<compile_context>
chip_gen: v5e
topology: v5e:2x2
jax: 0.10.0
libtpu: 0.0.40
codegen_flags: <defaults>
</compile_context>

<pallas_src>
import jax
import jax.numpy as jnp
from jax.experimental import pallas as pl
from jax.experimental.pallas import tpu as pltpu


def _round_up(x, m):
    return ((x + m - 1) // m) * m


def _make_desc_kernel(x_ref, w1_ref, b1_ref, w5_ref, b5_ref, w6_ref, b6_ref,
                      o_ref):
    # x_ref: (tile_m, K)             in compute dtype (bf16 by default)
    # w1_ref: (K, 2048)   b1_ref: (1, 2048) f32
    # w5_ref: (2048, 512) b5_ref: (1, 512)  f32
    # w6_ref: (512, 256)  b6_ref: (1, 256)  f32
    # o_ref:  (tile_m, 256)
    # MXU matmuls accumulate in f32; bias-add + ReLU stay f32 on the VPU.
    h = jnp.dot(x_ref[...].astype(w1_ref.dtype), w1_ref[...],
                preferred_element_type=jnp.float32)
    h = jnp.maximum(h + b1_ref[...], 0.0)

    h = jnp.dot(h.astype(w5_ref.dtype), w5_ref[...],
                preferred_element_type=jnp.float32)
    h = jnp.maximum(h + b5_ref[...], 0.0)

    h = jnp.dot(h.astype(w6_ref.dtype), w6_ref[...],
                preferred_element_type=jnp.float32)
    h = jnp.maximum(h + b6_ref[...], 0.0)

    o_ref[...] = h.astype(o_ref.dtype)


def make_desc_forward(inputs, w1, b1, w5, b5, w6, b6, *, tm=512,
                      compute_dtype=jnp.bfloat16, out_dtype=None):
    """Fused MakeDesc forward.

    inputs: [..., K]
    w1: [K, 2048]   b1: [2048]
    w5: [2048, 512] b5: [512]
    w6: [512, 256]  b6: [256]
    Weights are stored input-major (transposed from PyTorch's [out, in]).
    Returns [..., 256] in `out_dtype` (defaults to inputs.dtype).
    """
    *lead, K = inputs.shape
    H1 = w1.shape[1]
    H2 = w5.shape[1]
    N = w6.shape[1]
    if out_dtype is None:
        out_dtype = inputs.dtype

    M = 1
    for d in lead:
        M *= d

    # One-time casts to the MXU compute dtype; biases stay f32 so the epilogue
    # runs on the f32 accumulator. Output precision is controlled by out_dtype.
    x2d = inputs.reshape(M, K).astype(compute_dtype)
    w1c = w1.astype(compute_dtype)
    w5c = w5.astype(compute_dtype)
    w6c = w6.astype(compute_dtype)
    b1c = b1.astype(jnp.float32).reshape(1, H1)
    b5c = b5.astype(jnp.float32).reshape(1, H2)
    b6c = b6.astype(jnp.float32).reshape(1, N)

    # Row tile: multiple of 16 (valid for f32 sublane=8 and bf16 packing=16),
    # capped at tm. No input padding: the partial last tile is handled by the
    # pipeline and garbage rows never cross rows / never reach the output.
    tile_m = min(tm, _round_up(M, 16))
    # Guarantee >=2 grid steps when M is splittable so the "parallel" axis can
    # shard across both TensorCores on v7x (no-op on single-TC v5e/v6e).
    if pl.cdiv(M, tile_m) == 1 and M > 16:
        tile_m = min(tile_m, _round_up(pl.cdiv(M, 2), 16))
    grid = (pl.cdiv(M, tile_m),)

    flops = 2 * M * (K * H1 + H1 * H2 + H2 * N)
    bytes_accessed = (
        x2d.size * x2d.dtype.itemsize
        + (w1c.size + w5c.size + w6c.size) * jnp.dtype(compute_dtype).itemsize
        + (H1 + H2 + N) * 4
        + M * N * jnp.dtype(out_dtype).itemsize)
    cost = pl.CostEstimate(flops=flops, transcendentals=0,
                           bytes_accessed=bytes_accessed)

    def build_and_run(single_buffer_weights):
        # Weights/biases have constant index_maps -> a second pipeline buffer
        # is pure VMEM waste; request single buffering when supported.
        wkw = ({"pipeline_mode": pl.Buffered(1)}
               if single_buffer_weights else {})
        in_specs = [
            pl.BlockSpec((tile_m, K), lambda i: (i, 0)),        # x row tile
            pl.BlockSpec((K, H1), lambda i: (0, 0), **wkw),     # W1 (resident)
            pl.BlockSpec((1, H1), lambda i: (0, 0), **wkw),     # b1
            pl.BlockSpec((H1, H2), lambda i: (0, 0), **wkw),    # W5 (resident)
            pl.BlockSpec((1, H2), lambda i: (0, 0), **wkw),     # b5
            pl.BlockSpec((H2, N), lambda i: (0, 0), **wkw),     # W6 (resident)
            pl.BlockSpec((1, N), lambda i: (0, 0), **wkw),      # b6
        ]
        return pl.pallas_call(
            _make_desc_kernel,
            out_shape=jax.ShapeDtypeStruct((M, N), out_dtype),
            grid_spec=pl.GridSpec(
                grid=grid,
                in_specs=in_specs,
                out_specs=pl.BlockSpec((tile_m, N), lambda i: (i, 0)),
            ),
            compiler_params=pltpu.CompilerParams(
                dimension_semantics=("parallel",),
                vmem_limit_bytes=32 * 1024 * 1024,
            ),
            cost_estimate=cost,
        )(x2d, w1c, b1c, w5c, b5c, w6c, b6c)

    try:
        out = build_and_run(single_buffer_weights=True)
    except Exception:
        # pl.Buffered(1) not accepted by this jax/Mosaic version — fall back
        # to default double-buffered weight specs (identical results).
        out = build_and_run(single_buffer_weights=False)

    return out.reshape(*lead, N)


if __name__ == "__main__":
    key = jax.random.PRNGKey(0)
    k_x, k1w, k1b, k5w, k5b, k6w, k6b = jax.random.split(key, 7)

    B, S = 2, 8           # batch, sequence of descriptors
    inp_channel = 32      # MakeDesc inp_channel
    H1, H2, N = 2048, 512, 256

    def linear_init(kw, kb, fan_in, fan_out):
        bound = 1.0 / (fan_in ** 0.5)
        # Stored as [in, out] (transposed from PyTorch's [out, in]).
        w = jax.random.uniform(kw, (fan_in, fan_out), jnp.float32, -bound, bound)
        b = jax.random.uniform(kb, (fan_out,), jnp.float32, -bound, bound)
        return w, b

    w1, b1 = linear_init(k1w, k1b, inp_channel, H1)
    w5, b5 = linear_init(k5w, k5b, H1, H2)
    w6, b6 = linear_init(k6w, k6b, H2, N)

    x = jax.random.normal(k_x, (B, S, inp_channel), jnp.float32)

    # Plain-JAX f32 reference of the PyTorch forward.
    h = jax.nn.relu(x @ w1 + b1)
    h = jax.nn.relu(h @ w5 + b5)
    y_ref = jax.nn.relu(h @ w6 + b6)

    # 1) Exact-semantics check: f32 compute path, tight tolerance.
    y_f32 = make_desc_forward(x, w1, b1, w5, b5, w6, b6,
                              compute_dtype=jnp.float32)
    y_f32 = jax.block_until_ready(y_f32)
    assert y_f32.shape == (B, S, N), y_f32.shape
    assert jnp.allclose(y_f32, y_ref, atol=1e-3, rtol=1e-3), float(
        jnp.max(jnp.abs(y_f32 - y_ref)))

    # 2) Performance path (default): bf16 x/weights on the MXU, f32
    #    accumulation + f32 bias/ReLU, f32 output. Looser tolerance covers
    #    bf16 rounding of inputs/weights only.
    y = make_desc_forward(x, w1, b1, w5, b5, w6, b6)
    y = jax.block_until_ready(y)
    assert y.shape == (B, S, N), y.shape
    assert jnp.allclose(y, y_ref, atol=3e-2, rtol=3e-2), float(
        jnp.max(jnp.abs(y - y_ref)))

    print("KERNEL_OK")
</pallas_src>

<mosaic_0001>
module attributes {stable_mosaic.version = 11 : i64} {
  func.func @_make_desc_kernel(%arg0: i32, %arg1: memref<16x32xf32, #tpu.memory_space<vmem>>, %arg2: memref<32x2048xf32, #tpu.memory_space<vmem>>, %arg3: memref<1x2048xf32, #tpu.memory_space<vmem>>, %arg4: memref<2048x512xf32, #tpu.memory_space<vmem>>, %arg5: memref<1x512xf32, #tpu.memory_space<vmem>>, %arg6: memref<512x256xf32, #tpu.memory_space<vmem>>, %arg7: memref<1x256xf32, #tpu.memory_space<vmem>>, %arg8: memref<16x256xf32, #tpu.memory_space<vmem>>) attributes {dimension_semantics = [#tpu.dimension_semantics<parallel>], iteration_bounds = array<i64: 1>, scalar_prefetch = 0 : i64, scratch_operands = 0 : i64, tpu.core_type = #tpu.core_type<tc>, window_params = [{transform_indices = @transform_0, window_bounds = array<i64: 16, 32>}, {pipeline_mode = #tpu.pipeline_mode<synchronous>, transform_indices = @transform_1, window_bounds = array<i64: 32, 2048>}, {pipeline_mode = #tpu.pipeline_mode<synchronous>, transform_indices = @transform_2, window_bounds = array<i64: 1, 2048>}, {pipeline_mode = #tpu.pipeline_mode<synchronous>, transform_indices = @transform_3, window_bounds = array<i64: 2048, 512>}, {pipeline_mode = #tpu.pipeline_mode<synchronous>, transform_indices = @transform_4, window_bounds = array<i64: 1, 512>}, {pipeline_mode = #tpu.pipeline_mode<synchronous>, transform_indices = @transform_5, window_bounds = array<i64: 512, 256>}, {pipeline_mode = #tpu.pipeline_mode<synchronous>, transform_indices = @transform_6, window_bounds = array<i64: 1, 256>}, {transform_indices = @transform_7, window_bounds = array<i64: 16, 256>}]} {
    %c0 = arith.constant 0 : index
    %c0_0 = arith.constant 0 : index
    %0 = vector.load %arg1[%c0, %c0_0] : memref<16x32xf32, #tpu.memory_space<vmem>>, vector<16x32xf32>
    %c0_1 = arith.constant 0 : index
    %c0_2 = arith.constant 0 : index
    %1 = vector.load %arg2[%c0_1, %c0_2] : memref<32x2048xf32, #tpu.memory_space<vmem>>, vector<32x2048xf32>
    %cst = arith.constant dense<0.000000e+00> : vector<16x2048xf32>
    %2 = tpu.matmul %0, %1, %cst {dimension_numbers = #tpu.dot_dimension_numbers<[1], [0], [0], [1], [0, 0, 1, 1], [], []>} : vector<16x32xf32>, vector<32x2048xf32>, vector<16x2048xf32> -> vector<16x2048xf32>
    %c0_3 = arith.constant 0 : index
    %c0_4 = arith.constant 0 : index
    %3 = vector.load %arg3[%c0_3, %c0_4] : memref<1x2048xf32, #tpu.memory_space<vmem>>, vector<1x2048xf32>
    %4 = vector.broadcast %3 : vector<1x2048xf32> to vector<16x2048xf32>
    %5 = arith.addf %2, %4 : vector<16x2048xf32>
    %cst_5 = arith.constant 0.000000e+00 : f32
    %6 = vector.broadcast %cst_5 : f32 to vector<16x2048xf32>
    %7 = arith.maximumf %5, %6 : vector<16x2048xf32>
    %c0_6 = arith.constant 0 : index
    %c0_7 = arith.constant 0 : index
    %8 = vector.load %arg4[%c0_6, %c0_7] : memref<2048x512xf32, #tpu.memory_space<vmem>>, vector<2048x512xf32>
    %cst_8 = arith.constant dense<0.000000e+00> : vector<16x512xf32>
    %9 = tpu.matmul %7, %8, %cst_8 {dimension_numbers = #tpu.dot_dimension_numbers<[1], [0], [0], [1], [0, 0, 1, 1], [], []>} : vector<16x2048xf32>, vector<2048x512xf32>, vector<16x512xf32> -> vector<16x512xf32>
    %c0_9 = arith.constant 0 : index
    %c0_10 = arith.constant 0 : index
    %10 = vector.load %arg5[%c0_9, %c0_10] : memref<1x512xf32, #tpu.memory_space<vmem>>, vector<1x512xf32>
    %11 = vector.broadcast %10 : vector<1x512xf32> to vector<16x512xf32>
    %12 = arith.addf %9, %11 : vector<16x512xf32>
    %cst_11 = arith.constant 0.000000e+00 : f32
    %13 = vector.broadcast %cst_11 : f32 to vector<16x512xf32>
    %14 = arith.maximumf %12, %13 : vector<16x512xf32>
    %c0_12 = arith.constant 0 : index
    %c0_13 = arith.constant 0 : index
    %15 = vector.load %arg6[%c0_12, %c0_13] : memref<512x256xf32, #tpu.memory_space<vmem>>, vector<512x256xf32>
    %cst_14 = arith.constant dense<0.000000e+00> : vector<16x256xf32>
    %16 = tpu.matmul %14, %15, %cst_14 {dimension_numbers = #tpu.dot_dimension_numbers<[1], [0], [0], [1], [0, 0, 1, 1], [], []>} : vector<16x512xf32>, vector<512x256xf32>, vector<16x256xf32> -> vector<16x256xf32>
    %c0_15 = arith.constant 0 : index
    %c0_16 = arith.constant 0 : index
    %17 = vector.load %arg7[%c0_15, %c0_16] : memref<1x256xf32, #tpu.memory_space<vmem>>, vector<1x256xf32>
    %18 = vector.broadcast %17 : vector<1x256xf32> to vector<16x256xf32>
    %19 = arith.addf %16, %18 : vector<16x256xf32>
    %cst_17 = arith.constant 0.000000e+00 : f32
    %20 = vector.broadcast %cst_17 : f32 to vector<16x256xf32>
    %21 = arith.maximumf %19, %20 : vector<16x256xf32>
    %c0_18 = arith.constant 0 : index
    %c0_19 = arith.constant 0 : index
    %22 = vector.load %arg8[%c0_18, %c0_19] : memref<16x256xf32, #tpu.memory_space<vmem>>, vector<16x256xf32>
    tpu.vector_store %arg8[%c0_18, %c0_19], %21 {strides = array<i32>} : memref<16x256xf32, #tpu.memory_space<vmem>>, vector<16x256xf32>,
    return
  }
  func.func @transform_0(%arg0: i32) -> (i32, i32) {
    %c0_i32 = arith.constant 0 : i32
    %c0_i32_0 = arith.constant 0 : i32
    return %arg0, %c0_i32 : i32, i32
  }
  func.func @transform_1(%arg0: i32) -> (i32, i32) {
    %c0_i32 = arith.constant 0 : i32
    %c0_i32_0 = arith.constant 0 : i32
    %c0_i32_1 = arith.constant 0 : i32
    return %c0_i32, %c0_i32_0 : i32, i32
  }
  func.func @transform_2(%arg0: i32) -> (i32, i32) {
    %c0_i32 = arith.constant 0 : i32
    %c0_i32_0 = arith.constant 0 : i32
    %c0_i32_1 = arith.constant 0 : i32
    return %c0_i32, %c0_i32_0 : i32, i32
  }
  func.func @transform_3(%arg0: i32) -> (i32, i32) {
    %c0_i32 = arith.constant 0 : i32
    %c0_i32_0 = arith.constant 0 : i32
    %c0_i32_1 = arith.constant 0 : i32
    return %c0_i32, %c0_i32_0 : i32, i32
  }
  func.func @transform_4(%arg0: i32) -> (i32, i32) {
    %c0_i32 = arith.constant 0 : i32
    %c0_i32_0 = arith.constant 0 : i32
    %c0_i32_1 = arith.constant 0 : i32
    return %c0_i32, %c0_i32_0 : i32, i32
  }
  func.func @transform_5(%arg0: i32) -> (i32, i32) {
    %c0_i32 = arith.constant 0 : i32
    %c0_i32_0 = arith.constant 0 : i32
    %c0_i32_1 = arith.constant 0 : i32
    return %c0_i32, %c0_i32_0 : i32, i32
  }
  func.func @transform_6(%arg0: i32) -> (i32, i32) {
    %c0_i32 = arith.constant 0 : i32
    %c0_i32_0 = arith.constant 0 : i32
    %c0_i32_1 = arith.constant 0 : i32
    return %c0_i32, %c0_i32_0 : i32, i32
  }
  func.func @transform_7(%arg0: i32) -> (i32, i32) {
    %c0_i32 = arith.constant 0 : i32
    %c0_i32_0 = arith.constant 0 : i32
    return %arg0, %c0_i32 : i32, i32
  }
}

module attributes {stable_mosaic.version = 11 : i64} {
  func.func @_make_desc_kernel(%arg0: i32, %arg1: memref<16x32xf32, #tpu.memory_space<vmem>>, %arg2: memref<32x2048xf32, #tpu.memory_space<vmem>>, %arg3: memref<1x2048xf32, #tpu.memory_space<vmem>>, %arg4: memref<2048x512xf32, #tpu.memory_space<vmem>>, %arg5: memref<1x512xf32, #tpu.memory_space<vmem>>, %arg6: memref<512x256xf32, #tpu.memory_space<vmem>>, %arg7: memref<1x256xf32, #tpu.memory_space<vmem>>, %arg8: memref<16x256xf32, #tpu.memory_space<vmem>>) attributes {dimension_semantics = [#tpu.dimension_semantics<parallel>], iteration_bounds = array<i64: 1>, scalar_prefetch = 0 : i64, scratch_operands = 0 : i64, tpu.core_type = #tpu.core_type<tc>, window_params = [{transform_indices = @transform_0, window_bounds = array<i64: 16, 32>}, {pipeline_mode = #tpu.pipeline_mode<synchronous>, transform_indices = @transform_1, window_bounds = array<i64: 32, 2048>}, {pipeline_mode = #tpu.pipeline_mode<synchronous>, transform_indices = @transform_2, window_bounds = array<i64: 1, 2048>}, {pipeline_mode = #tpu.pipeline_mode<synchronous>, transform_indices = @transform_3, window_bounds = array<i64: 2048, 512>}, {pipeline_mode = #tpu.pipeline_mode<synchronous>, transform_indices = @transform_4, window_bounds = array<i64: 1, 512>}, {pipeline_mode = #tpu.pipeline_mode<synchronous>, transform_indices = @transform_5, window_bounds = array<i64: 512, 256>}, {pipeline_mode = #tpu.pipeline_mode<synchronous>, transform_indices = @transform_6, window_bounds = array<i64: 1, 256>}, {transform_indices = @transform_7, window_bounds = array<i64: 16, 256>}]} {
    %c0 = arith.constant 0 : index
    %c0_0 = arith.constant 0 : index
    %0 = vector.load %arg1[%c0, %c0_0] : memref<16x32xf32, #tpu.memory_space<vmem>>, vector<16x32xf32>
    %c0_1 = arith.constant 0 : index
    %c0_2 = arith.constant 0 : index
    %1 = vector.load %arg2[%c0_1, %c0_2] : memref<32x2048xf32, #tpu.memory_space<vmem>>, vector<32x2048xf32>
    %cst = arith.constant dense<0.000000e+00> : vector<16x2048xf32>
    %2 = tpu.matmul %0, %1, %cst {dimension_numbers = #tpu.dot_dimension_numbers<[1], [0], [0], [1], [0, 0, 1, 1], [], []>} : vector<16x32xf32>, vector<32x2048xf32>, vector<16x2048xf32> -> vector<16x2048xf32>
    %c0_3 = arith.constant 0 : index
    %c0_4 = arith.constant 0 : index
    %3 = vector.load %arg3[%c0_3, %c0_4] : memref<1x2048xf32, #tpu.memory_space<vmem>>, vector<1x2048xf32>
    %4 = vector.broadcast %3 : vector<1x2048xf32> to vector<16x2048xf32>
    %5 = arith.addf %2, %4 : vector<16x2048xf32>
    %cst_5 = arith.constant 0.000000e+00 : f32
    %6 = vector.broadcast %cst_5 : f32 to vector<16x2048xf32>
    %7 = arith.maximumf %5, %6 : vector<16x2048xf32>
    %c0_6 = arith.constant 0 : index
    %c0_7 = arith.constant 0 : index
    %8 = vector.load %arg4[%c0_6, %c0_7] : memref<2048x512xf32, #tpu.memory_space<vmem>>, vector<2048x512xf32>
    %cst_8 = arith.constant dense<0.000000e+00> : vector<16x512xf32>
    %9 = tpu.matmul %7, %8, %cst_8 {dimension_numbers = #tpu.dot_dimension_numbers<[1], [0], [0], [1], [0, 0, 1, 1], [], []>} : vector<16x2048xf32>, vector<2048x512xf32>, vector<16x512xf32> -> vector<16x512xf32>
    %c0_9 = arith.constant 0 : index
    %c0_10 = arith.constant 0 : index
    %10 = vector.load %arg5[%c0_9, %c0_10] : memref<1x512xf32, #tpu.memory_space<vmem>>, vector<1x512xf32>
    %11 = vector.broadcast %10 : vector<1x512xf32> to vector<16x512xf32>
    %12 = arith.addf %9, %11 : vector<16x512xf32>
    %cst_11 = arith.constant 0.000000e+00 : f32
    %13 = vector.broadcast %cst_11 : f32 to vector<16x512xf32>
    %14 = arith.maximumf %12, %13 : vector<16x512xf32>
    %c0_12 = arith.constant 0 : index
    %c0_13 = arith.constant 0 : index
    %15 = vector.load %arg6[%c0_12, %c0_13] : memref<512x256xf32, #tpu.memory_space<vmem>>, vector<512x256xf32>
    %cst_14 = arith.constant dense<0.000000e+00> : vector<16x256xf32>
    %16 = tpu.matmul %14, %15, %cst_14 {dimension_numbers = #tpu.dot_dimension_numbers<[1], [0], [0], [1], [0, 0, 1, 1], [], []>} : vector<16x512xf32>, vector<512x256xf32>, vector<16x256xf32> -> vector<16x256xf32>
    %c0_15 = arith.constant 0 : index
    %c0_16 = arith.constant 0 : index
    %17 = vector.load %arg7[%c0_15, %c0_16] : memref<1x256xf32, #tpu.memory_space<vmem>>, vector<1x256xf32>
    %18 = vector.broadcast %17 : vector<1x256xf32> to vector<16x256xf32>
    %19 = arith.addf %16, %18 : vector<16x256xf32>
    %cst_17 = arith.constant 0.000000e+00 : f32
    %20 = vector.broadcast %cst_17 : f32 to vector<16x256xf32>
    %21 = arith.maximumf %19, %20 : vector<16x256xf32>
    %c0_18 = arith.constant 0 : index
    %c0_19 = arith.constant 0 : index
    %22 = vector.load %arg8[%c0_18, %c0_19] : memref<16x256xf32, #tpu.memory_space<vmem>>, vector<16x256xf32>
    tpu.vector_store %arg8[%c0_18, %c0_19], %21 {strides = array<i32>} : memref<16x256xf32, #tpu.memory_space<vmem>>, vector<16x256xf32>,
    return
  }
  func.func @transform_0(%arg0: i32) -> (i32, i32) {
    %c0_i32 = arith.constant 0 : i32
    %c0_i32_0 = arith.constant 0 : i32
    return %arg0, %c0_i32 : i32, i32
  }
  func.func @transform_1(%arg0: i32) -> (i32, i32) {
    %c0_i32 = arith.constant 0 : i32
    %c0_i32_0 = arith.constant 0 : i32
    %c0_i32_1 = arith.constant 0 : i32
    return %c0_i32, %c0_i32_0 : i32, i32
  }
  func.func @transform_2(%arg0: i32) -> (i32, i32) {
    %c0_i32 = arith.constant 0 : i32
    %c0_i32_0 = arith.constant 0 : i32
    %c0_i32_1 = arith.constant 0 : i32
    return %c0_i32, %c0_i32_0 : i32, i32
  }
  func.func @transform_3(%arg0: i32) -> (i32, i32) {
    %c0_i32 = arith.constant 0 : i32
    %c0_i32_0 = arith.constant 0 : i32
    %c0_i32_1 = arith.constant 0 : i32
    return %c0_i32, %c0_i32_0 : i32, i32
  }
  func.func @transform_4(%arg0: i32) -> (i32, i32) {
    %c0_i32 = arith.constant 0 : i32
    %c0_i32_0 = arith.constant 0 : i32
    %c0_i32_1 = arith.constant 0 : i32
    return %c0_i32, %c0_i32_0 : i32, i32
  }
  func.func @transform_5(%arg0: i32) -> (i32, i32) {
    %c0_i32 = arith.constant 0 : i32
    %c0_i32_0 = arith.constant 0 : i32
    %c0_i32_1 = arith.constant 0 : i32
    return %c0_i32, %c0_i32_0 : i32, i32
  }
  func.func @transform_6(%arg0: i32) -> (i32, i32) {
    %c0_i32 = arith.constant 0 : i32
    %c0_i32_0 = arith.constant 0 : i32
    %c0_i32_1 = arith.constant 0 : i32
    return %c0_i32, %c0_i32_0 : i32, i32
  }
  func.func @transform_7(%arg0: i32) -> (i32, i32) {
    %c0_i32 = arith.constant 0 : i32
    %c0_i32_0 = arith.constant 0 : i32
    return %arg0, %c0_i32 : i32, i32
  }
}

</mosaic_0001>

<llo_original>
// kernel: tpu_custom_call.1
$region0: #{tpu_custom_call.1}
  #allocation0 [shape = 'u32[]', space=smem, size = 0x4, offset = 0x4, fixed_abs, tag = 'smem constant byte address 0x4 - core index']
  #allocation1 [shape = 'u32[72,128]{1,0:T(1,128)}', space=vmem, size = 0x9000, scoped, tag = 'internal scratch']
  %s0 = inlined_call_operand.hbm [shape: f32[16,32], index: 0, kind: input, shape index: {}]
  %s1 = inlined_call_operand.hbm [shape: f32[32,2048], index: 1, kind: input, shape index: {}]
  %s2 = inlined_call_operand.hbm [shape: f32[1,2048], index: 2, kind: input, shape index: {}]
  %s3 = inlined_call_operand.hbm [shape: f32[2048,512], index: 3, kind: input, shape index: {}]
  %s4 = inlined_call_operand.hbm [shape: f32[1,512], index: 4, kind: input, shape index: {}]
  %s5 = inlined_call_operand.hbm [shape: f32[512,256], index: 5, kind: input, shape index: {}]
  %s6 = inlined_call_operand.hbm [shape: f32[1,256], index: 6, kind: input, shape index: {}]
  %s7 = inlined_call_operand.hbm [shape: f32[16,256], index: 7, kind: output, shape index: {}]
  %s8 = sld [smem:[#allocation0]]
  $region66: #{tpu_custom_call.1} parent=0
    _
  %s10 = ssub.s32 1, %s8
  %s11 = scalar_select 0, %s10, %s8
  $region1: #{tpu_custom_call.1} parent=0
    #allocation2 [shape = 'u8[8192]{0}', space=vmem, size = 0x2000, scoped, tag = 'input window, operand 0, single buffered']
    #allocation3 [shape = 's32[1]{0}', space=sflag, size = 0x4, scoped, tag = 'scoped memory for tpu_custom_call.1']
    #allocation4 [shape = 's32[1]{0}', space=sflag, size = 0x4, scoped, tag = 'scoped memory for tpu_custom_call.1']
    #allocation5 [shape = 'u8[262144]{0}', space=vmem, size = 0x40000, scoped, tag = 'input window, operand 1, single buffered']
    #allocation6 [shape = 's32[1]{0}', space=sflag, size = 0x4, scoped, tag = 'scoped memory for tpu_custom_call.1']
    #allocation7 [shape = 'u8[8192]{0}', space=vmem, size = 0x2000, scoped, tag = 'input window, operand 2, single buffered']
    #allocation8 [shape = 'u8[4194304]{0}', space=vmem, size = 0x400000, scoped, tag = 'input window, operand 3, single buffered']
    #allocation9 [shape = 's32[1]{0}', space=sflag, size = 0x4, scoped, tag = 'scoped memory for tpu_custom_call.1']
    #allocation10 [shape = 'u8[2048]{0}', space=vmem, size = 0x800, scoped, tag = 'input window, operand 4, single buffered']
    #allocation11 [shape = 'u8[524288]{0}', space=vmem, size = 0x80000, scoped, tag = 'input window, operand 5, single buffered']
    #allocation12 [shape = 's32[1]{0}', space=sflag, size = 0x4, scoped, tag = 'scoped memory for tpu_custom_call.1']
    #allocation13 [shape = 'u8[1024]{0}', space=vmem, size = 0x400, scoped, tag = 'input window, operand 6, single buffered']
    #allocation14 [shape = 'u8[16384]{0}', space=vmem, size = 0x4000, scoped, tag = 'output window, operand 0, single buffered']
    %12 = vsyncpa [#allocation3], 0
    %13 = vsyncpa [#allocation6], 0
    %14 = vsyncpa [#allocation9], 0
    %15 = vsyncpa [#allocation12], 0
    %16 = vsyncpa [#allocation4], 0
    // Predicated region
    $region2: #{tpu_custom_call.1} parent=1 // pred_check
      _
    $region3: #{tpu_custom_call.1} parent=1 // pred_check_branch
      %18 = sbr.rel (0) target = $region5
    $region4: #{tpu_custom_call.1} parent=1 // pred_region
      %20 = vsyncadd [#allocation3], 0
      %s21 = sshll.u32 %s0, 4
      %s22 = int_to_ptr.hbm [resolvable:$true] %s21
      %s23 = sshll.u32 [#allocation2], 4
      %s24 = int_to_ptr.vmem [resolvable:$true] %s23
      %29 = dma.hbm_to_vmem [thread:$0]  %s22, 256, %s24, [#allocation3], 128, 128, 8
    $region5: #{tpu_custom_call.1} parent=1 // pred_fallthru
      _
    // Predicated region
    $region6: #{tpu_custom_call.1} parent=1 // pred_check
      _
    $region7: #{tpu_custom_call.1} parent=1 // pred_check_branch
      %31 = sbr.rel (0) target = $region9
    $region8: #{tpu_custom_call.1} parent=1 // pred_region
      %33 = vsyncadd [#allocation6], 0
      %s34 = sshll.u32 %s1, 4
      %s35 = int_to_ptr.hbm [resolvable:$true] %s34
      %s36 = sshll.u32 [#allocation5], 4
      %s37 = int_to_ptr.vmem [resolvable:$true] %s36
      %42 = dma.hbm_to_vmem [thread:$0]  %s35, 8192, %s37, [#allocation6], 2048, 2048, 128
    $region9: #{tpu_custom_call.1} parent=1 // pred_fallthru
      _
    // Predicated region
    $region10: #{tpu_custom_call.1} parent=1 // pred_check
      _
    $region11: #{tpu_custom_call.1} parent=1 // pred_check_branch
      %44 = sbr.rel (0) target = $region13
    $region12: #{tpu_custom_call.1} parent=1 // pred_region
      %46 = vsyncadd [#allocation6], 0
      %s48 = sshll.u32 %s2, 4
      %s49 = int_to_ptr.hbm [resolvable:$true] %s48
      %s50 = sshll.u32 [#allocation7], 4
      %s51 = int_to_ptr.vmem [resolvable:$true] %s50
      %53 = dma.hbm_to_vmem [thread:$0]  %s49, 256, %s51, [#allocation6]
    $region13: #{tpu_custom_call.1} parent=1 // pred_fallthru
      _
    // Predicated region
    $region14: #{tpu_custom_call.1} parent=1 // pred_check
      _
    $region15: #{tpu_custom_call.1} parent=1 // pred_check_branch
      %55 = sbr.rel (0) target = $region17
    $region16: #{tpu_custom_call.1} parent=1 // pred_region
      %57 = vsyncadd [#allocation9], 0
      %s58 = sshll.u32 %s3, 4
      %s59 = int_to_ptr.hbm [resolvable:$true] %s58
      %s60 = sshll.u32 [#allocation8], 4
      %s61 = int_to_ptr.vmem [resolvable:$true] %s60
      %66 = dma.hbm_to_vmem [thread:$0]  %s59, 131072, %s61, [#allocation9], 512, 512, 32
    $region17: #{tpu_custom_call.1} parent=1 // pred_fallthru
      _
    // Predicated region
    $region18: #{tpu_custom_call.1} parent=1 // pred_check
      _
    $region19: #{tpu_custom_call.1} parent=1 // pred_check_branch
      %68 = sbr.rel (0) target = $region21
    $region20: #{tpu_custom_call.1} parent=1 // pred_region
      %70 = vsyncadd [#allocation9], 0
      %s72 = sshll.u32 %s4, 4
      %s73 = int_to_ptr.hbm [resolvable:$true] %s72
      %s74 = sshll.u32 [#allocation10], 4
      %s75 = int_to_ptr.vmem [resolvable:$true] %s74
      %77 = dma.hbm_to_vmem [thread:$0]  %s73, 64, %s75, [#allocation9]
    $region21: #{tpu_custom_call.1} parent=1 // pred_fallthru
      _
    // Predicated region
    $region22: #{tpu_custom_call.1} parent=1 // pred_check
      _
    $region23: #{tpu_custom_call.1} parent=1 // pred_check_branch
      %79 = sbr.rel (0) target = $region25
    $region24: #{tpu_custom_call.1} parent=1 // pred_region
      %81 = vsyncadd [#allocation12], 0
      %s82 = sshll.u32 %s5, 4
      %s83 = int_to_ptr.hbm [resolvable:$true] %s82
      %s84 = sshll.u32 [#allocation11], 4
      %s85 = int_to_ptr.vmem [resolvable:$true] %s84
      %90 = dma.hbm_to_vmem [thread:$0]  %s83, 16384, %s85, [#allocation12], 256, 256, 16
    $region25: #{tpu_custom_call.1} parent=1 // pred_fallthru
      _
    // Predicated region
    $region26: #{tpu_custom_call.1} parent=1 // pred_check
      _
    $region27: #{tpu_custom_call.1} parent=1 // pred_check_branch
      %92 = sbr.rel (0) target = $region29
    $region28: #{tpu_custom_call.1} parent=1 // pred_region
      %94 = vsyncadd [#allocation12], 0
      %s96 = sshll.u32 %s6, 4
      %s97 = int_to_ptr.hbm [resolvable:$true] %s96
      %s98 = sshll.u32 [#allocation13], 4
      %s99 = int_to_ptr.vmem [resolvable:$true] %s98
      %101 = dma.hbm_to_vmem [thread:$0]  %s97, 32, %s99, [#allocation12]
    $region29: #{tpu_custom_call.1} parent=1 // pred_fallthru
      _
    // Predicated region
    $region30: #{tpu_custom_call.1} parent=1 // pred_check
      _
    $region31: #{tpu_custom_call.1} parent=1 // pred_check_branch
      %103 = sbr.rel (0) target = $region33
    $region32: #{tpu_custom_call.1} parent=1 // pred_region
      %105 = dma.done [#allocation3], 256
    $region33: #{tpu_custom_call.1} parent=1 // pred_fallthru
      _
    // Predicated region
    $region34: #{tpu_custom_call.1} parent=1 // pred_check
      _
    $region35: #{tpu_custom_call.1} parent=1 // pred_check_branch
      %107 = sbr.rel (0) target = $region37
    $region36: #{tpu_custom_call.1} parent=1 // pred_region
      %109 = dma.done [#allocation6], 8192
    $region37: #{tpu_custom_call.1} parent=1 // pred_fallthru
      _
    // Predicated region
    $region38: #{tpu_custom_call.1} parent=1 // pred_check
      _
    $region39: #{tpu_custom_call.1} parent=1 // pred_check_branch
      %111 = sbr.rel (0) target = $region41
    $region40: #{tpu_custom_call.1} parent=1 // pred_region
      %113 = dma.done [#allocation6], 256
    $region41: #{tpu_custom_call.1} parent=1 // pred_fallthru
      _
    // Predicated region
    $region42: #{tpu_custom_call.1} parent=1 // pred_check
      _
    $region43: #{tpu_custom_call.1} parent=1 // pred_check_branch
      %115 = sbr.rel (0) target = $region45
    $region44: #{tpu_custom_call.1} parent=1 // pred_region
      %117 = dma.done [#allocation9], 131072
    $region45: #{tpu_custom_call.1} parent=1 // pred_fallthru
      _
    // Predicated region
    $region46: #{tpu_custom_call.1} parent=1 // pred_check
      _
    $region47: #{tpu_custom_call.1} parent=1 // pred_check_branch
      %119 = sbr.rel (0) target = $region49
    $region48: #{tpu_custom_call.1} parent=1 // pred_region
      %121 = dma.done [#allocation9], 64
    $region49: #{tpu_custom_call.1} parent=1 // pred_fallthru
      _
    // Predicated region
    $region50: #{tpu_custom_call.1} parent=1 // pred_check
      _
    $region51: #{tpu_custom_call.1} parent=1 // pred_check_branch
      %123 = sbr.rel (0) target = $region53
    $region52: #{tpu_custom_call.1} parent=1 // pred_region
      %125 = dma.done [#allocation12], 16384
    $region53: #{tpu_custom_call.1} parent=1 // pred_fallthru
      _
    // Predicated region
    $region54: #{tpu_custom_call.1} parent=1 // pred_check
      _
    $region55: #{tpu_custom_call.1} parent=1 // pred_check_branch
      %127 = sbr.rel (0) target = $region57
    $region56: #{tpu_custom_call.1} parent=1 // pred_region
      %129 = dma.done [#allocation12], 32
    $region57: #{tpu_custom_call.1} parent=1 // pred_fallthru
      _
    %v130 = vld [vmem:[#allocation2] sm:$0xff]
    %v131 = vld [vmem:[#allocation2 + $0x8] sm:$0xff]
    %v132 = vld [vmem:[#allocation5] sm:$0xff]
    %v133 = vld [vmem:[#allocation5 + $0x8] sm:$0xff]
    %v134 = vld [vmem:[#allocation5 + $0x10] sm:$0xff]
    %v135 = vld [vmem:[#allocation5 + $0x18] sm:$0xff]
    %v136 = vld [vmem:[#allocation5 + $0x20] sm:$0xff]
    %v137 = vld [vmem:[#allocation5 + $0x28] sm:$0xff]
    %v138 = vld [vmem:[#allocation5 + $0x30] sm:$0xff]
    %v139 = vld [vmem:[#allocation5 + $0x38] sm:$0xff]
    %v140 = vld [vmem:[#allocation5 + $0x40] sm:$0xff]
    %v141 = vld [vmem:[#allocation5 + $0x48] sm:$0xff]
    %v142 = vld [vmem:[#allocation5 + $0x50] sm:$0xff]
    %v143 = vld [vmem:[#allocation5 + $0x58] sm:$0xff]
    %v144 = vld [vmem:[#allocation5 + $0x60] sm:$0xff]
    %v145 = vld [vmem:[#allocation5 + $0x68] sm:$0xff]
    %v146 = vld [vmem:[#allocation5 + $0x70] sm:$0xff]
    %v147 = vld [vmem:[#allocation5 + $0x78] sm:$0xff]
    %v148 = vld [vmem:[#allocation5 + $0x80] sm:$0xff]
    %v149 = vld [vmem:[#allocation5 + $0x88] sm:$0xff]
    %v150 = vld [vmem:[#allocation5 + $0x90] sm:$0xff]
    %v151 = vld [vmem:[#allocation5 + $0x98] sm:$0xff]
    %v152 = vld [vmem:[#allocation5 + $0xa0] sm:$0xff]
    %v153 = vld [vmem:[#allocation5 + $0xa8] sm:$0xff]
    %v154 = vld [vmem:[#allocation5 + $0xb0] sm:$0xff]
    %v155 = vld [vmem:[#allocation5 + $0xb8] sm:$0xff]
    %v156 = vld [vmem:[#allocation5 + $0xc0] sm:$0xff]
    %v157 = vld [vmem:[#allocation5 + $0xc8] sm:$0xff]
    %v158 = vld [vmem:[#allocation5 + $0xd0] sm:$0xff]
    %v159 = vld [vmem:[#allocation5 + $0xd8] sm:$0xff]
    %v160 = vld [vmem:[#allocation5 + $0xe0] sm:$0xff]
    %v161 = vld [vmem:[#allocation5 + $0xe8] sm:$0xff]
    %v162 = vld [vmem:[#allocation5 + $0xf0] sm:$0xff]
    %v163 = vld [vmem:[#allocation5 + $0xf8] sm:$0xff]
    %v164 = vld [vmem:[#allocation5 + $0x100] sm:$0xff]
    %v165 = vld [vmem:[#allocation5 + $0x108] sm:$0xff]
    %v166 = vld [vmem:[#allocation5 + $0x110] sm:$0xff]
    %v167 = vld [vmem:[#allocation5 + $0x118] sm:$0xff]
    %v168 = vld [vmem:[#allocation5 + $0x120] sm:$0xff]
    %v169 = vld [vmem:[#allocation5 + $0x128] sm:$0xff]
    %v170 = vld [vmem:[#allocation5 + $0x130] sm:$0xff]
    %v171 = vld [vmem:[#allocation5 + $0x138] sm:$0xff]
    %v172 = vld [vmem:[#allocation5 + $0x140] sm:$0xff]
    %v173 = vld [vmem:[#allocation5 + $0x148] sm:$0xff]
    %v174 = vld [vmem:[#allocation5 + $0x150] sm:$0xff]
    %v175 = vld [vmem:[#allocation5 + $0x158] sm:$0xff]
    %v176 = vld [vmem:[#allocation5 + $0x160] sm:$0xff]
    %v177 = vld [vmem:[#allocation5 + $0x168] sm:$0xff]
    %v178 = vld [vmem:[#allocation5 + $0x170] sm:$0xff]
    %v179 = vld [vmem:[#allocation5 + $0x178] sm:$0xff]
    %v180 = vld [vmem:[#allocation5 + $0x180] sm:$0xff]
    %v181 = vld [vmem:[#allocation5 + $0x188] sm:$0xff]
    %v182 = vld [vmem:[#allocation5 + $0x190] sm:$0xff]
    %v183 = vld [vmem:[#allocation5 + $0x198] sm:$0xff]
    %v184 = vld [vmem:[#allocation5 + $0x1a0] sm:$0xff]
    %v185 = vld [vmem:[#allocation5 + $0x1a8] sm:$0xff]
    %v186 = vld [vmem:[#allocation5 + $0x1b0] sm:$0xff]
    %v187 = vld [vmem:[#allocation5 + $0x1b8] sm:$0xff]
    %v188 = vld [vmem:[#allocation5 + $0x1c0] sm:$0xff]
    %v189 = vld [vmem:[#allocation5 + $0x1c8] sm:$0xff]
    %v190 = vld [vmem:[#allocation5 + $0x1d0] sm:$0xff]
    %v191 = vld [vmem:[#allocation5 + $0x1d8] sm:$0xff]
    %v192 = vld [vmem:[#allocation5 + $0x1e0] sm:$0xff]
    %v193 = vld [vmem:[#allocation5 + $0x1e8] sm:$0xff]
    %v194 = vld [vmem:[#allocation5 + $0x1f0] sm:$0xff]
    %v195 = vld [vmem:[#allocation5 + $0x1f8] sm:$0xff]
    %v196 = vld [vmem:[#allocation7] sm:$0xff]
    %v197 = vld [vmem:[#allocation7 + $0x8] sm:$0xff]
    %v200 = vperm.slane %v196, 0
    %v201 = vperm.slane %v196, 1
    %v202 = vperm.slane %v196, 2
    %v203 = vperm.slane %v196, 3
    %v204 = vperm.slane %v196, 4
    %v205 = vperm.slane %v196, 5
    %v206 = vperm.slane %v196, 6
    %v207 = vperm.slane %v196, 7
    %v208 = vperm.slane %v197, 0
    %v209 = vperm.slane %v197, 1
    %v210 = vperm.slane %v197, 2
    %v211 = vperm.slane %v197, 3
    %v212 = vperm.slane %v197, 4
    %v213 = vperm.slane %v197, 5
    %v214 = vperm.slane %v197, 6
    %v215 = vperm.slane %v197, 7
    %vm232 = vcmask 261120
    %v234 = vsel %vm232, %v130, 0
    %v237 = vsel %vm232, %v131, 0
    %239 = vmatpush.msra.mxu0 0.0
    %240 = vmatpush.msra.mxu0 0.0
    %241 = vmatpush.msra.mxu0 0.0
    %242 = vmatpush.msra.mxu0 0.0
    %243 = vmatpush.msra.mxu0 0.0
    %244 = vmatpush.msra.mxu0 0.0
    %245 = vmatpush.msra.mxu0 0.0
    %246 = vmatpush.msra.mxu0 0.0
    %247 = vmatpush.msra.mxu0 0.0
    %248 = vmatpush.msra.mxu0 0.0
    %249 = vmatpush.msra.mxu0 0.0
    %250 = vmatpush.msra.mxu0 0.0
    %251 = vmatpush.msra.mxu0 %v180
    %252 = vmatpush.msra.mxu0 %v164
    %253 = vmatpush.msra.mxu0 %v148
    %254 = vmatpush.msra.mxu0 %v132
    %255 = vmatmul.f32.gmra.mxu0 %v234
    %v256 = vpop.f32.mrf.mxu0
    %v257 = vadd.f32 %v200, %v256
    %258 = vmatmul.f32.gmra.mxu0 %v237
    %v259 = vpop.f32.mrf.mxu0
    %v260 = vadd.f32 %v200, %v259
    %261 = vdwg.mxu0
    %262 = vmatpush.msra.mxu0 0.0
    %263 = vmatpush.msra.mxu0 0.0
    %264 = vmatpush.msra.mxu0 0.0
    %265 = vmatpush.msra.mxu0 0.0
    %266 = vmatpush.msra.mxu0 0.0
    %267 = vmatpush.msra.mxu0 0.0
    %268 = vmatpush.msra.mxu0 0.0
    %269 = vmatpush.msra.mxu0 0.0
    %270 = vmatpush.msra.mxu0 0.0
    %271 = vmatpush.msra.mxu0 0.0
    %272 = vmatpush.msra.mxu0 0.0
    %273 = vmatpush.msra.mxu0 0.0
    %274 = vmatpush.msra.mxu0 %v181
    %275 = vmatpush.msra.mxu0 %v165
    %276 = vmatpush.msra.mxu0 %v149
    %277 = vmatpush.msra.mxu0 %v133
    %278 = vmatmul.f32.gmra.mxu0 %v234
    %v279 = vpop.f32.mrf.mxu0
    %v280 = vadd.f32 %v201, %v279
    %281 = vmatmul.f32.gmra.mxu0 %v237
    %v282 = vpop.f32.mrf.mxu0
    %v283 = vadd.f32 %v201, %v282
    %284 = vdwg.mxu0
    %285 = vmatpush.msra.mxu0 0.0
    %286 = vmatpush.msra.mxu0 0.0
    %287 = vmatpush.msra.mxu0 0.0
    %288 = vmatpush.msra.mxu0 0.0
    %289 = vmatpush.msra.mxu0 0.0
    %290 = vmatpush.msra.mxu0 0.0
    %291 = vmatpush.msra.mxu0 0.0
    %292 = vmatpush.msra.mxu0 0.0
    %293 = vmatpush.msra.mxu0 0.0
    %294 = vmatpush.msra.mxu0 0.0
    %295 = vmatpush.msra.mxu0 0.0
    %296 = vmatpush.msra.mxu0 0.0
    %297 = vmatpush.msra.mxu0 %v182
    %298 = vmatpush.msra.mxu0 %v166
    %299 = vmatpush.msra.mxu0 %v150
    %300 = vmatpush.msra.mxu0 %v134
    %301 = vmatmul.f32.gmra.mxu0 %v234
    %v302 = vpop.f32.mrf.mxu0
    %v303 = vadd.f32 %v202, %v302
    %304 = vmatmul.f32.gmra.mxu0 %v237
    %v305 = vpop.f32.mrf.mxu0
    %v306 = vadd.f32 %v202, %v305
    %307 = vdwg.mxu0
    %308 = vmatpush.msra.mxu0 0.0
    %309 = vmatpush.msra.mxu0 0.0
    %310 = vmatpush.msra.mxu0 0.0
    %311 = vmatpush.msra.mxu0 0.0
    %312 = vmatpush.msra.mxu0 0.0
    %313 = vmatpush.msra.mxu0 0.0
    %314 = vmatpush.msra.mxu0 0.0
    %315 = vmatpush.msra.mxu0 0.0
    %316 = vmatpush.msra.mxu0 0.0
    %317 = vmatpush.msra.mxu0 0.0
    %318 = vmatpush.msra.mxu0 0.0
    %319 = vmatpush.msra.mxu0 0.0
    %320 = vmatpush.msra.mxu0 %v183
    %321 = vmatpush.msra.mxu0 %v167
    %322 = vmatpush.msra.mxu0 %v151
    %323 = vmatpush.msra.mxu0 %v135
    %324 = vmatmul.f32.gmra.mxu0 %v234
    %v325 = vpop.f32.mrf.mxu0
    %v326 = vadd.f32 %v203, %v325
    %327 = vmatmul.f32.gmra.mxu0 %v237
    %v328 = vpop.f32.mrf.mxu0
    %v329 = vadd.f32 %v203, %v328
    %330 = vdwg.mxu0
    %331 = vmatpush.msra.mxu0 0.0
    %332 = vmatpush.msra.mxu0 0.0
    %333 = vmatpush.msra.mxu0 0.0
    %334 = vmatpush.msra.mxu0 0.0
    %335 = vmatpush.msra.mxu0 0.0
    %336 = vmatpush.msra.mxu0 0.0
    %337 = vmatpush.msra.mxu0 0.0
    %338 = vmatpush.msra.mxu0 0.0
    %339 = vmatpush.msra.mxu0 0.0
    %340 = vmatpush.msra.mxu0 0.0
    %341 = vmatpush.msra.mxu0 0.0
    %342 = vmatpush.msra.mxu0 0.0
    %343 = vmatpush.msra.mxu0 %v184
    %344 = vmatpush.msra.mxu0 %v168
    %345 = vmatpush.msra.mxu0 %v152
    %346 = vmatpush.msra.mxu0 %v136
    %347 = vmatmul.f32.gmra.mxu0 %v234
    %v348 = vpop.f32.mrf.mxu0
    %v349 = vadd.f32 %v204, %v348
    %350 = vmatmul.f32.gmra.mxu0 %v237
    %v351 = vpop.f32.mrf.mxu0
    %v352 = vadd.f32 %v204, %v351
    %353 = vdwg.mxu0
    %354 = vmatpush.msra.mxu0 0.0
    %355 = vmatpush.msra.mxu0 0.0
    %356 = vmatpush.msra.mxu0 0.0
    %357 = vmatpush.msra.mxu0 0.0
    %358 = vmatpush.msra.mxu0 0.0
    %359 = vmatpush.msra.mxu0 0.0
    %360 = vmatpush.msra.mxu0 0.0
    %361 = vmatpush.msra.mxu0 0.0
    %362 = vmatpush.msra.mxu0 0.0
    %363 = vmatpush.msra.mxu0 0.0
    %364 = vmatpush.msra.mxu0 0.0
    %365 = vmatpush.msra.mxu0 0.0
    %366 = vmatpush.msra.mxu0 %v185
    %367 = vmatpush.msra.mxu0 %v169
    %368 = vmatpush.msra.mxu0 %v153
    %369 = vmatpush.msra.mxu0 %v137
    %370 = vmatmul.f32.gmra.mxu0 %v234
    %v371 = vpop.f32.mrf.mxu0
    %v372 = vadd.f32 %v205, %v371
    %373 = vmatmul.f32.gmra.mxu0 %v237
    %v374 = vpop.f32.mrf.mxu0
    %v375 = vadd.f32 %v205, %v374
    %376 = vdwg.mxu0
    %377 = vmatpush.msra.mxu0 0.0
    %378 = vmatpush.msra.mxu0 0.0
    %379 = vmatpush.msra.mxu0 0.0
    %380 = vmatpush.msra.mxu0 0.0
    %381 = vmatpush.msra.mxu0 0.0
    %382 = vmatpush.msra.mxu0 0.0
    %383 = vmatpush.msra.mxu0 0.0
    %384 = vmatpush.msra.mxu0 0.0
    %385 = vmatpush.msra.mxu0 0.0
    %386 = vmatpush.msra.mxu0 0.0
    %387 = vmatpush.msra.mxu0 0.0
    %388 = vmatpush.msra.mxu0 0.0
    %389 = vmatpush.msra.mxu0 %v186
    %390 = vmatpush.msra.mxu0 %v170
    %391 = vmatpush.msra.mxu0 %v154
    %392 = vmatpush.msra.mxu0 %v138
    %393 = vmatmul.f32.gmra.mxu0 %v234
    %v394 = vpop.f32.mrf.mxu0
    %v395 = vadd.f32 %v206, %v394
    %396 = vmatmul.f32.gmra.mxu0 %v237
    %v397 = vpop.f32.mrf.mxu0
    %v398 = vadd.f32 %v206, %v397
    %399 = vdwg.mxu0
    %400 = vmatpush.msra.mxu0 0.0
    %401 = vmatpush.msra.mxu0 0.0
    %402 = vmatpush.msra.mxu0 0.0
    %403 = vmatpush.msra.mxu0 0.0
    %404 = vmatpush.msra.mxu0 0.0
    %405 = vmatpush.msra.mxu0 0.0
    %406 = vmatpush.msra.mxu0 0.0
    %407 = vmatpush.msra.mxu0 0.0
    %408 = vmatpush.msra.mxu0 0.0
    %409 = vmatpush.msra.mxu0 0.0
    %410 = vmatpush.msra.mxu0 0.0
    %411 = vmatpush.msra.mxu0 0.0
    %412 = vmatpush.msra.mxu0 %v187
    %413 = vmatpush.msra.mxu0 %v171
    %414 = vmatpush.msra.mxu0 %v155
    %415 = vmatpush.msra.mxu0 %v139
    %416 = vmatmul.f32.gmra.mxu0 %v234
    %v417 = vpop.f32.mrf.mxu0
    %v418 = vadd.f32 %v207, %v417
    %419 = vmatmul.f32.gmra.mxu0 %v237
    %v420 = vpop.f32.mrf.mxu0
    %v421 = vadd.f32 %v207, %v420
    %422 = vdwg.mxu0
    %423 = vmatpush.msra.mxu0 0.0
    %424 = vmatpush.msra.mxu0 0.0
    %425 = vmatpush.msra.mxu0 0.0
    %426 = vmatpush.msra.mxu0 0.0
    %427 = vmatpush.msra.mxu0 0.0
    %428 = vmatpush.msra.mxu0 0.0
    %429 = vmatpush.msra.mxu0 0.0
    %430 = vmatpush.msra.mxu0 0.0
    %431 = vmatpush.msra.mxu0 0.0
    %432 = vmatpush.msra.mxu0 0.0
    %433 = vmatpush.msra.mxu0 0.0
    %434 = vmatpush.msra.mxu0 0.0
    %435 = vmatpush.msra.mxu0 %v188
    %436 = vmatpush.msra.mxu0 %v172
    %437 = vmatpush.msra.mxu0 %v156
    %438 = vmatpush.msra.mxu0 %v140
    %439 = vmatmul.f32.gmra.mxu0 %v234
    %v440 = vpop.f32.mrf.mxu0
    %v441 = vadd.f32 %v208, %v440
    %442 = vmatmul.f32.gmra.mxu0 %v237
    %v443 = vpop.f32.mrf.mxu0
    %v444 = vadd.f32 %v208, %v443
    %445 = vdwg.mxu0
    %446 = vmatpush.msra.mxu0 0.0
    %447 = vmatpush.msra.mxu0 0.0
    %448 = vmatpush.msra.mxu0 0.0
    %449 = vmatpush.msra.mxu0 0.0
    %450 = vmatpush.msra.mxu0 0.0
    %451 = vmatpush.msra.mxu0 0.0
    %452 = vmatpush.msra.mxu0 0.0
    %453 = vmatpush.msra.mxu0 0.0
    %454 = vmatpush.msra.mxu0 0.0
    %455 = vmatpush.msra.mxu0 0.0
    %456 = vmatpush.msra.mxu0 0.0
    %457 = vmatpush.msra.mxu0 0.0
    %458 = vmatpush.msra.mxu0 %v189
    %459 = vmatpush.msra.mxu0 %v173
    %460 = vmatpush.msra.mxu0 %v157
    %461 = vmatpush.msra.mxu0 %v141
    %462 = vmatmul.f32.gmra.mxu0 %v234
    %v463 = vpop.f32.mrf.mxu0
    %v464 = vadd.f32 %v209, %v463
    %465 = vmatmul.f32.gmra.mxu0 %v237
    %v466 = vpop.f32.mrf.mxu0
    %v467 = vadd.f32 %v209, %v466
    %468 = vdwg.mxu0
    %469 = vmatpush.msra.mxu0 0.0
    %470 = vmatpush.msra.mxu0 0.0
    %471 = vmatpush.msra.mxu0 0.0
    %472 = vmatpush.msra.mxu0 0.0
    %473 = vmatpush.msra.mxu0 0.0
    %474 = vmatpush.msra.mxu0 0.0
    %475 = vmatpush.msra.mxu0 0.0
    %476 = vmatpush.msra.mxu0 0.0
    %477 = vmatpush.msra.mxu0 0.0
    %478 = vmatpush.msra.mxu0 0.0
    %479 = vmatpush.msra.mxu0 0.0
    %480 = vmatpush.msra.mxu0 0.0
    %481 = vmatpush.msra.mxu0 %v190
    %482 = vmatpush.msra.mxu0 %v174
    %483 = vmatpush.msra.mxu0 %v158
    %484 = vmatpush.msra.mxu0 %v142
    %485 = vmatmul.f32.gmra.mxu0 %v234
    %v486 = vpop.f32.mrf.mxu0
    %v487 = vadd.f32 %v210, %v486
    %488 = vmatmul.f32.gmra.mxu0 %v237
    %v489 = vpop.f32.mrf.mxu0
    %v490 = vadd.f32 %v210, %v489
    %491 = vdwg.mxu0
    %492 = vmatpush.msra.mxu0 0.0
    %493 = vmatpush.msra.mxu0 0.0
    %494 = vmatpush.msra.mxu0 0.0
    %495 = vmatpush.msra.mxu0 0.0
    %496 = vmatpush.msra.mxu0 0.0
    %497 = vmatpush.msra.mxu0 0.0
    %498 = vmatpush.msra.mxu0 0.0
    %499 = vmatpush.msra.mxu0 0.0
    %500 = vmatpush.msra.mxu0 0.0
    %501 = vmatpush.msra.mxu0 0.0
    %502 = vmatpush.msra.mxu0 0.0
    %503 = vmatpush.msra.mxu0 0.0
    %504 = vmatpush.msra.mxu0 %v191
    %505 = vmatpush.msra.mxu0 %v175
    %506 = vmatpush.msra.mxu0 %v159
    %507 = vmatpush.msra.mxu0 %v143
    %508 = vmatmul.f32.gmra.mxu0 %v234
    %v509 = vpop.f32.mrf.mxu0
    %v510 = vadd.f32 %v211, %v509
    %511 = vmatmul.f32.gmra.mxu0 %v237
    %v512 = vpop.f32.mrf.mxu0
    %v513 = vadd.f32 %v211, %v512
    %514 = vdwg.mxu0
    %515 = vmatpush.msra.mxu0 0.0
    %516 = vmatpush.msra.mxu0 0.0
    %517 = vmatpush.msra.mxu0 0.0
    %518 = vmatpush.msra.mxu0 0.0
    %519 = vmatpush.msra.mxu0 0.0
    %520 = vmatpush.msra.mxu0 0.0
    %521 = vmatpush.msra.mxu0 0.0
    %522 = vmatpush.msra.mxu0 0.0
    %523 = vmatpush.msra.mxu0 0.0
    %524 = vmatpush.msra.mxu0 0.0
    %525 = vmatpush.msra.mxu0 0.0
    %526 = vmatpush.msra.mxu0 0.0
    %527 = vmatpush.msra.mxu0 %v192
    %528 = vmatpush.msra.mxu0 %v176
    %529 = vmatpush.msra.mxu0 %v160
    %530 = vmatpush.msra.mxu0 %v144
    %531 = vmatmul.f32.gmra.mxu0 %v234
    %v532 = vpop.f32.mrf.mxu0
    %v533 = vadd.f32 %v212, %v532
    %534 = vmatmul.f32.gmra.mxu0 %v237
    %v535 = vpop.f32.mrf.mxu0
    %v536 = vadd.f32 %v212, %v535
    %537 = vdwg.mxu0
    %538 = vmatpush.msra.mxu0 0.0
    %539 = vmatpush.msra.mxu0 0.0
    %540 = vmatpush.msra.mxu0 0.0
    %541 = vmatpush.msra.mxu0 0.0
    %542 = vmatpush.msra.mxu0 0.0
    %543 = vmatpush.msra.mxu0 0.0
    %544 = vmatpush.msra.mxu0 0.0
    %545 = vmatpush.msra.mxu0 0.0
    %546 = vmatpush.msra.mxu0 0.0
    %547 = vmatpush.msra.mxu0 0.0
    %548 = vmatpush.msra.mxu0 0.0
    %549 = vmatpush.msra.mxu0 0.0
    %550 = vmatpush.msra.mxu0 %v193
    %551 = vmatpush.msra.mxu0 %v177
    %552 = vmatpush.msra.mxu0 %v161
    %553 = vmatpush.msra.mxu0 %v145
    %554 = vmatmul.f32.gmra.mxu0 %v234
    %v555 = vpop.f32.mrf.mxu0
    %v556 = vadd.f32 %v213, %v555
    %557 = vmatmul.f32.gmra.mxu0 %v237
    %v558 = vpop.f32.mrf.mxu0
    %v559 = vadd.f32 %v213, %v558
    %560 = vdwg.mxu0
    %561 = vmatpush.msra.mxu0 0.0
    %562 = vmatpush.msra.mxu0 0.0
    %563 = vmatpush.msra.mxu0 0.0
    %564 = vmatpush.msra.mxu0 0.0
    %565 = vmatpush.msra.mxu0 0.0
    %566 = vmatpush.msra.mxu0 0.0
    %567 = vmatpush.msra.mxu0 0.0
    %568 = vmatpush.msra.mxu0 0.0
    %569 = vmatpush.msra.mxu0 0.0
    %570 = vmatpush.msra.mxu0 0.0
    %571 = vmatpush.msra.mxu0 0.0
    %572 = vmatpush.msra.mxu0 0.0
    %573 = vmatpush.msra.mxu0 %v194
    %574 = vmatpush.msra.mxu0 %v178
    %575 = vmatpush.msra.mxu0 %v162
    %576 = vmatpush.msra.mxu0 %v146
    %577 = vmatmul.f32.gmra.mxu0 %v234
    %v578 = vpop.f32.mrf.mxu0
    %v579 = vadd.f32 %v214, %v578
    %580 = vmatmul.f32.gmra.mxu0 %v237
    %v581 = vpop.f32.mrf.mxu0
    %v582 = vadd.f32 %v214, %v581
    %583 = vdwg.mxu0
    %584 = vmatpush.msra.mxu0 0.0
    %585 = vmatpush.msra.mxu0 0.0
    %586 = vmatpush.msra.mxu0 0.0
    %587 = vmatpush.msra.mxu0 0.0
    %588 = vmatpush.msra.mxu0 0.0
    %589 = vmatpush.msra.mxu0 0.0
    %590 = vmatpush.msra.mxu0 0.0
    %591 = vmatpush.msra.mxu0 0.0
    %592 = vmatpush.msra.mxu0 0.0
    %593 = vmatpush.msra.mxu0 0.0
    %594 = vmatpush.msra.mxu0 0.0
    %595 = vmatpush.msra.mxu0 0.0
    %596 = vmatpush.msra.mxu0 %v195
    %597 = vmatpush.msra.mxu0 %v179
    %598 = vmatpush.msra.mxu0 %v163
    %599 = vmatpush.msra.mxu0 %v147
    %600 = vmatmul.f32.gmra.mxu0 %v234
    %v601 = vpop.f32.mrf.mxu0
    %v602 = vadd.f32 %v215, %v601
    %603 = vmatmul.f32.gmra.mxu0 %v237
    %v604 = vpop.f32.mrf.mxu0
    %v605 = vadd.f32 %v215, %v604
    %606 = vdwg.mxu0
    %v607 = vmax.f32 %v257, 0.0
    %v608 = vmax.f32 %v280, 0.0
    %v609 = vmax.f32 %v303, 0.0
    %v610 = vmax.f32 %v326, 0.0
    %v611 = vmax.f32 %v349, 0.0
    %v612 = vmax.f32 %v372, 0.0
    %v613 = vmax.f32 %v395, 0.0
    %v614 = vmax.f32 %v418, 0.0
    %v615 = vmax.f32 %v441, 0.0
    %v616 = vmax.f32 %v464, 0.0
    %v617 = vmax.f32 %v487, 0.0
    %v618 = vmax.f32 %v510, 0.0
    %v619 = vmax.f32 %v533, 0.0
    %v620 = vmax.f32 %v556, 0.0
    %v621 = vmax.f32 %v579, 0.0
    %v622 = vmax.f32 %v602, 0.0
    %v623 = vmax.f32 %v260, 0.0
    %v624 = vmax.f32 %v283, 0.0
    %v625 = vmax.f32 %v306, 0.0
    %v626 = vmax.f32 %v329, 0.0
    %v627 = vmax.f32 %v352, 0.0
    %v628 = vmax.f32 %v375, 0.0
    %v629 = vmax.f32 %v398, 0.0
    %v630 = vmax.f32 %v421, 0.0
    %v631 = vmax.f32 %v444, 0.0
    %v632 = vmax.f32 %v467, 0.0
    %v633 = vmax.f32 %v490, 0.0
    %v634 = vmax.f32 %v513, 0.0
    %v635 = vmax.f32 %v536, 0.0
    %v636 = vmax.f32 %v559, 0.0
    %v637 = vmax.f32 %v582, 0.0
    %v638 = vmax.f32 %v605, 0.0
    %v639 = vld [vmem:[#allocation8] sm:$0xff]
    %v640 = vld [vmem:[#allocation8 + $0x8] sm:$0xff]
    %v641 = vld [vmem:[#allocation8 + $0x10] sm:$0xff]
    %v642 = vld [vmem:[#allocation8 + $0x18] sm:$0xff]
    %v643 = vld [vmem:[#allocation8 + $0x20] sm:$0xff]
    %v644 = vld [vmem:[#allocation8 + $0x28] sm:$0xff]
    %v645 = vld [vmem:[#allocation8 + $0x30] sm:$0xff]
    %v646 = vld [vmem:[#allocation8 + $0x38] sm:$0xff]
    %v647 = vld [vmem:[#allocation8 + $0x40] sm:$0xff]
    %v648 = vld [vmem:[#allocation8 + $0x48] sm:$0xff]
    %v649 = vld [vmem:[#allocation8 + $0x50] sm:$0xff]
    %v650 = vld [vmem:[#allocation8 + $0x58] sm:$0xff]
    %v651 = vld [vmem:[#allocation8 + $0x60] sm:$0xff]
    %v652 = vld [vmem:[#allocation8 + $0x68] sm:$0xff]
    %v653 = vld [vmem:[#allocation8 + $0x70] sm:$0xff]
    %v654 = vld [vmem:[#allocation8 + $0x78] sm:$0xff]
    %v655 = vld [vmem:[#allocation8 + $0x80] sm:$0xff]
    %v656 = vld [vmem:[#allocation8 + $0x88] sm:$0xff]
    %v657 = vld [vmem:[#allocation8 + $0x90] sm:$0xff]
    %v658 = vld [vmem:[#allocation8 + $0x98] sm:$0xff]
    %v659 = vld [vmem:[#allocation8 + $0xa0] sm:$0xff]
    %v660 = vld [vmem:[#allocation8 + $0xa8] sm:$0xff]
    %v661 = vld [vmem:[#allocation8 + $0xb0] sm:$0xff]
    %v662 = vld [vmem:[#allocation8 + $0xb8] sm:$0xff]
    %v663 = vld [vmem:[#allocation8 + $0xc0] sm:$0xff]
    %v664 = vld [vmem:[#allocation8 + $0xc8] sm:$0xff]
    %v665 = vld [vmem:[#allocation8 + $0xd0] sm:$0xff]
    %v666 = vld [vmem:[#allocation8 + $0xd8] sm:$0xff]
    %v667 = vld [vmem:[#allocation8 + $0xe0] sm:$0xff]
    %v668 = vld [vmem:[#allocation8 + $0xe8] sm:$0xff]
    %v669 = vld [vmem:[#allocation8 + $0xf0] sm:$0xff]
    %v670 = vld [vmem:[#allocation8 + $0xf8] sm:$0xff]
    %v671 = vld [vmem:[#allocation8 + $0x100] sm:$0xff]
    %v672 = vld [vmem:[#allocation8 + $0x108] sm:$0xff]
    %v673 = vld [vmem:[#allocation8 + $0x110] sm:$0xff]
    %v674 = vld [vmem:[#allocation8 + $0x118] sm:$0xff]
    %v675 = vld [vmem:[#allocation8 + $0x120] sm:$0xff]
    %v676 = vld [vmem:[#allocation8 + $0x128] sm:$0xff]
    %v677 = vld [vmem:[#allocation8 + $0x130] sm:$0xff]
    %v678 = vld [vmem:[#allocation8 + $0x138] sm:$0xff]
    %v679 = vld [vmem:[#allocation8 + $0x140] sm:$0xff]
    %v680 = vld [vmem:[#allocation8 + $0x148] sm:$0xff]
    %v681 = vld [vmem:[#allocation8 + $0x150] sm:$0xff]
    %v682 = vld [vmem:[#allocation8 + $0x158] sm:$0xff]
    %v683 = vld [vmem:[#allocation8 + $0x160] sm:$0xff]
    %v684 = vld [vmem:[#allocation8 + $0x168] sm:$0xff]
    %v685 = vld [vmem:[#allocation8 + $0x170] sm:$0xff]
    %v686 = vld [vmem:[#allocation8 + $0x178] sm:$0xff]
    %v687 = vld [vmem:[#allocation8 + $0x180] sm:$0xff]
    %v688 = vld [vmem:[#allocation8 + $0x188] sm:$0xff]
    %v689 = vld [vmem:[#allocation8 + $0x190] sm:$0xff]
    %v690 = vld [vmem:[#allocation8 + $0x198] sm:$0xff]
    %v691 = vld [vmem:[#allocation8 + $0x1a0] sm:$0xff]
    %v692 = vld [vmem:[#allocation8 + $0x1a8] sm:$0xff]
    %v693 = vld [vmem:[#allocation8 + $0x1b0] sm:$0xff]
    %v694 = vld [vmem:[#allocation8 + $0x1b8] sm:$0xff]
    %v695 = vld [vmem:[#allocation8 + $0x1c0] sm:$0xff]
    %v696 = vld [vmem:[#allocation8 + $0x1c8] sm:$0xff]
    %v697 = vld [vmem:[#allocation8 + $0x1d0] sm:$0xff]
    %v698 = vld [vmem:[#allocation8 + $0x1d8] sm:$0xff]
    %v699 = vld [vmem:[#allocation8 + $0x1e0] sm:$0xff]
    %v700 = vld [vmem:[#allocation8 + $0x1e8] sm:$0xff]
    %v701 = vld [vmem:[#allocation8 + $0x1f0] sm:$0xff]
    %v702 = vld [vmem:[#allocation8 + $0x1f8] sm:$0xff]
    %v703 = vld [vmem:[#allocation8 + $0x200] sm:$0xff]
    %v704 = vld [vmem:[#allocation8 + $0x208] sm:$0xff]
    %v705 = vld [vmem:[#allocation8 + $0x210] sm:$0xff]
    %v706 = vld [vmem:[#allocation8 + $0x218] sm:$0xff]
    %v707 = vld [vmem:[#allocation8 + $0x220] sm:$0xff]
    %v708 = vld [vmem:[#allocation8 + $0x228] sm:$0xff]
    %v709 = vld [vmem:[#allocation8 + $0x230] sm:$0xff]
    %v710 = vld [vmem:[#allocation8 + $0x238] sm:$0xff]
    %v711 = vld [vmem:[#allocation8 + $0x240] sm:$0xff]
    %v712 = vld [vmem:[#allocation8 + $0x248] sm:$0xff]
    %v713 = vld [vmem:[#allocation8 + $0x250] sm:$0xff]
    %v714 = vld [vmem:[#allocation8 + $0x258] sm:$0xff]
    %v715 = vld [vmem:[#allocation8 + $0x260] sm:$0xff]
    %v716 = vld [vmem:[#allocation8 + $0x268] sm:$0xff]
    %v717 = vld [vmem:[#allocation8 + $0x270] sm:$0xff]
    %v718 = vld [vmem:[#allocation8 + $0x278] sm:$0xff]
    %v719 = vld [vmem:[#allocation8 + $0x280] sm:$0xff]
    %v720 = vld [vmem:[#allocation8 + $0x288] sm:$0xff]
    %v721 = vld [vmem:[#allocation8 + $0x290] sm:$0xff]
    %v722 = vld [vmem:[#allocation8 + $0x298] sm:$0xff]
    %v723 = vld [vmem:[#allocation8 + $0x2a0] sm:$0xff]
    %v724 = vld [vmem:[#allocation8 + $0x2a8] sm:$0xff]
    %v725 = vld [vmem:[#allocation8 + $0x2b0] sm:$0xff]
    %v726 = vld [vmem:[#allocation8 + $0x2b8] sm:$0xff]
    %v727 = vld [vmem:[#allocation8 + $0x2c0] sm:$0xff]
    %v728 = vld [vmem:[#allocation8 + $0x2c8] sm:$0xff]
    %v729 = vld [vmem:[#allocation8 + $0x2d0] sm:$0xff]
    %v730 = vld [vmem:[#allocation8 + $0x2d8] sm:$0xff]
    %v731 = vld [vmem:[#allocation8 + $0x2e0] sm:$0xff]
    %v732 = vld [vmem:[#allocation8 + $0x2e8] sm:$0xff]
    %v733 = vld [vmem:[#allocation8 + $0x2f0] sm:$0xff]
    %v734 = vld [vmem:[#allocation8 + $0x2f8] sm:$0xff]
    %v735 = vld [vmem:[#allocation8 + $0x300] sm:$0xff]
    %v736 = vld [vmem:[#allocation8 + $0x308] sm:$0xff]
    %v737 = vld [vmem:[#allocation8 + $0x310] sm:$0xff]
    %v738 = vld [vmem:[#allocation8 + $0x318] sm:$0xff]
    %v739 = vld [vmem:[#allocation8 + $0x320] sm:$0xff]
    %v740 = vld [vmem:[#allocation8 + $0x328] sm:$0xff]
    %v741 = vld [vmem:[#allocation8 + $0x330] sm:$0xff]
    %v742 = vld [vmem:[#allocation8 + $0x338] sm:$0xff]
    %v743 = vld [vmem:[#allocation8 + $0x340] sm:$0xff]
    %v744 = vld [vmem:[#allocation8 + $0x348] sm:$0xff]
    %v745 = vld [vmem:[#allocation8 + $0x350] sm:$0xff]
    %v746 = vld [vmem:[#allocation8 + $0x358] sm:$0xff]
    %v747 = vld [vmem:[#allocation8 + $0x360] sm:$0xff]
    %v748 = vld [vmem:[#allocation8 + $0x368] sm:$0xff]
    %v749 = vld [vmem:[#allocation8 + $0x370] sm:$0xff]
    %v750 = vld [vmem:[#allocation8 + $0x378] sm:$0xff]
    %v751 = vld [vmem:[#allocation8 + $0x380] sm:$0xff]
    %v752 = vld [vmem:[#allocation8 + $0x388] sm:$0xff]
    %v753 = vld [vmem:[#allocation8 + $0x390] sm:$0xff]
    %v754 = vld [vmem:[#allocation8 + $0x398] sm:$0xff]
    %v755 = vld [vmem:[#allocation8 + $0x3a0] sm:$0xff]
    %v756 = vld [vmem:[#allocation8 + $0x3a8] sm:$0xff]
    %v757 = vld [vmem:[#allocation8 + $0x3b0] sm:$0xff]
    %v758 = vld [vmem:[#allocation8 + $0x3b8] sm:$0xff]
    %v759 = vld [vmem:[#allocation8 + $0x3c0] sm:$0xff]
    %v760 = vld [vmem:[#allocation8 + $0x3c8] sm:$0xff]
    %v761 = vld [vmem:[#allocation8 + $0x3d0] sm:$0xff]
    %v762 = vld [vmem:[#allocation8 + $0x3d8] sm:$0xff]
    %v763 = vld [vmem:[#allocation8 + $0x3e0] sm:$0xff]
    %v764 = vld [vmem:[#allocation8 + $0x3e8] sm:$0xff]
    %v765 = vld [vmem:[#allocation8 + $0x3f0] sm:$0xff]
    %v766 = vld [vmem:[#allocation8 + $0x3f8] sm:$0xff]
    %v767 = vld [vmem:[#allocation8 + $0x400] sm:$0xff]
    %v768 = vld [vmem:[#allocation8 + $0x408] sm:$0xff]
    %v769 = vld [vmem:[#allocation8 + $0x410] sm:$0xff]
    %v770 = vld [vmem:[#allocation8 + $0x418] sm:$0xff]
    %v771 = vld [vmem:[#allocation8 + $0x420] sm:$0xff]
    %v772 = vld [vmem:[#allocation8 + $0x428] sm:$0xff]
    %v773 = vld [vmem:[#allocation8 + $0x430] sm:$0xff]
    %v774 = vld [vmem:[#allocation8 + $0x438] sm:$0xff]
    %v775 = vld [vmem:[#allocation8 + $0x440] sm:$0xff]
    %v776 = vld [vmem:[#allocation8 + $0x448] sm:$0xff]
    %v777 = vld [vmem:[#allocation8 + $0x450] sm:$0xff]
    %v778 = vld [vmem:[#allocation8 + $0x458] sm:$0xff]
    %v779 = vld [vmem:[#allocation8 + $0x460] sm:$0xff]
    %v780 = vld [vmem:[#allocation8 + $0x468] sm:$0xff]
    %v781 = vld [vmem:[#allocation8 + $0x470] sm:$0xff]
    %v782 = vld [vmem:[#allocation8 + $0x478] sm:$0xff]
    %v783 = vld [vmem:[#allocation8 + $0x480] sm:$0xff]
    %v784 = vld [vmem:[#allocation8 + $0x488] sm:$0xff]
    %v785 = vld [vmem:[#allocation8 + $0x490] sm:$0xff]
    %v786 = vld [vmem:[#allocation8 + $0x498] sm:$0xff]
    %v787 = vld [vmem:[#allocation8 + $0x4a0] sm:$0xff]
    %v788 = vld [vmem:[#allocation8 + $0x4a8] sm:$0xff]
    %v789 = vld [vmem:[#allocation8 + $0x4b0] sm:$0xff]
    %v790 = vld [vmem:[#allocation8 + $0x4b8] sm:$0xff]
    %v791 = vld [vmem:[#allocation8 + $0x4c0] sm:$0xff]
    %v792 = vld [vmem:[#allocation8 + $0x4c8] sm:$0xff]
    %v793 = vld [vmem:[#allocation8 + $0x4d0] sm:$0xff]
    %v794 = vld [vmem:[#allocation8 + $0x4d8] sm:$0xff]
    %v795 = vld [vmem:[#allocation8 + $0x4e0] sm:$0xff]
    %v796 = vld [vmem:[#allocation8 + $0x4e8] sm:$0xff]
    %v797 = vld [vmem:[#allocation8 + $0x4f0] sm:$0xff]
    %v798 = vld [vmem:[#allocation8 + $0x4f8] sm:$0xff]
    %v799 = vld [vmem:[#allocation8 + $0x500] sm:$0xff]
    %v800 = vld [vmem:[#allocation8 + $0x508] sm:$0xff]
    %v801 = vld [vmem:[#allocation8 + $0x510] sm:$0xff]
    %v802 = vld [vmem:[#allocation8 + $0x518] sm:$0xff]
    %v803 = vld [vmem:[#allocation8 + $0x520] sm:$0xff]
    %v804 = vld [vmem:[#allocation8 + $0x528] sm:$0xff]
    %v805 = vld [vmem:[#allocation8 + $0x530] sm:$0xff]
    %v806 = vld [vmem:[#allocation8 + $0x538] sm:$0xff]
    %v807 = vld [vmem:[#allocation8 + $0x540] sm:$0xff]
    %v808 = vld [vmem:[#allocation8 + $0x548] sm:$0xff]
    %v809 = vld [vmem:[#allocation8 + $0x550] sm:$0xff]
    %v810 = vld [vmem:[#allocation8 + $0x558] sm:$0xff]
    %v811 = vld [vmem:[#allocation8 + $0x560] sm:$0xff]
    %v812 = vld [vmem:[#allocation8 + $0x568] sm:$0xff]
    %v813 = vld [vmem:[#allocation8 + $0x570] sm:$0xff]
    %v814 = vld [vmem:[#allocation8 + $0x578] sm:$0xff]
    %v815 = vld [vmem:[#allocation8 + $0x580] sm:$0xff]
    %v816 = vld [vmem:[#allocation8 + $0x588] sm:$0xff]
    %v817 = vld [vmem:[#allocation8 + $0x590] sm:$0xff]
    %v818 = vld [vmem:[#allocation8 + $0x598] sm:$0xff]
    %v819 = vld [vmem:[#allocation8 + $0x5a0] sm:$0xff]
    %v820 = vld [vmem:[#allocation8 + $0x5a8] sm:$0xff]
    %v821 = vld [vmem:[#allocation8 + $0x5b0] sm:$0xff]
    %v822 = vld [vmem:[#allocation8 + $0x5b8] sm:$0xff]
    %v823 = vld [vmem:[#allocation8 + $0x5c0] sm:$0xff]
    %v824 = vld [vmem:[#allocation8 + $0x5c8] sm:$0xff]
    %v825 = vld [vmem:[#allocation8 + $0x5d0] sm:$0xff]
    %v826 = vld [vmem:[#allocation8 + $0x5d8] sm:$0xff]
    %v827 = vld [vmem:[#allocation8 + $0x5e0] sm:$0xff]
    %v828 = vld [vmem:[#allocation8 + $0x5e8] sm:$0xff]
    %v829 = vld [vmem:[#allocation8 + $0x5f0] sm:$0xff]
    %v830 = vld [vmem:[#allocation8 + $0x5f8] sm:$0xff]
    %v831 = vld [vmem:[#allocation8 + $0x600] sm:$0xff]
    %v832 = vld [vmem:[#allocation8 + $0x608] sm:$0xff]
    %v833 = vld [vmem:[#allocation8 + $0x610] sm:$0xff]
    %v834 = vld [vmem:[#allocation8 + $0x618] sm:$0xff]
    %v835 = vld [vmem:[#allocation8 + $0x620] sm:$0xff]
    %v836 = vld [vmem:[#allocation8 + $0x628] sm:$0xff]
    %v837 = vld [vmem:[#allocation8 + $0x630] sm:$0xff]
    %v838 = vld [vmem:[#allocation8 + $0x638] sm:$0xff]
    %v839 = vld [vmem:[#allocation8 + $0x640] sm:$0xff]
    %v840 = vld [vmem:[#allocation8 + $0x648] sm:$0xff]
    %v841 = vld [vmem:[#allocation8 + $0x650] sm:$0xff]
    %v842 = vld [vmem:[#allocation8 + $0x658] sm:$0xff]
    %v843 = vld [vmem:[#allocation8 + $0x660] sm:$0xff]
    %v844 = vld [vmem:[#allocation8 + $0x668] sm:$0xff]
    %v845 = vld [vmem:[#allocation8 + $0x670] sm:$0xff]
    %v846 = vld [vmem:[#allocation8 + $0x678] sm:$0xff]
    %v847 = vld [vmem:[#allocation8 + $0x680] sm:$0xff]
    %v848 = vld [vmem:[#allocation8 + $0x688] sm:$0xff]
    %v849 = vld [vmem:[#allocation8 + $0x690] sm:$0xff]
    %v850 = vld [vmem:[#allocation8 + $0x698] sm:$0xff]
    %v851 = vld [vmem:[#allocation8 + $0x6a0] sm:$0xff]
    %v852 = vld [vmem:[#allocation8 + $0x6a8] sm:$0xff]
    %v853 = vld [vmem:[#allocation8 + $0x6b0] sm:$0xff]
    %v854 = vld [vmem:[#allocation8 + $0x6b8] sm:$0xff]
    %v855 = vld [vmem:[#allocation8 + $0x6c0] sm:$0xff]
    %v856 = vld [vmem:[#allocation8 + $0x6c8] sm:$0xff]
    %v857 = vld [vmem:[#allocation8 + $0x6d0] sm:$0xff]
    %v858 = vld [vmem:[#allocation8 + $0x6d8] sm:$0xff]
    %v859 = vld [vmem:[#allocation8 + $0x6e0] sm:$0xff]
    %v860 = vld [vmem:[#allocation8 + $0x6e8] sm:$0xff]
    %v861 = vld [vmem:[#allocation8 + $0x6f0] sm:$0xff]
    %v862 = vld [vmem:[#allocation8 + $0x6f8] sm:$0xff]
    %v863 = vld [vmem:[#allocation8 + $0x700] sm:$0xff]
    %v864 = vld [vmem:[#allocation8 + $0x708] sm:$0xff]
    %v865 = vld [vmem:[#allocation8 + $0x710] sm:$0xff]
    %v866 = vld [vmem:[#allocation8 + $0x718] sm:$0xff]
    %v867 = vld [vmem:[#allocation8 + $0x720] sm:$0xff]
    %v868 = vld [vmem:[#allocation8 + $0x728] sm:$0xff]
    %v869 = vld [vmem:[#allocation8 + $0x730] sm:$0xff]
    %v870 = vld [vmem:[#allocation8 + $0x738] sm:$0xff]
    %v871 = vld [vmem:[#allocation8 + $0x740] sm:$0xff]
    %v872 = vld [vmem:[#allocation8 + $0x748] sm:$0xff]
    %v873 = vld [vmem:[#allocation8 + $0x750] sm:$0xff]
    %v874 = vld [vmem:[#allocation8 + $0x758] sm:$0xff]
    %v875 = vld [vmem:[#allocation8 + $0x760] sm:$0xff]
    %v876 = vld [vmem:[#allocation8 + $0x768] sm:$0xff]
    %v877 = vld [vmem:[#allocation8 + $0x770] sm:$0xff]
    %v878 = vld [vmem:[#allocation8 + $0x778] sm:$0xff]
    %v879 = vld [vmem:[#allocation8 + $0x780] sm:$0xff]
    %v880 = vld [vmem:[#allocation8 + $0x788] sm:$0xff]
    %v881 = vld [vmem:[#allocation8 + $0x790] sm:$0xff]
    %v882 = vld [vmem:[#allocation8 + $0x798] sm:$0xff]
    %v883 = vld [vmem:[#allocation8 + $0x7a0] sm:$0xff]
    %v884 = vld [vmem:[#allocation8 + $0x7a8] sm:$0xff]
    %v885 = vld [vmem:[#allocation8 + $0x7b0] sm:$0xff]
    %v886 = vld [vmem:[#allocation8 + $0x7b8] sm:$0xff]
    %v887 = vld [vmem:[#allocation8 + $0x7c0] sm:$0xff]
    %v888 = vld [vmem:[#allocation8 + $0x7c8] sm:$0xff]
    %v889 = vld [vmem:[#allocation8 + $0x7d0] sm:$0xff]
    %v890 = vld [vmem:[#allocation8 + $0x7d8] sm:$0xff]
    %v891 = vld [vmem:[#allocation8 + $0x7e0] sm:$0xff]
    %v892 = vld [vmem:[#allocation8 + $0x7e8] sm:$0xff]
    %v893 = vld [vmem:[#allocation8 + $0x7f0] sm:$0xff]
    %v894 = vld [vmem:[#allocation8 + $0x7f8] sm:$0xff]
    %v895 = vld [vmem:[#allocation8 + $0x800] sm:$0xff]
    %v896 = vld [vmem:[#allocation8 + $0x808] sm:$0xff]
    %v897 = vld [vmem:[#allocation8 + $0x810] sm:$0xff]
    %v898 = vld [vmem:[#allocation8 + $0x818] sm:$0xff]
    %v899 = vld [vmem:[#allocation8 + $0x820] sm:$0xff]
    %v900 = vld [vmem:[#allocation8 + $0x828] sm:$0xff]
    %v901 = vld [vmem:[#allocation8 + $0x830] sm:$0xff]
    %v902 = vld [vmem:[#allocation8 + $0x838] sm:$0xff]
    %v903 = vld [vmem:[#allocation8 + $0x840] sm:$0xff]
    %v904 = vld [vmem:[#allocation8 + $0x848] sm:$0xff]
    %v905 = vld [vmem:[#allocation8 + $0x850] sm:$0xff]
    %v906 = vld [vmem:[#allocation8 + $0x858] sm:$0xff]
    %v907 = vld [vmem:[#allocation8 + $0x860] sm:$0xff]
    %v908 = vld [vmem:[#allocation8 + $0x868] sm:$0xff]
    %v909 = vld [vmem:[#allocation8 + $0x870] sm:$0xff]
    %v910 = vld [vmem:[#allocation8 + $0x878] sm:$0xff]
    %v911 = vld [vmem:[#allocation8 + $0x880] sm:$0xff]
    %v912 = vld [vmem:[#allocation8 + $0x888] sm:$0xff]
    %v913 = vld [vmem:[#allocation8 + $0x890] sm:$0xff]
    %v914 = vld [vmem:[#allocation8 + $0x898] sm:$0xff]
    %v915 = vld [vmem:[#allocation8 + $0x8a0] sm:$0xff]
    %v916 = vld [vmem:[#allocation8 + $0x8a8] sm:$0xff]
    %v917 = vld [vmem:[#allocation8 + $0x8b0] sm:$0xff]
    %v918 = vld [vmem:[#allocation8 + $0x8b8] sm:$0xff]
    %v919 = vld [vmem:[#allocation8 + $0x8c0] sm:$0xff]
    %v920 = vld [vmem:[#allocation8 + $0x8c8] sm:$0xff]
    %v921 = vld [vmem:[#allocation8 + $0x8d0] sm:$0xff]
    %v922 = vld [vmem:[#allocation8 + $0x8d8] sm:$0xff]
    %v923 = vld [vmem:[#allocation8 + $0x8e0] sm:$0xff]
    %v924 = vld [vmem:[#allocation8 + $0x8e8] sm:$0xff]
    %v925 = vld [vmem:[#allocation8 + $0x8f0] sm:$0xff]
    %v926 = vld [vmem:[#allocation8 + $0x8f8] sm:$0xff]
    %v927 = vld [vmem:[#allocation8 + $0x900] sm:$0xff]
    %v928 = vld [vmem:[#allocation8 + $0x908] sm:$0xff]
    %v929 = vld [vmem:[#allocation8 + $0x910] sm:$0xff]
    %v930 = vld [vmem:[#allocation8 + $0x918] sm:$0xff]
    %v931 = vld [vmem:[#allocation8 + $0x920] sm:$0xff]
    %v932 = vld [vmem:[#allocation8 + $0x928] sm:$0xff]
    %v933 = vld [vmem:[#allocation8 + $0x930] sm:$0xff]
    %v934 = vld [vmem:[#allocation8 + $0x938] sm:$0xff]
    %v935 = vld [vmem:[#allocation8 + $0x940] sm:$0xff]
    %v936 = vld [vmem:[#allocation8 + $0x948] sm:$0xff]
    %v937 = vld [vmem:[#allocation8 + $0x950] sm:$0xff]
    %v938 = vld [vmem:[#allocation8 + $0x958] sm:$0xff]
    %v939 = vld [vmem:[#allocation8 + $0x960] sm:$0xff]
    %v940 = vld [vmem:[#allocation8 + $0x968] sm:$0xff]
    %v941 = vld [vmem:[#allocation8 + $0x970] sm:$0xff]
    %v942 = vld [vmem:[#allocation8 + $0x978] sm:$0xff]
    %v943 = vld [vmem:[#allocation8 + $0x980] sm:$0xff]
    %v944 = vld [vmem:[#allocation8 + $0x988] sm:$0xff]
    %v945 = vld [vmem:[#allocation8 + $0x990] sm:$0xff]
    %v946 = vld [vmem:[#allocation8 + $0x998] sm:$0xff]
    %v947 = vld [vmem:[#allocation8 + $0x9a0] sm:$0xff]
    %v948 = vld [vmem:[#allocation8 + $0x9a8] sm:$0xff]
    %v949 = vld [vmem:[#allocation8 + $0x9b0] sm:$0xff]
    %v950 = vld [vmem:[#allocation8 + $0x9b8] sm:$0xff]
    %v951 = vld [vmem:[#allocation8 + $0x9c0] sm:$0xff]
    %v952 = vld [vmem:[#allocation8 + $0x9c8] sm:$0xff]
    %v953 = vld [vmem:[#allocation8 + $0x9d0] sm:$0xff]
    %v954 = vld [vmem:[#allocation8 + $0x9d8] sm:$0xff]
    %v955 = vld [vmem:[#allocation8 + $0x9e0] sm:$0xff]
    %v956 = vld [vmem:[#allocation8 + $0x9e8] sm:$0xff]
    %v957 = vld [vmem:[#allocation8 + $0x9f0] sm:$0xff]
    %v958 = vld [vmem:[#allocation8 + $0x9f8] sm:$0xff]
    %v959 = vld [vmem:[#allocation8 + $0xa00] sm:$0xff]
    %v960 = vld [vmem:[#allocation8 + $0xa08] sm:$0xff]
    %v961 = vld [vmem:[#allocation8 + $0xa10] sm:$0xff]
    %v962 = vld [vmem:[#allocation8 + $0xa18] sm:$0xff]
    %v963 = vld [vmem:[#allocation8 + $0xa20] sm:$0xff]
    %v964 = vld [vmem:[#allocation8 + $0xa28] sm:$0xff]
    %v965 = vld [vmem:[#allocation8 + $0xa30] sm:$0xff]
    %v966 = vld [vmem:[#allocation8 + $0xa38] sm:$0xff]
    %v967 = vld [vmem:[#allocation8 + $0xa40] sm:$0xff]
    %v968 = vld [vmem:[#allocation8 + $0xa48] sm:$0xff]
    %v969 = vld [vmem:[#allocation8 + $0xa50] sm:$0xff]
    %v970 = vld [vmem:[#allocation8 + $0xa58] sm:$0xff]
    %v971 = vld [vmem:[#allocation8 + $0xa60] sm:$0xff]
    %v972 = vld [vmem:[#allocation8 + $0xa68] sm:$0xff]
    %v973 = vld [vmem:[#allocation8 + $0xa70] sm:$0xff]
    %v974 = vld [vmem:[#allocation8 + $0xa78] sm:$0xff]
    %v975 = vld [vmem:[#allocation8 + $0xa80] sm:$0xff]
    %v976 = vld [vmem:[#allocation8 + $0xa88] sm:$0xff]
    %v977 = vld [vmem:[#allocation8 + $0xa90] sm:$0xff]
    %v978 = vld [vmem:[#allocation8 + $0xa98] sm:$0xff]
    %v979 = vld [vmem:[#allocation8 + $0xaa0] sm:$0xff]
    %v980 = vld [vmem:[#allocation8 + $0xaa8] sm:$0xff]
    %v981 = vld [vmem:[#allocation8 + $0xab0] sm:$0xff]
    %v982 = vld [vmem:[#allocation8 + $0xab8] sm:$0xff]
    %v983 = vld [vmem:[#allocation8 + $0xac0] sm:$0xff]
    %v984 = vld [vmem:[#allocation8 + $0xac8] sm:$0xff]
    %v985 = vld [vmem:[#allocation8 + $0xad0] sm:$0xff]
    %v986 = vld [vmem:[#allocation8 + $0xad8] sm:$0xff]
    %v987 = vld [vmem:[#allocation8 + $0xae0] sm:$0xff]
    %v988 = vld [vmem:[#allocation8 + $0xae8] sm:$0xff]
    %v989 = vld [vmem:[#allocation8 + $0xaf0] sm:$0xff]
    %v990 = vld [vmem:[#allocation8 + $0xaf8] sm:$0xff]
    %v991 = vld [vmem:[#allocation8 + $0xb00] sm:$0xff]
    %v992 = vld [vmem:[#allocation8 + $0xb08] sm:$0xff]
    %v993 = vld [vmem:[#allocation8 + $0xb10] sm:$0xff]
    %v994 = vld [vmem:[#allocation8 + $0xb18] sm:$0xff]
    %v995 = vld [vmem:[#allocation8 + $0xb20] sm:$0xff]
    %v996 = vld [vmem:[#allocation8 + $0xb28] sm:$0xff]
    %v997 = vld [vmem:[#allocation8 + $0xb30] sm:$0xff]
    %v998 = vld [vmem:[#allocation8 + $0xb38] sm:$0xff]
    %v999 = vld [vmem:[#allocation8 + $0xb40] sm:$0xff]
    %v1000 = vld [vmem:[#allocation8 + $0xb48] sm:$0xff]
    %v1001 = vld [vmem:[#allocation8 + $0xb50] sm:$0xff]
    %v1002 = vld [vmem:[#allocation8 + $0xb58] sm:$0xff]
    %v1003 = vld [vmem:[#allocation8 + $0xb60] sm:$0xff]
    %v1004 = vld [vmem:[#allocation8 + $0xb68] sm:$0xff]
    %v1005 = vld [vmem:[#allocation8 + $0xb70] sm:$0xff]
    %v1006 = vld [vmem:[#allocation8 + $0xb78] sm:$0xff]
    %v1007 = vld [vmem:[#allocation8 + $0xb80] sm:$0xff]
    %v1008 = vld [vmem:[#allocation8 + $0xb88] sm:$0xff]
    %v1009 = vld [vmem:[#allocation8 + $0xb90] sm:$0xff]
    %v1010 = vld [vmem:[#allocation8 + $0xb98] sm:$0xff]
    %v1011 = vld [vmem:[#allocation8 + $0xba0] sm:$0xff]
    %v1012 = vld [vmem:[#allocation8 + $0xba8] sm:$0xff]
    %v1013 = vld [vmem:[#allocation8 + $0xbb0] sm:$0xff]
    %v1014 = vld [vmem:[#allocation8 + $0xbb8] sm:$0xff]
    %v1015 = vld [vmem:[#allocation8 + $0xbc0] sm:$0xff]
    %v1016 = vld [vmem:[#allocation8 + $0xbc8] sm:$0xff]
    %v1017 = vld [vmem:[#allocation8 + $0xbd0] sm:$0xff]
    %v1018 = vld [vmem:[#allocation8 + $0xbd8] sm:$0xff]
    %v1019 = vld [vmem:[#allocation8 + $0xbe0] sm:$0xff]
    %v1020 = vld [vmem:[#allocation8 + $0xbe8] sm:$0xff]
    %v1021 = vld [vmem:[#allocation8 + $0xbf0] sm:$0xff]
    %v1022 = vld [vmem:[#allocation8 + $0xbf8] sm:$0xff]
    %v1023 = vld [vmem:[#allocation8 + $0xc00] sm:$0xff]
    %v1024 = vld [vmem:[#allocation8 + $0xc08] sm:$0xff]
    %v1025 = vld [vmem:[#allocation8 + $0xc10] sm:$0xff]
    %v1026 = vld [vmem:[#allocation8 + $0xc18] sm:$0xff]
    %v1027 = vld [vmem:[#allocation8 + $0xc20] sm:$0xff]
    %v1028 = vld [vmem:[#allocation8 + $0xc28] sm:$0xff]
    %v1029 = vld [vmem:[#allocation8 + $0xc30] sm:$0xff]
    %v1030 = vld [vmem:[#allocation8 + $0xc38] sm:$0xff]
    %v1031 = vld [vmem:[#allocation8 + $0xc40] sm:$0xff]
    %v1032 = vld [vmem:[#allocation8 + $0xc48] sm:$0xff]
    %v1033 = vld [vmem:[#allocation8 + $0xc50] sm:$0xff]
    %v1034 = vld [vmem:[#allocation8 + $0xc58] sm:$0xff]
    %v1035 = vld [vmem:[#allocation8 + $0xc60] sm:$0xff]
    %v1036 = vld [vmem:[#allocation8 + $0xc68] sm:$0xff]
    %v1037 = vld [vmem:[#allocation8 + $0xc70] sm:$0xff]
    %v1038 = vld [vmem:[#allocation8 + $0xc78] sm:$0xff]
    %v1039 = vld [vmem:[#allocation8 + $0xc80] sm:$0xff]
    %v1040 = vld [vmem:[#allocation8 + $0xc88] sm:$0xff]
    %v1041 = vld [vmem:[#allocation8 + $0xc90] sm:$0xff]
    %v1042 = vld [vmem:[#allocation8 + $0xc98] sm:$0xff]
    %v1043 = vld [vmem:[#allocation8 + $0xca0] sm:$0xff]
    %v1044 = vld [vmem:[#allocation8 + $0xca8] sm:$0xff]
    %v1045 = vld [vmem:[#allocation8 + $0xcb0] sm:$0xff]
    %v1046 = vld [vmem:[#allocation8 + $0xcb8] sm:$0xff]
    %v1047 = vld [vmem:[#allocation8 + $0xcc0] sm:$0xff]
    %v1048 = vld [vmem:[#allocation8 + $0xcc8] sm:$0xff]
    %v1049 = vld [vmem:[#allocation8 + $0xcd0] sm:$0xff]
    %v1050 = vld [vmem:[#allocation8 + $0xcd8] sm:$0xff]
    %v1051 = vld [vmem:[#allocation8 + $0xce0] sm:$0xff]
    %v1052 = vld [vmem:[#allocation8 + $0xce8] sm:$0xff]
    %v1053 = vld [vmem:[#allocation8 + $0xcf0] sm:$0xff]
    %v1054 = vld [vmem:[#allocation8 + $0xcf8] sm:$0xff]
    %v1055 = vld [vmem:[#allocation8 + $0xd00] sm:$0xff]
    %v1056 = vld [vmem:[#allocation8 + $0xd08] sm:$0xff]
    %v1057 = vld [vmem:[#allocation8 + $0xd10] sm:$0xff]
    %v1058 = vld [vmem:[#allocation8 + $0xd18] sm:$0xff]
    %v1059 = vld [vmem:[#allocation8 + $0xd20] sm:$0xff]
    %v1060 = vld [vmem:[#allocation8 + $0xd28] sm:$0xff]
    %v1061 = vld [vmem:[#allocation8 + $0xd30] sm:$0xff]
    %v1062 = vld [vmem:[#allocation8 + $0xd38] sm:$0xff]
    %v1063 = vld [vmem:[#allocation8 + $0xd40] sm:$0xff]
    %v1064 = vld [vmem:[#allocation8 + $0xd48] sm:$0xff]
    %v1065 = vld [vmem:[#allocation8 + $0xd50] sm:$0xff]
    %v1066 = vld [vmem:[#allocation8 + $0xd58] sm:$0xff]
    %v1067 = vld [vmem:[#allocation8 + $0xd60] sm:$0xff]
    %v1068 = vld [vmem:[#allocation8 + $0xd68] sm:$0xff]
    %v1069 = vld [vmem:[#allocation8 + $0xd70] sm:$0xff]
    %v1070 = vld [vmem:[#allocation8 + $0xd78] sm:$0xff]
    %v1071 = vld [vmem:[#allocation8 + $0xd80] sm:$0xff]
    %v1072 = vld [vmem:[#allocation8 + $0xd88] sm:$0xff]
    %v1073 = vld [vmem:[#allocation8 + $0xd90] sm:$0xff]
    %v1074 = vld [vmem:[#allocation8 + $0xd98] sm:$0xff]
    %v1075 = vld [vmem:[#allocation8 + $0xda0] sm:$0xff]
    %v1076 = vld [vmem:[#allocation8 + $0xda8] sm:$0xff]
    %v1077 = vld [vmem:[#allocation8 + $0xdb0] sm:$0xff]
    %v1078 = vld [vmem:[#allocation8 + $0xdb8] sm:$0xff]
    %v1079 = vld [vmem:[#allocation8 + $0xdc0] sm:$0xff]
    %v1080 = vld [vmem:[#allocation8 + $0xdc8] sm:$0xff]
    %v1081 = vld [vmem:[#allocation8 + $0xdd0] sm:$0xff]
    %v1082 = vld [vmem:[#allocation8 + $0xdd8] sm:$0xff]
    %v1083 = vld [vmem:[#allocation8 + $0xde0] sm:$0xff]
    %v1084 = vld [vmem:[#allocation8 + $0xde8] sm:$0xff]
    %v1085 = vld [vmem:[#allocation8 + $0xdf0] sm:$0xff]
    %v1086 = vld [vmem:[#allocation8 + $0xdf8] sm:$0xff]
    %v1087 = vld [vmem:[#allocation8 + $0xe00] sm:$0xff]
    %v1088 = vld [vmem:[#allocation8 + $0xe08] sm:$0xff]
    %v1089 = vld [vmem:[#allocation8 + $0xe10] sm:$0xff]
    %v1090 = vld [vmem:[#allocation8 + $0xe18] sm:$0xff]
    %v1091 = vld [vmem:[#allocation8 + $0xe20] sm:$0xff]
    %v1092 = vld [vmem:[#allocation8 + $0xe28] sm:$0xff]
    %v1093 = vld [vmem:[#allocation8 + $0xe30] sm:$0xff]
    %v1094 = vld [vmem:[#allocation8 + $0xe38] sm:$0xff]
    %v1095 = vld [vmem:[#allocation8 + $0xe40] sm:$0xff]
    %v1096 = vld [vmem:[#allocation8 + $0xe48] sm:$0xff]
    %v1097 = vld [vmem:[#allocation8 + $0xe50] sm:$0xff]
    %v1098 = vld [vmem:[#allocation8 + $0xe58] sm:$0xff]
    %v1099 = vld [vmem:[#allocation8 + $0xe60] sm:$0xff]
    %v1100 = vld [vmem:[#allocation8 + $0xe68] sm:$0xff]
    %v1101 = vld [vmem:[#allocation8 + $0xe70] sm:$0xff]
    %v1102 = vld [vmem:[#allocation8 + $0xe78] sm:$0xff]
    %v1103 = vld [vmem:[#allocation8 + $0xe80] sm:$0xff]
    %v1104 = vld [vmem:[#allocation8 + $0xe88] sm:$0xff]
    %v1105 = vld [vmem:[#allocation8 + $0xe90] sm:$0xff]
    %v1106 = vld [vmem:[#allocation8 + $0xe98] sm:$0xff]
    %v1107 = vld [vmem:[#allocation8 + $0xea0] sm:$0xff]
    %v1108 = vld [vmem:[#allocation8 + $0xea8] sm:$0xff]
    %v1109 = vld [vmem:[#allocation8 + $0xeb0] sm:$0xff]
    %v1110 = vld [vmem:[#allocation8 + $0xeb8] sm:$0xff]
    %v1111 = vld [vmem:[#allocation8 + $0xec0] sm:$0xff]
    %v1112 = vld [vmem:[#allocation8 + $0xec8] sm:$0xff]
    %v1113 = vld [vmem:[#allocation8 + $0xed0] sm:$0xff]
    %v1114 = vld [vmem:[#allocation8 + $0xed8] sm:$0xff]
    %v1115 = vld [vmem:[#allocation8 + $0xee0] sm:$0xff]
    %v1116 = vld [vmem:[#allocation8 + $0xee8] sm:$0xff]
    %v1117 = vld [vmem:[#allocation8 + $0xef0] sm:$0xff]
    %v1118 = vld [vmem:[#allocation8 + $0xef8] sm:$0xff]
    %v1119 = vld [vmem:[#allocation8 + $0xf00] sm:$0xff]
    %v1120 = vld [vmem:[#allocation8 + $0xf08] sm:$0xff]
    %v1121 = vld [vmem:[#allocation8 + $0xf10] sm:$0xff]
    %v1122 = vld [vmem:[#allocation8 + $0xf18] sm:$0xff]
    %v1123 = vld [vmem:[#allocation8 + $0xf20] sm:$0xff]
    %v1124 = vld [vmem:[#allocation8 + $0xf28] sm:$0xff]
    %v1125 = vld [vmem:[#allocation8 + $0xf30] sm:$0xff]
    %v1126 = vld [vmem:[#allocation8 + $0xf38] sm:$0xff]
    %v1127 = vld [vmem:[#allocation8 + $0xf40] sm:$0xff]
    %v1128 = vld [vmem:[#allocation8 + $0xf48] sm:$0xff]
    %v1129 = vld [vmem:[#allocation8 + $0xf50] sm:$0xff]
    %v1130 = vld [vmem:[#allocation8 + $0xf58] sm:$0xff]
    %v1131 = vld [vmem:[#allocation8 + $0xf60] sm:$0xff]
    %v1132 = vld [vmem:[#allocation8 + $0xf68] sm:$0xff]
    %v1133 = vld [vmem:[#allocation8 + $0xf70] sm:$0xff]
    %v1134 = vld [vmem:[#allocation8 + $0xf78] sm:$0xff]
    %v1135 = vld [vmem:[#allocation8 + $0xf80] sm:$0xff]
    %v1136 = vld [vmem:[#allocation8 + $0xf88] sm:$0xff]
    %v1137 = vld [vmem:[#allocation8 + $0xf90] sm:$0xff]
    %v1138 = vld [vmem:[#allocation8 + $0xf98] sm:$0xff]
    %v1139 = vld [vmem:[#allocation8 + $0xfa0] sm:$0xff]
    %v1140 = vld [vmem:[#allocation8 + $0xfa8] sm:$0xff]
    %v1141 = vld [vmem:[#allocation8 + $0xfb0] sm:$0xff]
    %v1142 = vld [vmem:[#allocation8 + $0xfb8] sm:$0xff]
    %v1143 = vld [vmem:[#allocation8 + $0xfc0] sm:$0xff]
    %v1144 = vld [vmem:[#allocation8 + $0xfc8] sm:$0xff]
    %v1145 = vld [vmem:[#allocation8 + $0xfd0] sm:$0xff]
    %v1146 = vld [vmem:[#allocation8 + $0xfd8] sm:$0xff]
    %v1147 = vld [vmem:[#allocation8 + $0xfe0] sm:$0xff]
    %v1148 = vld [vmem:[#allocation8 + $0xfe8] sm:$0xff]
    %v1149 = vld [vmem:[#allocation8 + $0xff0] sm:$0xff]
    %v1150 = vld [vmem:[#allocation8 + $0xff8] sm:$0xff]
    %v1151 = vld [vmem:[#allocation8 + $0x1000] sm:$0xff]
    %v1152 = vld [vmem:[#allocation8 + $0x1008] sm:$0xff]
    %v1153 = vld [vmem:[#allocation8 + $0x1010] sm:$0xff]
    %v1154 = vld [vmem:[#allocation8 + $0x1018] sm:$0xff]
    %v1155 = vld [vmem:[#allocation8 + $0x1020] sm:$0xff]
    %v1156 = vld [vmem:[#allocation8 + $0x1028] sm:$0xff]
    %v1157 = vld [vmem:[#allocation8 + $0x1030] sm:$0xff]
    %v1158 = vld [vmem:[#allocation8 + $0x1038] sm:$0xff]
    %v1159 = vld [vmem:[#allocation8 + $0x1040] sm:$0xff]
    %v1160 = vld [vmem:[#allocation8 + $0x1048] sm:$0xff]
    %v1161 = vld [vmem:[#allocation8 + $0x1050] sm:$0xff]
    %v1162 = vld [vmem:[#allocation8 + $0x1058] sm:$0xff]
    %v1163 = vld [vmem:[#allocation8 + $0x1060] sm:$0xff]
    %v1164 = vld [vmem:[#allocation8 + $0x1068] sm:$0xff]
    %v1165 = vld [vmem:[#allocation8 + $0x1070] sm:$0xff]
    %v1166 = vld [vmem:[#allocation8 + $0x1078] sm:$0xff]
    %v1167 = vld [vmem:[#allocation8 + $0x1080] sm:$0xff]
    %v1168 = vld [vmem:[#allocation8 + $0x1088] sm:$0xff]
    %v1169 = vld [vmem:[#allocation8 + $0x1090] sm:$0xff]
    %v1170 = vld [vmem:[#allocation8 + $0x1098] sm:$0xff]
    %v1171 = vld [vmem:[#allocation8 + $0x10a0] sm:$0xff]
    %v1172 = vld [vmem:[#allocation8 + $0x10a8] sm:$0xff]
    %v1173 = vld [vmem:[#allocation8 + $0x10b0] sm:$0xff]
    %v1174 = vld [vmem:[#allocation8 + $0x10b8] sm:$0xff]
    %v1175 = vld [vmem:[#allocation8 + $0x10c0] sm:$0xff]
    %v1176 = vld [vmem:[#allocation8 + $0x10c8] sm:$0xff]
    %v1177 = vld [vmem:[#allocation8 + $0x10d0] sm:$0xff]
    %v1178 = vld [vmem:[#allocation8 + $0x10d8] sm:$0xff]
    %v1179 = vld [vmem:[#allocation8 + $0x10e0] sm:$0xff]
    %v1180 = vld [vmem:[#allocation8 + $0x10e8] sm:$0xff]
    %v1181 = vld [vmem:[#allocation8 + $0x10f0] sm:$0xff]
    %v1182 = vld [vmem:[#allocation8 + $0x10f8] sm:$0xff]
    %v1183 = vld [vmem:[#allocation8 + $0x1100] sm:$0xff]
    %v1184 = vld [vmem:[#allocation8 + $0x1108] sm:$0xff]
    %v1185 = vld [vmem:[#allocation8 + $0x1110] sm:$0xff]
    %v1186 = vld [vmem:[#allocation8 + $0x1118] sm:$0xff]
    %v1187 = vld [vmem:[#allocation8 + $0x1120] sm:$0xff]
    %v1188 = vld [vmem:[#allocation8 + $0x1128] sm:$0xff]
    %v1189 = vld [vmem:[#allocation8 + $0x1130] sm:$0xff]
    %v1190 = vld [vmem:[#allocation8 + $0x1138] sm:$0xff]
    %v1191 = vld [vmem:[#allocation8 + $0x1140] sm:$0xff]
    %v1192 = vld [vmem:[#allocation8 + $0x1148] sm:$0xff]
    %v1193 = vld [vmem:[#allocation8 + $0x1150] sm:$0xff]
    %v1194 = vld [vmem:[#allocation8 + $0x1158] sm:$0xff]
    %v1195 = vld [vmem:[#allocation8 + $0x1160] sm:$0xff]
    %v1196 = vld [vmem:[#allocation8 + $0x1168] sm:$0xff]
    %v1197 = vld [vmem:[#allocation8 + $0x1170] sm:$0xff]
    %v1198 = vld [vmem:[#allocation8 + $0x1178] sm:$0xff]
    %v1199 = vld [vmem:[#allocation8 + $0x1180] sm:$0xff]
    %v1200 = vld [vmem:[#allocation8 + $0x1188] sm:$0xff]
    %v1201 = vld [vmem:[#allocation8 + $0x1190] sm:$0xff]
    %v1202 = vld [vmem:[#allocation8 + $0x1198] sm:$0xff]
    %v1203 = vld [vmem:[#allocation8 + $0x11a0] sm:$0xff]
    %v1204 = vld [vmem:[#allocation8 + $0x11a8] sm:$0xff]
    %v1205 = vld [vmem:[#allocation8 + $0x11b0] sm:$0xff]
    %v1206 = vld [vmem:[#allocation8 + $0x11b8] sm:$0xff]
    %v1207 = vld [vmem:[#allocation8 + $0x11c0] sm:$0xff]
    %v1208 = vld [vmem:[#allocation8 + $0x11c8] sm:$0xff]
    %v1209 = vld [vmem:[#allocation8 + $0x11d0] sm:$0xff]
    %v1210 = vld [vmem:[#allocation8 + $0x11d8] sm:$0xff]
    %v1211 = vld [vmem:[#allocation8 + $0x11e0] sm:$0xff]
    %v1212 = vld [vmem:[#allocation8 + $0x11e8] sm:$0xff]
    %v1213 = vld [vmem:[#allocation8 + $0x11f0] sm:$0xff]
    %v1214 = vld [vmem:[#allocation8 + $0x11f8] sm:$0xff]
    %v1215 = vld [vmem:[#allocation8 + $0x1200] sm:$0xff]
    %v1216 = vld [vmem:[#allocation8 + $0x1208] sm:$0xff]
    %v1217 = vld [vmem:[#allocation8 + $0x1210] sm:$0xff]
    %v1218 = vld [vmem:[#allocation8 + $0x1218] sm:$0xff]
    %v1219 = vld [vmem:[#allocation8 + $0x1220] sm:$0xff]
    %v1220 = vld [vmem:[#allocation8 + $0x1228] sm:$0xff]
    %v1221 = vld [vmem:[#allocation8 + $0x1230] sm:$0xff]
    %v1222 = vld [vmem:[#allocation8 + $0x1238] sm:$0xff]
    %v1223 = vld [vmem:[#allocation8 + $0x1240] sm:$0xff]
    %v1224 = vld [vmem:[#allocation8 + $0x1248] sm:$0xff]
    %v1225 = vld [vmem:[#allocation8 + $0x1250] sm:$0xff]
    %v1226 = vld [vmem:[#allocation8 + $0x1258] sm:$0xff]
    %v1227 = vld [vmem:[#allocation8 + $0x1260] sm:$0xff]
    %v1228 = vld [vmem:[#allocation8 + $0x1268] sm:$0xff]
    %v1229 = vld [vmem:[#allocation8 + $0x1270] sm:$0xff]
    %v1230 = vld [vmem:[#allocation8 + $0x1278] sm:$0xff]
    %v1231 = vld [vmem:[#allocation8 + $0x1280] sm:$0xff]
    %v1232 = vld [vmem:[#allocation8 + $0x1288] sm:$0xff]
    %v1233 = vld [vmem:[#allocation8 + $0x1290] sm:$0xff]
    %v1234 = vld [vmem:[#allocation8 + $0x1298] sm:$0xff]
    %v1235 = vld [vmem:[#allocation8 + $0x12a0] sm:$0xff]
    %v1236 = vld [vmem:[#allocation8 + $0x12a8] sm:$0xff]
    %v1237 = vld [vmem:[#allocation8 + $0x12b0] sm:$0xff]
    %v1238 = vld [vmem:[#allocation8 + $0x12b8] sm:$0xff]
    %v1239 = vld [vmem:[#allocation8 + $0x12c0] sm:$0xff]
    %v1240 = vld [vmem:[#allocation8 + $0x12c8] sm:$0xff]
    %v1241 = vld [vmem:[#allocation8 + $0x12d0] sm:$0xff]
    %v1242 = vld [vmem:[#allocation8 + $0x12d8] sm:$0xff]
    %v1243 = vld [vmem:[#allocation8 + $0x12e0] sm:$0xff]
    %v1244 = vld [vmem:[#allocation8 + $0x12e8] sm:$0xff]
    %v1245 = vld [vmem:[#allocation8 + $0x12f0] sm:$0xff]
    %v1246 = vld [vmem:[#allocation8 + $0x12f8] sm:$0xff]
    %v1247 = vld [vmem:[#allocation8 + $0x1300] sm:$0xff]
    %v1248 = vld [vmem:[#allocation8 + $0x1308] sm:$0xff]
    %v1249 = vld [vmem:[#allocation8 + $0x1310] sm:$0xff]
    %v1250 = vld [vmem:[#allocation8 + $0x1318] sm:$0xff]
    %v1251 = vld [vmem:[#allocation8 + $0x1320] sm:$0xff]
    %v1252 = vld [vmem:[#allocation8 + $0x1328] sm:$0xff]
    %v1253 = vld [vmem:[#allocation8 + $0x1330] sm:$0xff]
    %v1254 = vld [vmem:[#allocation8 + $0x1338] sm:$0xff]
    %v1255 = vld [vmem:[#allocation8 + $0x1340] sm:$0xff]
    %v1256 = vld [vmem:[#allocation8 + $0x1348] sm:$0xff]
    %v1257 = vld [vmem:[#allocation8 + $0x1350] sm:$0xff]
    %v1258 = vld [vmem:[#allocation8 + $0x1358] sm:$0xff]
    %v1259 = vld [vmem:[#allocation8 + $0x1360] sm:$0xff]
    %v1260 = vld [vmem:[#allocation8 + $0x1368] sm:$0xff]
    %v1261 = vld [vmem:[#allocation8 + $0x1370] sm:$0xff]
    %v1262 = vld [vmem:[#allocation8 + $0x1378] sm:$0xff]
    %v1263 = vld [vmem:[#allocation8 + $0x1380] sm:$0xff]
    %v1264 = vld [vmem:[#allocation8 + $0x1388] sm:$0xff]
    %v1265 = vld [vmem:[#allocation8 + $0x1390] sm:$0xff]
    %v1266 = vld [vmem:[#allocation8 + $0x1398] sm:$0xff]
    %v1267 = vld [vmem:[#allocation8 + $0x13a0] sm:$0xff]
    %v1268 = vld [vmem:[#allocation8 + $0x13a8] sm:$0xff]
    %v1269 = vld [vmem:[#allocation8 + $0x13b0] sm:$0xff]
    %v1270 = vld [vmem:[#allocation8 + $0x13b8] sm:$0xff]
    %v1271 = vld [vmem:[#allocation8 + $0x13c0] sm:$0xff]
    %v1272 = vld [vmem:[#allocation8 + $0x13c8] sm:$0xff]
    %v1273 = vld [vmem:[#allocation8 + $0x13d0] sm:$0xff]
    %v1274 = vld [vmem:[#allocation8 + $0x13d8] sm:$0xff]
    %v1275 = vld [vmem:[#allocation8 + $0x13e0] sm:$0xff]
    %v1276 = vld [vmem:[#allocation8 + $0x13e8] sm:$0xff]
    %v1277 = vld [vmem:[#allocation8 + $0x13f0] sm:$0xff]
    %v1278 = vld [vmem:[#allocation8 + $0x13f8] sm:$0xff]
    %v1279 = vld [vmem:[#allocation8 + $0x1400] sm:$0xff]
    %v1280 = vld [vmem:[#allocation8 + $0x1408] sm:$0xff]
    %v1281 = vld [vmem:[#allocation8 + $0x1410] sm:$0xff]
    %v1282 = vld [vmem:[#allocation8 + $0x1418] sm:$0xff]
    %v1283 = vld [vmem:[#allocation8 + $0x1420] sm:$0xff]
    %v1284 = vld [vmem:[#allocation8 + $0x1428] sm:$0xff]
    %v1285 = vld [vmem:[#allocation8 + $0x1430] sm:$0xff]
    %v1286 = vld [vmem:[#allocation8 + $0x1438] sm:$0xff]
    %v1287 = vld [vmem:[#allocation8 + $0x1440] sm:$0xff]
    %v1288 = vld [vmem:[#allocation8 + $0x1448] sm:$0xff]
    %v1289 = vld [vmem:[#allocation8 + $0x1450] sm:$0xff]
    %v1290 = vld [vmem:[#allocation8 + $0x1458] sm:$0xff]
    %v1291 = vld [vmem:[#allocation8 + $0x1460] sm:$0xff]
    %v1292 = vld [vmem:[#allocation8 + $0x1468] sm:$0xff]
    %v1293 = vld [vmem:[#allocation8 + $0x1470] sm:$0xff]
    %v1294 = vld [vmem:[#allocation8 + $0x1478] sm:$0xff]
    %v1295 = vld [vmem:[#allocation8 + $0x1480] sm:$0xff]
    %v1296 = vld [vmem:[#allocation8 + $0x1488] sm:$0xff]
    %v1297 = vld [vmem:[#allocation8 + $0x1490] sm:$0xff]
    %v1298 = vld [vmem:[#allocation8 + $0x1498] sm:$0xff]
    %v1299 = vld [vmem:[#allocation8 + $0x14a0] sm:$0xff]
    %v1300 = vld [vmem:[#allocation8 + $0x14a8] sm:$0xff]
    %v1301 = vld [vmem:[#allocation8 + $0x14b0] sm:$0xff]
    %v1302 = vld [vmem:[#allocation8 + $0x14b8] sm:$0xff]
    %v1303 = vld [vmem:[#allocation8 + $0x14c0] sm:$0xff]
    %v1304 = vld [vmem:[#allocation8 + $0x14c8] sm:$0xff]
    %v1305 = vld [vmem:[#allocation8 + $0x14d0] sm:$0xff]
    %v1306 = vld [vmem:[#allocation8 + $0x14d8] sm:$0xff]
    %v1307 = vld [vmem:[#allocation8 + $0x14e0] sm:$0xff]
    %v1308 = vld [vmem:[#allocation8 + $0x14e8] sm:$0xff]
    %v1309 = vld [vmem:[#allocation8 + $0x14f0] sm:$0xff]
    %v1310 = vld [vmem:[#allocation8 + $0x14f8] sm:$0xff]
    %v1311 = vld [vmem:[#allocation8 + $0x1500] sm:$0xff]
    %v1312 = vld [vmem:[#allocation8 + $0x1508] sm:$0xff]
    %v1313 = vld [vmem:[#allocation8 + $0x1510] sm:$0xff]
    %v1314 = vld [vmem:[#allocation8 + $0x1518] sm:$0xff]
    %v1315 = vld [vmem:[#allocation8 + $0x1520] sm:$0xff]
    %v1316 = vld [vmem:[#allocation8 + $0x1528] sm:$0xff]
    %v1317 = vld [vmem:[#allocation8 + $0x1530] sm:$0xff]
    %v1318 = vld [vmem:[#allocation8 + $0x1538] sm:$0xff]
    %v1319 = vld [vmem:[#allocation8 + $0x1540] sm:$0xff]
    %v1320 = vld [vmem:[#allocation8 + $0x1548] sm:$0xff]
    %v1321 = vld [vmem:[#allocation8 + $0x1550] sm:$0xff]
    %v1322 = vld [vmem:[#allocation8 + $0x1558] sm:$0xff]
    %v1323 = vld [vmem:[#allocation8 + $0x1560] sm:$0xff]
    %v1324 = vld [vmem:[#allocation8 + $0x1568] sm:$0xff]
    %v1325 = vld [vmem:[#allocation8 + $0x1570] sm:$0xff]
    %v1326 = vld [vmem:[#allocation8 + $0x1578] sm:$0xff]
    %v1327 = vld [vmem:[#allocation8 + $0x1580] sm:$0xff]
    %v1328 = vld [vmem:[#allocation8 + $0x1588] sm:$0xff]
    %v1329 = vld [vmem:[#allocation8 + $0x1590] sm:$0xff]
    %v1330 = vld [vmem:[#allocation8 + $0x1598] sm:$0xff]
    %v1331 = vld [vmem:[#allocation8 + $0x15a0] sm:$0xff]
    %v1332 = vld [vmem:[#allocation8 + $0x15a8] sm:$0xff]
    %v1333 = vld [vmem:[#allocation8 + $0x15b0] sm:$0xff]
    %v1334 = vld [vmem:[#allocation8 + $0x15b8] sm:$0xff]
    %v1335 = vld [vmem:[#allocation8 + $0x15c0] sm:$0xff]
    %v1336 = vld [vmem:[#allocation8 + $0x15c8] sm:$0xff]
    %v1337 = vld [vmem:[#allocation8 + $0x15d0] sm:$0xff]
    %v1338 = vld [vmem:[#allocation8 + $0x15d8] sm:$0xff]
    %v1339 = vld [vmem:[#allocation8 + $0x15e0] sm:$0xff]
    %v1340 = vld [vmem:[#allocation8 + $0x15e8] sm:$0xff]
    %v1341 = vld [vmem:[#allocation8 + $0x15f0] sm:$0xff]
    %v1342 = vld [vmem:[#allocation8 + $0x15f8] sm:$0xff]
    %v1343 = vld [vmem:[#allocation8 + $0x1600] sm:$0xff]
    %v1344 = vld [vmem:[#allocation8 + $0x1608] sm:$0xff]
    %v1345 = vld [vmem:[#allocation8 + $0x1610] sm:$0xff]
    %v1346 = vld [vmem:[#allocation8 + $0x1618] sm:$0xff]
    %v1347 = vld [vmem:[#allocation8 + $0x1620] sm:$0xff]
    %v1348 = vld [vmem:[#allocation8 + $0x1628] sm:$0xff]
    %v1349 = vld [vmem:[#allocation8 + $0x1630] sm:$0xff]
    %v1350 = vld [vmem:[#allocation8 + $0x1638] sm:$0xff]
    %v1351 = vld [vmem:[#allocation8 + $0x1640] sm:$0xff]
    %v1352 = vld [vmem:[#allocation8 + $0x1648] sm:$0xff]
    %v1353 = vld [vmem:[#allocation8 + $0x1650] sm:$0xff]
    %v1354 = vld [vmem:[#allocation8 + $0x1658] sm:$0xff]
    %v1355 = vld [vmem:[#allocation8 + $0x1660] sm:$0xff]
    %v1356 = vld [vmem:[#allocation8 + $0x1668] sm:$0xff]
    %v1357 = vld [vmem:[#allocation8 + $0x1670] sm:$0xff]
    %v1358 = vld [vmem:[#allocation8 + $0x1678] sm:$0xff]
    %v1359 = vld [vmem:[#allocation8 + $0x1680] sm:$0xff]
    %v1360 = vld [vmem:[#allocation8 + $0x1688] sm:$0xff]
    %v1361 = vld [vmem:[#allocation8 + $0x1690] sm:$0xff]
    %v1362 = vld [vmem:[#allocation8 + $0x1698] sm:$0xff]
    %v1363 = vld [vmem:[#allocation8 + $0x16a0] sm:$0xff]
    %v1364 = vld [vmem:[#allocation8 + $0x16a8] sm:$0xff]
    %v1365 = vld [vmem:[#allocation8 + $0x16b0] sm:$0xff]
    %v1366 = vld [vmem:[#allocation8 + $0x16b8] sm:$0xff]
    %v1367 = vld [vmem:[#allocation8 + $0x16c0] sm:$0xff]
    %v1368 = vld [vmem:[#allocation8 + $0x16c8] sm:$0xff]
    %v1369 = vld [vmem:[#allocation8 + $0x16d0] sm:$0xff]
    %v1370 = vld [vmem:[#allocation8 + $0x16d8] sm:$0xff]
    %v1371 = vld [vmem:[#allocation8 + $0x16e0] sm:$0xff]
    %v1372 = vld [vmem:[#allocation8 + $0x16e8] sm:$0xff]
    %v1373 = vld [vmem:[#allocation8 + $0x16f0] sm:$0xff]
    %v1374 = vld [vmem:[#allocation8 + $0x16f8] sm:$0xff]
    %v1375 = vld [vmem:[#allocation8 + $0x1700] sm:$0xff]
    %v1376 = vld [vmem:[#allocation8 + $0x1708] sm:$0xff]
    %v1377 = vld [vmem:[#allocation8 + $0x1710] sm:$0xff]
    %v1378 = vld [vmem:[#allocation8 + $0x1718] sm:$0xff]
    %v1379 = vld [vmem:[#allocation8 + $0x1720] sm:$0xff]
    %v1380 = vld [vmem:[#allocation8 + $0x1728] sm:$0xff]
    %v1381 = vld [vmem:[#allocation8 + $0x1730] sm:$0xff]
    %v1382 = vld [vmem:[#allocation8 + $0x1738] sm:$0xff]
    %v1383 = vld [vmem:[#allocation8 + $0x1740] sm:$0xff]
    %v1384 = vld [vmem:[#allocation8 + $0x1748] sm:$0xff]
    %v1385 = vld [vmem:[#allocation8 + $0x1750] sm:$0xff]
    %v1386 = vld [vmem:[#allocation8 + $0x1758] sm:$0xff]
    %v1387 = vld [vmem:[#allocation8 + $0x1760] sm:$0xff]
    %v1388 = vld [vmem:[#allocation8 + $0x1768] sm:$0xff]
    %v1389 = vld [vmem:[#allocation8 + $0x1770] sm:$0xff]
    %v1390 = vld [vmem:[#allocation8 + $0x1778] sm:$0xff]
    %v1391 = vld [vmem:[#allocation8 + $0x1780] sm:$0xff]
    %v1392 = vld [vmem:[#allocation8 + $0x1788] sm:$0xff]
    %v1393 = vld [vmem:[#allocation8 + $0x1790] sm:$0xff]
    %v1394 = vld [vmem:[#allocation8 + $0x1798] sm:$0xff]
    %v1395 = vld [vmem:[#allocation8 + $0x17a0] sm:$0xff]
    %v1396 = vld [vmem:[#allocation8 + $0x17a8] sm:$0xff]
    %v1397 = vld [vmem:[#allocation8 + $0x17b0] sm:$0xff]
    %v1398 = vld [vmem:[#allocation8 + $0x17b8] sm:$0xff]
    %v1399 = vld [vmem:[#allocation8 + $0x17c0] sm:$0xff]
    %v1400 = vld [vmem:[#allocation8 + $0x17c8] sm:$0xff]
    %v1401 = vld [vmem:[#allocation8 + $0x17d0] sm:$0xff]
    %v1402 = vld [vmem:[#allocation8 + $0x17d8] sm:$0xff]
    %v1403 = vld [vmem:[#allocation8 + $0x17e0] sm:$0xff]
    %v1404 = vld [vmem:[#allocation8 + $0x17e8] sm:$0xff]
    %v1405 = vld [vmem:[#allocation8 + $0x17f0] sm:$0xff]
    %v1406 = vld [vmem:[#allocation8 + $0x17f8] sm:$0xff]
    %v1407 = vld [vmem:[#allocation8 + $0x1800] sm:$0xff]
    %v1408 = vld [vmem:[#allocation8 + $0x1808] sm:$0xff]
    %v1409 = vld [vmem:[#allocation8 + $0x1810] sm:$0xff]
    %v1410 = vld [vmem:[#allocation8 + $0x1818] sm:$0xff]
    %v1411 = vld [vmem:[#allocation8 + $0x1820] sm:$0xff]
    %v1412 = vld [vmem:[#allocation8 + $0x1828] sm:$0xff]
    %v1413 = vld [vmem:[#allocation8 + $0x1830] sm:$0xff]
    %v1414 = vld [vmem:[#allocation8 + $0x1838] sm:$0xff]
    %v1415 = vld [vmem:[#allocation8 + $0x1840] sm:$0xff]
    %v1416 = vld [vmem:[#allocation8 + $0x1848] sm:$0xff]
    %v1417 = vld [vmem:[#allocation8 + $0x1850] sm:$0xff]
    %v1418 = vld [vmem:[#allocation8 + $0x1858] sm:$0xff]
    %v1419 = vld [vmem:[#allocation8 + $0x1860] sm:$0xff]
    %v1420 = vld [vmem:[#allocation8 + $0x1868] sm:$0xff]
    %v1421 = vld [vmem:[#allocation8 + $0x1870] sm:$0xff]
    %v1422 = vld [vmem:[#allocation8 + $0x1878] sm:$0xff]
    %v1423 = vld [vmem:[#allocation8 + $0x1880] sm:$0xff]
    %v1424 = vld [vmem:[#allocation8 + $0x1888] sm:$0xff]
    %v1425 = vld [vmem:[#allocation8 + $0x1890] sm:$0xff]
    %v1426 = vld [vmem:[#allocation8 + $0x1898] sm:$0xff]
    %v1427 = vld [vmem:[#allocation8 + $0x18a0] sm:$0xff]
    %v1428 = vld [vmem:[#allocation8 + $0x18a8] sm:$0xff]
    %v1429 = vld [vmem:[#allocation8 + $0x18b0] sm:$0xff]
    %v1430 = vld [vmem:[#allocation8 + $0x18b8] sm:$0xff]
    %v1431 = vld [vmem:[#allocation8 + $0x18c0] sm:$0xff]
    %v1432 = vld [vmem:[#allocation8 + $0x18c8] sm:$0xff]
    %v1433 = vld [vmem:[#allocation8 + $0x18d0] sm:$0xff]
    %v1434 = vld [vmem:[#allocation8 + $0x18d8] sm:$0xff]
    %v1435 = vld [vmem:[#allocation8 + $0x18e0] sm:$0xff]
    %v1436 = vld [vmem:[#allocation8 + $0x18e8] sm:$0xff]
    %v1437 = vld [vmem:[#allocation8 + $0x18f0] sm:$0xff]
    %v1438 = vld [vmem:[#allocation8 + $0x18f8] sm:$0xff]
    %v1439 = vld [vmem:[#allocation8 + $0x1900] sm:$0xff]
    %v1440 = vld [vmem:[#allocation8 + $0x1908] sm:$0xff]
    %v1441 = vld [vmem:[#allocation8 + $0x1910] sm:$0xff]
    %v1442 = vld [vmem:[#allocation8 + $0x1918] sm:$0xff]
    %v1443 = vld [vmem:[#allocation8 + $0x1920] sm:$0xff]
    %v1444 = vld [vmem:[#allocation8 + $0x1928] sm:$0xff]
    %v1445 = vld [vmem:[#allocation8 + $0x1930] sm:$0xff]
    %v1446 = vld [vmem:[#allocation8 + $0x1938] sm:$0xff]
    %v1447 = vld [vmem:[#allocation8 + $0x1940] sm:$0xff]
    %v1448 = vld [vmem:[#allocation8 + $0x1948] sm:$0xff]
    %v1449 = vld [vmem:[#allocation8 + $0x1950] sm:$0xff]
    %v1450 = vld [vmem:[#allocation8 + $0x1958] sm:$0xff]
    %v1451 = vld [vmem:[#allocation8 + $0x1960] sm:$0xff]
    %v1452 = vld [vmem:[#allocation8 + $0x1968] sm:$0xff]
    %v1453 = vld [vmem:[#allocation8 + $0x1970] sm:$0xff]
    %v1454 = vld [vmem:[#allocation8 + $0x1978] sm:$0xff]
    %v1455 = vld [vmem:[#allocation8 + $0x1980] sm:$0xff]
    %v1456 = vld [vmem:[#allocation8 + $0x1988] sm:$0xff]
    %v1457 = vld [vmem:[#allocation8 + $0x1990] sm:$0xff]
    %v1458 = vld [vmem:[#allocation8 + $0x1998] sm:$0xff]
    %v1459 = vld [vmem:[#allocation8 + $0x19a0] sm:$0xff]
    %v1460 = vld [vmem:[#allocation8 + $0x19a8] sm:$0xff]
    %v1461 = vld [vmem:[#allocation8 + $0x19b0] sm:$0xff]
    %v1462 = vld [vmem:[#allocation8 + $0x19b8] sm:$0xff]
    %v1463 = vld [vmem:[#allocation8 + $0x19c0] sm:$0xff]
    %v1464 = vld [vmem:[#allocation8 + $0x19c8] sm:$0xff]
    %v1465 = vld [vmem:[#allocation8 + $0x19d0] sm:$0xff]
    %v1466 = vld [vmem:[#allocation8 + $0x19d8] sm:$0xff]
    %v1467 = vld [vmem:[#allocation8 + $0x19e0] sm:$0xff]
    %v1468 = vld [vmem:[#allocation8 + $0x19e8] sm:$0xff]
    %v1469 = vld [vmem:[#allocation8 + $0x19f0] sm:$0xff]
    %v1470 = vld [vmem:[#allocation8 + $0x19f8] sm:$0xff]
    %v1471 = vld [vmem:[#allocation8 + $0x1a00] sm:$0xff]
    %v1472 = vld [vmem:[#allocation8 + $0x1a08] sm:$0xff]
    %v1473 = vld [vmem:[#allocation8 + $0x1a10] sm:$0xff]
    %v1474 = vld [vmem:[#allocation8 + $0x1a18] sm:$0xff]
    %v1475 = vld [vmem:[#allocation8 + $0x1a20] sm:$0xff]
    %v1476 = vld [vmem:[#allocation8 + $0x1a28] sm:$0xff]
    %v1477 = vld [vmem:[#allocation8 + $0x1a30] sm:$0xff]
    %v1478 = vld [vmem:[#allocation8 + $0x1a38] sm:$0xff]
    %v1479 = vld [vmem:[#allocation8 + $0x1a40] sm:$0xff]
    %v1480 = vld [vmem:[#allocation8 + $0x1a48] sm:$0xff]
    %v1481 = vld [vmem:[#allocation8 + $0x1a50] sm:$0xff]
    %v1482 = vld [vmem:[#allocation8 + $0x1a58] sm:$0xff]
    %v1483 = vld [vmem:[#allocation8 + $0x1a60] sm:$0xff]
    %v1484 = vld [vmem:[#allocation8 + $0x1a68] sm:$0xff]
    %v1485 = vld [vmem:[#allocation8 + $0x1a70] sm:$0xff]
    %v1486 = vld [vmem:[#allocation8 + $0x1a78] sm:$0xff]
    %v1487 = vld [vmem:[#allocation8 + $0x1a80] sm:$0xff]
    %v1488 = vld [vmem:[#allocation8 + $0x1a88] sm:$0xff]
    %v1489 = vld [vmem:[#allocation8 + $0x1a90] sm:$0xff]
    %v1490 = vld [vmem:[#allocation8 + $0x1a98] sm:$0xff]
    %v1491 = vld [vmem:[#allocation8 + $0x1aa0] sm:$0xff]
    %v1492 = vld [vmem:[#allocation8 + $0x1aa8] sm:$0xff]
    %v1493 = vld [vmem:[#allocation8 + $0x1ab0] sm:$0xff]
    %v1494 = vld [vmem:[#allocation8 + $0x1ab8] sm:$0xff]
    %v1495 = vld [vmem:[#allocation8 + $0x1ac0] sm:$0xff]
    %v1496 = vld [vmem:[#allocation8 + $0x1ac8] sm:$0xff]
    %v1497 = vld [vmem:[#allocation8 + $0x1ad0] sm:$0xff]
    %v1498 = vld [vmem:[#allocation8 + $0x1ad8] sm:$0xff]
    %v1499 = vld [vmem:[#allocation8 + $0x1ae0] sm:$0xff]
    %v1500 = vld [vmem:[#allocation8 + $0x1ae8] sm:$0xff]
    %v1501 = vld [vmem:[#allocation8 + $0x1af0] sm:$0xff]
    %v1502 = vld [vmem:[#allocation8 + $0x1af8] sm:$0xff]
    %v1503 = vld [vmem:[#allocation8 + $0x1b00] sm:$0xff]
    %v1504 = vld [vmem:[#allocation8 + $0x1b08] sm:$0xff]
    %v1505 = vld [vmem:[#allocation8 + $0x1b10] sm:$0xff]
    %v1506 = vld [vmem:[#allocation8 + $0x1b18] sm:$0xff]
    %v1507 = vld [vmem:[#allocation8 + $0x1b20] sm:$0xff]
    %v1508 = vld [vmem:[#allocation8 + $0x1b28] sm:$0xff]
    %v1509 = vld [vmem:[#allocation8 + $0x1b30] sm:$0xff]
    %v1510 = vld [vmem:[#allocation8 + $0x1b38] sm:$0xff]
    %v1511 = vld [vmem:[#allocation8 + $0x1b40] sm:$0xff]
    %v1512 = vld [vmem:[#allocation8 + $0x1b48] sm:$0xff]
    %v1513 = vld [vmem:[#allocation8 + $0x1b50] sm:$0xff]
    %v1514 = vld [vmem:[#allocation8 + $0x1b58] sm:$0xff]
    %v1515 = vld [vmem:[#allocation8 + $0x1b60] sm:$0xff]
    %v1516 = vld [vmem:[#allocation8 + $0x1b68] sm:$0xff]
    %v1517 = vld [vmem:[#allocation8 + $0x1b70] sm:$0xff]
    %v1518 = vld [vmem:[#allocation8 + $0x1b78] sm:$0xff]
    %v1519 = vld [vmem:[#allocation8 + $0x1b80] sm:$0xff]
    %v1520 = vld [vmem:[#allocation8 + $0x1b88] sm:$0xff]
    %v1521 = vld [vmem:[#allocation8 + $0x1b90] sm:$0xff]
    %v1522 = vld [vmem:[#allocation8 + $0x1b98] sm:$0xff]
    %v1523 = vld [vmem:[#allocation8 + $0x1ba0] sm:$0xff]
    %v1524 = vld [vmem:[#allocation8 + $0x1ba8] sm:$0xff]
    %v1525 = vld [vmem:[#allocation8 + $0x1bb0] sm:$0xff]
    %v1526 = vld [vmem:[#allocation8 + $0x1bb8] sm:$0xff]
    %v1527 = vld [vmem:[#allocation8 + $0x1bc0] sm:$0xff]
    %v1528 = vld [vmem:[#allocation8 + $0x1bc8] sm:$0xff]
    %v1529 = vld [vmem:[#allocation8 + $0x1bd0] sm:$0xff]
    %v1530 = vld [vmem:[#allocation8 + $0x1bd8] sm:$0xff]
    %v1531 = vld [vmem:[#allocation8 + $0x1be0] sm:$0xff]
    %v1532 = vld [vmem:[#allocation8 + $0x1be8] sm:$0xff]
    %v1533 = vld [vmem:[#allocation8 + $0x1bf0] sm:$0xff]
    %v1534 = vld [vmem:[#allocation8 + $0x1bf8] sm:$0xff]
    %v1535 = vld [vmem:[#allocation8 + $0x1c00] sm:$0xff]
    %v1536 = vld [vmem:[#allocation8 + $0x1c08] sm:$0xff]
    %v1537 = vld [vmem:[#allocation8 + $0x1c10] sm:$0xff]
    %v1538 = vld [vmem:[#allocation8 + $0x1c18] sm:$0xff]
    %v1539 = vld [vmem:[#allocation8 + $0x1c20] sm:$0xff]
    %v1540 = vld [vmem:[#allocation8 + $0x1c28] sm:$0xff]
    %v1541 = vld [vmem:[#allocation8 + $0x1c30] sm:$0xff]
    %v1542 = vld [vmem:[#allocation8 + $0x1c38] sm:$0xff]
    %v1543 = vld [vmem:[#allocation8 + $0x1c40] sm:$0xff]
    %v1544 = vld [vmem:[#allocation8 + $0x1c48] sm:$0xff]
    %v1545 = vld [vmem:[#allocation8 + $0x1c50] sm:$0xff]
    %v1546 = vld [vmem:[#allocation8 + $0x1c58] sm:$0xff]
    %v1547 = vld [vmem:[#allocation8 + $0x1c60] sm:$0xff]
    %v1548 = vld [vmem:[#allocation8 + $0x1c68] sm:$0xff]
    %v1549 = vld [vmem:[#allocation8 + $0x1c70] sm:$0xff]
    %v1550 = vld [vmem:[#allocation8 + $0x1c78] sm:$0xff]
    %v1551 = vld [vmem:[#allocation8 + $0x1c80] sm:$0xff]
    %v1552 = vld [vmem:[#allocation8 + $0x1c88] sm:$0xff]
    %v1553 = vld [vmem:[#allocation8 + $0x1c90] sm:$0xff]
    %v1554 = vld [vmem:[#allocation8 + $0x1c98] sm:$0xff]
    %v1555 = vld [vmem:[#allocation8 + $0x1ca0] sm:$0xff]
    %v1556 = vld [vmem:[#allocation8 + $0x1ca8] sm:$0xff]
    %v1557 = vld [vmem:[#allocation8 + $0x1cb0] sm:$0xff]
    %v1558 = vld [vmem:[#allocation8 + $0x1cb8] sm:$0xff]
    %v1559 = vld [vmem:[#allocation8 + $0x1cc0] sm:$0xff]
    %v1560 = vld [vmem:[#allocation8 + $0x1cc8] sm:$0xff]
    %v1561 = vld [vmem:[#allocation8 + $0x1cd0] sm:$0xff]
    %v1562 = vld [vmem:[#allocation8 + $0x1cd8] sm:$0xff]
    %v1563 = vld [vmem:[#allocation8 + $0x1ce0] sm:$0xff]
    %v1564 = vld [vmem:[#allocation8 + $0x1ce8] sm:$0xff]
    %v1565 = vld [vmem:[#allocation8 + $0x1cf0] sm:$0xff]
    %v1566 = vld [vmem:[#allocation8 + $0x1cf8] sm:$0xff]
    %v1567 = vld [vmem:[#allocation8 + $0x1d00] sm:$0xff]
    %v1568 = vld [vmem:[#allocation8 + $0x1d08] sm:$0xff]
    %v1569 = vld [vmem:[#allocation8 + $0x1d10] sm:$0xff]
    %v1570 = vld [vmem:[#allocation8 + $0x1d18] sm:$0xff]
    %v1571 = vld [vmem:[#allocation8 + $0x1d20] sm:$0xff]
    %v1572 = vld [vmem:[#allocation8 + $0x1d28] sm:$0xff]
    %v1573 = vld [vmem:[#allocation8 + $0x1d30] sm:$0xff]
    %v1574 = vld [vmem:[#allocation8 + $0x1d38] sm:$0xff]
    %v1575 = vld [vmem:[#allocation8 + $0x1d40] sm:$0xff]
    %v1576 = vld [vmem:[#allocation8 + $0x1d48] sm:$0xff]
    %v1577 = vld [vmem:[#allocation8 + $0x1d50] sm:$0xff]
    %v1578 = vld [vmem:[#allocation8 + $0x1d58] sm:$0xff]
    %v1579 = vld [vmem:[#allocation8 + $0x1d60] sm:$0xff]
    %v1580 = vld [vmem:[#allocation8 + $0x1d68] sm:$0xff]
    %v1581 = vld [vmem:[#allocation8 + $0x1d70] sm:$0xff]
    %v1582 = vld [vmem:[#allocation8 + $0x1d78] sm:$0xff]
    %v1583 = vld [vmem:[#allocation8 + $0x1d80] sm:$0xff]
    %v1584 = vld [vmem:[#allocation8 + $0x1d88] sm:$0xff]
    %v1585 = vld [vmem:[#allocation8 + $0x1d90] sm:$0xff]
    %v1586 = vld [vmem:[#allocation8 + $0x1d98] sm:$0xff]
    %v1587 = vld [vmem:[#allocation8 + $0x1da0] sm:$0xff]
    %v1588 = vld [vmem:[#allocation8 + $0x1da8] sm:$0xff]
    %v1589 = vld [vmem:[#allocation8 + $0x1db0] sm:$0xff]
    %v1590 = vld [vmem:[#allocation8 + $0x1db8] sm:$0xff]
    %v1591 = vld [vmem:[#allocation8 + $0x1dc0] sm:$0xff]
    %v1592 = vld [vmem:[#allocation8 + $0x1dc8] sm:$0xff]
    %v1593 = vld [vmem:[#allocation8 + $0x1dd0] sm:$0xff]
    %v1594 = vld [vmem:[#allocation8 + $0x1dd8] sm:$0xff]
    %v1595 = vld [vmem:[#allocation8 + $0x1de0] sm:$0xff]
    %v1596 = vld [vmem:[#allocation8 + $0x1de8] sm:$0xff]
    %v1597 = vld [vmem:[#allocation8 + $0x1df0] sm:$0xff]
    %v1598 = vld [vmem:[#allocation8 + $0x1df8] sm:$0xff]
    %v1599 = vld [vmem:[#allocation8 + $0x1e00] sm:$0xff]
    %v1600 = vld [vmem:[#allocation8 + $0x1e08] sm:$0xff]
    %v1601 = vld [vmem:[#allocation8 + $0x1e10] sm:$0xff]
    %v1602 = vld [vmem:[#allocation8 + $0x1e18] sm:$0xff]
    %v1603 = vld [vmem:[#allocation8 + $0x1e20] sm:$0xff]
    %v1604 = vld [vmem:[#allocation8 + $0x1e28] sm:$0xff]
    %v1605 = vld [vmem:[#allocation8 + $0x1e30] sm:$0xff]
    %v1606 = vld [vmem:[#allocation8 + $0x1e38] sm:$0xff]
    %v1607 = vld [vmem:[#allocation8 + $0x1e40] sm:$0xff]
    %v1608 = vld [vmem:[#allocation8 + $0x1e48] sm:$0xff]
    %v1609 = vld [vmem:[#allocation8 + $0x1e50] sm:$0xff]
    %v1610 = vld [vmem:[#allocation8 + $0x1e58] sm:$0xff]
    %v1611 = vld [vmem:[#allocation8 + $0x1e60] sm:$0xff]
    %v1612 = vld [vmem:[#allocation8 + $0x1e68] sm:$0xff]
    %v1613 = vld [vmem:[#allocation8 + $0x1e70] sm:$0xff]
    %v1614 = vld [vmem:[#allocation8 + $0x1e78] sm:$0xff]
    %v1615 = vld [vmem:[#allocation8 + $0x1e80] sm:$0xff]
    %v1616 = vld [vmem:[#allocation8 + $0x1e88] sm:$0xff]
    %v1617 = vld [vmem:[#allocation8 + $0x1e90] sm:$0xff]
    %v1618 = vld [vmem:[#allocation8 + $0x1e98] sm:$0xff]
    %v1619 = vld [vmem:[#allocation8 + $0x1ea0] sm:$0xff]
    %v1620 = vld [vmem:[#allocation8 + $0x1ea8] sm:$0xff]
    %v1621 = vld [vmem:[#allocation8 + $0x1eb0] sm:$0xff]
    %v1622 = vld [vmem:[#allocation8 + $0x1eb8] sm:$0xff]
    %v1623 = vld [vmem:[#allocation8 + $0x1ec0] sm:$0xff]
    %v1624 = vld [vmem:[#allocation8 + $0x1ec8] sm:$0xff]
    %v1625 = vld [vmem:[#allocation8 + $0x1ed0] sm:$0xff]
    %v1626 = vld [vmem:[#allocation8 + $0x1ed8] sm:$0xff]
    %v1627 = vld [vmem:[#allocation8 + $0x1ee0] sm:$0xff]
    %v1628 = vld [vmem:[#allocation8 + $0x1ee8] sm:$0xff]
    %v1629 = vld [vmem:[#allocation8 + $0x1ef0] sm:$0xff]
    %v1630 = vld [vmem:[#allocation8 + $0x1ef8] sm:$0xff]
    %v1631 = vld [vmem:[#allocation8 + $0x1f00] sm:$0xff]
    %v1632 = vld [vmem:[#allocation8 + $0x1f08] sm:$0xff]
    %v1633 = vld [vmem:[#allocation8 + $0x1f10] sm:$0xff]
    %v1634 = vld [vmem:[#allocation8 + $0x1f18] sm:$0xff]
    %v1635 = vld [vmem:[#allocation8 + $0x1f20] sm:$0xff]
    %v1636 = vld [vmem:[#allocation8 + $0x1f28] sm:$0xff]
    %v1637 = vld [vmem:[#allocation8 + $0x1f30] sm:$0xff]
    %v1638 = vld [vmem:[#allocation8 + $0x1f38] sm:$0xff]
    %v1639 = vld [vmem:[#allocation8 + $0x1f40] sm:$0xff]
    %v1640 = vld [vmem:[#allocation8 + $0x1f48] sm:$0xff]
    %v1641 = vld [vmem:[#allocation8 + $0x1f50] sm:$0xff]
    %v1642 = vld [vmem:[#allocation8 + $0x1f58] sm:$0xff]
    %v1643 = vld [vmem:[#allocation8 + $0x1f60] sm:$0xff]
    %v1644 = vld [vmem:[#allocation8 + $0x1f68] sm:$0xff]
    %v1645 = vld [vmem:[#allocation8 + $0x1f70] sm:$0xff]
    %v1646 = vld [vmem:[#allocation8 + $0x1f78] sm:$0xff]
    %v1647 = vld [vmem:[#allocation8 + $0x1f80] sm:$0xff]
    %v1648 = vld [vmem:[#allocation8 + $0x1f88] sm:$0xff]
    %v1649 = vld [vmem:[#allocation8 + $0x1f90] sm:$0xff]
    %v1650 = vld [vmem:[#allocation8 + $0x1f98] sm:$0xff]
    %v1651 = vld [vmem:[#allocation8 + $0x1fa0] sm:$0xff]
    %v1652 = vld [vmem:[#allocation8 + $0x1fa8] sm:$0xff]
    %v1653 = vld [vmem:[#allocation8 + $0x1fb0] sm:$0xff]
    %v1654 = vld [vmem:[#allocation8 + $0x1fb8] sm:$0xff]
    %v1655 = vld [vmem:[#allocation8 + $0x1fc0] sm:$0xff]
    %v1656 = vld [vmem:[#allocation8 + $0x1fc8] sm:$0xff]
    %v1657 = vld [vmem:[#allocation8 + $0x1fd0] sm:$0xff]
    %v1658 = vld [vmem:[#allocation8 + $0x1fd8] sm:$0xff]
    %v1659 = vld [vmem:[#allocation8 + $0x1fe0] sm:$0xff]
    %v1660 = vld [vmem:[#allocation8 + $0x1fe8] sm:$0xff]
    %v1661 = vld [vmem:[#allocation8 + $0x1ff0] sm:$0xff]
    %v1662 = vld [vmem:[#allocation8 + $0x1ff8] sm:$0xff]
    %v1663 = vld [vmem:[#allocation10] sm:$0xf]
    %v1665 = vperm.slane %v1663, 0
    %v1666 = vperm.slane %v1663, 1
    %v1667 = vperm.slane %v1663, 2
    %v1668 = vperm.slane %v1663, 3
    %1673 = vmatpush.msra.mxu0 %v699
    %1674 = vmatpush.msra.mxu0 %v695
    %1675 = vmatpush.msra.mxu0 %v691
    %1676 = vmatpush.msra.mxu0 %v687
    %1677 = vmatpush.msra.mxu0 %v683
    %1678 = vmatpush.msra.mxu0 %v679
    %1679 = vmatpush.msra.mxu0 %v675
    %1680 = vmatpush.msra.mxu0 %v671
    %1681 = vmatpush.msra.mxu0 %v667
    %1682 = vmatpush.msra.mxu0 %v663
    %1683 = vmatpush.msra.mxu0 %v659
    %1684 = vmatpush.msra.mxu0 %v655
    %1685 = vmatpush.msra.mxu0 %v651
    %1686 = vmatpush.msra.mxu0 %v647
    %1687 = vmatpush.msra.mxu0 %v643
    %1688 = vmatpush.msra.mxu0 %v639
    %1689 = vmatmul.f32.gmra.mxu0 %v607
    %v1690 = vpop.f32.mrf.mxu0
    %v1691 = vadd.f32 %v1665, %v1690
    %1692 = vmatmul.f32.gmra.mxu0 %v623
    %v1693 = vpop.f32.mrf.mxu0
    %v1694 = vadd.f32 %v1665, %v1693
    %1695 = vdwg.mxu0
    %1696 = vmatpush.msra.mxu0 %v763
    %1697 = vmatpush.msra.mxu0 %v759
    %1698 = vmatpush.msra.mxu0 %v755
    %1699 = vmatpush.msra.mxu0 %v751
    %1700 = vmatpush.msra.mxu0 %v747
    %1701 = vmatpush.msra.mxu0 %v743
    %1702 = vmatpush.msra.mxu0 %v739
    %1703 = vmatpush.msra.mxu0 %v735
    %1704 = vmatpush.msra.mxu0 %v731
    %1705 = vmatpush.msra.mxu0 %v727
    %1706 = vmatpush.msra.mxu0 %v723
    %1707 = vmatpush.msra.mxu0 %v719
    %1708 = vmatpush.msra.mxu0 %v715
    %1709 = vmatpush.msra.mxu0 %v711
    %1710 = vmatpush.msra.mxu0 %v707
    %1711 = vmatpush.msra.mxu0 %v703
    %1712 = vmatmul.f32.gmra.mxu0 %v608
    %v1713 = vpop.f32.mrf.mxu0
    %v1714 = vadd.f32 %v1691, %v1713
    %1715 = vmatmul.f32.gmra.mxu0 %v624
    %v1716 = vpop.f32.mrf.mxu0
    %v1717 = vadd.f32 %v1694, %v1716
    %1718 = vdwg.mxu0
    %1719 = vmatpush.msra.mxu0 %v827
    %1720 = vmatpush.msra.mxu0 %v823
    %1721 = vmatpush.msra.mxu0 %v819
    %1722 = vmatpush.msra.mxu0 %v815
    %1723 = vmatpush.msra.mxu0 %v811
    %1724 = vmatpush.msra.mxu0 %v807
    %1725 = vmatpush.msra.mxu0 %v803
    %1726 = vmatpush.msra.mxu0 %v799
    %1727 = vmatpush.msra.mxu0 %v795
    %1728 = vmatpush.msra.mxu0 %v791
    %1729 = vmatpush.msra.mxu0 %v787
    %1730 = vmatpush.msra.mxu0 %v783
    %1731 = vmatpush.msra.mxu0 %v779
    %1732 = vmatpush.msra.mxu0 %v775
    %1733 = vmatpush.msra.mxu0 %v771
    %1734 = vmatpush.msra.mxu0 %v767
    %1735 = vmatmul.f32.gmra.mxu0 %v609
    %v1736 = vpop.f32.mrf.mxu0
    %v1737 = vadd.f32 %v1714, %v1736
    %1738 = vmatmul.f32.gmra.mxu0 %v625
    %v1739 = vpop.f32.mrf.mxu0
    %v1740 = vadd.f32 %v1717, %v1739
    %1741 = vdwg.mxu0
    %1742 = vmatpush.msra.mxu0 %v891
    %1743 = vmatpush.msra.mxu0 %v887
    %1744 = vmatpush.msra.mxu0 %v883
    %1745 = vmatpush.msra.mxu0 %v879
    %1746 = vmatpush.msra.mxu0 %v875
    %1747 = vmatpush.msra.mxu0 %v871
    %1748 = vmatpush.msra.mxu0 %v867
    %1749 = vmatpush.msra.mxu0 %v863
    %1750 = vmatpush.msra.mxu0 %v859
    %1751 = vmatpush.msra.mxu0 %v855
    %1752 = vmatpush.msra.mxu0 %v851
    %1753 = vmatpush.msra.mxu0 %v847
    %1754 = vmatpush.msra.mxu0 %v843
    %1755 = vmatpush.msra.mxu0 %v839
    %1756 = vmatpush.msra.mxu0 %v835
    %1757 = vmatpush.msra.mxu0 %v831
    %1758 = vmatmul.f32.gmra.mxu0 %v610
    %v1759 = vpop.f32.mrf.mxu0
    %v1760 = vadd.f32 %v1737, %v1759
    %1761 = vmatmul.f32.gmra.mxu0 %v626
    %v1762 = vpop.f32.mrf.mxu0
    %v1763 = vadd.f32 %v1740, %v1762
    %1764 = vdwg.mxu0
    %1765 = vmatpush.msra.mxu0 %v955
    %1766 = vmatpush.msra.mxu0 %v951
    %1767 = vmatpush.msra.mxu0 %v947
    %1768 = vmatpush.msra.mxu0 %v943
    %1769 = vmatpush.msra.mxu0 %v939
    %1770 = vmatpush.msra.mxu0 %v935
    %1771 = vmatpush.msra.mxu0 %v931
    %1772 = vmatpush.msra.mxu0 %v927
    %1773 = vmatpush.msra.mxu0 %v923
    %1774 = vmatpush.msra.mxu0 %v919
    %1775 = vmatpush.msra.mxu0 %v915
    %1776 = vmatpush.msra.mxu0 %v911
    %1777 = vmatpush.msra.mxu0 %v907
    %1778 = vmatpush.msra.mxu0 %v903
    %1779 = vmatpush.msra.mxu0 %v899
    %1780 = vmatpush.msra.mxu0 %v895
    %1781 = vmatmul.f32.gmra.mxu0 %v611
    %v1782 = vpop.f32.mrf.mxu0
    %v1783 = vadd.f32 %v1760, %v1782
    %1784 = vmatmul.f32.gmra.mxu0 %v627
    %v1785 = vpop.f32.mrf.mxu0
    %v1786 = vadd.f32 %v1763, %v1785
    %1787 = vdwg.mxu0
    %1788 = vmatpush.msra.mxu0 %v1019
    %1789 = vmatpush.msra.mxu0 %v1015
    %1790 = vmatpush.msra.mxu0 %v1011
    %1791 = vmatpush.msra.mxu0 %v1007
    %1792 = vmatpush.msra.mxu0 %v1003
    %1793 = vmatpush.msra.mxu0 %v999
    %1794 = vmatpush.msra.mxu0 %v995
    %1795 = vmatpush.msra.mxu0 %v991
    %1796 = vmatpush.msra.mxu0 %v987
    %1797 = vmatpush.msra.mxu0 %v983
    %1798 = vmatpush.msra.mxu0 %v979
    %1799 = vmatpush.msra.mxu0 %v975
    %1800 = vmatpush.msra.mxu0 %v971
    %1801 = vmatpush.msra.mxu0 %v967
    %1802 = vmatpush.msra.mxu0 %v963
    %1803 = vmatpush.msra.mxu0 %v959
    %1804 = vmatmul.f32.gmra.mxu0 %v612
    %v1805 = vpop.f32.mrf.mxu0
    %v1806 = vadd.f32 %v1783, %v1805
    %1807 = vmatmul.f32.gmra.mxu0 %v628
    %v1808 = vpop.f32.mrf.mxu0
    %v1809 = vadd.f32 %v1786, %v1808
    %1810 = vdwg.mxu0
    %1811 = vmatpush.msra.mxu0 %v1083
    %1812 = vmatpush.msra.mxu0 %v1079
    %1813 = vmatpush.msra.mxu0 %v1075
    %1814 = vmatpush.msra.mxu0 %v1071
    %1815 = vmatpush.msra.mxu0 %v1067
    %1816 = vmatpush.msra.mxu0 %v1063
    %1817 = vmatpush.msra.mxu0 %v1059
    %1818 = vmatpush.msra.mxu0 %v1055
    %1819 = vmatpush.msra.mxu0 %v1051
    %1820 = vmatpush.msra.mxu0 %v1047
    %1821 = vmatpush.msra.mxu0 %v1043
    %1822 = vmatpush.msra.mxu0 %v1039
    %1823 = vmatpush.msra.mxu0 %v1035
    %1824 = vmatpush.msra.mxu0 %v1031
    %1825 = vmatpush.msra.mxu0 %v1027
    %1826 = vmatpush.msra.mxu0 %v1023
    %1827 = vmatmul.f32.gmra.mxu0 %v613
    %v1828 = vpop.f32.mrf.mxu0
    %v1829 = vadd.f32 %v1806, %v1828
    %1830 = vmatmul.f32.gmra.mxu0 %v629
    %v1831 = vpop.f32.mrf.mxu0
    %v1832 = vadd.f32 %v1809, %v1831
    %1833 = vdwg.mxu0
    %1834 = vmatpush.msra.mxu0 %v1147
    %1835 = vmatpush.msra.mxu0 %v1143
    %1836 = vmatpush.msra.mxu0 %v1139
    %1837 = vmatpush.msra.mxu0 %v1135
    %1838 = vmatpush.msra.mxu0 %v1131
    %1839 = vmatpush.msra.mxu0 %v1127
    %1840 = vmatpush.msra.mxu0 %v1123
    %1841 = vmatpush.msra.mxu0 %v1119
    %1842 = vmatpush.msra.mxu0 %v1115
    %1843 = vmatpush.msra.mxu0 %v1111
    %1844 = vmatpush.msra.mxu0 %v1107
    %1845 = vmatpush.msra.mxu0 %v1103
    %1846 = vmatpush.msra.mxu0 %v1099
    %1847 = vmatpush.msra.mxu0 %v1095
    %1848 = vmatpush.msra.mxu0 %v1091
    %1849 = vmatpush.msra.mxu0 %v1087
    %1850 = vmatmul.f32.gmra.mxu0 %v614
    %v1851 = vpop.f32.mrf.mxu0
    %v1852 = vadd.f32 %v1829, %v1851
    %1853 = vmatmul.f32.gmra.mxu0 %v630
    %v1854 = vpop.f32.mrf.mxu0
    %v1855 = vadd.f32 %v1832, %v1854
    %1856 = vdwg.mxu0
    %1857 = vmatpush.msra.mxu0 %v1211
    %1858 = vmatpush.msra.mxu0 %v1207
    %1859 = vmatpush.msra.mxu0 %v1203
    %1860 = vmatpush.msra.mxu0 %v1199
    %1861 = vmatpush.msra.mxu0 %v1195
    %1862 = vmatpush.msra.mxu0 %v1191
    %1863 = vmatpush.msra.mxu0 %v1187
    %1864 = vmatpush.msra.mxu0 %v1183
    %1865 = vmatpush.msra.mxu0 %v1179
    %1866 = vmatpush.msra.mxu0 %v1175
    %1867 = vmatpush.msra.mxu0 %v1171
    %1868 = vmatpush.msra.mxu0 %v1167
    %1869 = vmatpush.msra.mxu0 %v1163
    %1870 = vmatpush.msra.mxu0 %v1159
    %1871 = vmatpush.msra.mxu0 %v1155
    %1872 = vmatpush.msra.mxu0 %v1151
    %1873 = vmatmul.f32.gmra.mxu0 %v615
    %v1874 = vpop.f32.mrf.mxu0
    %v1875 = vadd.f32 %v1852, %v1874
    %1876 = vmatmul.f32.gmra.mxu0 %v631
    %v1877 = vpop.f32.mrf.mxu0
    %v1878 = vadd.f32 %v1855, %v1877
    %1879 = vdwg.mxu0
    %1880 = vmatpush.msra.mxu0 %v1275
    %1881 = vmatpush.msra.mxu0 %v1271
    %1882 = vmatpush.msra.mxu0 %v1267
    %1883 = vmatpush.msra.mxu0 %v1263
    %1884 = vmatpush.msra.mxu0 %v1259
    %1885 = vmatpush.msra.mxu0 %v1255
    %1886 = vmatpush.msra.mxu0 %v1251
    %1887 = vmatpush.msra.mxu0 %v1247
    %1888 = vmatpush.msra.mxu0 %v1243
    %1889 = vmatpush.msra.mxu0 %v1239
    %1890 = vmatpush.msra.mxu0 %v1235
    %1891 = vmatpush.msra.mxu0 %v1231
    %1892 = vmatpush.msra.mxu0 %v1227
    %1893 = vmatpush.msra.mxu0 %v1223
    %1894 = vmatpush.msra.mxu0 %v1219
    %1895 = vmatpush.msra.mxu0 %v1215
    %1896 = vmatmul.f32.gmra.mxu0 %v616
    %v1897 = vpop.f32.mrf.mxu0
    %v1898 = vadd.f32 %v1875, %v1897
    %1899 = vmatmul.f32.gmra.mxu0 %v632
    %v1900 = vpop.f32.mrf.mxu0
    %v1901 = vadd.f32 %v1878, %v1900
    %1902 = vdwg.mxu0
    %1903 = vmatpush.msra.mxu0 %v1339
    %1904 = vmatpush.msra.mxu0 %v1335
    %1905 = vmatpush.msra.mxu0 %v1331
    %1906 = vmatpush.msra.mxu0 %v1327
    %1907 = vmatpush.msra.mxu0 %v1323
    %1908 = vmatpush.msra.mxu0 %v1319
    %1909 = vmatpush.msra.mxu0 %v1315
    %1910 = vmatpush.msra.mxu0 %v1311
    %1911 = vmatpush.msra.mxu0 %v1307
    %1912 = vmatpush.msra.mxu0 %v1303
    %1913 = vmatpush.msra.mxu0 %v1299
    %1914 = vmatpush.msra.mxu0 %v1295
    %1915 = vmatpush.msra.mxu0 %v1291
    %1916 = vmatpush.msra.mxu0 %v1287
    %1917 = vmatpush.msra.mxu0 %v1283
    %1918 = vmatpush.msra.mxu0 %v1279
    %1919 = vmatmul.f32.gmra.mxu0 %v617
    %v1920 = vpop.f32.mrf.mxu0
    %v1921 = vadd.f32 %v1898, %v1920
    %1922 = vmatmul.f32.gmra.mxu0 %v633
    %v1923 = vpop.f32.mrf.mxu0
    %v1924 = vadd.f32 %v1901, %v1923
    %1925 = vdwg.mxu0
    %1926 = vmatpush.msra.mxu0 %v1403
    %1927 = vmatpush.msra.mxu0 %v1399
    %1928 = vmatpush.msra.mxu0 %v1395
    %1929 = vmatpush.msra.mxu0 %v1391
    %1930 = vmatpush.msra.mxu0 %v1387
    %1931 = vmatpush.msra.mxu0 %v1383
    %1932 = vmatpush.msra.mxu0 %v1379
    %1933 = vmatpush.msra.mxu0 %v1375
    %1934 = vmatpush.msra.mxu0 %v1371
    %1935 = vmatpush.msra.mxu0 %v1367
    %1936 = vmatpush.msra.mxu0 %v1363
    %1937 = vmatpush.msra.mxu0 %v1359
    %1938 = vmatpush.msra.mxu0 %v1355
    %1939 = vmatpush.msra.mxu0 %v1351
    %1940 = vmatpush.msra.mxu0 %v1347
    %1941 = vmatpush.msra.mxu0 %v1343
    %1942 = vmatmul.f32.gmra.mxu0 %v618
    %v1943 = vpop.f32.mrf.mxu0
    %v1944 = vadd.f32 %v1921, %v1943
    %1945 = vmatmul.f32.gmra.mxu0 %v634
    %v1946 = vpop.f32.mrf.mxu0
    %v1947 = vadd.f32 %v1924, %v1946
    %1948 = vdwg.mxu0
    %1949 = vmatpush.msra.mxu0 %v1467
    %1950 = vmatpush.msra.mxu0 %v1463
    %1951 = vmatpush.msra.mxu0 %v1459
    %1952 = vmatpush.msra.mxu0 %v1455
    %1953 = vmatpush.msra.mxu0 %v1451
    %1954 = vmatpush.msra.mxu0 %v1447
    %1955 = vmatpush.msra.mxu0 %v1443
    %1956 = vmatpush.msra.mxu0 %v1439
    %1957 = vmatpush.msra.mxu0 %v1435
    %1958 = vmatpush.msra.mxu0 %v1431
    %1959 = vmatpush.msra.mxu0 %v1427
    %1960 = vmatpush.msra.mxu0 %v1423
    %1961 = vmatpush.msra.mxu0 %v1419
    %1962 = vmatpush.msra.mxu0 %v1415
    %1963 = vmatpush.msra.mxu0 %v1411
    %1964 = vmatpush.msra.mxu0 %v1407
    %1965 = vmatmul.f32.gmra.mxu0 %v619
    %v1966 = vpop.f32.mrf.mxu0
    %v1967 = vadd.f32 %v1944, %v1966
    %1968 = vmatmul.f32.gmra.mxu0 %v635
    %v1969 = vpop.f32.mrf.mxu0
    %v1970 = vadd.f32 %v1947, %v1969
    %1971 = vdwg.mxu0
    %1972 = vmatpush.msra.mxu0 %v1531
    %1973 = vmatpush.msra.mxu0 %v1527
    %1974 = vmatpush.msra.mxu0 %v1523
    %1975 = vmatpush.msra.mxu0 %v1519
    %1976 = vmatpush.msra.mxu0 %v1515
    %1977 = vmatpush.msra.mxu0 %v1511
    %1978 = vmatpush.msra.mxu0 %v1507
    %1979 = vmatpush.msra.mxu0 %v1503
    %1980 = vmatpush.msra.mxu0 %v1499
    %1981 = vmatpush.msra.mxu0 %v1495
    %1982 = vmatpush.msra.mxu0 %v1491
    %1983 = vmatpush.msra.mxu0 %v1487
    %1984 = vmatpush.msra.mxu0 %v1483
    %1985 = vmatpush.msra.mxu0 %v1479
    %1986 = vmatpush.msra.mxu0 %v1475
    %1987 = vmatpush.msra.mxu0 %v1471
    %1988 = vmatmul.f32.gmra.mxu0 %v620
    %v1989 = vpop.f32.mrf.mxu0
    %v1990 = vadd.f32 %v1967, %v1989
    %1991 = vmatmul.f32.gmra.mxu0 %v636
    %v1992 = vpop.f32.mrf.mxu0
    %v1993 = vadd.f32 %v1970, %v1992
    %1994 = vdwg.mxu0
    %1995 = vmatpush.msra.mxu0 %v1595
    %1996 = vmatpush.msra.mxu0 %v1591
    %1997 = vmatpush.msra.mxu0 %v1587
    %1998 = vmatpush.msra.mxu0 %v1583
    %1999 = vmatpush.msra.mxu0 %v1579
    %2000 = vmatpush.msra.mxu0 %v1575
    %2001 = vmatpush.msra.mxu0 %v1571
    %2002 = vmatpush.msra.mxu0 %v1567
    %2003 = vmatpush.msra.mxu0 %v1563
    %2004 = vmatpush.msra.mxu0 %v1559
    %2005 = vmatpush.msra.mxu0 %v1555
    %2006 = vmatpush.msra.mxu0 %v1551
    %2007 = vmatpush.msra.mxu0 %v1547
    %2008 = vmatpush.msra.mxu0 %v1543
    %2009 = vmatpush.msra.mxu0 %v1539
    %2010 = vmatpush.msra.mxu0 %v1535
    %2011 = vmatmul.f32.gmra.mxu0 %v621
    %v2012 = vpop.f32.mrf.mxu0
    %v2013 = vadd.f32 %v1990, %v2012
    %2014 = vmatmul.f32.gmra.mxu0 %v637
    %v2015 = vpop.f32.mrf.mxu0
    %v2016 = vadd.f32 %v1993, %v2015
    %2017 = vdwg.mxu0
    %2018 = vmatpush.msra.mxu0 %v1659
    %2019 = vmatpush.msra.mxu0 %v1655
    %2020 = vmatpush.msra.mxu0 %v1651
    %2021 = vmatpush.msra.mxu0 %v1647
    %2022 = vmatpush.msra.mxu0 %v1643
    %2023 = vmatpush.msra.mxu0 %v1639
    %2024 = vmatpush.msra.mxu0 %v1635
    %2025 = vmatpush.msra.mxu0 %v1631
    %2026 = vmatpush.msra.mxu0 %v1627
    %2027 = vmatpush.msra.mxu0 %v1623
    %2028 = vmatpush.msra.mxu0 %v1619
    %2029 = vmatpush.msra.mxu0 %v1615
    %2030 = vmatpush.msra.mxu0 %v1611
    %2031 = vmatpush.msra.mxu0 %v1607
    %2032 = vmatpush.msra.mxu0 %v1603
    %2033 = vmatpush.msra.mxu0 %v1599
    %2034 = vmatmul.f32.gmra.mxu0 %v622
    %v2035 = vpop.f32.mrf.mxu0
    %v2036 = vadd.f32 %v2013, %v2035
    %2037 = vmatmul.f32.gmra.mxu0 %v638
    %v2038 = vpop.f32.mrf.mxu0
    %v2039 = vadd.f32 %v2016, %v2038
    %2040 = vdwg.mxu0
    %2041 = vmatpush.msra.mxu0 %v700
    %2042 = vmatpush.msra.mxu0 %v696
    %2043 = vmatpush.msra.mxu0 %v692
    %2044 = vmatpush.msra.mxu0 %v688
    %2045 = vmatpush.msra.mxu0 %v684
    %2046 = vmatpush.msra.mxu0 %v680
    %2047 = vmatpush.msra.mxu0 %v676
    %2048 = vmatpush.msra.mxu0 %v672
    %2049 = vmatpush.msra.mxu0 %v668
    %2050 = vmatpush.msra.mxu0 %v664
    %2051 = vmatpush.msra.mxu0 %v660
    %2052 = vmatpush.msra.mxu0 %v656
    %2053 = vmatpush.msra.mxu0 %v652
    %2054 = vmatpush.msra.mxu0 %v648
    %2055 = vmatpush.msra.mxu0 %v644
    %2056 = vmatpush.msra.mxu0 %v640
    %2057 = vmatmul.f32.gmra.mxu0 %v607
    %v2058 = vpop.f32.mrf.mxu0
    %v2059 = vadd.f32 %v1666, %v2058
    %2060 = vmatmul.f32.gmra.mxu0 %v623
    %v2061 = vpop.f32.mrf.mxu0
    %v2062 = vadd.f32 %v1666, %v2061
    %2063 = vdwg.mxu0
    %2064 = vmatpush.msra.mxu0 %v764
    %2065 = vmatpush.msra.mxu0 %v760
    %2066 = vmatpush.msra.mxu0 %v756
    %2067 = vmatpush.msra.mxu0 %v752
    %2068 = vmatpush.msra.mxu0 %v748
    %2069 = vmatpush.msra.mxu0 %v744
    %2070 = vmatpush.msra.mxu0 %v740
    %2071 = vmatpush.msra.mxu0 %v736
    %2072 = vmatpush.msra.mxu0 %v732
    %2073 = vmatpush.msra.mxu0 %v728
    %2074 = vmatpush.msra.mxu0 %v724
    %2075 = vmatpush.msra.mxu0 %v720
    %2076 = vmatpush.msra.mxu0 %v716
    %2077 = vmatpush.msra.mxu0 %v712
    %2078 = vmatpush.msra.mxu0 %v708
    %2079 = vmatpush.msra.mxu0 %v704
    %2080 = vmatmul.f32.gmra.mxu0 %v608
    %v2081 = vpop.f32.mrf.mxu0
    %v2082 = vadd.f32 %v2059, %v2081
    %2083 = vmatmul.f32.gmra.mxu0 %v624
    %v2084 = vpop.f32.mrf.mxu0
    %v2085 = vadd.f32 %v2062, %v2084
    %2086 = vdwg.mxu0
    %2087 = vmatpush.msra.mxu0 %v828
    %2088 = vmatpush.msra.mxu0 %v824
    %2089 = vmatpush.msra.mxu0 %v820
    %2090 = vmatpush.msra.mxu0 %v816
    %2091 = vmatpush.msra.mxu0 %v812
    %2092 = vmatpush.msra.mxu0 %v808
    %2093 = vmatpush.msra.mxu0 %v804
    %2094 = vmatpush.msra.mxu0 %v800
    %2095 = vmatpush.msra.mxu0 %v796
    %2096 = vmatpush.msra.mxu0 %v792
    %2097 = vmatpush.msra.mxu0 %v788
    %2098 = vmatpush.msra.mxu0 %v784
    %2099 = vmatpush.msra.mxu0 %v780
    %2100 = vmatpush.msra.mxu0 %v776
    %2101 = vmatpush.msra.mxu0 %v772
    %2102 = vmatpush.msra.mxu0 %v768
    %2103 = vmatmul.f32.gmra.mxu0 %v609
    %v2104 = vpop.f32.mrf.mxu0
    %v2105 = vadd.f32 %v2082, %v2104
    %2106 = vmatmul.f32.gmra.mxu0 %v625
    %v2107 = vpop.f32.mrf.mxu0
    %v2108 = vadd.f32 %v2085, %v2107
    %2109 = vdwg.mxu0
    %2110 = vmatpush.msra.mxu0 %v892
    %2111 = vmatpush.msra.mxu0 %v888
    %2112 = vmatpush.msra.mxu0 %v884
    %2113 = vmatpush.msra.mxu0 %v880
    %2114 = vmatpush.msra.mxu0 %v876
    %2115 = vmatpush.msra.mxu0 %v872
    %2116 = vmatpush.msra.mxu0 %v868
    %2117 = vmatpush.msra.mxu0 %v864
    %2118 = vmatpush.msra.mxu0 %v860
    %2119 = vmatpush.msra.mxu0 %v856
    %2120 = vmatpush.msra.mxu0 %v852
    %2121 = vmatpush.msra.mxu0 %v848
    %2122 = vmatpush.msra.mxu0 %v844
    %2123 = vmatpush.msra.mxu0 %v840
    %2124 = vmatpush.msra.mxu0 %v836
    %2125 = vmatpush.msra.mxu0 %v832
    %2126 = vmatmul.f32.gmra.mxu0 %v610
    %v2127 = vpop.f32.mrf.mxu0
    %v2128 = vadd.f32 %v2105, %v2127
    %2129 = vmatmul.f32.gmra.mxu0 %v626
    %v2130 = vpop.f32.mrf.mxu0
    %v2131 = vadd.f32 %v2108, %v2130
    %2132 = vdwg.mxu0
    %2133 = vmatpush.msra.mxu0 %v956
    %2134 = vmatpush.msra.mxu0 %v952
    %2135 = vmatpush.msra.mxu0 %v948
    %2136 = vmatpush.msra.mxu0 %v944
    %2137 = vmatpush.msra.mxu0 %v940
    %2138 = vmatpush.msra.mxu0 %v936
    %2139 = vmatpush.msra.mxu0 %v932
    %2140 = vmatpush.msra.mxu0 %v928
    %2141 = vmatpush.msra.mxu0 %v924
    %2142 = vmatpush.msra.mxu0 %v920
    %2143 = vmatpush.msra.mxu0 %v916
    %2144 = vmatpush.msra.mxu0 %v912
    %2145 = vmatpush.msra.mxu0 %v908
    %2146 = vmatpush.msra.mxu0 %v904
    %2147 = vmatpush.msra.mxu0 %v900
    %2148 = vmatpush.msra.mxu0 %v896
    %2149 = vmatmul.f32.gmra.mxu0 %v611
    %v2150 = vpop.f32.mrf.mxu0
    %v2151 = vadd.f32 %v2128, %v2150
    %2152 = vmatmul.f32.gmra.mxu0 %v627
    %v2153 = vpop.f32.mrf.mxu0
    %v2154 = vadd.f32 %v2131, %v2153
    %2155 = vdwg.mxu0
    %2156 = vmatpush.msra.mxu0 %v1020
    %2157 = vmatpush.msra.mxu0 %v1016
    %2158 = vmatpush.msra.mxu0 %v1012
    %2159 = vmatpush.msra.mxu0 %v1008
    %2160 = vmatpush.msra.mxu0 %v1004
    %2161 = vmatpush.msra.mxu0 %v1000
    %2162 = vmatpush.msra.mxu0 %v996
    %2163 = vmatpush.msra.mxu0 %v992
    %2164 = vmatpush.msra.mxu0 %v988
    %2165 = vmatpush.msra.mxu0 %v984
    %2166 = vmatpush.msra.mxu0 %v980
    %2167 = vmatpush.msra.mxu0 %v976
    %2168 = vmatpush.msra.mxu0 %v972
    %2169 = vmatpush.msra.mxu0 %v968
    %2170 = vmatpush.msra.mxu0 %v964
    %2171 = vmatpush.msra.mxu0 %v960
    %2172 = vmatmul.f32.gmra.mxu0 %v612
    %v2173 = vpop.f32.mrf.mxu0
    %v2174 = vadd.f32 %v2151, %v2173
    %2175 = vmatmul.f32.gmra.mxu0 %v628
    %v2176 = vpop.f32.mrf.mxu0
    %v2177 = vadd.f32 %v2154, %v2176
    %2178 = vdwg.mxu0
    %2179 = vmatpush.msra.mxu0 %v1084
    %2180 = vmatpush.msra.mxu0 %v1080
    %2181 = vmatpush.msra.mxu0 %v1076
    %2182 = vmatpush.msra.mxu0 %v1072
    %2183 = vmatpush.msra.mxu0 %v1068
    %2184 = vmatpush.msra.mxu0 %v1064
    %2185 = vmatpush.msra.mxu0 %v1060
    %2186 = vmatpush.msra.mxu0 %v1056
    %2187 = vmatpush.msra.mxu0 %v1052
    %2188 = vmatpush.msra.mxu0 %v1048
    %2189 = vmatpush.msra.mxu0 %v1044
    %2190 = vmatpush.msra.mxu0 %v1040
    %2191 = vmatpush.msra.mxu0 %v1036
    %2192 = vmatpush.msra.mxu0 %v1032
    %2193 = vmatpush.msra.mxu0 %v1028
    %2194 = vmatpush.msra.mxu0 %v1024
    %2195 = vmatmul.f32.gmra.mxu0 %v613
    %v2196 = vpop.f32.mrf.mxu0
    %v2197 = vadd.f32 %v2174, %v2196
    %2198 = vmatmul.f32.gmra.mxu0 %v629
    %v2199 = vpop.f32.mrf.mxu0
    %v2200 = vadd.f32 %v2177, %v2199
    %2201 = vdwg.mxu0
    %2202 = vmatpush.msra.mxu0 %v1148
    %2203 = vmatpush.msra.mxu0 %v1144
    %2204 = vmatpush.msra.mxu0 %v1140
    %2205 = vmatpush.msra.mxu0 %v1136
    %2206 = vmatpush.msra.mxu0 %v1132
    %2207 = vmatpush.msra.mxu0 %v1128
    %2208 = vmatpush.msra.mxu0 %v1124
    %2209 = vmatpush.msra.mxu0 %v1120
    %2210 = vmatpush.msra.mxu0 %v1116
    %2211 = vmatpush.msra.mxu0 %v1112
    %2212 = vmatpush.msra.mxu0 %v1108
    %2213 = vmatpush.msra.mxu0 %v1104
    %2214 = vmatpush.msra.mxu0 %v1100
    %2215 = vmatpush.msra.mxu0 %v1096
    %2216 = vmatpush.msra.mxu0 %v1092
    %2217 = vmatpush.msra.mxu0 %v1088
    %2218 = vmatmul.f32.gmra.mxu0 %v614
    %v2219 = vpop.f32.mrf.mxu0
    %v2220 = vadd.f32 %v2197, %v2219
    %2221 = vmatmul.f32.gmra.mxu0 %v630
    %v2222 = vpop.f32.mrf.mxu0
    %v2223 = vadd.f32 %v2200, %v2222
    %2224 = vdwg.mxu0
    %2225 = vmatpush.msra.mxu0 %v1212
    %2226 = vmatpush.msra.mxu0 %v1208
    %2227 = vmatpush.msra.mxu0 %v1204
    %2228 = vmatpush.msra.mxu0 %v1200
    %2229 = vmatpush.msra.mxu0 %v1196
    %2230 = vmatpush.msra.mxu0 %v1192
    %2231 = vmatpush.msra.mxu0 %v1188
    %2232 = vmatpush.msra.mxu0 %v1184
    %2233 = vmatpush.msra.mxu0 %v1180
    %2234 = vmatpush.msra.mxu0 %v1176
    %2235 = vmatpush.msra.mxu0 %v1172
    %2236 = vmatpush.msra.mxu0 %v1168
    %2237 = vmatpush.msra.mxu0 %v1164
    %2238 = vmatpush.msra.mxu0 %v1160
    %2239 = vmatpush.msra.mxu0 %v1156
    %2240 = vmatpush.msra.mxu0 %v1152
    %2241 = vmatmul.f32.gmra.mxu0 %v615
    %v2242 = vpop.f32.mrf.mxu0
    %v2243 = vadd.f32 %v2220, %v2242
    %2244 = vmatmul.f32.gmra.mxu0 %v631
    %v2245 = vpop.f32.mrf.mxu0
    %v2246 = vadd.f32 %v2223, %v2245
    %2247 = vdwg.mxu0
    %2248 = vmatpush.msra.mxu0 %v1276
    %2249 = vmatpush.msra.mxu0 %v1272
    %2250 = vmatpush.msra.mxu0 %v1268
    %2251 = vmatpush.msra.mxu0 %v1264
    %2252 = vmatpush.msra.mxu0 %v1260
    %2253 = vmatpush.msra.mxu0 %v1256
    %2254 = vmatpush.msra.mxu0 %v1252
    %2255 = vmatpush.msra.mxu0 %v1248
    %2256 = vmatpush.msra.mxu0 %v1244
    %2257 = vmatpush.msra.mxu0 %v1240
    %2258 = vmatpush.msra.mxu0 %v1236
    %2259 = vmatpush.msra.mxu0 %v1232
    %2260 = vmatpush.msra.mxu0 %v1228
    %2261 = vmatpush.msra.mxu0 %v1224
    %2262 = vmatpush.msra.mxu0 %v1220
    %2263 = vmatpush.msra.mxu0 %v1216
    %2264 = vmatmul.f32.gmra.mxu0 %v616
    %v2265 = vpop.f32.mrf.mxu0
    %v2266 = vadd.f32 %v2243, %v2265
    %2267 = vmatmul.f32.gmra.mxu0 %v632
    %v2268 = vpop.f32.mrf.mxu0
    %v2269 = vadd.f32 %v2246, %v2268
    %2270 = vdwg.mxu0
    %2271 = vmatpush.msra.mxu0 %v1340
    %2272 = vmatpush.msra.mxu0 %v1336
    %2273 = vmatpush.msra.mxu0 %v1332
    %2274 = vmatpush.msra.mxu0 %v1328
    %2275 = vmatpush.msra.mxu0 %v1324
    %2276 = vmatpush.msra.mxu0 %v1320
    %2277 = vmatpush.msra.mxu0 %v1316
    %2278 = vmatpush.msra.mxu0 %v1312
    %2279 = vmatpush.msra.mxu0 %v1308
    %2280 = vmatpush.msra.mxu0 %v1304
    %2281 = vmatpush.msra.mxu0 %v1300
    %2282 = vmatpush.msra.mxu0 %v1296
    %2283 = vmatpush.msra.mxu0 %v1292
    %2284 = vmatpush.msra.mxu0 %v1288
    %2285 = vmatpush.msra.mxu0 %v1284
    %2286 = vmatpush.msra.mxu0 %v1280
    %2287 = vmatmul.f32.gmra.mxu0 %v617
    %v2288 = vpop.f32.mrf.mxu0
    %v2289 = vadd.f32 %v2266, %v2288
    %2290 = vmatmul.f32.gmra.mxu0 %v633
    %v2291 = vpop.f32.mrf.mxu0
    %v2292 = vadd.f32 %v2269, %v2291
    %2293 = vdwg.mxu0
    %2294 = vmatpush.msra.mxu0 %v1404
    %2295 = vmatpush.msra.mxu0 %v1400
    %2296 = vmatpush.msra.mxu0 %v1396
    %2297 = vmatpush.msra.mxu0 %v1392
    %2298 = vmatpush.msra.mxu0 %v1388
    %2299 = vmatpush.msra.mxu0 %v1384
    %2300 = vmatpush.msra.mxu0 %v1380
    %2301 = vmatpush.msra.mxu0 %v1376
    %2302 = vmatpush.msra.mxu0 %v1372
    %2303 = vmatpush.msra.mxu0 %v1368
    %2304 = vmatpush.msra.mxu0 %v1364
    %2305 = vmatpush.msra.mxu0 %v1360
    %2306 = vmatpush.msra.mxu0 %v1356
    %2307 = vmatpush.msra.mxu0 %v1352
    %2308 = vmatpush.msra.mxu0 %v1348
    %2309 = vmatpush.msra.mxu0 %v1344
    %2310 = vmatmul.f32.gmra.mxu0 %v618
    %v2311 = vpop.f32.mrf.mxu0
    %v2312 = vadd.f32 %v2289, %v2311
    %2313 = vmatmul.f32.gmra.mxu0 %v634
    %v2314 = vpop.f32.mrf.mxu0
    %v2315 = vadd.f32 %v2292, %v2314
    %2316 = vdwg.mxu0
    %2317 = vmatpush.msra.mxu0 %v1468
    %2318 = vmatpush.msra.mxu0 %v1464
    %2319 = vmatpush.msra.mxu0 %v1460
    %2320 = vmatpush.msra.mxu0 %v1456
    %2321 = vmatpush.msra.mxu0 %v1452
    %2322 = vmatpush.msra.mxu0 %v1448
    %2323 = vmatpush.msra.mxu0 %v1444
    %2324 = vmatpush.msra.mxu0 %v1440
    %2325 = vmatpush.msra.mxu0 %v1436
    %2326 = vmatpush.msra.mxu0 %v1432
    %2327 = vmatpush.msra.mxu0 %v1428
    %2328 = vmatpush.msra.mxu0 %v1424
    %2329 = vmatpush.msra.mxu0 %v1420
    %2330 = vmatpush.msra.mxu0 %v1416
    %2331 = vmatpush.msra.mxu0 %v1412
    %2332 = vmatpush.msra.mxu0 %v1408
    %2333 = vmatmul.f32.gmra.mxu0 %v619
    %v2334 = vpop.f32.mrf.mxu0
    %v2335 = vadd.f32 %v2312, %v2334
    %2336 = vmatmul.f32.gmra.mxu0 %v635
    %v2337 = vpop.f32.mrf.mxu0
    %v2338 = vadd.f32 %v2315, %v2337
    %2339 = vdwg.mxu0
    %2340 = vmatpush.msra.mxu0 %v1532
    %2341 = vmatpush.msra.mxu0 %v1528
    %2342 = vmatpush.msra.mxu0 %v1524
    %2343 = vmatpush.msra.mxu0 %v1520
    %2344 = vmatpush.msra.mxu0 %v1516
    %2345 = vmatpush.msra.mxu0 %v1512
    %2346 = vmatpush.msra.mxu0 %v1508
    %2347 = vmatpush.msra.mxu0 %v1504
    %2348 = vmatpush.msra.mxu0 %v1500
    %2349 = vmatpush.msra.mxu0 %v1496
    %2350 = vmatpush.msra.mxu0 %v1492
    %2351 = vmatpush.msra.mxu0 %v1488
    %2352 = vmatpush.msra.mxu0 %v1484
    %2353 = vmatpush.msra.mxu0 %v1480
    %2354 = vmatpush.msra.mxu0 %v1476
    %2355 = vmatpush.msra.mxu0 %v1472
    %2356 = vmatmul.f32.gmra.mxu0 %v620
    %v2357 = vpop.f32.mrf.mxu0
    %v2358 = vadd.f32 %v2335, %v2357
    %2359 = vmatmul.f32.gmra.mxu0 %v636
    %v2360 = vpop.f32.mrf.mxu0
    %v2361 = vadd.f32 %v2338, %v2360
    %2362 = vdwg.mxu0
    %2363 = vmatpush.msra.mxu0 %v1596
    %2364 = vmatpush.msra.mxu0 %v1592
    %2365 = vmatpush.msra.mxu0 %v1588
    %2366 = vmatpush.msra.mxu0 %v1584
    %2367 = vmatpush.msra.mxu0 %v1580
    %2368 = vmatpush.msra.mxu0 %v1576
    %2369 = vmatpush.msra.mxu0 %v1572
    %2370 = vmatpush.msra.mxu0 %v1568
    %2371 = vmatpush.msra.mxu0 %v1564
    %2372 = vmatpush.msra.mxu0 %v1560
    %2373 = vmatpush.msra.mxu0 %v1556
    %2374 = vmatpush.msra.mxu0 %v1552
    %2375 = vmatpush.msra.mxu0 %v1548
    %2376 = vmatpush.msra.mxu0 %v1544
    %2377 = vmatpush.msra.mxu0 %v1540
    %2378 = vmatpush.msra.mxu0 %v1536
    %2379 = vmatmul.f32.gmra.mxu0 %v621
    %v2380 = vpop.f32.mrf.mxu0
    %v2381 = vadd.f32 %v2358, %v2380
    %2382 = vmatmul.f32.gmra.mxu0 %v637
    %v2383 = vpop.f32.mrf.mxu0
    %v2384 = vadd.f32 %v2361, %v2383
    %2385 = vdwg.mxu0
    %2386 = vmatpush.msra.mxu0 %v1660
    %2387 = vmatpush.msra.mxu0 %v1656
    %2388 = vmatpush.msra.mxu0 %v1652
    %2389 = vmatpush.msra.mxu0 %v1648
    %2390 = vmatpush.msra.mxu0 %v1644
    %2391 = vmatpush.msra.mxu0 %v1640
    %2392 = vmatpush.msra.mxu0 %v1636
    %2393 = vmatpush.msra.mxu0 %v1632
    %2394 = vmatpush.msra.mxu0 %v1628
    %2395 = vmatpush.msra.mxu0 %v1624
    %2396 = vmatpush.msra.mxu0 %v1620
    %2397 = vmatpush.msra.mxu0 %v1616
    %2398 = vmatpush.msra.mxu0 %v1612
    %2399 = vmatpush.msra.mxu0 %v1608
    %2400 = vmatpush.msra.mxu0 %v1604
    %2401 = vmatpush.msra.mxu0 %v1600
    %2402 = vmatmul.f32.gmra.mxu0 %v622
    %v2403 = vpop.f32.mrf.mxu0
    %v2404 = vadd.f32 %v2381, %v2403
    %2405 = vmatmul.f32.gmra.mxu0 %v638
    %v2406 = vpop.f32.mrf.mxu0
    %v2407 = vadd.f32 %v2384, %v2406
    %2408 = vdwg.mxu0
    %2409 = vmatpush.msra.mxu0 %v701
    %2410 = vmatpush.msra.mxu0 %v697
    %2411 = vmatpush.msra.mxu0 %v693
    %2412 = vmatpush.msra.mxu0 %v689
    %2413 = vmatpush.msra.mxu0 %v685
    %2414 = vmatpush.msra.mxu0 %v681
    %2415 = vmatpush.msra.mxu0 %v677
    %2416 = vmatpush.msra.mxu0 %v673
    %2417 = vmatpush.msra.mxu0 %v669
    %2418 = vmatpush.msra.mxu0 %v665
    %2419 = vmatpush.msra.mxu0 %v661
    %2420 = vmatpush.msra.mxu0 %v657
    %2421 = vmatpush.msra.mxu0 %v653
    %2422 = vmatpush.msra.mxu0 %v649
    %2423 = vmatpush.msra.mxu0 %v645
    %2424 = vmatpush.msra.mxu0 %v641
    %2425 = vmatmul.f32.gmra.mxu0 %v607
    %v2426 = vpop.f32.mrf.mxu0
    %v2427 = vadd.f32 %v1667, %v2426
    %2428 = vmatmul.f32.gmra.mxu0 %v623
    %v2429 = vpop.f32.mrf.mxu0
    %v2430 = vadd.f32 %v1667, %v2429
    %2431 = vdwg.mxu0
    %2432 = vmatpush.msra.mxu0 %v765
    %2433 = vmatpush.msra.mxu0 %v761
    %2434 = vmatpush.msra.mxu0 %v757
    %2435 = vmatpush.msra.mxu0 %v753
    %2436 = vmatpush.msra.mxu0 %v749
    %2437 = vmatpush.msra.mxu0 %v745
    %2438 = vmatpush.msra.mxu0 %v741
    %2439 = vmatpush.msra.mxu0 %v737
    %2440 = vmatpush.msra.mxu0 %v733
    %2441 = vmatpush.msra.mxu0 %v729
    %2442 = vmatpush.msra.mxu0 %v725
    %2443 = vmatpush.msra.mxu0 %v721
    %2444 = vmatpush.msra.mxu0 %v717
    %2445 = vmatpush.msra.mxu0 %v713
    %2446 = vmatpush.msra.mxu0 %v709
    %2447 = vmatpush.msra.mxu0 %v705
    %2448 = vmatmul.f32.gmra.mxu0 %v608
    %v2449 = vpop.f32.mrf.mxu0
    %v2450 = vadd.f32 %v2427, %v2449
    %2451 = vmatmul.f32.gmra.mxu0 %v624
    %v2452 = vpop.f32.mrf.mxu0
    %v2453 = vadd.f32 %v2430, %v2452
    %2454 = vdwg.mxu0
    %2455 = vmatpush.msra.mxu0 %v829
    %2456 = vmatpush.msra.mxu0 %v825
    %2457 = vmatpush.msra.mxu0 %v821
    %2458 = vmatpush.msra.mxu0 %v817
    %2459 = vmatpush.msra.mxu0 %v813
    %2460 = vmatpush.msra.mxu0 %v809
    %2461 = vmatpush.msra.mxu0 %v805
    %2462 = vmatpush.msra.mxu0 %v801
    %2463 = vmatpush.msra.mxu0 %v797
    %2464 = vmatpush.msra.mxu0 %v793
    %2465 = vmatpush.msra.mxu0 %v789
    %2466 = vmatpush.msra.mxu0 %v785
    %2467 = vmatpush.msra.mxu0 %v781
    %2468 = vmatpush.msra.mxu0 %v777
    %2469 = vmatpush.msra.mxu0 %v773
    %2470 = vmatpush.msra.mxu0 %v769
    %2471 = vmatmul.f32.gmra.mxu0 %v609
    %v2472 = vpop.f32.mrf.mxu0
    %v2473 = vadd.f32 %v2450, %v2472
    %2474 = vmatmul.f32.gmra.mxu0 %v625
    %v2475 = vpop.f32.mrf.mxu0
    %v2476 = vadd.f32 %v2453, %v2475
    %2477 = vdwg.mxu0
    %2478 = vmatpush.msra.mxu0 %v893
    %2479 = vmatpush.msra.mxu0 %v889
    %2480 = vmatpush.msra.mxu0 %v885
    %2481 = vmatpush.msra.mxu0 %v881
    %2482 = vmatpush.msra.mxu0 %v877
    %2483 = vmatpush.msra.mxu0 %v873
    %2484 = vmatpush.msra.mxu0 %v869
    %2485 = vmatpush.msra.mxu0 %v865
    %2486 = vmatpush.msra.mxu0 %v861
    %2487 = vmatpush.msra.mxu0 %v857
    %2488 = vmatpush.msra.mxu0 %v853
    %2489 = vmatpush.msra.mxu0 %v849
    %2490 = vmatpush.msra.mxu0 %v845
    %2491 = vmatpush.msra.mxu0 %v841
    %2492 = vmatpush.msra.mxu0 %v837
    %2493 = vmatpush.msra.mxu0 %v833
    %2494 = vmatmul.f32.gmra.mxu0 %v610
    %v2495 = vpop.f32.mrf.mxu0
    %v2496 = vadd.f32 %v2473, %v2495
    %2497 = vmatmul.f32.gmra.mxu0 %v626
    %v2498 = vpop.f32.mrf.mxu0
    %v2499 = vadd.f32 %v2476, %v2498
    %2500 = vdwg.mxu0
    %2501 = vmatpush.msra.mxu0 %v957
    %2502 = vmatpush.msra.mxu0 %v953
    %2503 = vmatpush.msra.mxu0 %v949
    %2504 = vmatpush.msra.mxu0 %v945
    %2505 = vmatpush.msra.mxu0 %v941
    %2506 = vmatpush.msra.mxu0 %v937
    %2507 = vmatpush.msra.mxu0 %v933
    %2508 = vmatpush.msra.mxu0 %v929
    %2509 = vmatpush.msra.mxu0 %v925
    %2510 = vmatpush.msra.mxu0 %v921
    %2511 = vmatpush.msra.mxu0 %v917
    %2512 = vmatpush.msra.mxu0 %v913
    %2513 = vmatpush.msra.mxu0 %v909
    %2514 = vmatpush.msra.mxu0 %v905
    %2515 = vmatpush.msra.mxu0 %v901
    %2516 = vmatpush.msra.mxu0 %v897
    %2517 = vmatmul.f32.gmra.mxu0 %v611
    %v2518 = vpop.f32.mrf.mxu0
    %v2519 = vadd.f32 %v2496, %v2518
    %2520 = vmatmul.f32.gmra.mxu0 %v627
    %v2521 = vpop.f32.mrf.mxu0
    %v2522 = vadd.f32 %v2499, %v2521
    %2523 = vdwg.mxu0
    %2524 = vmatpush.msra.mxu0 %v1021
    %2525 = vmatpush.msra.mxu0 %v1017
    %2526 = vmatpush.msra.mxu0 %v1013
    %2527 = vmatpush.msra.mxu0 %v1009
    %2528 = vmatpush.msra.mxu0 %v1005
    %2529 = vmatpush.msra.mxu0 %v1001
    %2530 = vmatpush.msra.mxu0 %v997
    %2531 = vmatpush.msra.mxu0 %v993
    %2532 = vmatpush.msra.mxu0 %v989
    %2533 = vmatpush.msra.mxu0 %v985
    %2534 = vmatpush.msra.mxu0 %v981
    %2535 = vmatpush.msra.mxu0 %v977
    %2536 = vmatpush.msra.mxu0 %v973
    %2537 = vmatpush.msra.mxu0 %v969
    %2538 = vmatpush.msra.mxu0 %v965
    %2539 = vmatpush.msra.mxu0 %v961
    %2540 = vmatmul.f32.gmra.mxu0 %v612
    %v2541 = vpop.f32.mrf.mxu0
    %v2542 = vadd.f32 %v2519, %v2541
    %2543 = vmatmul.f32.gmra.mxu0 %v628
    %v2544 = vpop.f32.mrf.mxu0
    %v2545 = vadd.f32 %v2522, %v2544
    %2546 = vdwg.mxu0
    %2547 = vmatpush.msra.mxu0 %v1085
    %2548 = vmatpush.msra.mxu0 %v1081
    %2549 = vmatpush.msra.mxu0 %v1077
    %2550 = vmatpush.msra.mxu0 %v1073
    %2551 = vmatpush.msra.mxu0 %v1069
    %2552 = vmatpush.msra.mxu0 %v1065
    %2553 = vmatpush.msra.mxu0 %v1061
    %2554 = vmatpush.msra.mxu0 %v1057
    %2555 = vmatpush.msra.mxu0 %v1053
    %2556 = vmatpush.msra.mxu0 %v1049
    %2557 = vmatpush.msra.mxu0 %v1045
    %2558 = vmatpush.msra.mxu0 %v1041
    %2559 = vmatpush.msra.mxu0 %v1037
    %2560 = vmatpush.msra.mxu0 %v1033
    %2561 = vmatpush.msra.mxu0 %v1029
    %2562 = vmatpush.msra.mxu0 %v1025
    %2563 = vmatmul.f32.gmra.mxu0 %v613
    %v2564 = vpop.f32.mrf.mxu0
    %v2565 = vadd.f32 %v2542, %v2564
    %2566 = vmatmul.f32.gmra.mxu0 %v629
    %v2567 = vpop.f32.mrf.mxu0
    %v2568 = vadd.f32 %v2545, %v2567
    %2569 = vdwg.mxu0
    %2570 = vmatpush.msra.mxu0 %v1149
    %2571 = vmatpush.msra.mxu0 %v1145
    %2572 = vmatpush.msra.mxu0 %v1141
    %2573 = vmatpush.msra.mxu0 %v1137
    %2574 = vmatpush.msra.mxu0 %v1133
    %2575 = vmatpush.msra.mxu0 %v1129
    %2576 = vmatpush.msra.mxu0 %v1125
    %2577 = vmatpush.msra.mxu0 %v1121
    %2578 = vmatpush.msra.mxu0 %v1117
    %2579 = vmatpush.msra.mxu0 %v1113
    %2580 = vmatpush.msra.mxu0 %v1109
    %2581 = vmatpush.msra.mxu0 %v1105
    %2582 = vmatpush.msra.mxu0 %v1101
    %2583 = vmatpush.msra.mxu0 %v1097
    %2584 = vmatpush.msra.mxu0 %v1093
    %2585 = vmatpush.msra.mxu0 %v1089
    %2586 = vmatmul.f32.gmra.mxu0 %v614
    %v2587 = vpop.f32.mrf.mxu0
    %v2588 = vadd.f32 %v2565, %v2587
    %2589 = vmatmul.f32.gmra.mxu0 %v630
    %v2590 = vpop.f32.mrf.mxu0
    %v2591 = vadd.f32 %v2568, %v2590
    %2592 = vdwg.mxu0
    %2593 = vmatpush.msra.mxu0 %v1213
    %2594 = vmatpush.msra.mxu0 %v1209
    %2595 = vmatpush.msra.mxu0 %v1205
    %2596 = vmatpush.msra.mxu0 %v1201
    %2597 = vmatpush.msra.mxu0 %v1197
    %2598 = vmatpush.msra.mxu0 %v1193
    %2599 = vmatpush.msra.mxu0 %v1189
    %2600 = vmatpush.msra.mxu0 %v1185
    %2601 = vmatpush.msra.mxu0 %v1181
    %2602 = vmatpush.msra.mxu0 %v1177
    %2603 = vmatpush.msra.mxu0 %v1173
    %2604 = vmatpush.msra.mxu0 %v1169
    %2605 = vmatpush.msra.mxu0 %v1165
    %2606 = vmatpush.msra.mxu0 %v1161
    %2607 = vmatpush.msra.mxu0 %v1157
    %2608 = vmatpush.msra.mxu0 %v1153
    %2609 = vmatmul.f32.gmra.mxu0 %v615
    %v2610 = vpop.f32.mrf.mxu0
    %v2611 = vadd.f32 %v2588, %v2610
    %2612 = vmatmul.f32.gmra.mxu0 %v631
    %v2613 = vpop.f32.mrf.mxu0
    %v2614 = vadd.f32 %v2591, %v2613
    %2615 = vdwg.mxu0
    %2616 = vmatpush.msra.mxu0 %v1277
    %2617 = vmatpush.msra.mxu0 %v1273
    %2618 = vmatpush.msra.mxu0 %v1269
    %2619 = vmatpush.msra.mxu0 %v1265
    %2620 = vmatpush.msra.mxu0 %v1261
    %2621 = vmatpush.msra.mxu0 %v1257
    %2622 = vmatpush.msra.mxu0 %v1253
    %2623 = vmatpush.msra.mxu0 %v1249
    %2624 = vmatpush.msra.mxu0 %v1245
    %2625 = vmatpush.msra.mxu0 %v1241
    %2626 = vmatpush.msra.mxu0 %v1237
    %2627 = vmatpush.msra.mxu0 %v1233
    %2628 = vmatpush.msra.mxu0 %v1229
    %2629 = vmatpush.msra.mxu0 %v1225
    %2630 = vmatpush.msra.mxu0 %v1221
    %2631 = vmatpush.msra.mxu0 %v1217
    %2632 = vmatmul.f32.gmra.mxu0 %v616
    %v2633 = vpop.f32.mrf.mxu0
    %v2634 = vadd.f32 %v2611, %v2633
    %2635 = vmatmul.f32.gmra.mxu0 %v632
    %v2636 = vpop.f32.mrf.mxu0
    %v2637 = vadd.f32 %v2614, %v2636
    %2638 = vdwg.mxu0
    %2639 = vmatpush.msra.mxu0 %v1341
    %2640 = vmatpush.msra.mxu0 %v1337
    %2641 = vmatpush.msra.mxu0 %v1333
    %2642 = vmatpush.msra.mxu0 %v1329
    %2643 = vmatpush.msra.mxu0 %v1325
    %2644 = vmatpush.msra.mxu0 %v1321
    %2645 = vmatpush.msra.mxu0 %v1317
    %2646 = vmatpush.msra.mxu0 %v1313
    %2647 = vmatpush.msra.mxu0 %v1309
    %2648 = vmatpush.msra.mxu0 %v1305
    %2649 = vmatpush.msra.mxu0 %v1301
    %2650 = vmatpush.msra.mxu0 %v1297
    %2651 = vmatpush.msra.mxu0 %v1293
    %2652 = vmatpush.msra.mxu0 %v1289
    %2653 = vmatpush.msra.mxu0 %v1285
    %2654 = vmatpush.msra.mxu0 %v1281
    %2655 = vmatmul.f32.gmra.mxu0 %v617
    %v2656 = vpop.f32.mrf.mxu0
    %v2657 = vadd.f32 %v2634, %v2656
    %2658 = vmatmul.f32.gmra.mxu0 %v633
    %v2659 = vpop.f32.mrf.mxu0
    %v2660 = vadd.f32 %v2637, %v2659
    %2661 = vdwg.mxu0
    %2662 = vmatpush.msra.mxu0 %v1405
    %2663 = vmatpush.msra.mxu0 %v1401
    %2664 = vmatpush.msra.mxu0 %v1397
    %2665 = vmatpush.msra.mxu0 %v1393
    %2666 = vmatpush.msra.mxu0 %v1389
    %2667 = vmatpush.msra.mxu0 %v1385
    %2668 = vmatpush.msra.mxu0 %v1381
    %2669 = vmatpush.msra.mxu0 %v1377
    %2670 = vmatpush.msra.mxu0 %v1373
    %2671 = vmatpush.msra.mxu0 %v1369
    %2672 = vmatpush.msra.mxu0 %v1365
    %2673 = vmatpush.msra.mxu0 %v1361
    %2674 = vmatpush.msra.mxu0 %v1357
    %2675 = vmatpush.msra.mxu0 %v1353
    %2676 = vmatpush.msra.mxu0 %v1349
    %2677 = vmatpush.msra.mxu0 %v1345
    %2678 = vmatmul.f32.gmra.mxu0 %v618
    %v2679 = vpop.f32.mrf.mxu0
    %v2680 = vadd.f32 %v2657, %v2679
    %2681 = vmatmul.f32.gmra.mxu0 %v634
    %v2682 = vpop.f32.mrf.mxu0
    %v2683 = vadd.f32 %v2660, %v2682
    %2684 = vdwg.mxu0
    %2685 = vmatpush.msra.mxu0 %v1469
    %2686 = vmatpush.msra.mxu0 %v1465
    %2687 = vmatpush.msra.mxu0 %v1461
    %2688 = vmatpush.msra.mxu0 %v1457
    %2689 = vmatpush.msra.mxu0 %v1453
    %2690 = vmatpush.msra.mxu0 %v1449
    %2691 = vmatpush.msra.mxu0 %v1445
    %2692 = vmatpush.msra.mxu0 %v1441
    %2693 = vmatpush.msra.mxu0 %v1437
    %2694 = vmatpush.msra.mxu0 %v1433
    %2695 = vmatpush.msra.mxu0 %v1429
    %2696 = vmatpush.msra.mxu0 %v1425
    %2697 = vmatpush.msra.mxu0 %v1421
    %2698 = vmatpush.msra.mxu0 %v1417
    %2699 = vmatpush.msra.mxu0 %v1413
    %2700 = vmatpush.msra.mxu0 %v1409
    %2701 = vmatmul.f32.gmra.mxu0 %v619
    %v2702 = vpop.f32.mrf.mxu0
    %v2703 = vadd.f32 %v2680, %v2702
    %2704 = vmatmul.f32.gmra.mxu0 %v635
    %v2705 = vpop.f32.mrf.mxu0
    %v2706 = vadd.f32 %v2683, %v2705
    %2707 = vdwg.mxu0
    %2708 = vmatpush.msra.mxu0 %v1533
    %2709 = vmatpush.msra.mxu0 %v1529
    %2710 = vmatpush.msra.mxu0 %v1525
    %2711 = vmatpush.msra.mxu0 %v1521
    %2712 = vmatpush.msra.mxu0 %v1517
    %2713 = vmatpush.msra.mxu0 %v1513
    %2714 = vmatpush.msra.mxu0 %v1509
    %2715 = vmatpush.msra.mxu0 %v1505
    %2716 = vmatpush.msra.mxu0 %v1501
    %2717 = vmatpush.msra.mxu0 %v1497
    %2718 = vmatpush.msra.mxu0 %v1493
    %2719 = vmatpush.msra.mxu0 %v1489
    %2720 = vmatpush.msra.mxu0 %v1485
    %2721 = vmatpush.msra.mxu0 %v1481
    %2722 = vmatpush.msra.mxu0 %v1477
    %2723 = vmatpush.msra.mxu0 %v1473
    %2724 = vmatmul.f32.gmra.mxu0 %v620
    %v2725 = vpop.f32.mrf.mxu0
    %v2726 = vadd.f32 %v2703, %v2725
    %2727 = vmatmul.f32.gmra.mxu0 %v636
    %v2728 = vpop.f32.mrf.mxu0
    %v2729 = vadd.f32 %v2706, %v2728
    %2730 = vdwg.mxu0
    %2731 = vmatpush.msra.mxu0 %v1597
    %2732 = vmatpush.msra.mxu0 %v1593
    %2733 = vmatpush.msra.mxu0 %v1589
    %2734 = vmatpush.msra.mxu0 %v1585
    %2735 = vmatpush.msra.mxu0 %v1581
    %2736 = vmatpush.msra.mxu0 %v1577
    %2737 = vmatpush.msra.mxu0 %v1573
    %2738 = vmatpush.msra.mxu0 %v1569
    %2739 = vmatpush.msra.mxu0 %v1565
    %2740 = vmatpush.msra.mxu0 %v1561
    %2741 = vmatpush.msra.mxu0 %v1557
    %2742 = vmatpush.msra.mxu0 %v1553
    %2743 = vmatpush.msra.mxu0 %v1549
    %2744 = vmatpush.msra.mxu0 %v1545
    %2745 = vmatpush.msra.mxu0 %v1541
    %2746 = vmatpush.msra.mxu0 %v1537
    %2747 = vmatmul.f32.gmra.mxu0 %v621
    %v2748 = vpop.f32.mrf.mxu0
    %v2749 = vadd.f32 %v2726, %v2748
    %2750 = vmatmul.f32.gmra.mxu0 %v637
    %v2751 = vpop.f32.mrf.mxu0
    %v2752 = vadd.f32 %v2729, %v2751
    %2753 = vdwg.mxu0
    %2754 = vmatpush.msra.mxu0 %v1661
    %2755 = vmatpush.msra.mxu0 %v1657
    %2756 = vmatpush.msra.mxu0 %v1653
    %2757 = vmatpush.msra.mxu0 %v1649
    %2758 = vmatpush.msra.mxu0 %v1645
    %2759 = vmatpush.msra.mxu0 %v1641
    %2760 = vmatpush.msra.mxu0 %v1637
    %2761 = vmatpush.msra.mxu0 %v1633
    %2762 = vmatpush.msra.mxu0 %v1629
    %2763 = vmatpush.msra.mxu0 %v1625
    %2764 = vmatpush.msra.mxu0 %v1621
    %2765 = vmatpush.msra.mxu0 %v1617
    %2766 = vmatpush.msra.mxu0 %v1613
    %2767 = vmatpush.msra.mxu0 %v1609
    %2768 = vmatpush.msra.mxu0 %v1605
    %2769 = vmatpush.msra.mxu0 %v1601
    %2770 = vmatmul.f32.gmra.mxu0 %v622
    %v2771 = vpop.f32.mrf.mxu0
    %v2772 = vadd.f32 %v2749, %v2771
    %2773 = vmatmul.f32.gmra.mxu0 %v638
    %v2774 = vpop.f32.mrf.mxu0
    %v2775 = vadd.f32 %v2752, %v2774
    %2776 = vdwg.mxu0
    %2777 = vmatpush.msra.mxu0 %v702
    %2778 = vmatpush.msra.mxu0 %v698
    %2779 = vmatpush.msra.mxu0 %v694
    %2780 = vmatpush.msra.mxu0 %v690
    %2781 = vmatpush.msra.mxu0 %v686
    %2782 = vmatpush.msra.mxu0 %v682
    %2783 = vmatpush.msra.mxu0 %v678
    %2784 = vmatpush.msra.mxu0 %v674
    %2785 = vmatpush.msra.mxu0 %v670
    %2786 = vmatpush.msra.mxu0 %v666
    %2787 = vmatpush.msra.mxu0 %v662
    %2788 = vmatpush.msra.mxu0 %v658
    %2789 = vmatpush.msra.mxu0 %v654
    %2790 = vmatpush.msra.mxu0 %v650
    %2791 = vmatpush.msra.mxu0 %v646
    %2792 = vmatpush.msra.mxu0 %v642
    %2793 = vmatmul.f32.gmra.mxu0 %v607
    %v2794 = vpop.f32.mrf.mxu0
    %v2795 = vadd.f32 %v1668, %v2794
    %2796 = vmatmul.f32.gmra.mxu0 %v623
    %v2797 = vpop.f32.mrf.mxu0
    %v2798 = vadd.f32 %v1668, %v2797
    %2799 = vdwg.mxu0
    %2800 = vmatpush.msra.mxu0 %v766
    %2801 = vmatpush.msra.mxu0 %v762
    %2802 = vmatpush.msra.mxu0 %v758
    %2803 = vmatpush.msra.mxu0 %v754
    %2804 = vmatpush.msra.mxu0 %v750
    %2805 = vmatpush.msra.mxu0 %v746
    %2806 = vmatpush.msra.mxu0 %v742
    %2807 = vmatpush.msra.mxu0 %v738
    %2808 = vmatpush.msra.mxu0 %v734
    %2809 = vmatpush.msra.mxu0 %v730
    %2810 = vmatpush.msra.mxu0 %v726
    %2811 = vmatpush.msra.mxu0 %v722
    %2812 = vmatpush.msra.mxu0 %v718
    %2813 = vmatpush.msra.mxu0 %v714
    %2814 = vmatpush.msra.mxu0 %v710
    %2815 = vmatpush.msra.mxu0 %v706
    %2816 = vmatmul.f32.gmra.mxu0 %v608
    %v2817 = vpop.f32.mrf.mxu0
    %v2818 = vadd.f32 %v2795, %v2817
    %2819 = vmatmul.f32.gmra.mxu0 %v624
    %v2820 = vpop.f32.mrf.mxu0
    %v2821 = vadd.f32 %v2798, %v2820
    %2822 = vdwg.mxu0
    %2823 = vmatpush.msra.mxu0 %v830
    %2824 = vmatpush.msra.mxu0 %v826
    %2825 = vmatpush.msra.mxu0 %v822
    %2826 = vmatpush.msra.mxu0 %v818
    %2827 = vmatpush.msra.mxu0 %v814
    %2828 = vmatpush.msra.mxu0 %v810
    %2829 = vmatpush.msra.mxu0 %v806
    %2830 = vmatpush.msra.mxu0 %v802
    %2831 = vmatpush.msra.mxu0 %v798
    %2832 = vmatpush.msra.mxu0 %v794
    %2833 = vmatpush.msra.mxu0 %v790
    %2834 = vmatpush.msra.mxu0 %v786
    %2835 = vmatpush.msra.mxu0 %v782
    %2836 = vmatpush.msra.mxu0 %v778
    %2837 = vmatpush.msra.mxu0 %v774
    %2838 = vmatpush.msra.mxu0 %v770
    %2839 = vmatmul.f32.gmra.mxu0 %v609
    %v2840 = vpop.f32.mrf.mxu0
    %v2841 = vadd.f32 %v2818, %v2840
    %2842 = vmatmul.f32.gmra.mxu0 %v625
    %v2843 = vpop.f32.mrf.mxu0
    %v2844 = vadd.f32 %v2821, %v2843
    %2845 = vdwg.mxu0
    %2846 = vmatpush.msra.mxu0 %v894
    %2847 = vmatpush.msra.mxu0 %v890
    %2848 = vmatpush.msra.mxu0 %v886
    %2849 = vmatpush.msra.mxu0 %v882
    %2850 = vmatpush.msra.mxu0 %v878
    %2851 = vmatpush.msra.mxu0 %v874
    %2852 = vmatpush.msra.mxu0 %v870
    %2853 = vmatpush.msra.mxu0 %v866
    %2854 = vmatpush.msra.mxu0 %v862
    %2855 = vmatpush.msra.mxu0 %v858
    %2856 = vmatpush.msra.mxu0 %v854
    %2857 = vmatpush.msra.mxu0 %v850
    %2858 = vmatpush.msra.mxu0 %v846
    %2859 = vmatpush.msra.mxu0 %v842
    %2860 = vmatpush.msra.mxu0 %v838
    %2861 = vmatpush.msra.mxu0 %v834
    %2862 = vmatmul.f32.gmra.mxu0 %v610
    %v2863 = vpop.f32.mrf.mxu0
    %v2864 = vadd.f32 %v2841, %v2863
    %2865 = vmatmul.f32.gmra.mxu0 %v626
    %v2866 = vpop.f32.mrf.mxu0
    %v2867 = vadd.f32 %v2844, %v2866
    %2868 = vdwg.mxu0
    %2869 = vmatpush.msra.mxu0 %v958
    %2870 = vmatpush.msra.mxu0 %v954
    %2871 = vmatpush.msra.mxu0 %v950
    %2872 = vmatpush.msra.mxu0 %v946
    %2873 = vmatpush.msra.mxu0 %v942
    %2874 = vmatpush.msra.mxu0 %v938
    %2875 = vmatpush.msra.mxu0 %v934
    %2876 = vmatpush.msra.mxu0 %v930
    %2877 = vmatpush.msra.mxu0 %v926
    %2878 = vmatpush.msra.mxu0 %v922
    %2879 = vmatpush.msra.mxu0 %v918
    %2880 = vmatpush.msra.mxu0 %v914
    %2881 = vmatpush.msra.mxu0 %v910
    %2882 = vmatpush.msra.mxu0 %v906
    %2883 = vmatpush.msra.mxu0 %v902
    %2884 = vmatpush.msra.mxu0 %v898
    %2885 = vmatmul.f32.gmra.mxu0 %v611
    %v2886 = vpop.f32.mrf.mxu0
    %v2887 = vadd.f32 %v2864, %v2886
    %2888 = vmatmul.f32.gmra.mxu0 %v627
    %v2889 = vpop.f32.mrf.mxu0
    %v2890 = vadd.f32 %v2867, %v2889
    %2891 = vdwg.mxu0
    %2892 = vmatpush.msra.mxu0 %v1022
    %2893 = vmatpush.msra.mxu0 %v1018
    %2894 = vmatpush.msra.mxu0 %v1014
    %2895 = vmatpush.msra.mxu0 %v1010
    %2896 = vmatpush.msra.mxu0 %v1006
    %2897 = vmatpush.msra.mxu0 %v1002
    %2898 = vmatpush.msra.mxu0 %v998
    %2899 = vmatpush.msra.mxu0 %v994
    %2900 = vmatpush.msra.mxu0 %v990
    %2901 = vmatpush.msra.mxu0 %v986
    %2902 = vmatpush.msra.mxu0 %v982
    %2903 = vmatpush.msra.mxu0 %v978
    %2904 = vmatpush.msra.mxu0 %v974
    %2905 = vmatpush.msra.mxu0 %v970
    %2906 = vmatpush.msra.mxu0 %v966
    %2907 = vmatpush.msra.mxu0 %v962
    %2908 = vmatmul.f32.gmra.mxu0 %v612
    %v2909 = vpop.f32.mrf.mxu0
    %v2910 = vadd.f32 %v2887, %v2909
    %2911 = vmatmul.f32.gmra.mxu0 %v628
    %v2912 = vpop.f32.mrf.mxu0
    %v2913 = vadd.f32 %v2890, %v2912
    %2914 = vdwg.mxu0
    %2915 = vmatpush.msra.mxu0 %v1086
    %2916 = vmatpush.msra.mxu0 %v1082
    %2917 = vmatpush.msra.mxu0 %v1078
    %2918 = vmatpush.msra.mxu0 %v1074
    %2919 = vmatpush.msra.mxu0 %v1070
    %2920 = vmatpush.msra.mxu0 %v1066
    %2921 = vmatpush.msra.mxu0 %v1062
    %2922 = vmatpush.msra.mxu0 %v1058
    %2923 = vmatpush.msra.mxu0 %v1054
    %2924 = vmatpush.msra.mxu0 %v1050
    %2925 = vmatpush.msra.mxu0 %v1046
    %2926 = vmatpush.msra.mxu0 %v1042
    %2927 = vmatpush.msra.mxu0 %v1038
    %2928 = vmatpush.msra.mxu0 %v1034
    %2929 = vmatpush.msra.mxu0 %v1030
    %2930 = vmatpush.msra.mxu0 %v1026
    %2931 = vmatmul.f32.gmra.mxu0 %v613
    %v2932 = vpop.f32.mrf.mxu0
    %v2933 = vadd.f32 %v2910, %v2932
    %2934 = vmatmul.f32.gmra.mxu0 %v629
    %v2935 = vpop.f32.mrf.mxu0
    %v2936 = vadd.f32 %v2913, %v2935
    %2937 = vdwg.mxu0
    %2938 = vmatpush.msra.mxu0 %v1150
    %2939 = vmatpush.msra.mxu0 %v1146
    %2940 = vmatpush.msra.mxu0 %v1142
    %2941 = vmatpush.msra.mxu0 %v1138
    %2942 = vmatpush.msra.mxu0 %v1134
    %2943 = vmatpush.msra.mxu0 %v1130
    %2944 = vmatpush.msra.mxu0 %v1126
    %2945 = vmatpush.msra.mxu0 %v1122
    %2946 = vmatpush.msra.mxu0 %v1118
    %2947 = vmatpush.msra.mxu0 %v1114
    %2948 = vmatpush.msra.mxu0 %v1110
    %2949 = vmatpush.msra.mxu0 %v1106
    %2950 = vmatpush.msra.mxu0 %v1102
    %2951 = vmatpush.msra.mxu0 %v1098
    %2952 = vmatpush.msra.mxu0 %v1094
    %2953 = vmatpush.msra.mxu0 %v1090
    %2954 = vmatmul.f32.gmra.mxu0 %v614
    %v2955 = vpop.f32.mrf.mxu0
    %v2956 = vadd.f32 %v2933, %v2955
    %2957 = vmatmul.f32.gmra.mxu0 %v630
    %v2958 = vpop.f32.mrf.mxu0
    %v2959 = vadd.f32 %v2936, %v2958
    %2960 = vdwg.mxu0
    %2961 = vmatpush.msra.mxu0 %v1214
    %2962 = vmatpush.msra.mxu0 %v1210
    %2963 = vmatpush.msra.mxu0 %v1206
    %2964 = vmatpush.msra.mxu0 %v1202
    %2965 = vmatpush.msra.mxu0 %v1198
    %2966 = vmatpush.msra.mxu0 %v1194
    %2967 = vmatpush.msra.mxu0 %v1190
    %2968 = vmatpush.msra.mxu0 %v1186
    %2969 = vmatpush.msra.mxu0 %v1182
    %2970 = vmatpush.msra.mxu0 %v1178
    %2971 = vmatpush.msra.mxu0 %v1174
    %2972 = vmatpush.msra.mxu0 %v1170
    %2973 = vmatpush.msra.mxu0 %v1166
    %2974 = vmatpush.msra.mxu0 %v1162
    %2975 = vmatpush.msra.mxu0 %v1158
    %2976 = vmatpush.msra.mxu0 %v1154
    %2977 = vmatmul.f32.gmra.mxu0 %v615
    %v2978 = vpop.f32.mrf.mxu0
    %v2979 = vadd.f32 %v2956, %v2978
    %2980 = vmatmul.f32.gmra.mxu0 %v631
    %v2981 = vpop.f32.mrf.mxu0
    %v2982 = vadd.f32 %v2959, %v2981
    %2983 = vdwg.mxu0
    %2984 = vmatpush.msra.mxu0 %v1278
    %2985 = vmatpush.msra.mxu0 %v1274
    %2986 = vmatpush.msra.mxu0 %v1270
    %2987 = vmatpush.msra.mxu0 %v1266
    %2988 = vmatpush.msra.mxu0 %v1262
    %2989 = vmatpush.msra.mxu0 %v1258
    %2990 = vmatpush.msra.mxu0 %v1254
    %2991 = vmatpush.msra.mxu0 %v1250
    %2992 = vmatpush.msra.mxu0 %v1246
    %2993 = vmatpush.msra.mxu0 %v1242
    %2994 = vmatpush.msra.mxu0 %v1238
    %2995 = vmatpush.msra.mxu0 %v1234
    %2996 = vmatpush.msra.mxu0 %v1230
    %2997 = vmatpush.msra.mxu0 %v1226
    %2998 = vmatpush.msra.mxu0 %v1222
    %2999 = vmatpush.msra.mxu0 %v1218
    %3000 = vmatmul.f32.gmra.mxu0 %v616
    %v3001 = vpop.f32.mrf.mxu0
    %v3002 = vadd.f32 %v2979, %v3001
    %3003 = vmatmul.f32.gmra.mxu0 %v632
    %v3004 = vpop.f32.mrf.mxu0
    %v3005 = vadd.f32 %v2982, %v3004
    %3006 = vdwg.mxu0
    %3007 = vmatpush.msra.mxu0 %v1342
    %3008 = vmatpush.msra.mxu0 %v1338
    %3009 = vmatpush.msra.mxu0 %v1334
    %3010 = vmatpush.msra.mxu0 %v1330
    %3011 = vmatpush.msra.mxu0 %v1326
    %3012 = vmatpush.msra.mxu0 %v1322
    %3013 = vmatpush.msra.mxu0 %v1318
    %3014 = vmatpush.msra.mxu0 %v1314
    %3015 = vmatpush.msra.mxu0 %v1310
    %3016 = vmatpush.msra.mxu0 %v1306
    %3017 = vmatpush.msra.mxu0 %v1302
    %3018 = vmatpush.msra.mxu0 %v1298
    %3019 = vmatpush.msra.mxu0 %v1294
    %3020 = vmatpush.msra.mxu0 %v1290
    %3021 = vmatpush.msra.mxu0 %v1286
    %3022 = vmatpush.msra.mxu0 %v1282
    %3023 = vmatmul.f32.gmra.mxu0 %v617
    %v3024 = vpop.f32.mrf.mxu0
    %v3025 = vadd.f32 %v3002, %v3024
    %3026 = vmatmul.f32.gmra.mxu0 %v633
    %v3027 = vpop.f32.mrf.mxu0
    %v3028 = vadd.f32 %v3005, %v3027
    %3029 = vdwg.mxu0
    %3030 = vmatpush.msra.mxu0 %v1406
    %3031 = vmatpush.msra.mxu0 %v1402
    %3032 = vmatpush.msra.mxu0 %v1398
    %3033 = vmatpush.msra.mxu0 %v1394
    %3034 = vmatpush.msra.mxu0 %v1390
    %3035 = vmatpush.msra.mxu0 %v1386
    %3036 = vmatpush.msra.mxu0 %v1382
    %3037 = vmatpush.msra.mxu0 %v1378
    %3038 = vmatpush.msra.mxu0 %v1374
    %3039 = vmatpush.msra.mxu0 %v1370
    %3040 = vmatpush.msra.mxu0 %v1366
    %3041 = vmatpush.msra.mxu0 %v1362
    %3042 = vmatpush.msra.mxu0 %v1358
    %3043 = vmatpush.msra.mxu0 %v1354
    %3044 = vmatpush.msra.mxu0 %v1350
    %3045 = vmatpush.msra.mxu0 %v1346
    %3046 = vmatmul.f32.gmra.mxu0 %v618
    %v3047 = vpop.f32.mrf.mxu0
    %v3048 = vadd.f32 %v3025, %v3047
    %3049 = vmatmul.f32.gmra.mxu0 %v634
    %v3050 = vpop.f32.mrf.mxu0
    %v3051 = vadd.f32 %v3028, %v3050
    %3052 = vdwg.mxu0
    %3053 = vmatpush.msra.mxu0 %v1470
    %3054 = vmatpush.msra.mxu0 %v1466
    %3055 = vmatpush.msra.mxu0 %v1462
    %3056 = vmatpush.msra.mxu0 %v1458
    %3057 = vmatpush.msra.mxu0 %v1454
    %3058 = vmatpush.msra.mxu0 %v1450
    %3059 = vmatpush.msra.mxu0 %v1446
    %3060 = vmatpush.msra.mxu0 %v1442
    %3061 = vmatpush.msra.mxu0 %v1438
    %3062 = vmatpush.msra.mxu0 %v1434
    %3063 = vmatpush.msra.mxu0 %v1430
    %3064 = vmatpush.msra.mxu0 %v1426
    %3065 = vmatpush.msra.mxu0 %v1422
    %3066 = vmatpush.msra.mxu0 %v1418
    %3067 = vmatpush.msra.mxu0 %v1414
    %3068 = vmatpush.msra.mxu0 %v1410
    %3069 = vmatmul.f32.gmra.mxu0 %v619
    %v3070 = vpop.f32.mrf.mxu0
    %v3071 = vadd.f32 %v3048, %v3070
    %3072 = vmatmul.f32.gmra.mxu0 %v635
    %v3073 = vpop.f32.mrf.mxu0
    %v3074 = vadd.f32 %v3051, %v3073
    %3075 = vdwg.mxu0
    %3076 = vmatpush.msra.mxu0 %v1534
    %3077 = vmatpush.msra.mxu0 %v1530
    %3078 = vmatpush.msra.mxu0 %v1526
    %3079 = vmatpush.msra.mxu0 %v1522
    %3080 = vmatpush.msra.mxu0 %v1518
    %3081 = vmatpush.msra.mxu0 %v1514
    %3082 = vmatpush.msra.mxu0 %v1510
    %3083 = vmatpush.msra.mxu0 %v1506
    %3084 = vmatpush.msra.mxu0 %v1502
    %3085 = vmatpush.msra.mxu0 %v1498
    %3086 = vmatpush.msra.mxu0 %v1494
    %3087 = vmatpush.msra.mxu0 %v1490
    %3088 = vmatpush.msra.mxu0 %v1486
    %3089 = vmatpush.msra.mxu0 %v1482
    %3090 = vmatpush.msra.mxu0 %v1478
    %3091 = vmatpush.msra.mxu0 %v1474
    %3092 = vmatmul.f32.gmra.mxu0 %v620
    %v3093 = vpop.f32.mrf.mxu0
    %v3094 = vadd.f32 %v3071, %v3093
    %3095 = vmatmul.f32.gmra.mxu0 %v636
    %v3096 = vpop.f32.mrf.mxu0
    %v3097 = vadd.f32 %v3074, %v3096
    %3098 = vdwg.mxu0
    %3099 = vmatpush.msra.mxu0 %v1598
    %3100 = vmatpush.msra.mxu0 %v1594
    %3101 = vmatpush.msra.mxu0 %v1590
    %3102 = vmatpush.msra.mxu0 %v1586
    %3103 = vmatpush.msra.mxu0 %v1582
    %3104 = vmatpush.msra.mxu0 %v1578
    %3105 = vmatpush.msra.mxu0 %v1574
    %3106 = vmatpush.msra.mxu0 %v1570
    %3107 = vmatpush.msra.mxu0 %v1566
    %3108 = vmatpush.msra.mxu0 %v1562
    %3109 = vmatpush.msra.mxu0 %v1558
    %3110 = vmatpush.msra.mxu0 %v1554
    %3111 = vmatpush.msra.mxu0 %v1550
    %3112 = vmatpush.msra.mxu0 %v1546
    %3113 = vmatpush.msra.mxu0 %v1542
    %3114 = vmatpush.msra.mxu0 %v1538
    %3115 = vmatmul.f32.gmra.mxu0 %v621
    %v3116 = vpop.f32.mrf.mxu0
    %v3117 = vadd.f32 %v3094, %v3116
    %3118 = vmatmul.f32.gmra.mxu0 %v637
    %v3119 = vpop.f32.mrf.mxu0
    %v3120 = vadd.f32 %v3097, %v3119
    %3121 = vdwg.mxu0
    %3122 = vmatpush.msra.mxu0 %v1662
    %3123 = vmatpush.msra.mxu0 %v1658
    %3124 = vmatpush.msra.mxu0 %v1654
    %3125 = vmatpush.msra.mxu0 %v1650
    %3126 = vmatpush.msra.mxu0 %v1646
    %3127 = vmatpush.msra.mxu0 %v1642
    %3128 = vmatpush.msra.mxu0 %v1638
    %3129 = vmatpush.msra.mxu0 %v1634
    %3130 = vmatpush.msra.mxu0 %v1630
    %3131 = vmatpush.msra.mxu0 %v1626
    %3132 = vmatpush.msra.mxu0 %v1622
    %3133 = vmatpush.msra.mxu0 %v1618
    %3134 = vmatpush.msra.mxu0 %v1614
    %3135 = vmatpush.msra.mxu0 %v1610
    %3136 = vmatpush.msra.mxu0 %v1606
    %3137 = vmatpush.msra.mxu0 %v1602
    %3138 = vmatmul.f32.gmra.mxu0 %v622
    %v3139 = vpop.f32.mrf.mxu0
    %v3140 = vadd.f32 %v3117, %v3139
    %3141 = vmatmul.f32.gmra.mxu0 %v638
    %v3142 = vpop.f32.mrf.mxu0
    %v3143 = vadd.f32 %v3120, %v3142
    %3144 = vdwg.mxu0
    %v3145 = vmax.f32 %v2036, 0.0
    %v3146 = vmax.f32 %v2404, 0.0
    %v3147 = vmax.f32 %v2772, 0.0
    %v3148 = vmax.f32 %v3140, 0.0
    %v3149 = vmax.f32 %v2039, 0.0
    %v3150 = vmax.f32 %v2407, 0.0
    %v3151 = vmax.f32 %v2775, 0.0
    %v3152 = vmax.f32 %v3143, 0.0
    %v3153 = vld [vmem:[#allocation11] sm:$0xff]
    %v3154 = vld [vmem:[#allocation11 + $0x8] sm:$0xff]
    %v3155 = vld [vmem:[#allocation11 + $0x10] sm:$0xff]
    %v3156 = vld [vmem:[#allocation11 + $0x18] sm:$0xff]
    %v3157 = vld [vmem:[#allocation11 + $0x20] sm:$0xff]
    %v3158 = vld [vmem:[#allocation11 + $0x28] sm:$0xff]
    %v3159 = vld [vmem:[#allocation11 + $0x30] sm:$0xff]
    %v3160 = vld [vmem:[#allocation11 + $0x38] sm:$0xff]
    %v3161 = vld [vmem:[#allocation11 + $0x40] sm:$0xff]
    %v3162 = vld [vmem:[#allocation11 + $0x48] sm:$0xff]
    %v3163 = vld [vmem:[#allocation11 + $0x50] sm:$0xff]
    %v3164 = vld [vmem:[#allocation11 + $0x58] sm:$0xff]
    %v3165 = vld [vmem:[#allocation11 + $0x60] sm:$0xff]
    %v3166 = vld [vmem:[#allocation11 + $0x68] sm:$0xff]
    %v3167 = vld [vmem:[#allocation11 + $0x70] sm:$0xff]
    %v3168 = vld [vmem:[#allocation11 + $0x78] sm:$0xff]
    %v3169 = vld [vmem:[#allocation11 + $0x80] sm:$0xff]
    %v3170 = vld [vmem:[#allocation11 + $0x88] sm:$0xff]
    %v3171 = vld [vmem:[#allocation11 + $0x90] sm:$0xff]
    %v3172 = vld [vmem:[#allocation11 + $0x98] sm:$0xff]
    %v3173 = vld [vmem:[#allocation11 + $0xa0] sm:$0xff]
    %v3174 = vld [vmem:[#allocation11 + $0xa8] sm:$0xff]
    %v3175 = vld [vmem:[#allocation11 + $0xb0] sm:$0xff]
    %v3176 = vld [vmem:[#allocation11 + $0xb8] sm:$0xff]
    %v3177 = vld [vmem:[#allocation11 + $0xc0] sm:$0xff]
    %v3178 = vld [vmem:[#allocation11 + $0xc8] sm:$0xff]
    %v3179 = vld [vmem:[#allocation11 + $0xd0] sm:$0xff]
    %v3180 = vld [vmem:[#allocation11 + $0xd8] sm:$0xff]
    %v3181 = vld [vmem:[#allocation11 + $0xe0] sm:$0xff]
    %v3182 = vld [vmem:[#allocation11 + $0xe8] sm:$0xff]
    %v3183 = vld [vmem:[#allocation11 + $0xf0] sm:$0xff]
    %v3184 = vld [vmem:[#allocation11 + $0xf8] sm:$0xff]
    %v3185 = vld [vmem:[#allocation11 + $0x100] sm:$0xff]
    %v3186 = vld [vmem:[#allocation11 + $0x108] sm:$0xff]
    %v3187 = vld [vmem:[#allocation11 + $0x110] sm:$0xff]
    %v3188 = vld [vmem:[#allocation11 + $0x118] sm:$0xff]
    %v3189 = vld [vmem:[#allocation11 + $0x120] sm:$0xff]
    %v3190 = vld [vmem:[#allocation11 + $0x128] sm:$0xff]
    %v3191 = vld [vmem:[#allocation11 + $0x130] sm:$0xff]
    %v3192 = vld [vmem:[#allocation11 + $0x138] sm:$0xff]
    %v3193 = vld [vmem:[#allocation11 + $0x140] sm:$0xff]
    %v3194 = vld [vmem:[#allocation11 + $0x148] sm:$0xff]
    %v3195 = vld [vmem:[#allocation11 + $0x150] sm:$0xff]
    %v3196 = vld [vmem:[#allocation11 + $0x158] sm:$0xff]
    %v3197 = vld [vmem:[#allocation11 + $0x160] sm:$0xff]
    %v3198 = vld [vmem:[#allocation11 + $0x168] sm:$0xff]
    %v3199 = vld [vmem:[#allocation11 + $0x170] sm:$0xff]
    %v3200 = vld [vmem:[#allocation11 + $0x178] sm:$0xff]
    %v3201 = vld [vmem:[#allocation11 + $0x180] sm:$0xff]
    %v3202 = vld [vmem:[#allocation11 + $0x188] sm:$0xff]
    %v3203 = vld [vmem:[#allocation11 + $0x190] sm:$0xff]
    %v3204 = vld [vmem:[#allocation11 + $0x198] sm:$0xff]
    %v3205 = vld [vmem:[#allocation11 + $0x1a0] sm:$0xff]
    %v3206 = vld [vmem:[#allocation11 + $0x1a8] sm:$0xff]
    %v3207 = vld [vmem:[#allocation11 + $0x1b0] sm:$0xff]
    %v3208 = vld [vmem:[#allocation11 + $0x1b8] sm:$0xff]
    %v3209 = vld [vmem:[#allocation11 + $0x1c0] sm:$0xff]
    %v3210 = vld [vmem:[#allocation11 + $0x1c8] sm:$0xff]
    %v3211 = vld [vmem:[#allocation11 + $0x1d0] sm:$0xff]
    %v3212 = vld [vmem:[#allocation11 + $0x1d8] sm:$0xff]
    %v3213 = vld [vmem:[#allocation11 + $0x1e0] sm:$0xff]
    %v3214 = vld [vmem:[#allocation11 + $0x1e8] sm:$0xff]
    %v3215 = vld [vmem:[#allocation11 + $0x1f0] sm:$0xff]
    %v3216 = vld [vmem:[#allocation11 + $0x1f8] sm:$0xff]
    %v3217 = vld [vmem:[#allocation11 + $0x200] sm:$0xff]
    %v3218 = vld [vmem:[#allocation11 + $0x208] sm:$0xff]
    %v3219 = vld [vmem:[#allocation11 + $0x210] sm:$0xff]
    %v3220 = vld [vmem:[#allocation11 + $0x218] sm:$0xff]
    %v3221 = vld [vmem:[#allocation11 + $0x220] sm:$0xff]
    %v3222 = vld [vmem:[#allocation11 + $0x228] sm:$0xff]
    %v3223 = vld [vmem:[#allocation11 + $0x230] sm:$0xff]
    %v3224 = vld [vmem:[#allocation11 + $0x238] sm:$0xff]
    %v3225 = vld [vmem:[#allocation11 + $0x240] sm:$0xff]
    %v3226 = vld [vmem:[#allocation11 + $0x248] sm:$0xff]
    %v3227 = vld [vmem:[#allocation11 + $0x250] sm:$0xff]
    %v3228 = vld [vmem:[#allocation11 + $0x258] sm:$0xff]
    %v3229 = vld [vmem:[#allocation11 + $0x260] sm:$0xff]
    %v3230 = vld [vmem:[#allocation11 + $0x268] sm:$0xff]
    %v3231 = vld [vmem:[#allocation11 + $0x270] sm:$0xff]
    %v3232 = vld [vmem:[#allocation11 + $0x278] sm:$0xff]
    %v3233 = vld [vmem:[#allocation11 + $0x280] sm:$0xff]
    %v3234 = vld [vmem:[#allocation11 + $0x288] sm:$0xff]
    %v3235 = vld [vmem:[#allocation11 + $0x290] sm:$0xff]
    %v3236 = vld [vmem:[#allocation11 + $0x298] sm:$0xff]
    %v3237 = vld [vmem:[#allocation11 + $0x2a0] sm:$0xff]
    %v3238 = vld [vmem:[#allocation11 + $0x2a8] sm:$0xff]
    %v3239 = vld [vmem:[#allocation11 + $0x2b0] sm:$0xff]
    %v3240 = vld [vmem:[#allocation11 + $0x2b8] sm:$0xff]
    %v3241 = vld [vmem:[#allocation11 + $0x2c0] sm:$0xff]
    %v3242 = vld [vmem:[#allocation11 + $0x2c8] sm:$0xff]
    %v3243 = vld [vmem:[#allocation11 + $0x2d0] sm:$0xff]
    %v3244 = vld [vmem:[#allocation11 + $0x2d8] sm:$0xff]
    %v3245 = vld [vmem:[#allocation11 + $0x2e0] sm:$0xff]
    %v3246 = vld [vmem:[#allocation11 + $0x2e8] sm:$0xff]
    %v3247 = vld [vmem:[#allocation11 + $0x2f0] sm:$0xff]
    %v3248 = vld [vmem:[#allocation11 + $0x2f8] sm:$0xff]
    %v3249 = vld [vmem:[#allocation11 + $0x300] sm:$0xff]
    %v3250 = vld [vmem:[#allocation11 + $0x308] sm:$0xff]
    %v3251 = vld [vmem:[#allocation11 + $0x310] sm:$0xff]
    %v3252 = vld [vmem:[#allocation11 + $0x318] sm:$0xff]
    %v3253 = vld [vmem:[#allocation11 + $0x320] sm:$0xff]
    %v3254 = vld [vmem:[#allocation11 + $0x328] sm:$0xff]
    %v3255 = vld [vmem:[#allocation11 + $0x330] sm:$0xff]
    %v3256 = vld [vmem:[#allocation11 + $0x338] sm:$0xff]
    %v3257 = vld [vmem:[#allocation11 + $0x340] sm:$0xff]
    %v3258 = vld [vmem:[#allocation11 + $0x348] sm:$0xff]
    %v3259 = vld [vmem:[#allocation11 + $0x350] sm:$0xff]
    %v3260 = vld [vmem:[#allocation11 + $0x358] sm:$0xff]
    %v3261 = vld [vmem:[#allocation11 + $0x360] sm:$0xff]
    %v3262 = vld [vmem:[#allocation11 + $0x368] sm:$0xff]
    %v3263 = vld [vmem:[#allocation11 + $0x370] sm:$0xff]
    %v3264 = vld [vmem:[#allocation11 + $0x378] sm:$0xff]
    %v3265 = vld [vmem:[#allocation11 + $0x380] sm:$0xff]
    %v3266 = vld [vmem:[#allocation11 + $0x388] sm:$0xff]
    %v3267 = vld [vmem:[#allocation11 + $0x390] sm:$0xff]
    %v3268 = vld [vmem:[#allocation11 + $0x398] sm:$0xff]
    %v3269 = vld [vmem:[#allocation11 + $0x3a0] sm:$0xff]
    %v3270 = vld [vmem:[#allocation11 + $0x3a8] sm:$0xff]
    %v3271 = vld [vmem:[#allocation11 + $0x3b0] sm:$0xff]
    %v3272 = vld [vmem:[#allocation11 + $0x3b8] sm:$0xff]
    %v3273 = vld [vmem:[#allocation11 + $0x3c0] sm:$0xff]
    %v3274 = vld [vmem:[#allocation11 + $0x3c8] sm:$0xff]
    %v3275 = vld [vmem:[#allocation11 + $0x3d0] sm:$0xff]
    %v3276 = vld [vmem:[#allocation11 + $0x3d8] sm:$0xff]
    %v3277 = vld [vmem:[#allocation11 + $0x3e0] sm:$0xff]
    %v3278 = vld [vmem:[#allocation11 + $0x3e8] sm:$0xff]
    %v3279 = vld [vmem:[#allocation11 + $0x3f0] sm:$0xff]
    %v3280 = vld [vmem:[#allocation11 + $0x3f8] sm:$0xff]
    %v3281 = vld [vmem:[#allocation13] sm:$0x3]
    %v3283 = vperm.slane %v3281, 0
    %v3284 = vperm.slane %v3281, 1
    %3287 = vmatpush.msra.mxu0 %v3183
    %3288 = vmatpush.msra.mxu0 %v3181
    %3289 = vmatpush.msra.mxu0 %v3179
    %3290 = vmatpush.msra.mxu0 %v3177
    %3291 = vmatpush.msra.mxu0 %v3175
    %3292 = vmatpush.msra.mxu0 %v3173
    %3293 = vmatpush.msra.mxu0 %v3171
    %3294 = vmatpush.msra.mxu0 %v3169
    %3295 = vmatpush.msra.mxu0 %v3167
    %3296 = vmatpush.msra.mxu0 %v3165
    %3297 = vmatpush.msra.mxu0 %v3163
    %3298 = vmatpush.msra.mxu0 %v3161
    %3299 = vmatpush.msra.mxu0 %v3159
    %3300 = vmatpush.msra.mxu0 %v3157
    %3301 = vmatpush.msra.mxu0 %v3155
    %3302 = vmatpush.msra.mxu0 %v3153
    %3303 = vmatmul.f32.gmra.mxu0 %v3145
    %v3304 = vpop.f32.mrf.mxu0
    %v3305 = vadd.f32 %v3283, %v3304
    %3306 = vmatmul.f32.gmra.mxu0 %v3149
    %v3307 = vpop.f32.mrf.mxu0
    %v3308 = vadd.f32 %v3283, %v3307
    %3309 = vdwg.mxu0
    %3310 = vmatpush.msra.mxu0 %v3215
    %3311 = vmatpush.msra.mxu0 %v3213
    %3312 = vmatpush.msra.mxu0 %v3211
    %3313 = vmatpush.msra.mxu0 %v3209
    %3314 = vmatpush.msra.mxu0 %v3207
    %3315 = vmatpush.msra.mxu0 %v3205
    %3316 = vmatpush.msra.mxu0 %v3203
    %3317 = vmatpush.msra.mxu0 %v3201
    %3318 = vmatpush.msra.mxu0 %v3199
    %3319 = vmatpush.msra.mxu0 %v3197
    %3320 = vmatpush.msra.mxu0 %v3195
    %3321 = vmatpush.msra.mxu0 %v3193
    %3322 = vmatpush.msra.mxu0 %v3191
    %3323 = vmatpush.msra.mxu0 %v3189
    %3324 = vmatpush.msra.mxu0 %v3187
    %3325 = vmatpush.msra.mxu0 %v3185
    %3326 = vmatmul.f32.gmra.mxu0 %v3146
    %v3327 = vpop.f32.mrf.mxu0
    %v3328 = vadd.f32 %v3305, %v3327
    %3329 = vmatmul.f32.gmra.mxu0 %v3150
    %v3330 = vpop.f32.mrf.mxu0
    %v3331 = vadd.f32 %v3308, %v3330
    %3332 = vdwg.mxu0
    %3333 = vmatpush.msra.mxu0 %v3247
    %3334 = vmatpush.msra.mxu0 %v3245
    %3335 = vmatpush.msra.mxu0 %v3243
    %3336 = vmatpush.msra.mxu0 %v3241
    %3337 = vmatpush.msra.mxu0 %v3239
    %3338 = vmatpush.msra.mxu0 %v3237
    %3339 = vmatpush.msra.mxu0 %v3235
    %3340 = vmatpush.msra.mxu0 %v3233
    %3341 = vmatpush.msra.mxu0 %v3231
    %3342 = vmatpush.msra.mxu0 %v3229
    %3343 = vmatpush.msra.mxu0 %v3227
    %3344 = vmatpush.msra.mxu0 %v3225
    %3345 = vmatpush.msra.mxu0 %v3223
    %3346 = vmatpush.msra.mxu0 %v3221
    %3347 = vmatpush.msra.mxu0 %v3219
    %3348 = vmatpush.msra.mxu0 %v3217
    %3349 = vmatmul.f32.gmra.mxu0 %v3147
    %v3350 = vpop.f32.mrf.mxu0
    %v3351 = vadd.f32 %v3328, %v3350
    %3352 = vmatmul.f32.gmra.mxu0 %v3151
    %v3353 = vpop.f32.mrf.mxu0
    %v3354 = vadd.f32 %v3331, %v3353
    %3355 = vdwg.mxu0
    %3356 = vmatpush.msra.mxu0 %v3279
    %3357 = vmatpush.msra.mxu0 %v3277
    %3358 = vmatpush.msra.mxu0 %v3275
    %3359 = vmatpush.msra.mxu0 %v3273
    %3360 = vmatpush.msra.mxu0 %v3271
    %3361 = vmatpush.msra.mxu0 %v3269
    %3362 = vmatpush.msra.mxu0 %v3267
    %3363 = vmatpush.msra.mxu0 %v3265
    %3364 = vmatpush.msra.mxu0 %v3263
    %3365 = vmatpush.msra.mxu0 %v3261
    %3366 = vmatpush.msra.mxu0 %v3259
    %3367 = vmatpush.msra.mxu0 %v3257
    %3368 = vmatpush.msra.mxu0 %v3255
    %3369 = vmatpush.msra.mxu0 %v3253
    %3370 = vmatpush.msra.mxu0 %v3251
    %3371 = vmatpush.msra.mxu0 %v3249
    %3372 = vmatmul.f32.gmra.mxu0 %v3148
    %v3373 = vpop.f32.mrf.mxu0
    %v3374 = vadd.f32 %v3351, %v3373
    %3375 = vmatmul.f32.gmra.mxu0 %v3152
    %v3376 = vpop.f32.mrf.mxu0
    %v3377 = vadd.f32 %v3354, %v3376
    %3378 = vdwg.mxu0
    %3379 = vmatpush.msra.mxu0 %v3184
    %3380 = vmatpush.msra.mxu0 %v3182
    %3381 = vmatpush.msra.mxu0 %v3180
    %3382 = vmatpush.msra.mxu0 %v3178
    %3383 = vmatpush.msra.mxu0 %v3176
    %3384 = vmatpush.msra.mxu0 %v3174
    %3385 = vmatpush.msra.mxu0 %v3172
    %3386 = vmatpush.msra.mxu0 %v3170
    %3387 = vmatpush.msra.mxu0 %v3168
    %3388 = vmatpush.msra.mxu0 %v3166
    %3389 = vmatpush.msra.mxu0 %v3164
    %3390 = vmatpush.msra.mxu0 %v3162
    %3391 = vmatpush.msra.mxu0 %v3160
    %3392 = vmatpush.msra.mxu0 %v3158
    %3393 = vmatpush.msra.mxu0 %v3156
    %3394 = vmatpush.msra.mxu0 %v3154
    %3395 = vmatmul.f32.gmra.mxu0 %v3145
    %v3396 = vpop.f32.mrf.mxu0
    %v3397 = vadd.f32 %v3284, %v3396
    %3398 = vmatmul.f32.gmra.mxu0 %v3149
    %v3399 = vpop.f32.mrf.mxu0
    %v3400 = vadd.f32 %v3284, %v3399
    %3401 = vdwg.mxu0
    %3402 = vmatpush.msra.mxu0 %v3216
    %3403 = vmatpush.msra.mxu0 %v3214
    %3404 = vmatpush.msra.mxu0 %v3212
    %3405 = vmatpush.msra.mxu0 %v3210
    %3406 = vmatpush.msra.mxu0 %v3208
    %3407 = vmatpush.msra.mxu0 %v3206
    %3408 = vmatpush.msra.mxu0 %v3204
    %3409 = vmatpush.msra.mxu0 %v3202
    %3410 = vmatpush.msra.mxu0 %v3200
    %3411 = vmatpush.msra.mxu0 %v3198
    %3412 = vmatpush.msra.mxu0 %v3196
    %3413 = vmatpush.msra.mxu0 %v3194
    %3414 = vmatpush.msra.mxu0 %v3192
    %3415 = vmatpush.msra.mxu0 %v3190
    %3416 = vmatpush.msra.mxu0 %v3188
    %3417 = vmatpush.msra.mxu0 %v3186
    %3418 = vmatmul.f32.gmra.mxu0 %v3146
    %v3419 = vpop.f32.mrf.mxu0
    %v3420 = vadd.f32 %v3397, %v3419
    %3421 = vmatmul.f32.gmra.mxu0 %v3150
    %v3422 = vpop.f32.mrf.mxu0
    %v3423 = vadd.f32 %v3400, %v3422
    %3424 = vdwg.mxu0
    %3425 = vmatpush.msra.mxu0 %v3248
    %3426 = vmatpush.msra.mxu0 %v3246
    %3427 = vmatpush.msra.mxu0 %v3244
    %3428 = vmatpush.msra.mxu0 %v3242
    %3429 = vmatpush.msra.mxu0 %v3240
    %3430 = vmatpush.msra.mxu0 %v3238
    %3431 = vmatpush.msra.mxu0 %v3236
    %3432 = vmatpush.msra.mxu0 %v3234
    %3433 = vmatpush.msra.mxu0 %v3232
    %3434 = vmatpush.msra.mxu0 %v3230
    %3435 = vmatpush.msra.mxu0 %v3228
    %3436 = vmatpush.msra.mxu0 %v3226
    %3437 = vmatpush.msra.mxu0 %v3224
    %3438 = vmatpush.msra.mxu0 %v3222
    %3439 = vmatpush.msra.mxu0 %v3220
    %3440 = vmatpush.msra.mxu0 %v3218
    %3441 = vmatmul.f32.gmra.mxu0 %v3147
    %v3442 = vpop.f32.mrf.mxu0
    %v3443 = vadd.f32 %v3420, %v3442
    %3444 = vmatmul.f32.gmra.mxu0 %v3151
    %v3445 = vpop.f32.mrf.mxu0
    %v3446 = vadd.f32 %v3423, %v3445
    %3447 = vdwg.mxu0
    %3448 = vmatpush.msra.mxu0 %v3280
    %3449 = vmatpush.msra.mxu0 %v3278
    %3450 = vmatpush.msra.mxu0 %v3276
    %3451 = vmatpush.msra.mxu0 %v3274
    %3452 = vmatpush.msra.mxu0 %v3272
    %3453 = vmatpush.msra.mxu0 %v3270
    %3454 = vmatpush.msra.mxu0 %v3268
    %3455 = vmatpush.msra.mxu0 %v3266
    %3456 = vmatpush.msra.mxu0 %v3264
    %3457 = vmatpush.msra.mxu0 %v3262
    %3458 = vmatpush.msra.mxu0 %v3260
    %3459 = vmatpush.msra.mxu0 %v3258
    %3460 = vmatpush.msra.mxu0 %v3256
    %3461 = vmatpush.msra.mxu0 %v3254
    %3462 = vmatpush.msra.mxu0 %v3252
    %3463 = vmatpush.msra.mxu0 %v3250
    %3464 = vmatmul.f32.gmra.mxu0 %v3148
    %v3465 = vpop.f32.mrf.mxu0
    %v3466 = vadd.f32 %v3443, %v3465
    %3467 = vmatmul.f32.gmra.mxu0 %v3152
    %v3468 = vpop.f32.mrf.mxu0
    %v3469 = vadd.f32 %v3446, %v3468
    %3470 = vdwg.mxu0
    %v3471 = vmax.f32 %v3374, 0.0
    %v3472 = vmax.f32 %v3466, 0.0
    %v3473 = vmax.f32 %v3377, 0.0
    %v3474 = vmax.f32 %v3469, 0.0
    %3475 = vst [vmem:[#allocation14] sm:$0xff] %v3471
    %3476 = vst [vmem:[#allocation14 + $0x8] sm:$0xff] %v3472
    %3477 = vst [vmem:[#allocation14 + $0x10] sm:$0xff] %v3473
    %3478 = vst [vmem:[#allocation14 + $0x18] sm:$0xff] %v3474
    // Predicated region
    $region58: #{tpu_custom_call.1} parent=1 // pred_check
      _
    $region59: #{tpu_custom_call.1} parent=1 // pred_check_branch
      %3480 = sbr.rel (0) target = $region61
    $region60: #{tpu_custom_call.1} parent=1 // pred_region
      %3482 = vsyncadd [#allocation4], 0
      %s3483 = sshll.u32 [#allocation14], 4
      %s3484 = int_to_ptr.vmem [resolvable:$true] %s3483
      %s3485 = sshll.u32 %s7, 4
      %s3486 = int_to_ptr.hbm [resolvable:$true] %s3485
      %3491 = dma.vmem_to_hbm [thread:$0]  %s3484, 512, %s3486, [#allocation4], 256, 256, 16
    $region61: #{tpu_custom_call.1} parent=1 // pred_fallthru
      _
    // Predicated region
    $region62: #{tpu_custom_call.1} parent=1 // pred_check
      _
    $region63: #{tpu_custom_call.1} parent=1 // pred_check_branch
      %3493 = sbr.rel (0) target = $region65
    $region64: #{tpu_custom_call.1} parent=1 // pred_region
      %3495 = dma.done [#allocation4], 512
    $region65: #{tpu_custom_call.1} parent=1 // pred_fallthru
      _
    %3496 = vsyncpa [#allocation3], 1
    %3497 = vsyncpa [#allocation6], 1
    %3498 = vsyncpa [#allocation9], 1
    %3499 = vsyncpa [#allocation12], 1
    %3500 = vsyncpa [#allocation4], 1

// kernel: tpu_custom_call.1
$region0: #{tpu_custom_call.1}
  #allocation0 [shape = 'u32[]', space=smem, size = 0x4, offset = 0x4, fixed_abs, tag = 'smem constant byte address 0x4 - core index']
  #allocation1 [shape = 'u32[72,128]{1,0:T(1,128)}', space=vmem, size = 0x9000, scoped, tag = 'internal scratch']
  %s0 = inlined_call_operand.hbm [shape: f32[16,32], index: 0, kind: input, shape index: {}]
  %s1 = inlined_call_operand.hbm [shape: f32[32,2048], index: 1, kind: input, shape index: {}]
  %s2 = inlined_call_operand.hbm [shape: f32[1,2048], index: 2, kind: input, shape index: {}]
  %s3 = inlined_call_operand.hbm [shape: f32[2048,512], index: 3, kind: input, shape index: {}]
  %s4 = inlined_call_operand.hbm [shape: f32[1,512], index: 4, kind: input, shape index: {}]
  %s5 = inlined_call_operand.hbm [shape: f32[512,256], index: 5, kind: input, shape index: {}]
  %s6 = inlined_call_operand.hbm [shape: f32[1,256], index: 6, kind: input, shape index: {}]
  %s7 = inlined_call_operand.hbm [shape: f32[16,256], index: 7, kind: output, shape index: {}]
  %s8 = sld [smem:[#allocation0]]
  $region66: #{tpu_custom_call.1} parent=0
    _
  %s10 = ssub.s32 1, %s8
  %s11 = scalar_select 0, %s10, %s8
  $region1: #{tpu_custom_call.1} parent=0
    #allocation2 [shape = 'u8[8192]{0}', space=vmem, size = 0x2000, scoped, tag = 'input window, operand 0, single buffered']
    #allocation3 [shape = 's32[1]{0}', space=sflag, size = 0x4, scoped, tag = 'scoped memory for tpu_custom_call.1']
    #allocation4 [shape = 's32[1]{0}', space=sflag, size = 0x4, scoped, tag = 'scoped memory for tpu_custom_call.1']
    #allocation5 [shape = 'u8[262144]{0}', space=vmem, size = 0x40000, scoped, tag = 'input window, operand 1, single buffered']
    #allocation6 [shape = 's32[1]{0}', space=sflag, size = 0x4, scoped, tag = 'scoped memory for tpu_custom_call.1']
    #allocation7 [shape = 'u8[8192]{0}', space=vmem, size = 0x2000, scoped, tag = 'input window, operand 2, single buffered']
    #allocation8 [shape = 'u8[4194304]{0}', space=vmem, size = 0x400000, scoped, tag = 'input window, operand 3, single buffered']
    #allocation9 [shape = 's32[1]{0}', space=sflag, size = 0x4, scoped, tag = 'scoped memory for tpu_custom_call.1']
    #allocation10 [shape = 'u8[2048]{0}', space=vmem, size = 0x800, scoped, tag = 'input window, operand 4, single buffered']
    #allocation11 [shape = 'u8[524288]{0}', space=vmem, size = 0x80000, scoped, tag = 'input window, operand 5, single buffered']
    #allocation12 [shape = 's32[1]{0}', space=sflag, size = 0x4, scoped, tag = 'scoped memory for tpu_custom_call.1']
    #allocation13 [shape = 'u8[1024]{0}', space=vmem, size = 0x400, scoped, tag = 'input window, operand 6, single buffered']
    #allocation14 [shape = 'u8[16384]{0}', space=vmem, size = 0x4000, scoped, tag = 'output window, operand 0, single buffered']
    %12 = vsyncpa [#allocation3], 0
    %13 = vsyncpa [#allocation6], 0
    %14 = vsyncpa [#allocation9], 0
    %15 = vsyncpa [#allocation12], 0
    %16 = vsyncpa [#allocation4], 0
    // Predicated region
    $region2: #{tpu_custom_call.1} parent=1 // pred_check
      _
    $region3: #{tpu_custom_call.1} parent=1 // pred_check_branch
      %18 = sbr.rel (0) target = $region5
    $region4: #{tpu_custom_call.1} parent=1 // pred_region
      %20 = vsyncadd [#allocation3], 0
      %s21 = sshll.u32 %s0, 4
      %s22 = int_to_ptr.hbm [resolvable:$true] %s21
      %s23 = sshll.u32 [#allocation2], 4
      %s24 = int_to_ptr.vmem [resolvable:$true] %s23
      %29 = dma.hbm_to_vmem [thread:$0]  %s22, 256, %s24, [#allocation3], 128, 128, 8
    $region5: #{tpu_custom_call.1} parent=1 // pred_fallthru
      _
    // Predicated region
    $region6: #{tpu_custom_call.1} parent=1 // pred_check
      _
    $region7: #{tpu_custom_call.1} parent=1 // pred_check_branch
      %31 = sbr.rel (0) target = $region9
    $region8: #{tpu_custom_call.1} parent=1 // pred_region
      %33 = vsyncadd [#allocation6], 0
      %s34 = sshll.u32 %s1, 4
      %s35 = int_to_ptr.hbm [resolvable:$true] %s34
      %s36 = sshll.u32 [#allocation5], 4
      %s37 = int_to_ptr.vmem [resolvable:$true] %s36
      %42 = dma.hbm_to_vmem [thread:$0]  %s35, 8192, %s37, [#allocation6], 2048, 2048, 128
    $region9: #{tpu_custom_call.1} parent=1 // pred_fallthru
      _
    // Predicated region
    $region10: #{tpu_custom_call.1} parent=1 // pred_check
      _
    $region11: #{tpu_custom_call.1} parent=1 // pred_check_branch
      %44 = sbr.rel (0) target = $region13
    $region12: #{tpu_custom_call.1} parent=1 // pred_region
      %46 = vsyncadd [#allocation6], 0
      %s48 = sshll.u32 %s2, 4
      %s49 = int_to_ptr.hbm [resolvable:$true] %s48
      %s50 = sshll.u32 [#allocation7], 4
      %s51 = int_to_ptr.vmem [resolvable:$true] %s50
      %53 = dma.hbm_to_vmem [thread:$0]  %s49, 256, %s51, [#allocation6]
    $region13: #{tpu_custom_call.1} parent=1 // pred_fallthru
      _
    // Predicated region
    $region14: #{tpu_custom_call.1} parent=1 // pred_check
      _
    $region15: #{tpu_custom_call.1} parent=1 // pred_check_branch
      %55 = sbr.rel (0) target = $region17
    $region16: #{tpu_custom_call.1} parent=1 // pred_region
      %57 = vsyncadd [#allocation9], 0
      %s58 = sshll.u32 %s3, 4
      %s59 = int_to_ptr.hbm [resolvable:$true] %s58
      %s60 = sshll.u32 [#allocation8], 4
      %s61 = int_to_ptr.vmem [resolvable:$true] %s60
      %66 = dma.hbm_to_vmem [thread:$0]  %s59, 131072, %s61, [#allocation9], 512, 512, 32
    $region17: #{tpu_custom_call.1} parent=1 // pred_fallthru
      _
    // Predicated region
    $region18: #{tpu_custom_call.1} parent=1 // pred_check
      _
    $region19: #{tpu_custom_call.1} parent=1 // pred_check_branch
      %68 = sbr.rel (0) target = $region21
    $region20: #{tpu_custom_call.1} parent=1 // pred_region
      %70 = vsyncadd [#allocation9], 0
      %s72 = sshll.u32 %s4, 4
      %s73 = int_to_ptr.hbm [resolvable:$true] %s72
      %s74 = sshll.u32 [#allocation10], 4
      %s75 = int_to_ptr.vmem [resolvable:$true] %s74
      %77 = dma.hbm_to_vmem [thread:$0]  %s73, 64, %s75, [#allocation9]
    $region21: #{tpu_custom_call.1} parent=1 // pred_fallthru
      _
    // Predicated region
    $region22: #{tpu_custom_call.1} parent=1 // pred_check
      _
    $region23: #{tpu_custom_call.1} parent=1 // pred_check_branch
      %79 = sbr.rel (0) target = $region25
    $region24: #{tpu_custom_call.1} parent=1 // pred_region
      %81 = vsyncadd [#allocation12], 0
      %s82 = sshll.u32 %s5, 4
      %s83 = int_to_ptr.hbm [resolvable:$true] %s82
      %s84 = sshll.u32 [#allocation11], 4
      %s85 = int_to_ptr.vmem [resolvable:$true] %s84
      %90 = dma.hbm_to_vmem [thread:$0]  %s83, 16384, %s85, [#allocation12], 256, 256, 16
    $region25: #{tpu_custom_call.1} parent=1 // pred_fallthru
      _
    // Predicated region
    $region26: #{tpu_custom_call.1} parent=1 // pred_check
      _
    $region27: #{tpu_custom_call.1} parent=1 // pred_check_branch
      %92 = sbr.rel (0) target = $region29
    $region28: #{tpu_custom_call.1} parent=1 // pred_region
      %94 = vsyncadd [#allocation12], 0
      %s96 = sshll.u32 %s6, 4
      %s97 = int_to_ptr.hbm [resolvable:$true] %s96
      %s98 = sshll.u32 [#allocation13], 4
      %s99 = int_to_ptr.vmem [resolvable:$true] %s98
      %101 = dma.hbm_to_vmem [thread:$0]  %s97, 32, %s99, [#allocation12]
    $region29: #{tpu_custom_call.1} parent=1 // pred_fallthru
      _
    // Predicated region
    $region30: #{tpu_custom_call.1} parent=1 // pred_check
      _
    $region31: #{tpu_custom_call.1} parent=1 // pred_check_branch
      %103 = sbr.rel (0) target = $region33
    $region32: #{tpu_custom_call.1} parent=1 // pred_region
      %105 = dma.done [#allocation3], 256
    $region33: #{tpu_custom_call.1} parent=1 // pred_fallthru
      _
    // Predicated region
    $region34: #{tpu_custom_call.1} parent=1 // pred_check
      _
    $region35: #{tpu_custom_call.1} parent=1 // pred_check_branch
      %107 = sbr.rel (0) target = $region37
    $region36: #{tpu_custom_call.1} parent=1 // pred_region
      %109 = dma.done [#allocation6], 8192
    $region37: #{tpu_custom_call.1} parent=1 // pred_fallthru
      _
    // Predicated region
    $region38: #{tpu_custom_call.1} parent=1 // pred_check
      _
    $region39: #{tpu_custom_call.1} parent=1 // pred_check_branch
      %111 = sbr.rel (0) target = $region41
    $region40: #{tpu_custom_call.1} parent=1 // pred_region
      %113 = dma.done [#allocation6], 256
    $region41: #{tpu_custom_call.1} parent=1 // pred_fallthru
      _
    // Predicated region
    $region42: #{tpu_custom_call.1} parent=1 // pred_check
      _
    $region43: #{tpu_custom_call.1} parent=1 // pred_check_branch
      %115 = sbr.rel (0) target = $region45
    $region44: #{tpu_custom_call.1} parent=1 // pred_region
      %117 = dma.done [#allocation9], 131072
    $region45: #{tpu_custom_call.1} parent=1 // pred_fallthru
      _
    // Predicated region
    $region46: #{tpu_custom_call.1} parent=1 // pred_check
      _
    $region47: #{tpu_custom_call.1} parent=1 // pred_check_branch
      %119 = sbr.rel (0) target = $region49
    $region48: #{tpu_custom_call.1} parent=1 // pred_region
      %121 = dma.done [#allocation9], 64
    $region49: #{tpu_custom_call.1} parent=1 // pred_fallthru
      _
    // Predicated region
    $region50: #{tpu_custom_call.1} parent=1 // pred_check
      _
    $region51: #{tpu_custom_call.1} parent=1 // pred_check_branch
      %123 = sbr.rel (0) target = $region53
    $region52: #{tpu_custom_call.1} parent=1 // pred_region
      %125 = dma.done [#allocation12], 16384
    $region53: #{tpu_custom_call.1} parent=1 // pred_fallthru
      _
    // Predicated region
    $region54: #{tpu_custom_call.1} parent=1 // pred_check
      _
    $region55: #{tpu_custom_call.1} parent=1 // pred_check_branch
      %127 = sbr.rel (0) target = $region57
    $region56: #{tpu_custom_call.1} parent=1 // pred_region
      %129 = dma.done [#allocation12], 32
    $region57: #{tpu_custom_call.1} parent=1 // pred_fallthru
      _
    %v130 = vld [vmem:[#allocation2] sm:$0xff]
    %v131 = vld [vmem:[#allocation2 + $0x8] sm:$0xff]
    %v132 = vld [vmem:[#allocation5] sm:$0xff]
    %v133 = vld [vmem:[#allocation5 + $0x8] sm:$0xff]
    %v134 = vld [vmem:[#allocation5 + $0x10] sm:$0xff]
    %v135 = vld [vmem:[#allocation5 + $0x18] sm:$0xff]
    %v136 = vld [vmem:[#allocation5 + $0x20] sm:$0xff]
    %v137 = vld [vmem:[#allocation5 + $0x28] sm:$0xff]
    %v138 = vld [vmem:[#allocation5 + $0x30] sm:$0xff]
    %v139 = vld [vmem:[#allocation5 + $0x38] sm:$0xff]
    %v140 = vld [vmem:[#allocation5 + $0x40] sm:$0xff]
    %v141 = vld [vmem:[#allocation5 + $0x48] sm:$0xff]
    %v142 = vld [vmem:[#allocation5 + $0x50] sm:$0xff]
    %v143 = vld [vmem:[#allocation5 + $0x58] sm:$0xff]
    %v144 = vld [vmem:[#allocation5 + $0x60] sm:$0xff]
    %v145 = vld [vmem:[#allocation5 + $0x68] sm:$0xff]
    %v146 = vld [vmem:[#allocation5 + $0x70] sm:$0xff]
    %v147 = vld [vmem:[#allocation5 + $0x78] sm:$0xff]
    %v148 = vld [vmem:[#allocation5 + $0x80] sm:$0xff]
    %v149 = vld [vmem:[#allocation5 + $0x88] sm:$0xff]
    %v150 = vld [vmem:[#allocation5 + $0x90] sm:$0xff]
    %v151 = vld [vmem:[#allocation5 + $0x98] sm:$0xff]
    %v152 = vld [vmem:[#allocation5 + $0xa0] sm:$0xff]
    %v153 = vld [vmem:[#allocation5 + $0xa8] sm:$0xff]
    %v154 = vld [vmem:[#allocation5 + $0xb0] sm:$0xff]
    %v155 = vld [vmem:[#allocation5 + $0xb8] sm:$0xff]
    %v156 = vld [vmem:[#allocation5 + $0xc0] sm:$0xff]
    %v157 = vld [vmem:[#allocation5 + $0xc8] sm:$0xff]
    %v158 = vld [vmem:[#allocation5 + $0xd0] sm:$0xff]
    %v159 = vld [vmem:[#allocation5 + $0xd8] sm:$0xff]
    %v160 = vld [vmem:[#allocation5 + $0xe0] sm:$0xff]
    %v161 = vld [vmem:[#allocation5 + $0xe8] sm:$0xff]
    %v162 = vld [vmem:[#allocation5 + $0xf0] sm:$0xff]
    %v163 = vld [vmem:[#allocation5 + $0xf8] sm:$0xff]
    %v164 = vld [vmem:[#allocation5 + $0x100] sm:$0xff]
    %v165 = vld [vmem:[#allocation5 + $0x108] sm:$0xff]
    %v166 = vld [vmem:[#allocation5 + $0x110] sm:$0xff]
    %v167 = vld [vmem:[#allocation5 + $0x118] sm:$0xff]
    %v168 = vld [vmem:[#allocation5 + $0x120] sm:$0xff]
    %v169 = vld [vmem:[#allocation5 + $0x128] sm:$0xff]
    %v170 = vld [vmem:[#allocation5 + $0x130] sm:$0xff]
    %v171 = vld [vmem:[#allocation5 + $0x138] sm:$0xff]
    %v172 = vld [vmem:[#allocation5 + $0x140] sm:$0xff]
    %v173 = vld [vmem:[#allocation5 + $0x148] sm:$0xff]
    %v174 = vld [vmem:[#allocation5 + $0x150] sm:$0xff]
    %v175 = vld [vmem:[#allocation5 + $0x158] sm:$0xff]
    %v176 = vld [vmem:[#allocation5 + $0x160] sm:$0xff]
    %v177 = vld [vmem:[#allocation5 + $0x168] sm:$0xff]
    %v178 = vld [vmem:[#allocation5 + $0x170] sm:$0xff]
    %v179 = vld [vmem:[#allocation5 + $0x178] sm:$0xff]
    %v180 = vld [vmem:[#allocation5 + $0x180] sm:$0xff]
    %v181 = vld [vmem:[#allocation5 + $0x188] sm:$0xff]
    %v182 = vld [vmem:[#allocation5 + $0x190] sm:$0xff]
    %v183 = vld [vmem:[#allocation5 + $0x198] sm:$0xff]
    %v184 = vld [vmem:[#allocation5 + $0x1a0] sm:$0xff]
    %v185 = vld [vmem:[#allocation5 + $0x1a8] sm:$0xff]
    %v186 = vld [vmem:[#allocation5 + $0x1b0] sm:$0xff]
    %v187 = vld [vmem:[#allocation5 + $0x1b8] sm:$0xff]
    %v188 = vld [vmem:[#allocation5 + $0x1c0] sm:$0xff]
    %v189 = vld [vmem:[#allocation5 + $0x1c8] sm:$0xff]
    %v190 = vld [vmem:[#allocation5 + $0x1d0] sm:$0xff]
    %v191 = vld [vmem:[#allocation5 + $0x1d8] sm:$0xff]
    %v192 = vld [vmem:[#allocation5 + $0x1e0] sm:$0xff]
    %v193 = vld [vmem:[#allocation5 + $0x1e8] sm:$0xff]
    %v194 = vld [vmem:[#allocation5 + $0x1f0] sm:$0xff]
    %v195 = vld [vmem:[#allocation5 + $0x1f8] sm:$0xff]
    %v196 = vld [vmem:[#allocation7] sm:$0xff]
    %v197 = vld [vmem:[#allocation7 + $0x8] sm:$0xff]
    %v200 = vperm.slane %v196, 0
    %v201 = vperm.slane %v196, 1
    %v202 = vperm.slane %v196, 2
    %v203 = vperm.slane %v196, 3
    %v204 = vperm.slane %v196, 4
    %v205 = vperm.slane %v196, 5
    %v206 = vperm.slane %v196, 6
    %v207 = vperm.slane %v196, 7
    %v208 = vperm.slane %v197, 0
    %v209 = vperm.slane %v197, 1
    %v210 = vperm.slane %v197, 2
    %v211 = vperm.slane %v197, 3
    %v212 = vperm.slane %v197, 4
    %v213 = vperm.slane %v197, 5
    %v214 = vperm.slane %v197, 6
    %v215 = vperm.slane %v197, 7
    %vm232 = vcmask 261120
    %v234 = vsel %vm232, %v130, 0
    %v237 = vsel %vm232, %v131, 0
    %239 = vmatpush.msra.mxu0 0.0
    %240 = vmatpush.msra.mxu0 0.0
    %241 = vmatpush.msra.mxu0 0.0
    %242 = vmatpush.msra.mxu0 0.0
    %243 = vmatpush.msra.mxu0 0.0
    %244 = vmatpush.msra.mxu0 0.0
    %245 = vmatpush.msra.mxu0 0.0
    %246 = vmatpush.msra.mxu0 0.0
    %247 = vmatpush.msra.mxu0 0.0
    %248 = vmatpush.msra.mxu0 0.0
    %249 = vmatpush.msra.mxu0 0.0
    %250 = vmatpush.msra.mxu0 0.0
    %251 = vmatpush.msra.mxu0 %v180
    %252 = vmatpush.msra.mxu0 %v164
    %253 = vmatpush.msra.mxu0 %v148
    %254 = vmatpush.msra.mxu0 %v132
    %255 = vmatmul.f32.gmra.mxu0 %v234
    %v256 = vpop.f32.mrf.mxu0
    %v257 = vadd.f32 %v200, %v256
    %258 = vmatmul.f32.gmra.mxu0 %v237
    %v259 = vpop.f32.mrf.mxu0
    %v260 = vadd.f32 %v200, %v259
    %261 = vdwg.mxu0
    %262 = vmatpush.msra.mxu0 0.0
    %263 = vmatpush.msra.mxu0 0.0
    %264 = vmatpush.msra.mxu0 0.0
    %265 = vmatpush.msra.mxu0 0.0
    %266 = vmatpush.msra.mxu0 0.0
    %267 = vmatpush.msra.mxu0 0.0
    %268 = vmatpush.msra.mxu0 0.0
    %269 = vmatpush.msra.mxu0 0.0
    %270 = vmatpush.msra.mxu0 0.0
    %271 = vmatpush.msra.mxu0 0.0
    %272 = vmatpush.msra.mxu0 0.0
    %273 = vmatpush.msra.mxu0 0.0
    %274 = vmatpush.msra.mxu0 %v181
    %275 = vmatpush.msra.mxu0 %v165
    %276 = vmatpush.msra.mxu0 %v149
    %277 = vmatpush.msra.mxu0 %v133
    %278 = vmatmul.f32.gmra.mxu0 %v234
    %v279 = vpop.f32.mrf.mxu0
    %v280 = vadd.f32 %v201, %v279
    %281 = vmatmul.f32.gmra.mxu0 %v237
    %v282 = vpop.f32.mrf.mxu0
    %v283 = vadd.f32 %v201, %v282
    %284 = vdwg.mxu0
    %285 = vmatpush.msra.mxu0 0.0
    %286 = vmatpush.msra.mxu0 0.0
    %287 = vmatpush.msra.mxu0 0.0
    %288 = vmatpush.msra.mxu0 0.0
    %289 = vmatpush.msra.mxu0 0.0
    %290 = vmatpush.msra.mxu0 0.0
    %291 = vmatpush.msra.mxu0 0.0
    %292 = vmatpush.msra.mxu0 0.0
    %293 = vmatpush.msra.mxu0 0.0
    %294 = vmatpush.msra.mxu0 0.0
    %295 = vmatpush.msra.mxu0 0.0
    %296 = vmatpush.msra.mxu0 0.0
    %297 = vmatpush.msra.mxu0 %v182
    %298 = vmatpush.msra.mxu0 %v166
    %299 = vmatpush.msra.mxu0 %v150
    %300 = vmatpush.msra.mxu0 %v134
    %301 = vmatmul.f32.gmra.mxu0 %v234
    %v302 = vpop.f32.mrf.mxu0
    %v303 = vadd.f32 %v202, %v302
    %304 = vmatmul.f32.gmra.mxu0 %v237
    %v305 = vpop.f32.mrf.mxu0
    %v306 = vadd.f32 %v202, %v305
    %307 = vdwg.mxu0
    %308 = vmatpush.msra.mxu0 0.0
    %309 = vmatpush.msra.mxu0 0.0
    %310 = vmatpush.msra.mxu0 0.0
    %311 = vmatpush.msra.mxu0 0.0
    %312 = vmatpush.msra.mxu0 0.0
    %313 = vmatpush.msra.mxu0 0.0
    %314 = vmatpush.msra.mxu0 0.0
    %315 = vmatpush.msra.mxu0 0.0
    %316 = vmatpush.msra.mxu0 0.0
    %317 = vmatpush.msra.mxu0 0.0
    %318 = vmatpush.msra.mxu0 0.0
    %319 = vmatpush.msra.mxu0 0.0
    %320 = vmatpush.msra.mxu0 %v183
    %321 = vmatpush.msra.mxu0 %v167
    %322 = vmatpush.msra.mxu0 %v151
    %323 = vmatpush.msra.mxu0 %v135
    %324 = vmatmul.f32.gmra.mxu0 %v234
    %v325 = vpop.f32.mrf.mxu0
    %v326 = vadd.f32 %v203, %v325
    %327 = vmatmul.f32.gmra.mxu0 %v237
    %v328 = vpop.f32.mrf.mxu0
    %v329 = vadd.f32 %v203, %v328
    %330 = vdwg.mxu0
    %331 = vmatpush.msra.mxu0 0.0
    %332 = vmatpush.msra.mxu0 0.0
    %333 = vmatpush.msra.mxu0 0.0
    %334 = vmatpush.msra.mxu0 0.0
    %335 = vmatpush.msra.mxu0 0.0
    %336 = vmatpush.msra.mxu0 0.0
    %337 = vmatpush.msra.mxu0 0.0
    %338 = vmatpush.msra.mxu0 0.0
    %339 = vmatpush.msra.mxu0 0.0
    %340 = vmatpush.msra.mxu0 0.0
    %341 = vmatpush.msra.mxu0 0.0
    %342 = vmatpush.msra.mxu0 0.0
    %343 = vmatpush.msra.mxu0 %v184
    %344 = vmatpush.msra.mxu0 %v168
    %345 = vmatpush.msra.mxu0 %v152
    %346 = vmatpush.msra.mxu0 %v136
    %347 = vmatmul.f32.gmra.mxu0 %v234
    %v348 = vpop.f32.mrf.mxu0
    %v349 = vadd.f32 %v204, %v348
    %350 = vmatmul.f32.gmra.mxu0 %v237
    %v351 = vpop.f32.mrf.mxu0
    %v352 = vadd.f32 %v204, %v351
    %353 = vdwg.mxu0
    %354 = vmatpush.msra.mxu0 0.0
    %355 = vmatpush.msra.mxu0 0.0
    %356 = vmatpush.msra.mxu0 0.0
    %357 = vmatpush.msra.mxu0 0.0
    %358 = vmatpush.msra.mxu0 0.0
    %359 = vmatpush.msra.mxu0 0.0
    %360 = vmatpush.msra.mxu0 0.0
    %361 = vmatpush.msra.mxu0 0.0
    %362 = vmatpush.msra.mxu0 0.0
    %363 = vmatpush.msra.mxu0 0.0
    %364 = vmatpush.msra.mxu0 0.0
    %365 = vmatpush.msra.mxu0 0.0
    %366 = vmatpush.msra.mxu0 %v185
    %367 = vmatpush.msra.mxu0 %v169
    %368 = vmatpush.msra.mxu0 %v153
    %369 = vmatpush.msra.mxu0 %v137
    %370 = vmatmul.f32.gmra.mxu0 %v234
    %v371 = vpop.f32.mrf.mxu0
    %v372 = vadd.f32 %v205, %v371
    %373 = vmatmul.f32.gmra.mxu0 %v237
    %v374 = vpop.f32.mrf.mxu0
    %v375 = vadd.f32 %v205, %v374
    %376 = vdwg.mxu0
    %377 = vmatpush.msra.mxu0 0.0
    %378 = vmatpush.msra.mxu0 0.0
    %379 = vmatpush.msra.mxu0 0.0
    %380 = vmatpush.msra.mxu0 0.0
    %381 = vmatpush.msra.mxu0 0.0
    %382 = vmatpush.msra.mxu0 0.0
    %383 = vmatpush.msra.mxu0 0.0
    %384 = vmatpush.msra.mxu0 0.0
    %385 = vmatpush.msra.mxu0 0.0
    %386 = vmatpush.msra.mxu0 0.0
    %387 = vmatpush.msra.mxu0 0.0
    %388 = vmatpush.msra.mxu0 0.0
    %389 = vmatpush.msra.mxu0 %v186
    %390 = vmatpush.msra.mxu0 %v170
    %391 = vmatpush.msra.mxu0 %v154
    %392 = vmatpush.msra.mxu0 %v138
    %393 = vmatmul.f32.gmra.mxu0 %v234
    %v394 = vpop.f32.mrf.mxu0
    %v395 = vadd.f32 %v206, %v394
    %396 = vmatmul.f32.gmra.mxu0 %v237
    %v397 = vpop.f32.mrf.mxu0
    %v398 = vadd.f32 %v206, %v397
    %399 = vdwg.mxu0
    %400 = vmatpush.msra.mxu0 0.0
    %401 = vmatpush.msra.mxu0 0.0
    %402 = vmatpush.msra.mxu0 0.0
    %403 = vmatpush.msra.mxu0 0.0
    %404 = vmatpush.msra.mxu0 0.0
    %405 = vmatpush.msra.mxu0 0.0
    %406 = vmatpush.msra.mxu0 0.0
    %407 = vmatpush.msra.mxu0 0.0
    %408 = vmatpush.msra.mxu0 0.0
    %409 = vmatpush.msra.mxu0 0.0
    %410 = vmatpush.msra.mxu0 0.0
    %411 = vmatpush.msra.mxu0 0.0
    %412 = vmatpush.msra.mxu0 %v187
    %413 = vmatpush.msra.mxu0 %v171
    %414 = vmatpush.msra.mxu0 %v155
    %415 = vmatpush.msra.mxu0 %v139
    %416 = vmatmul.f32.gmra.mxu0 %v234
    %v417 = vpop.f32.mrf.mxu0
    %v418 = vadd.f32 %v207, %v417
    %419 = vmatmul.f32.gmra.mxu0 %v237
    %v420 = vpop.f32.mrf.mxu0
    %v421 = vadd.f32 %v207, %v420
    %422 = vdwg.mxu0
    %423 = vmatpush.msra.mxu0 0.0
    %424 = vmatpush.msra.mxu0 0.0
    %425 = vmatpush.msra.mxu0 0.0
    %426 = vmatpush.msra.mxu0 0.0
    %427 = vmatpush.msra.mxu0 0.0
    %428 = vmatpush.msra.mxu0 0.0
    %429 = vmatpush.msra.mxu0 0.0
    %430 = vmatpush.msra.mxu0 0.0
    %431 = vmatpush.msra.mxu0 0.0
    %432 = vmatpush.msra.mxu0 0.0
    %433 = vmatpush.msra.mxu0 0.0
    %434 = vmatpush.msra.mxu0 0.0
    %435 = vmatpush.msra.mxu0 %v188
    %436 = vmatpush.msra.mxu0 %v172
    %437 = vmatpush.msra.mxu0 %v156
    %438 = vmatpush.msra.mxu0 %v140
    %439 = vmatmul.f32.gmra.mxu0 %v234
    %v440 = vpop.f32.mrf.mxu0
    %v441 = vadd.f32 %v208, %v440
    %442 = vmatmul.f32.gmra.mxu0 %v237
    %v443 = vpop.f32.mrf.mxu0
    %v444 = vadd.f32 %v208, %v443
    %445 = vdwg.mxu0
    %446 = vmatpush.msra.mxu0 0.0
    %447 = vmatpush.msra.mxu0 0.0
    %448 = vmatpush.msra.mxu0 0.0
    %449 = vmatpush.msra.mxu0 0.0
    %450 = vmatpush.msra.mxu0 0.0
    %451 = vmatpush.msra.mxu0 0.0
    %452 = vmatpush.msra.mxu0 0.0
    %453 = vmatpush.msra.mxu0 0.0
    %454 = vmatpush.msra.mxu0 0.0
    %455 = vmatpush.msra.mxu0 0.0
    %456 = vmatpush.msra.mxu0 0.0
    %457 = vmatpush.msra.mxu0 0.0
    %458 = vmatpush.msra.mxu0 %v189
    %459 = vmatpush.msra.mxu0 %v173
    %460 = vmatpush.msra.mxu0 %v157
    %461 = vmatpush.msra.mxu0 %v141
    %462 = vmatmul.f32.gmra.mxu0 %v234
    %v463 = vpop.f32.mrf.mxu0
    %v464 = vadd.f32 %v209, %v463
    %465 = vmatmul.f32.gmra.mxu0 %v237
    %v466 = vpop.f32.mrf.mxu0
    %v467 = vadd.f32 %v209, %v466
    %468 = vdwg.mxu0
    %469 = vmatpush.msra.mxu0 0.0
    %470 = vmatpush.msra.mxu0 0.0
    %471 = vmatpush.msra.mxu0 0.0
    %472 = vmatpush.msra.mxu0 0.0
    %473 = vmatpush.msra.mxu0 0.0
    %474 = vmatpush.msra.mxu0 0.0
    %475 = vmatpush.msra.mxu0 0.0
    %476 = vmatpush.msra.mxu0 0.0
    %477 = vmatpush.msra.mxu0 0.0
    %478 = vmatpush.msra.mxu0 0.0
    %479 = vmatpush.msra.mxu0 0.0
    %480 = vmatpush.msra.mxu0 0.0
    %481 = vmatpush.msra.mxu0 %v190
    %482 = vmatpush.msra.mxu0 %v174
    %483 = vmatpush.msra.mxu0 %v158
    %484 = vmatpush.msra.mxu0 %v142
    %485 = vmatmul.f32.gmra.mxu0 %v234
    %v486 = vpop.f32.mrf.mxu0
    %v487 = vadd.f32 %v210, %v486
    %488 = vmatmul.f32.gmra.mxu0 %v237
    %v489 = vpop.f32.mrf.mxu0
    %v490 = vadd.f32 %v210, %v489
    %491 = vdwg.mxu0
    %492 = vmatpush.msra.mxu0 0.0
    %493 = vmatpush.msra.mxu0 0.0
    %494 = vmatpush.msra.mxu0 0.0
    %495 = vmatpush.msra.mxu0 0.0
    %496 = vmatpush.msra.mxu0 0.0
    %497 = vmatpush.msra.mxu0 0.0
    %498 = vmatpush.msra.mxu0 0.0
    %499 = vmatpush.msra.mxu0 0.0
    %500 = vmatpush.msra.mxu0 0.0
    %501 = vmatpush.msra.mxu0 0.0
    %502 = vmatpush.msra.mxu0 0.0
    %503 = vmatpush.msra.mxu0 0.0
    %504 = vmatpush.msra.mxu0 %v191
    %505 = vmatpush.msra.mxu0 %v175
    %506 = vmatpush.msra.mxu0 %v159
    %507 = vmatpush.msra.mxu0 %v143
    %508 = vmatmul.f32.gmra.mxu0 %v234
    %v509 = vpop.f32.mrf.mxu0
    %v510 = vadd.f32 %v211, %v509
    %511 = vmatmul.f32.gmra.mxu0 %v237
    %v512 = vpop.f32.mrf.mxu0
    %v513 = vadd.f32 %v211, %v512
    %514 = vdwg.mxu0
    %515 = vmatpush.msra.mxu0 0.0
    %516 = vmatpush.msra.mxu0 0.0
    %517 = vmatpush.msra.mxu0 0.0
    %518 = vmatpush.msra.mxu0 0.0
    %519 = vmatpush.msra.mxu0 0.0
    %520 = vmatpush.msra.mxu0 0.0
    %521 = vmatpush.msra.mxu0 0.0
    %522 = vmatpush.msra.mxu0 0.0
    %523 = vmatpush.msra.mxu0 0.0
    %524 = vmatpush.msra.mxu0 0.0
    %525 = vmatpush.msra.mxu0 0.0
    %526 = vmatpush.msra.mxu0 0.0
    %527 = vmatpush.msra.mxu0 %v192
    %528 = vmatpush.msra.mxu0 %v176
    %529 = vmatpush.msra.mxu0 %v160
    %530 = vmatpush.msra.mxu0 %v144
    %531 = vmatmul.f32.gmra.mxu0 %v234
    %v532 = vpop.f32.mrf.mxu0
    %v533 = vadd.f32 %v212, %v532
    %534 = vmatmul.f32.gmra.mxu0 %v237
    %v535 = vpop.f32.mrf.mxu0
    %v536 = vadd.f32 %v212, %v535
    %537 = vdwg.mxu0
    %538 = vmatpush.msra.mxu0 0.0
    %539 = vmatpush.msra.mxu0 0.0
    %540 = vmatpush.msra.mxu0 0.0
    %541 = vmatpush.msra.mxu0 0.0
    %542 = vmatpush.msra.mxu0 0.0
    %543 = vmatpush.msra.mxu0 0.0
    %544 = vmatpush.msra.mxu0 0.0
    %545 = vmatpush.msra.mxu0 0.0
    %546 = vmatpush.msra.mxu0 0.0
    %547 = vmatpush.msra.mxu0 0.0
    %548 = vmatpush.msra.mxu0 0.0
    %549 = vmatpush.msra.mxu0 0.0
    %550 = vmatpush.msra.mxu0 %v193
    %551 = vmatpush.msra.mxu0 %v177
    %552 = vmatpush.msra.mxu0 %v161
    %553 = vmatpush.msra.mxu0 %v145
    %554 = vmatmul.f32.gmra.mxu0 %v234
    %v555 = vpop.f32.mrf.mxu0
    %v556 = vadd.f32 %v213, %v555
    %557 = vmatmul.f32.gmra.mxu0 %v237
    %v558 = vpop.f32.mrf.mxu0
    %v559 = vadd.f32 %v213, %v558
    %560 = vdwg.mxu0
    %561 = vmatpush.msra.mxu0 0.0
    %562 = vmatpush.msra.mxu0 0.0
    %563 = vmatpush.msra.mxu0 0.0
    %564 = vmatpush.msra.mxu0 0.0
    %565 = vmatpush.msra.mxu0 0.0
    %566 = vmatpush.msra.mxu0 0.0
    %567 = vmatpush.msra.mxu0 0.0
    %568 = vmatpush.msra.mxu0 0.0
    %569 = vmatpush.msra.mxu0 0.0
    %570 = vmatpush.msra.mxu0 0.0
    %571 = vmatpush.msra.mxu0 0.0
    %572 = vmatpush.msra.mxu0 0.0
    %573 = vmatpush.msra.mxu0 %v194
    %574 = vmatpush.msra.mxu0 %v178
    %575 = vmatpush.msra.mxu0 %v162
    %576 = vmatpush.msra.mxu0 %v146
    %577 = vmatmul.f32.gmra.mxu0 %v234
    %v578 = vpop.f32.mrf.mxu0
    %v579 = vadd.f32 %v214, %v578
    %580 = vmatmul.f32.gmra.mxu0 %v237
    %v581 = vpop.f32.mrf.mxu0
    %v582 = vadd.f32 %v214, %v581
    %583 = vdwg.mxu0
    %584 = vmatpush.msra.mxu0 0.0
    %585 = vmatpush.msra.mxu0 0.0
    %586 = vmatpush.msra.mxu0 0.0
    %587 = vmatpush.msra.mxu0 0.0
    %588 = vmatpush.msra.mxu0 0.0
    %589 = vmatpush.msra.mxu0 0.0
    %590 = vmatpush.msra.mxu0 0.0
    %591 = vmatpush.msra.mxu0 0.0
    %592 = vmatpush.msra.mxu0 0.0
    %593 = vmatpush.msra.mxu0 0.0
    %594 = vmatpush.msra.mxu0 0.0
    %595 = vmatpush.msra.mxu0 0.0
    %596 = vmatpush.msra.mxu0 %v195
    %597 = vmatpush.msra.mxu0 %v179
    %598 = vmatpush.msra.mxu0 %v163
    %599 = vmatpush.msra.mxu0 %v147
    %600 = vmatmul.f32.gmra.mxu0 %v234
    %v601 = vpop.f32.mrf.mxu0
    %v602 = vadd.f32 %v215, %v601
    %603 = vmatmul.f32.gmra.mxu0 %v237
    %v604 = vpop.f32.mrf.mxu0
    %v605 = vadd.f32 %v215, %v604
    %606 = vdwg.mxu0
    %v607 = vmax.f32 %v257, 0.0
    %v608 = vmax.f32 %v280, 0.0
    %v609 = vmax.f32 %v303, 0.0
    %v610 = vmax.f32 %v326, 0.0
    %v611 = vmax.f32 %v349, 0.0
    %v612 = vmax.f32 %v372, 0.0
    %v613 = vmax.f32 %v395, 0.0
    %v614 = vmax.f32 %v418, 0.0
    %v615 = vmax.f32 %v441, 0.0
    %v616 = vmax.f32 %v464, 0.0
    %v617 = vmax.f32 %v487, 0.0
    %v618 = vmax.f32 %v510, 0.0
    %v619 = vmax.f32 %v533, 0.0
    %v620 = vmax.f32 %v556, 0.0
    %v621 = vmax.f32 %v579, 0.0
    %v622 = vmax.f32 %v602, 0.0
    %v623 = vmax.f32 %v260, 0.0
    %v624 = vmax.f32 %v283, 0.0
    %v625 = vmax.f32 %v306, 0.0
    %v626 = vmax.f32 %v329, 0.0
    %v627 = vmax.f32 %v352, 0.0
    %v628 = vmax.f32 %v375, 0.0
    %v629 = vmax.f32 %v398, 0.0
    %v630 = vmax.f32 %v421, 0.0
    %v631 = vmax.f32 %v444, 0.0
    %v632 = vmax.f32 %v467, 0.0
    %v633 = vmax.f32 %v490, 0.0
    %v634 = vmax.f32 %v513, 0.0
    %v635 = vmax.f32 %v536, 0.0
    %v636 = vmax.f32 %v559, 0.0
    %v637 = vmax.f32 %v582, 0.0
    %v638 = vmax.f32 %v605, 0.0
    %v639 = vld [vmem:[#allocation8] sm:$0xff]
    %v640 = vld [vmem:[#allocation8 + $0x8] sm:$0xff]
    %v641 = vld [vmem:[#allocation8 + $0x10] sm:$0xff]
    %v642 = vld [vmem:[#allocation8 + $0x18] sm:$0xff]
    %v643 = vld [vmem:[#allocation8 + $0x20] sm:$0xff]
    %v644 = vld [vmem:[#allocation8 + $0x28] sm:$0xff]
    %v645 = vld [vmem:[#allocation8 + $0x30] sm:$0xff]
    %v646 = vld [vmem:[#allocation8 + $0x38] sm:$0xff]
    %v647 = vld [vmem:[#allocation8 + $0x40] sm:$0xff]
    %v648 = vld [vmem:[#allocation8 + $0x48] sm:$0xff]
    %v649 = vld [vmem:[#allocation8 + $0x50] sm:$0xff]
    %v650 = vld [vmem:[#allocation8 + $0x58] sm:$0xff]
    %v651 = vld [vmem:[#allocation8 + $0x60] sm:$0xff]
    %v652 = vld [vmem:[#allocation8 + $0x68] sm:$0xff]
    %v653 = vld [vmem:[#allocation8 + $0x70] sm:$0xff]
    %v654 = vld [vmem:[#allocation8 + $0x78] sm:$0xff]
    %v655 = vld [vmem:[#allocation8 + $0x80] sm:$0xff]
    %v656 = vld [vmem:[#allocation8 + $0x88] sm:$0xff]
    %v657 = vld [vmem:[#allocation8 + $0x90] sm:$0xff]
    %v658 = vld [vmem:[#allocation8 + $0x98] sm:$0xff]
    %v659 = vld [vmem:[#allocation8 + $0xa0] sm:$0xff]
    %v660 = vld [vmem:[#allocation8 + $0xa8] sm:$0xff]
    %v661 = vld [vmem:[#allocation8 + $0xb0] sm:$0xff]
    %v662 = vld [vmem:[#allocation8 + $0xb8] sm:$0xff]
    %v663 = vld [vmem:[#allocation8 + $0xc0] sm:$0xff]
    %v664 = vld [vmem:[#allocation8 + $0xc8] sm:$0xff]
    %v665 = vld [vmem:[#allocation8 + $0xd0] sm:$0xff]
    %v666 = vld [vmem:[#allocation8 + $0xd8] sm:$0xff]
    %v667 = vld [vmem:[#allocation8 + $0xe0] sm:$0xff]
    %v668 = vld [vmem:[#allocation8 + $0xe8] sm:$0xff]
    %v669 = vld [vmem:[#allocation8 + $0xf0] sm:$0xff]
    %v670 = vld [vmem:[#allocation8 + $0xf8] sm:$0xff]
    %v671 = vld [vmem:[#allocation8 + $0x100] sm:$0xff]
    %v672 = vld [vmem:[#allocation8 + $0x108] sm:$0xff]
    %v673 = vld [vmem:[#allocation8 + $0x110] sm:$0xff]
    %v674 = vld [vmem:[#allocation8 + $0x118] sm:$0xff]
    %v675 = vld [vmem:[#allocation8 + $0x120] sm:$0xff]
    %v676 = vld [vmem:[#allocation8 + $0x128] sm:$0xff]
    %v677 = vld [vmem:[#allocation8 + $0x130] sm:$0xff]
    %v678 = vld [vmem:[#allocation8 + $0x138] sm:$0xff]
    %v679 = vld [vmem:[#allocation8 + $0x140] sm:$0xff]
    %v680 = vld [vmem:[#allocation8 + $0x148] sm:$0xff]
    %v681 = vld [vmem:[#allocation8 + $0x150] sm:$0xff]
    %v682 = vld [vmem:[#allocation8 + $0x158] sm:$0xff]
    %v683 = vld [vmem:[#allocation8 + $0x160] sm:$0xff]
    %v684 = vld [vmem:[#allocation8 + $0x168] sm:$0xff]
    %v685 = vld [vmem:[#allocation8 + $0x170] sm:$0xff]
    %v686 = vld [vmem:[#allocation8 + $0x178] sm:$0xff]
    %v687 = vld [vmem:[#allocation8 + $0x180] sm:$0xff]
    %v688 = vld [vmem:[#allocation8 + $0x188] sm:$0xff]
    %v689 = vld [vmem:[#allocation8 + $0x190] sm:$0xff]
    %v690 = vld [vmem:[#allocation8 + $0x198] sm:$0xff]
    %v691 = vld [vmem:[#allocation8 + $0x1a0] sm:$0xff]
    %v692 = vld [vmem:[#allocation8 + $0x1a8] sm:$0xff]
    %v693 = vld [vmem:[#allocation8 + $0x1b0] sm:$0xff]
    %v694 = vld [vmem:[#allocation8 + $0x1b8] sm:$0xff]
    %v695 = vld [vmem:[#allocation8 + $0x1c0] sm:$0xff]
    %v696 = vld [vmem:[#allocation8 + $0x1c8] sm:$0xff]
    %v697 = vld [vmem:[#allocation8 + $0x1d0] sm:$0xff]
    %v698 = vld [vmem:[#allocation8 + $0x1d8] sm:$0xff]
    %v699 = vld [vmem:[#allocation8 + $0x1e0] sm:$0xff]
    %v700 = vld [vmem:[#allocation8 + $0x1e8] sm:$0xff]
    %v701 = vld [vmem:[#allocation8 + $0x1f0] sm:$0xff]
    %v702 = vld [vmem:[#allocation8 + $0x1f8] sm:$0xff]
    %v703 = vld [vmem:[#allocation8 + $0x200] sm:$0xff]
    %v704 = vld [vmem:[#allocation8 + $0x208] sm:$0xff]
    %v705 = vld [vmem:[#allocation8 + $0x210] sm:$0xff]
    %v706 = vld [vmem:[#allocation8 + $0x218] sm:$0xff]
    %v707 = vld [vmem:[#allocation8 + $0x220] sm:$0xff]
    %v708 = vld [vmem:[#allocation8 + $0x228] sm:$0xff]
    %v709 = vld [vmem:[#allocation8 + $0x230] sm:$0xff]
    %v710 = vld [vmem:[#allocation8 + $0x238] sm:$0xff]
    %v711 = vld [vmem:[#allocation8 + $0x240] sm:$0xff]
    %v712 = vld [vmem:[#allocation8 + $0x248] sm:$0xff]
    %v713 = vld [vmem:[#allocation8 + $0x250] sm:$0xff]
    %v714 = vld [vmem:[#allocation8 + $0x258] sm:$0xff]
    %v715 = vld [vmem:[#allocation8 + $0x260] sm:$0xff]
    %v716 = vld [vmem:[#allocation8 + $0x268] sm:$0xff]
    %v717 = vld [vmem:[#allocation8 + $0x270] sm:$0xff]
    %v718 = vld [vmem:[#allocation8 + $0x278] sm:$0xff]
    %v719 = vld [vmem:[#allocation8 + $0x280] sm:$0xff]
    %v720 = vld [vmem:[#allocation8 + $0x288] sm:$0xff]
    %v721 = vld [vmem:[#allocation8 + $0x290] sm:$0xff]
    %v722 = vld [vmem:[#allocation8 + $0x298] sm:$0xff]
    %v723 = vld [vmem:[#allocation8 + $0x2a0] sm:$0xff]
    %v724 = vld [vmem:[#allocation8 + $0x2a8] sm:$0xff]
    %v725 = vld [vmem:[#allocation8 + $0x2b0] sm:$0xff]
    %v726 = vld [vmem:[#allocation8 + $0x2b8] sm:$0xff]
    %v727 = vld [vmem:[#allocation8 + $0x2c0] sm:$0xff]
    %v728 = vld [vmem:[#allocation8 + $0x2c8] sm:$0xff]
    %v729 = vld [vmem:[#allocation8 + $0x2d0] sm:$0xff]
    %v730 = vld [vmem:[#allocation8 + $0x2d8] sm:$0xff]
    %v731 = vld [vmem:[#allocation8 + $0x2e0] sm:$0xff]
    %v732 = vld [vmem:[#allocation8 + $0x2e8] sm:$0xff]
    %v733 = vld [vmem:[#allocation8 + $0x2f0] sm:$0xff]
    %v734 = vld [vmem:[#allocation8 + $0x2f8] sm:$0xff]
    %v735 = vld [vmem:[#allocation8 + $0x300] sm:$0xff]
    %v736 = vld [vmem:[#allocation8 + $0x308] sm:$0xff]
    %v737 = vld [vmem:[#allocation8 + $0x310] sm:$0xff]
    %v738 = vld [vmem:[#allocation8 + $0x318] sm:$0xff]
    %v739 = vld [vmem:[#allocation8 + $0x320] sm:$0xff]
    %v740 = vld [vmem:[#allocation8 + $0x328] sm:$0xff]
    %v741 = vld [vmem:[#allocation8 + $0x330] sm:$0xff]
    %v742 = vld [vmem:[#allocation8 + $0x338] sm:$0xff]
    %v743 = vld [vmem:[#allocation8 + $0x340] sm:$0xff]
    %v744 = vld [vmem:[#allocation8 + $0x348] sm:$0xff]
    %v745 = vld [vmem:[#allocation8 + $0x350] sm:$0xff]
    %v746 = vld [vmem:[#allocation8 + $0x358] sm:$0xff]
    %v747 = vld [vmem:[#allocation8 + $0x360] sm:$0xff]
    %v748 = vld [vmem:[#allocation8 + $0x368] sm:$0xff]
    %v749 = vld [vmem:[#allocation8 + $0x370] sm:$0xff]
    %v750 = vld [vmem:[#allocation8 + $0x378] sm:$0xff]
    %v751 = vld [vmem:[#allocation8 + $0x380] sm:$0xff]
    %v752 = vld [vmem:[#allocation8 + $0x388] sm:$0xff]
    %v753 = vld [vmem:[#allocation8 + $0x390] sm:$0xff]
    %v754 = vld [vmem:[#allocation8 + $0x398] sm:$0xff]
    %v755 = vld [vmem:[#allocation8 + $0x3a0] sm:$0xff]
    %v756 = vld [vmem:[#allocation8 + $0x3a8] sm:$0xff]
    %v757 = vld [vmem:[#allocation8 + $0x3b0] sm:$0xff]
    %v758 = vld [vmem:[#allocation8 + $0x3b8] sm:$0xff]
    %v759 = vld [vmem:[#allocation8 + $0x3c0] sm:$0xff]
    %v760 = vld [vmem:[#allocation8 + $0x3c8] sm:$0xff]
    %v761 = vld [vmem:[#allocation8 + $0x3d0] sm:$0xff]
    %v762 = vld [vmem:[#allocation8 + $0x3d8] sm:$0xff]
    %v763 = vld [vmem:[#allocation8 + $0x3e0] sm:$0xff]
    %v764 = vld [vmem:[#allocation8 + $0x3e8] sm:$0xff]
    %v765 = vld [vmem:[#allocation8 + $0x3f0] sm:$0xff]
    %v766 = vld [vmem:[#allocation8 + $0x3f8] sm:$0xff]
    %v767 = vld [vmem:[#allocation8 + $0x400] sm:$0xff]
    %v768 = vld [vmem:[#allocation8 + $0x408] sm:$0xff]
    %v769 = vld [vmem:[#allocation8 + $0x410] sm:$0xff]
    %v770 = vld [vmem:[#allocation8 + $0x418] sm:$0xff]
    %v771 = vld [vmem:[#allocation8 + $0x420] sm:$0xff]
    %v772 = vld [vmem:[#allocation8 + $0x428] sm:$0xff]
    %v773 = vld [vmem:[#allocation8 + $0x430] sm:$0xff]
    %v774 = vld [vmem:[#allocation8 + $0x438] sm:$0xff]
    %v775 = vld [vmem:[#allocation8 + $0x440] sm:$0xff]
    %v776 = vld [vmem:[#allocation8 + $0x448] sm:$0xff]
    %v777 = vld [vmem:[#allocation8 + $0x450] sm:$0xff]
    %v778 = vld [vmem:[#allocation8 + $0x458] sm:$0xff]
    %v779 = vld [vmem:[#allocation8 + $0x460] sm:$0xff]
    %v780 = vld [vmem:[#allocation8 + $0x468] sm:$0xff]
    %v781 = vld [vmem:[#allocation8 + $0x470] sm:$0xff]
    %v782 = vld [vmem:[#allocation8 + $0x478] sm:$0xff]
    %v783 = vld [vmem:[#allocation8 + $0x480] sm:$0xff]
    %v784 = vld [vmem:[#allocation8 + $0x488] sm:$0xff]
    %v785 = vld [vmem:[#allocation8 + $0x490] sm:$0xff]
    %v786 = vld [vmem:[#allocation8 + $0x498] sm:$0xff]
    %v787 = vld [vmem:[#allocation8 + $0x4a0] sm:$0xff]
    %v788 = vld [vmem:[#allocation8 + $0x4a8] sm:$0xff]
    %v789 = vld [vmem:[#allocation8 + $0x4b0] sm:$0xff]
    %v790 = vld [vmem:[#allocation8 + $0x4b8] sm:$0xff]
    %v791 = vld [vmem:[#allocation8 + $0x4c0] sm:$0xff]
    %v792 = vld [vmem:[#allocation8 + $0x4c8] sm:$0xff]
    %v793 = vld [vmem:[#allocation8 + $0x4d0] sm:$0xff]
    %v794 = vld [vmem:[#allocation8 + $0x4d8] sm:$0xff]
    %v795 = vld [vmem:[#allocation8 + $0x4e0] sm:$0xff]
    %v796 = vld [vmem:[#allocation8 + $0x4e8] sm:$0xff]
    %v797 = vld [vmem:[#allocation8 + $0x4f0] sm:$0xff]
    %v798 = vld [vmem:[#allocation8 + $0x4f8] sm:$0xff]
    %v799 = vld [vmem:[#allocation8 + $0x500] sm:$0xff]
    %v800 = vld [vmem:[#allocation8 + $0x508] sm:$0xff]
    %v801 = vld [vmem:[#allocation8 + $0x510] sm:$0xff]
    %v802 = vld [vmem:[#allocation8 + $0x518] sm:$0xff]
    %v803 = vld [vmem:[#allocation8 + $0x520] sm:$0xff]
    %v804 = vld [vmem:[#allocation8 + $0x528] sm:$0xff]
    %v805 = vld [vmem:[#allocation8 + $0x530] sm:$0xff]
    %v806 = vld [vmem:[#allocation8 + $0x538] sm:$0xff]
    %v807 = vld [vmem:[#allocation8 + $0x540] sm:$0xff]
    %v808 = vld [vmem:[#allocation8 + $0x548] sm:$0xff]
    %v809 = vld [vmem:[#allocation8 + $0x550] sm:$0xff]
    %v810 = vld [vmem:[#allocation8 + $0x558] sm:$0xff]
    %v811 = vld [vmem:[#allocation8 + $0x560] sm:$0xff]
    %v812 = vld [vmem:[#allocation8 + $0x568] sm:$0xff]
    %v813 = vld [vmem:[#allocation8 + $0x570] sm:$0xff]
    %v814 = vld [vmem:[#allocation8 + $0x578] sm:$0xff]
    %v815 = vld [vmem:[#allocation8 + $0x580] sm:$0xff]
    %v816 = vld [vmem:[#allocation8 + $0x588] sm:$0xff]
    %v817 = vld [vmem:[#allocation8 + $0x590] sm:$0xff]
    %v818 = vld [vmem:[#allocation8 + $0x598] sm:$0xff]
    %v819 = vld [vmem:[#allocation8 + $0x5a0] sm:$0xff]
    %v820 = vld [vmem:[#allocation8 + $0x5a8] sm:$0xff]
    %v821 = vld [vmem:[#allocation8 + $0x5b0] sm:$0xff]
    %v822 = vld [vmem:[#allocation8 + $0x5b8] sm:$0xff]
    %v823 = vld [vmem:[#allocation8 + $0x5c0] sm:$0xff]
    %v824 = vld [vmem:[#allocation8 + $0x5c8] sm:$0xff]
    %v825 = vld [vmem:[#allocation8 + $0x5d0] sm:$0xff]
    %v826 = vld [vmem:[#allocation8 + $0x5d8] sm:$0xff]
    %v827 = vld [vmem:[#allocation8 + $0x5e0] sm:$0xff]
    %v828 = vld [vmem:[#allocation8 + $0x5e8] sm:$0xff]
    %v829 = vld [vmem:[#allocation8 + $0x5f0] sm:$0xff]
    %v830 = vld [vmem:[#allocation8 + $0x5f8] sm:$0xff]
    %v831 = vld [vmem:[#allocation8 + $0x600] sm:$0xff]
    %v832 = vld [vmem:[#allocation8 + $0x608] sm:$0xff]
    %v833 = vld [vmem:[#allocation8 + $0x610] sm:$0xff]
    %v834 = vld [vmem:[#allocation8 + $0x618] sm:$0xff]
    %v835 = vld [vmem:[#allocation8 + $0x620] sm:$0xff]
    %v836 = vld [vmem:[#allocation8 + $0x628] sm:$0xff]
    %v837 = vld [vmem:[#allocation8 + $0x630] sm:$0xff]
    %v838 = vld [vmem:[#allocation8 + $0x638] sm:$0xff]
    %v839 = vld [vmem:[#allocation8 + $0x640] sm:$0xff]
    %v840 = vld [vmem:[#allocation8 + $0x648] sm:$0xff]
    %v841 = vld [vmem:[#allocation8 + $0x650] sm:$0xff]
    %v842 = vld [vmem:[#allocation8 + $0x658] sm:$0xff]
    %v843 = vld [vmem:[#allocation8 + $0x660] sm:$0xff]
    %v844 = vld [vmem:[#allocation8 + $0x668] sm:$0xff]
    %v845 = vld [vmem:[#allocation8 + $0x670] sm:$0xff]
    %v846 = vld [vmem:[#allocation8 + $0x678] sm:$0xff]
    %v847 = vld [vmem:[#allocation8 + $0x680] sm:$0xff]
    %v848 = vld [vmem:[#allocation8 + $0x688] sm:$0xff]
    %v849 = vld [vmem:[#allocation8 + $0x690] sm:$0xff]
    %v850 = vld [vmem:[#allocation8 + $0x698] sm:$0xff]
    %v851 = vld [vmem:[#allocation8 + $0x6a0] sm:$0xff]
    %v852 = vld [vmem:[#allocation8 + $0x6a8] sm:$0xff]
    %v853 = vld [vmem:[#allocation8 + $0x6b0] sm:$0xff]
    %v854 = vld [vmem:[#allocation8 + $0x6b8] sm:$0xff]
    %v855 = vld [vmem:[#allocation8 + $0x6c0] sm:$0xff]
    %v856 = vld [vmem:[#allocation8 + $0x6c8] sm:$0xff]
    %v857 = vld [vmem:[#allocation8 + $0x6d0] sm:$0xff]
    %v858 = vld [vmem:[#allocation8 + $0x6d8] sm:$0xff]
    %v859 = vld [vmem:[#allocation8 + $0x6e0] sm:$0xff]
    %v860 = vld [vmem:[#allocation8 + $0x6e8] sm:$0xff]
    %v861 = vld [vmem:[#allocation8 + $0x6f0] sm:$0xff]
    %v862 = vld [vmem:[#allocation8 + $0x6f8] sm:$0xff]
    %v863 = vld [vmem:[#allocation8 + $0x700] sm:$0xff]
    %v864 = vld [vmem:[#allocation8 + $0x708] sm:$0xff]
    %v865 = vld [vmem:[#allocation8 + $0x710] sm:$0xff]
    %v866 = vld [vmem:[#allocation8 + $0x718] sm:$0xff]
    %v867 = vld [vmem:[#allocation8 + $0x720] sm:$0xff]
    %v868 = vld [vmem:[#allocation8 + $0x728] sm:$0xff]
    %v869 = vld [vmem:[#allocation8 + $0x730] sm:$0xff]
    %v870 = vld [vmem:[#allocation8 + $0x738] sm:$0xff]
    %v871 = vld [vmem:[#allocation8 + $0x740] sm:$0xff]
    %v872 = vld [vmem:[#allocation8 + $0x748] sm:$0xff]
    %v873 = vld [vmem:[#allocation8 + $0x750] sm:$0xff]
    %v874 = vld [vmem:[#allocation8 + $0x758] sm:$0xff]
    %v875 = vld [vmem:[#allocation8 + $0x760] sm:$0xff]
    %v876 = vld [vmem:[#allocation8 + $0x768] sm:$0xff]
    %v877 = vld [vmem:[#allocation8 + $0x770] sm:$0xff]
    %v878 = vld [vmem:[#allocation8 + $0x778] sm:$0xff]
    %v879 = vld [vmem:[#allocation8 + $0x780] sm:$0xff]
    %v880 = vld [vmem:[#allocation8 + $0x788] sm:$0xff]
    %v881 = vld [vmem:[#allocation8 + $0x790] sm:$0xff]
    %v882 = vld [vmem:[#allocation8 + $0x798] sm:$0xff]
    %v883 = vld [vmem:[#allocation8 + $0x7a0] sm:$0xff]
    %v884 = vld [vmem:[#allocation8 + $0x7a8] sm:$0xff]
    %v885 = vld [vmem:[#allocation8 + $0x7b0] sm:$0xff]
    %v886 = vld [vmem:[#allocation8 + $0x7b8] sm:$0xff]
    %v887 = vld [vmem:[#allocation8 + $0x7c0] sm:$0xff]
    %v888 = vld [vmem:[#allocation8 + $0x7c8] sm:$0xff]
    %v889 = vld [vmem:[#allocation8 + $0x7d0] sm:$0xff]
    %v890 = vld [vmem:[#allocation8 + $0x7d8] sm:$0xff]
    %v891 = vld [vmem:[#allocation8 + $0x7e0] sm:$0xff]
    %v892 = vld [vmem:[#allocation8 + $0x7e8] sm:$0xff]
    %v893 = vld [vmem:[#allocation8 + $0x7f0] sm:$0xff]
    %v894 = vld [vmem:[#allocation8 + $0x7f8] sm:$0xff]
    %v895 = vld [vmem:[#allocation8 + $0x800] sm:$0xff]
    %v896 = vld [vmem:[#allocation8 + $0x808] sm:$0xff]
    %v897 = vld [vmem:[#allocation8 + $0x810] sm:$0xff]
    %v898 = vld [vmem:[#allocation8 + $0x818] sm:$0xff]
    %v899 = vld [vmem:[#allocation8 + $0x820] sm:$0xff]
    %v900 = vld [vmem:[#allocation8 + $0x828] sm:$0xff]
    %v901 = vld [vmem:[#allocation8 + $0x830] sm:$0xff]
    %v902 = vld [vmem:[#allocation8 + $0x838] sm:$0xff]
    %v903 = vld [vmem:[#allocation8 + $0x840] sm:$0xff]
    %v904 = vld [vmem:[#allocation8 + $0x848] sm:$0xff]
    %v905 = vld [vmem:[#allocation8 + $0x850] sm:$0xff]
    %v906 = vld [vmem:[#allocation8 + $0x858] sm:$0xff]
    %v907 = vld [vmem:[#allocation8 + $0x860] sm:$0xff]
    %v908 = vld [vmem:[#allocation8 + $0x868] sm:$0xff]
    %v909 = vld [vmem:[#allocation8 + $0x870] sm:$0xff]
    %v910 = vld [vmem:[#allocation8 + $0x878] sm:$0xff]
    %v911 = vld [vmem:[#allocation8 + $0x880] sm:$0xff]
    %v912 = vld [vmem:[#allocation8 + $0x888] sm:$0xff]
    %v913 = vld [vmem:[#allocation8 + $0x890] sm:$0xff]
    %v914 = vld [vmem:[#allocation8 + $0x898] sm:$0xff]
    %v915 = vld [vmem:[#allocation8 + $0x8a0] sm:$0xff]
    %v916 = vld [vmem:[#allocation8 + $0x8a8] sm:$0xff]
    %v917 = vld [vmem:[#allocation8 + $0x8b0] sm:$0xff]
    %v918 = vld [vmem:[#allocation8 + $0x8b8] sm:$0xff]
    %v919 = vld [vmem:[#allocation8 + $0x8c0] sm:$0xff]
    %v920 = vld [vmem:[#allocation8 + $0x8c8] sm:$0xff]
    %v921 = vld [vmem:[#allocation8 + $0x8d0] sm:$0xff]
    %v922 = vld [vmem:[#allocation8 + $0x8d8] sm:$0xff]
    %v923 = vld [vmem:[#allocation8 + $0x8e0] sm:$0xff]
    %v924 = vld [vmem:[#allocation8 + $0x8e8] sm:$0xff]
    %v925 = vld [vmem:[#allocation8 + $0x8f0] sm:$0xff]
    %v926 = vld [vmem:[#allocation8 + $0x8f8] sm:$0xff]
    %v927 = vld [vmem:[#allocation8 + $0x900] sm:$0xff]
    %v928 = vld [vmem:[#allocation8 + $0x908] sm:$0xff]
    %v929 = vld [vmem:[#allocation8 + $0x910] sm:$0xff]
    %v930 = vld [vmem:[#allocation8 + $0x918] sm:$0xff]
    %v931 = vld [vmem:[#allocation8 + $0x920] sm:$0xff]
    %v932 = vld [vmem:[#allocation8 + $0x928] sm:$0xff]
    %v933 = vld [vmem:[#allocation8 + $0x930] sm:$0xff]
    %v934 = vld [vmem:[#allocation8 + $0x938] sm:$0xff]
    %v935 = vld [vmem:[#allocation8 + $0x940] sm:$0xff]
    %v936 = vld [vmem:[#allocation8 + $0x948] sm:$0xff]
    %v937 = vld [vmem:[#allocation8 + $0x950] sm:$0xff]
    %v938 = vld [vmem:[#allocation8 + $0x958] sm:$0xff]
    %v939 = vld [vmem:[#allocation8 + $0x960] sm:$0xff]
    %v940 = vld [vmem:[#allocation8 + $0x968] sm:$0xff]
    %v941 = vld [vmem:[#allocation8 + $0x970] sm:$0xff]
    %v942 = vld [vmem:[#allocation8 + $0x978] sm:$0xff]
    %v943 = vld [vmem:[#allocation8 + $0x980] sm:$0xff]
    %v944 = vld [vmem:[#allocation8 + $0x988] sm:$0xff]
    %v945 = vld [vmem:[#allocation8 + $0x990] sm:$0xff]
    %v946 = vld [vmem:[#allocation8 + $0x998] sm:$0xff]
    %v947 = vld [vmem:[#allocation8 + $0x9a0] sm:$0xff]
    %v948 = vld [vmem:[#allocation8 + $0x9a8] sm:$0xff]
    %v949 = vld [vmem:[#allocation8 + $0x9b0] sm:$0xff]
    %v950 = vld [vmem:[#allocation8 + $0x9b8] sm:$0xff]
    %v951 = vld [vmem:[#allocation8 + $0x9c0] sm:$0xff]
    %v952 = vld [vmem:[#allocation8 + $0x9c8] sm:$0xff]
    %v953 = vld [vmem:[#allocation8 + $0x9d0] sm:$0xff]
    %v954 = vld [vmem:[#allocation8 + $0x9d8] sm:$0xff]
    %v955 = vld [vmem:[#allocation8 + $0x9e0] sm:$0xff]
    %v956 = vld [vmem:[#allocation8 + $0x9e8] sm:$0xff]
    %v957 = vld [vmem:[#allocation8 + $0x9f0] sm:$0xff]
    %v958 = vld [vmem:[#allocation8 + $0x9f8] sm:$0xff]
    %v959 = vld [vmem:[#allocation8 + $0xa00] sm:$0xff]
    %v960 = vld [vmem:[#allocation8 + $0xa08] sm:$0xff]
    %v961 = vld [vmem:[#allocation8 + $0xa10] sm:$0xff]
    %v962 = vld [vmem:[#allocation8 + $0xa18] sm:$0xff]
    %v963 = vld [vmem:[#allocation8 + $0xa20] sm:$0xff]
    %v964 = vld [vmem:[#allocation8 + $0xa28] sm:$0xff]
    %v965 = vld [vmem:[#allocation8 + $0xa30] sm:$0xff]
    %v966 = vld [vmem:[#allocation8 + $0xa38] sm:$0xff]
    %v967 = vld [vmem:[#allocation8 + $0xa40] sm:$0xff]
    %v968 = vld [vmem:[#allocation8 + $0xa48] sm:$0xff]
    %v969 = vld [vmem:[#allocation8 + $0xa50] sm:$0xff]
    %v970 = vld [vmem:[#allocation8 + $0xa58] sm:$0xff]
    %v971 = vld [vmem:[#allocation8 + $0xa60] sm:$0xff]
    %v972 = vld [vmem:[#allocation8 + $0xa68] sm:$0xff]
    %v973 = vld [vmem:[#allocation8 + $0xa70] sm:$0xff]
    %v974 = vld [vmem:[#allocation8 + $0xa78] sm:$0xff]
    %v975 = vld [vmem:[#allocation8 + $0xa80] sm:$0xff]
    %v976 = vld [vmem:[#allocation8 + $0xa88] sm:$0xff]
    %v977 = vld [vmem:[#allocation8 + $0xa90] sm:$0xff]
    %v978 = vld [vmem:[#allocation8 + $0xa98] sm:$0xff]
    %v979 = vld [vmem:[#allocation8 + $0xaa0] sm:$0xff]
    %v980 = vld [vmem:[#allocation8 + $0xaa8] sm:$0xff]
    %v981 = vld [vmem:[#allocation8 + $0xab0] sm:$0xff]
    %v982 = vld [vmem:[#allocation8 + $0xab8] sm:$0xff]
    %v983 = vld [vmem:[#allocation8 + $0xac0] sm:$0xff]
    %v984 = vld [vmem:[#allocation8 + $0xac8] sm:$0xff]
    %v985 = vld [vmem:[#allocation8 + $0xad0] sm:$0xff]
    %v986 = vld [vmem:[#allocation8 + $0xad8] sm:$0xff]
    %v987 = vld [vmem:[#allocation8 + $0xae0] sm:$0xff]
    %v988 = vld [vmem:[#allocation8 + $0xae8] sm:$0xff]
    %v989 = vld [vmem:[#allocation8 + $0xaf0] sm:$0xff]
    %v990 = vld [vmem:[#allocation8 + $0xaf8] sm:$0xff]
    %v991 = vld [vmem:[#allocation8 + $0xb00] sm:$0xff]
    %v992 = vld [vmem:[#allocation8 + $0xb08] sm:$0xff]
    %v993 = vld [vmem:[#allocation8 + $0xb10] sm:$0xff]
    %v994 = vld [vmem:[#allocation8 + $0xb18] sm:$0xff]
    %v995 = vld [vmem:[#allocation8 + $0xb20] sm:$0xff]
    %v996 = vld [vmem:[#allocation8 + $0xb28] sm:$0xff]
    %v997 = vld [vmem:[#allocation8 + $0xb30] sm:$0xff]
    %v998 = vld [vmem:[#allocation8 + $0xb38] sm:$0xff]
    %v999 = vld [vmem:[#allocation8 + $0xb40] sm:$0xff]
    %v1000 = vld [vmem:[#allocation8 + $0xb48] sm:$0xff]
    %v1001 = vld [vmem:[#allocation8 + $0xb50] sm:$0xff]
    %v1002 = vld [vmem:[#allocation8 + $0xb58] sm:$0xff]
    %v1003 = vld [vmem:[#allocation8 + $0xb60] sm:$0xff]
    %v1004 = vld [vmem:[#allocation8 + $0xb68] sm:$0xff]
    %v1005 = vld [vmem:[#allocation8 + $0xb70] sm:$0xff]
    %v1006 = vld [vmem:[#allocation8 + $0xb78] sm:$0xff]
    %v1007 = vld [vmem:[#allocation8 + $0xb80] sm:$0xff]
    %v1008 = vld [vmem:[#allocation8 + $0xb88] sm:$0xff]
    %v1009 = vld [vmem:[#allocation8 + $0xb90] sm:$0xff]
    %v1010 = vld [vmem:[#allocation8 + $0xb98] sm:$0xff]
    %v1011 = vld [vmem:[#allocation8 + $0xba0] sm:$0xff]
    %v1012 = vld [vmem:[#allocation8 + $0xba8] sm:$0xff]
    %v1013 = vld [vmem:[#allocation8 + $0xbb0] sm:$0xff]
    %v1014 = vld [vmem:[#allocation8 + $0xbb8] sm:$0xff]
    %v1015 = vld [vmem:[#allocation8 + $0xbc0] sm:$0xff]
    %v1016 = vld [vmem:[#allocation8 + $0xbc8] sm:$0xff]
    %v1017 = vld [vmem:[#allocation8 + $0xbd0] sm:$0xff]
    %v1018 = vld [vmem:[#allocation8 + $0xbd8] sm:$0xff]
    %v1019 = vld [vmem:[#allocation8 + $0xbe0] sm:$0xff]
    %v1020 = vld [vmem:[#allocation8 + $0xbe8] sm:$0xff]
    %v1021 = vld [vmem:[#allocation8 + $0xbf0] sm:$0xff]
    %v1022 = vld [vmem:[#allocation8 + $0xbf8] sm:$0xff]
    %v1023 = vld [vmem:[#allocation8 + $0xc00] sm:$0xff]
    %v1024 = vld [vmem:[#allocation8 + $0xc08] sm:$0xff]
    %v1025 = vld [vmem:[#allocation8 + $0xc10] sm:$0xff]
    %v1026 = vld [vmem:[#allocation8 + $0xc18] sm:$0xff]
    %v1027 = vld [vmem:[#allocation8 + $0xc20] sm:$0xff]
    %v1028 = vld [vmem:[#allocation8 + $0xc28] sm:$0xff]
    %v1029 = vld [vmem:[#allocation8 + $0xc30] sm:$0xff]
    %v1030 = vld [vmem:[#allocation8 + $0xc38] sm:$0xff]
    %v1031 = vld [vmem:[#allocation8 + $0xc40] sm:$0xff]
    %v1032 = vld [vmem:[#allocation8 + $0xc48] sm:$0xff]
    %v1033 = vld [vmem:[#allocation8 + $0xc50] sm:$0xff]
    %v1034 = vld [vmem:[#allocation8 + $0xc58] sm:$0xff]
    %v1035 = vld [vmem:[#allocation8 + $0xc60] sm:$0xff]
    %v1036 = vld [vmem:[#allocation8 + $0xc68] sm:$0xff]
    %v1037 = vld [vmem:[#allocation8 + $0xc70] sm:$0xff]
    %v1038 = vld [vmem:[#allocation8 + $0xc78] sm:$0xff]
    %v1039 = vld [vmem:[#allocation8 + $0xc80] sm:$0xff]
    %v1040 = vld [vmem:[#allocation8 + $0xc88] sm:$0xff]
    %v1041 = vld [vmem:[#allocation8 + $0xc90] sm:$0xff]
    %v1042 = vld [vmem:[#allocation8 + $0xc98] sm:$0xff]
    %v1043 = vld [vmem:[#allocation8 + $0xca0] sm:$0xff]
    %v1044 = vld [vmem:[#allocation8 + $0xca8] sm:$0xff]
    %v1045 = vld [vmem:[#allocation8 + $0xcb0] sm:$0xff]
    %v1046 = vld [vmem:[#allocation8 + $0xcb8] sm:$0xff]
    %v1047 = vld [vmem:[#allocation8 + $0xcc0] sm:$0xff]
    %v1048 = vld [vmem:[#allocation8 + $0xcc8] sm:$0xff]
    %v1049 = vld [vmem:[#allocation8 + $0xcd0] sm:$0xff]
    %v1050 = vld [vmem:[#allocation8 + $0xcd8] sm:$0xff]
    %v1051 = vld [vmem:[#allocation8 + $0xce0] sm:$0xff]
    %v1052 = vld [vmem:[#allocation8 + $0xce8] sm:$0xff]
    %v1053 = vld [vmem:[#allocation8 + $0xcf0] sm:$0xff]
    %v1054 = vld [vmem:[#allocation8 + $0xcf8] sm:$0xff]
    %v1055 = vld [vmem:[#allocation8 + $0xd00] sm:$0xff]
    %v1056 = vld [vmem:[#allocation8 + $0xd08] sm:$0xff]
    %v1057 = vld [vmem:[#allocation8 + $0xd10] sm:$0xff]
    %v1058 = vld [vmem:[#allocation8 + $0xd18] sm:$0xff]
    %v1059 = vld [vmem:[#allocation8 + $0xd20] sm:$0xff]
    %v1060 = vld [vmem:[#allocation8 + $0xd28] sm:$0xff]
    %v1061 = vld [vmem:[#allocation8 + $0xd30] sm:$0xff]
    %v1062 = vld [vmem:[#allocation8 + $0xd38] sm:$0xff]
    %v1063 = vld [vmem:[#allocation8 + $0xd40] sm:$0xff]
    %v1064 = vld [vmem:[#allocation8 + $0xd48] sm:$0xff]
    %v1065 = vld [vmem:[#allocation8 + $0xd50] sm:$0xff]
    %v1066 = vld [vmem:[#allocation8 + $0xd58] sm:$0xff]
    %v1067 = vld [vmem:[#allocation8 + $0xd60] sm:$0xff]
    %v1068 = vld [vmem:[#allocation8 + $0xd68] sm:$0xff]
    %v1069 = vld [vmem:[#allocation8 + $0xd70] sm:$0xff]
    %v1070 = vld [vmem:[#allocation8 + $0xd78] sm:$0xff]
    %v1071 = vld [vmem:[#allocation8 + $0xd80] sm:$0xff]
    %v1072 = vld [vmem:[#allocation8 + $0xd88] sm:$0xff]
    %v1073 = vld [vmem:[#allocation8 + $0xd90] sm:$0xff]
    %v1074 = vld [vmem:[#allocation8 + $0xd98] sm:$0xff]
    %v1075 = vld [vmem:[#allocation8 + $0xda0] sm:$0xff]
    %v1076 = vld [vmem:[#allocation8 + $0xda8] sm:$0xff]
    %v1077 = vld [vmem:[#allocation8 + $0xdb0] sm:$0xff]
    %v1078 = vld [vmem:[#allocation8 + $0xdb8] sm:$0xff]
    %v1079 = vld [vmem:[#allocation8 + $0xdc0] sm:$0xff]
    %v1080 = vld [vmem:[#allocation8 + $0xdc8] sm:$0xff]
    %v1081 = vld [vmem:[#allocation8 + $0xdd0] sm:$0xff]
    %v1082 = vld [vmem:[#allocation8 + $0xdd8] sm:$0xff]
    %v1083 = vld [vmem:[#allocation8 + $0xde0] sm:$0xff]
    %v1084 = vld [vmem:[#allocation8 + $0xde8] sm:$0xff]
    %v1085 = vld [vmem:[#allocation8 + $0xdf0] sm:$0xff]
    %v1086 = vld [vmem:[#allocation8 + $0xdf8] sm:$0xff]
    %v1087 = vld [vmem:[#allocation8 + $0xe00] sm:$0xff]
    %v1088 = vld [vmem:[#allocation8 + $0xe08] sm:$0xff]
    %v1089 = vld [vmem:[#allocation8 + $0xe10] sm:$0xff]
    %v1090 = vld [vmem:[#allocation8 + $0xe18] sm:$0xff]
    %v1091 = vld [vmem:[#allocation8 + $0xe20] sm:$0xff]
    %v1092 = vld [vmem:[#allocation8 + $0xe28] sm:$0xff]
    %v1093 = vld [vmem:[#allocation8 + $0xe30] sm:$0xff]
    %v1094 = vld [vmem:[#allocation8 + $0xe38] sm:$0xff]
    %v1095 = vld [vmem:[#allocation8 + $0xe40] sm:$0xff]
    %v1096 = vld [vmem:[#allocation8 + $0xe48] sm:$0xff]
    %v1097 = vld [vmem:[#allocation8 + $0xe50] sm:$0xff]
    %v1098 = vld [vmem:[#allocation8 + $0xe58] sm:$0xff]
    %v1099 = vld [vmem:[#allocation8 + $0xe60] sm:$0xff]
    %v1100 = vld [vmem:[#allocation8 + $0xe68] sm:$0xff]
    %v1101 = vld [vmem:[#allocation8 + $0xe70] sm:$0xff]
    %v1102 = vld [vmem:[#allocation8 + $0xe78] sm:$0xff]
    %v1103 = vld [vmem:[#allocation8 + $0xe80] sm:$0xff]
    %v1104 = vld [vmem:[#allocation8 + $0xe88] sm:$0xff]
    %v1105 = vld [vmem:[#allocation8 + $0xe90] sm:$0xff]
    %v1106 = vld [vmem:[#allocation8 + $0xe98] sm:$0xff]
    %v1107 = vld [vmem:[#allocation8 + $0xea0] sm:$0xff]
    %v1108 = vld [vmem:[#allocation8 + $0xea8] sm:$0xff]
    %v1109 = vld [vmem:[#allocation8 + $0xeb0] sm:$0xff]
    %v1110 = vld [vmem:[#allocation8 + $0xeb8] sm:$0xff]
    %v1111 = vld [vmem:[#allocation8 + $0xec0] sm:$0xff]
    %v1112 = vld [vmem:[#allocation8 + $0xec8] sm:$0xff]
    %v1113 = vld [vmem:[#allocation8 + $0xed0] sm:$0xff]
    %v1114 = vld [vmem:[#allocation8 + $0xed8] sm:$0xff]
    %v1115 = vld [vmem:[#allocation8 + $0xee0] sm:$0xff]
    %v1116 = vld [vmem:[#allocation8 + $0xee8] sm:$0xff]
    %v1117 = vld [vmem:[#allocation8 + $0xef0] sm:$0xff]
    %v1118 = vld [vmem:[#allocation8 + $0xef8] sm:$0xff]
    %v1119 = vld [vmem:[#allocation8 + $0xf00] sm:$0xff]
    %v1120 = vld [vmem:[#allocation8 + $0xf08] sm:$0xff]
    %v1121 = vld [vmem:[#allocation8 + $0xf10] sm:$0xff]
    %v1122 = vld [vmem:[#allocation8 + $0xf18] sm:$0xff]
    %v1123 = vld [vmem:[#allocation8 + $0xf20] sm:$0xff]
    %v1124 = vld [vmem:[#allocation8 + $0xf28] sm:$0xff]
    %v1125 = vld [vmem:[#allocation8 + $0xf30] sm:$0xff]
    %v1126 = vld [vmem:[#allocation8 + $0xf38] sm:$0xff]
    %v1127 = vld [vmem:[#allocation8 + $0xf40] sm:$0xff]
    %v1128 = vld [vmem:[#allocation8 + $0xf48] sm:$0xff]
    %v1129 = vld [vmem:[#allocation8 + $0xf50] sm:$0xff]
    %v1130 = vld [vmem:[#allocation8 + $0xf58] sm:$0xff]
    %v1131 = vld [vmem:[#allocation8 + $0xf60] sm:$0xff]
    %v1132 = vld [vmem:[#allocation8 + $0xf68] sm:$0xff]
    %v1133 = vld [vmem:[#allocation8 + $0xf70] sm:$0xff]
    %v1134 = vld [vmem:[#allocation8 + $0xf78] sm:$0xff]
    %v1135 = vld [vmem:[#allocation8 + $0xf80] sm:$0xff]
    %v1136 = vld [vmem:[#allocation8 + $0xf88] sm:$0xff]
    %v1137 = vld [vmem:[#allocation8 + $0xf90] sm:$0xff]
    %v1138 = vld [vmem:[#allocation8 + $0xf98] sm:$0xff]
    %v1139 = vld [vmem:[#allocation8 + $0xfa0] sm:$0xff]
    %v1140 = vld [vmem:[#allocation8 + $0xfa8] sm:$0xff]
    %v1141 = vld [vmem:[#allocation8 + $0xfb0] sm:$0xff]
    %v1142 = vld [vmem:[#allocation8 + $0xfb8] sm:$0xff]
    %v1143 = vld [vmem:[#allocation8 + $0xfc0] sm:$0xff]
    %v1144 = vld [vmem:[#allocation8 + $0xfc8] sm:$0xff]
    %v1145 = vld [vmem:[#allocation8 + $0xfd0] sm:$0xff]
    %v1146 = vld [vmem:[#allocation8 + $0xfd8] sm:$0xff]
    %v1147 = vld [vmem:[#allocation8 + $0xfe0] sm:$0xff]
    %v1148 = vld [vmem:[#allocation8 + $0xfe8] sm:$0xff]
    %v1149 = vld [vmem:[#allocation8 + $0xff0] sm:$0xff]
    %v1150 = vld [vmem:[#allocation8 + $0xff8] sm:$0xff]
    %v1151 = vld [vmem:[#allocation8 + $0x1000] sm:$0xff]
    %v1152 = vld [vmem:[#allocation8 + $0x1008] sm:$0xff]
    %v1153 = vld [vmem:[#allocation8 + $0x1010] sm:$0xff]
    %v1154 = vld [vmem:[#allocation8 + $0x1018] sm:$0xff]
    %v1155 = vld [vmem:[#allocation8 + $0x1020] sm:$0xff]
    %v1156 = vld [vmem:[#allocation8 + $0x1028] sm:$0xff]
    %v1157 = vld [vmem:[#allocation8 + $0x1030] sm:$0xff]
    %v1158 = vld [vmem:[#allocation8 + $0x1038] sm:$0xff]
    %v1159 = vld [vmem:[#allocation8 + $0x1040] sm:$0xff]
    %v1160 = vld [vmem:[#allocation8 + $0x1048] sm:$0xff]
    %v1161 = vld [vmem:[#allocation8 + $0x1050] sm:$0xff]
    %v1162 = vld [vmem:[#allocation8 + $0x1058] sm:$0xff]
    %v1163 = vld [vmem:[#allocation8 + $0x1060] sm:$0xff]
    %v1164 = vld [vmem:[#allocation8 + $0x1068] sm:$0xff]
    %v1165 = vld [vmem:[#allocation8 + $0x1070] sm:$0xff]
    %v1166 = vld [vmem:[#allocation8 + $0x1078] sm:$0xff]
    %v1167 = vld [vmem:[#allocation8 + $0x1080] sm:$0xff]
    %v1168 = vld [vmem:[#allocation8 + $0x1088] sm:$0xff]
    %v1169 = vld [vmem:[#allocation8 + $0x1090] sm:$0xff]
    %v1170 = vld [vmem:[#allocation8 + $0x1098] sm:$0xff]
    %v1171 = vld [vmem:[#allocation8 + $0x10a0] sm:$0xff]
    %v1172 = vld [vmem:[#allocation8 + $0x10a8] sm:$0xff]
    %v1173 = vld [vmem:[#allocation8 + $0x10b0] sm:$0xff]
    %v1174 = vld [vmem:[#allocation8 + $0x10b8] sm:$0xff]
    %v1175 = vld [vmem:[#allocation8 + $0x10c0] sm:$0xff]
    %v1176 = vld [vmem:[#allocation8 + $0x10c8] sm:$0xff]
    %v1177 = vld [vmem:[#allocation8 + $0x10d0] sm:$0xff]
    %v1178 = vld [vmem:[#allocation8 + $0x10d8] sm:$0xff]
    %v1179 = vld [vmem:[#allocation8 + $0x10e0] sm:$0xff]
    %v1180 = vld [vmem:[#allocation8 + $0x10e8] sm:$0xff]
    %v1181 = vld [vmem:[#allocation8 + $0x10f0] sm:$0xff]
    %v1182 = vld [vmem:[#allocation8 + $0x10f8] sm:$0xff]
    %v1183 = vld [vmem:[#allocation8 + $0x1100] sm:$0xff]
    %v1184 = vld [vmem:[#allocation8 + $0x1108] sm:$0xff]
    %v1185 = vld [vmem:[#allocation8 + $0x1110] sm:$0xff]
    %v1186 = vld [vmem:[#allocation8 + $0x1118] sm:$0xff]
    %v1187 = vld [vmem:[#allocation8 + $0x1120] sm:$0xff]
    %v1188 = vld [vmem:[#allocation8 + $0x1128] sm:$0xff]
    %v1189 = vld [vmem:[#allocation8 + $0x1130] sm:$0xff]
    %v1190 = vld [vmem:[#allocation8 + $0x1138] sm:$0xff]
    %v1191 = vld [vmem:[#allocation8 + $0x1140] sm:$0xff]
    %v1192 = vld [vmem:[#allocation8 + $0x1148] sm:$0xff]
    %v1193 = vld [vmem:[#allocation8 + $0x1150] sm:$0xff]
    %v1194 = vld [vmem:[#allocation8 + $0x1158] sm:$0xff]
    %v1195 = vld [vmem:[#allocation8 + $0x1160] sm:$0xff]
    %v1196 = vld [vmem:[#allocation8 + $0x1168] sm:$0xff]
    %v1197 = vld [vmem:[#allocation8 + $0x1170] sm:$0xff]
    %v1198 = vld [vmem:[#allocation8 + $0x1178] sm:$0xff]
    %v1199 = vld [vmem:[#allocation8 + $0x1180] sm:$0xff]
    %v1200 = vld [vmem:[#allocation8 + $0x1188] sm:$0xff]
    %v1201 = vld [vmem:[#allocation8 + $0x1190] sm:$0xff]
    %v1202 = vld [vmem:[#allocation8 + $0x1198] sm:$0xff]
    %v1203 = vld [vmem:[#allocation8 + $0x11a0] sm:$0xff]
    %v1204 = vld [vmem:[#allocation8 + $0x11a8] sm:$0xff]
    %v1205 = vld [vmem:[#allocation8 + $0x11b0] sm:$0xff]
    %v1206 = vld [vmem:[#allocation8 + $0x11b8] sm:$0xff]
    %v1207 = vld [vmem:[#allocation8 + $0x11c0] sm:$0xff]
    %v1208 = vld [vmem:[#allocation8 + $0x11c8] sm:$0xff]
    %v1209 = vld [vmem:[#allocation8 + $0x11d0] sm:$0xff]
    %v1210 = vld [vmem:[#allocation8 + $0x11d8] sm:$0xff]
    %v1211 = vld [vmem:[#allocation8 + $0x11e0] sm:$0xff]
    %v1212 = vld [vmem:[#allocation8 + $0x11e8] sm:$0xff]
    %v1213 = vld [vmem:[#allocation8 + $0x11f0] sm:$0xff]
    %v1214 = vld [vmem:[#allocation8 + $0x11f8] sm:$0xff]
    %v1215 = vld [vmem:[#allocation8 + $0x1200] sm:$0xff]
    %v1216 = vld [vmem:[#allocation8 + $0x1208] sm:$0xff]
    %v1217 = vld [vmem:[#allocation8 + $0x1210] sm:$0xff]
    %v1218 = vld [vmem:[#allocation8 + $0x1218] sm:$0xff]
    %v1219 = vld [vmem:[#allocation8 + $0x1220] sm:$0xff]
    %v1220 = vld [vmem:[#allocation8 + $0x1228] sm:$0xff]
    %v1221 = vld [vmem:[#allocation8 + $0x1230] sm:$0xff]
    %v1222 = vld [vmem:[#allocation8 + $0x1238] sm:$0xff]
    %v1223 = vld [vmem:[#allocation8 + $0x1240] sm:$0xff]
    %v1224 = vld [vmem:[#allocation8 + $0x1248] sm:$0xff]
    %v1225 = vld [vmem:[#allocation8 + $0x1250] sm:$0xff]
    %v1226 = vld [vmem:[#allocation8 + $0x1258] sm:$0xff]
    %v1227 = vld [vmem:[#allocation8 + $0x1260] sm:$0xff]
    %v1228 = vld [vmem:[#allocation8 + $0x1268] sm:$0xff]
    %v1229 = vld [vmem:[#allocation8 + $0x1270] sm:$0xff]
    %v1230 = vld [vmem:[#allocation8 + $0x1278] sm:$0xff]
    %v1231 = vld [vmem:[#allocation8 + $0x1280] sm:$0xff]
    %v1232 = vld [vmem:[#allocation8 + $0x1288] sm:$0xff]
    %v1233 = vld [vmem:[#allocation8 + $0x1290] sm:$0xff]
    %v1234 = vld [vmem:[#allocation8 + $0x1298] sm:$0xff]
    %v1235 = vld [vmem:[#allocation8 + $0x12a0] sm:$0xff]
    %v1236 = vld [vmem:[#allocation8 + $0x12a8] sm:$0xff]
    %v1237 = vld [vmem:[#allocation8 + $0x12b0] sm:$0xff]
    %v1238 = vld [vmem:[#allocation8 + $0x12b8] sm:$0xff]
    %v1239 = vld [vmem:[#allocation8 + $0x12c0] sm:$0xff]
    %v1240 = vld [vmem:[#allocation8 + $0x12c8] sm:$0xff]
    %v1241 = vld [vmem:[#allocation8 + $0x12d0] sm:$0xff]
    %v1242 = vld [vmem:[#allocation8 + $0x12d8] sm:$0xff]
    %v1243 = vld [vmem:[#allocation8 + $0x12e0] sm:$0xff]
    %v1244 = vld [vmem:[#allocation8 + $0x12e8] sm:$0xff]
    %v1245 = vld [vmem:[#allocation8 + $0x12f0] sm:$0xff]
    %v1246 = vld [vmem:[#allocation8 + $0x12f8] sm:$0xff]
    %v1247 = vld [vmem:[#allocation8 + $0x1300] sm:$0xff]
    %v1248 = vld [vmem:[#allocation8 + $0x1308] sm:$0xff]
    %v1249 = vld [vmem:[#allocation8 + $0x1310] sm:$0xff]
    %v1250 = vld [vmem:[#allocation8 + $0x1318] sm:$0xff]
    %v1251 = vld [vmem:[#allocation8 + $0x1320] sm:$0xff]
    %v1252 = vld [vmem:[#allocation8 + $0x1328] sm:$0xff]
    %v1253 = vld [vmem:[#allocation8 + $0x1330] sm:$0xff]
    %v1254 = vld [vmem:[#allocation8 + $0x1338] sm:$0xff]
    %v1255 = vld [vmem:[#allocation8 + $0x1340] sm:$0xff]
    %v1256 = vld [vmem:[#allocation8 + $0x1348] sm:$0xff]
    %v1257 = vld [vmem:[#allocation8 + $0x1350] sm:$0xff]
    %v1258 = vld [vmem:[#allocation8 + $0x1358] sm:$0xff]
    %v1259 = vld [vmem:[#allocation8 + $0x1360] sm:$0xff]
    %v1260 = vld [vmem:[#allocation8 + $0x1368] sm:$0xff]
    %v1261 = vld [vmem:[#allocation8 + $0x1370] sm:$0xff]
    %v1262 = vld [vmem:[#allocation8 + $0x1378] sm:$0xff]
    %v1263 = vld [vmem:[#allocation8 + $0x1380] sm:$0xff]
    %v1264 = vld [vmem:[#allocation8 + $0x1388] sm:$0xff]
    %v1265 = vld [vmem:[#allocation8 + $0x1390] sm:$0xff]
    %v1266 = vld [vmem:[#allocation8 + $0x1398] sm:$0xff]
    %v1267 = vld [vmem:[#allocation8 + $0x13a0] sm:$0xff]
    %v1268 = vld [vmem:[#allocation8 + $0x13a8] sm:$0xff]
    %v1269 = vld [vmem:[#allocation8 + $0x13b0] sm:$0xff]
    %v1270 = vld [vmem:[#allocation8 + $0x13b8] sm:$0xff]
    %v1271 = vld [vmem:[#allocation8 + $0x13c0] sm:$0xff]
    %v1272 = vld [vmem:[#allocation8 + $0x13c8] sm:$0xff]
    %v1273 = vld [vmem:[#allocation8 + $0x13d0] sm:$0xff]
    %v1274 = vld [vmem:[#allocation8 + $0x13d8] sm:$0xff]
    %v1275 = vld [vmem:[#allocation8 + $0x13e0] sm:$0xff]
    %v1276 = vld [vmem:[#allocation8 + $0x13e8] sm:$0xff]
    %v1277 = vld [vmem:[#allocation8 + $0x13f0] sm:$0xff]
    %v1278 = vld [vmem:[#allocation8 + $0x13f8] sm:$0xff]
    %v1279 = vld [vmem:[#allocation8 + $0x1400] sm:$0xff]
    %v1280 = vld [vmem:[#allocation8 + $0x1408] sm:$0xff]
    %v1281 = vld [vmem:[#allocation8 + $0x1410] sm:$0xff]
    %v1282 = vld [vmem:[#allocation8 + $0x1418] sm:$0xff]
    %v1283 = vld [vmem:[#allocation8 + $0x1420] sm:$0xff]
    %v1284 = vld [vmem:[#allocation8 + $0x1428] sm:$0xff]
    %v1285 = vld [vmem:[#allocation8 + $0x1430] sm:$0xff]
    %v1286 = vld [vmem:[#allocation8 + $0x1438] sm:$0xff]
    %v1287 = vld [vmem:[#allocation8 + $0x1440] sm:$0xff]
    %v1288 = vld [vmem:[#allocation8 + $0x1448] sm:$0xff]
    %v1289 = vld [vmem:[#allocation8 + $0x1450] sm:$0xff]
    %v1290 = vld [vmem:[#allocation8 + $0x1458] sm:$0xff]
    %v1291 = vld [vmem:[#allocation8 + $0x1460] sm:$0xff]
    %v1292 = vld [vmem:[#allocation8 + $0x1468] sm:$0xff]
    %v1293 = vld [vmem:[#allocation8 + $0x1470] sm:$0xff]
    %v1294 = vld [vmem:[#allocation8 + $0x1478] sm:$0xff]
    %v1295 = vld [vmem:[#allocation8 + $0x1480] sm:$0xff]
    %v1296 = vld [vmem:[#allocation8 + $0x1488] sm:$0xff]
    %v1297 = vld [vmem:[#allocation8 + $0x1490] sm:$0xff]
    %v1298 = vld [vmem:[#allocation8 + $0x1498] sm:$0xff]
    %v1299 = vld [vmem:[#allocation8 + $0x14a0] sm:$0xff]
    %v1300 = vld [vmem:[#allocation8 + $0x14a8] sm:$0xff]
    %v1301 = vld [vmem:[#allocation8 + $0x14b0] sm:$0xff]
    %v1302 = vld [vmem:[#allocation8 + $0x14b8] sm:$0xff]
    %v1303 = vld [vmem:[#allocation8 + $0x14c0] sm:$0xff]
    %v1304 = vld [vmem:[#allocation8 + $0x14c8] sm:$0xff]
    %v1305 = vld [vmem:[#allocation8 + $0x14d0] sm:$0xff]
    %v1306 = vld [vmem:[#allocation8 + $0x14d8] sm:$0xff]
    %v1307 = vld [vmem:[#allocation8 + $0x14e0] sm:$0xff]
    %v1308 = vld [vmem:[#allocation8 + $0x14e8] sm:$0xff]
    %v1309 = vld [vmem:[#allocation8 + $0x14f0] sm:$0xff]
    %v1310 = vld [vmem:[#allocation8 + $0x14f8] sm:$0xff]
    %v1311 = vld [vmem:[#allocation8 + $0x1500] sm:$0xff]
    %v1312 = vld [vmem:[#allocation8 + $0x1508] sm:$0xff]
    %v1313 = vld [vmem:[#allocation8 + $0x1510] sm:$0xff]
    %v1314 = vld [vmem:[#allocation8 + $0x1518] sm:$0xff]
    %v1315 = vld [vmem:[#allocation8 + $0x1520] sm:$0xff]
    %v1316 = vld [vmem:[#allocation8 + $0x1528] sm:$0xff]
    %v1317 = vld [vmem:[#allocation8 + $0x1530] sm:$0xff]
    %v1318 = vld [vmem:[#allocation8 + $0x1538] sm:$0xff]
    %v1319 = vld [vmem:[#allocation8 + $0x1540] sm:$0xff]
    %v1320 = vld [vmem:[#allocation8 + $0x1548] sm:$0xff]
    %v1321 = vld [vmem:[#allocation8 + $0x1550] sm:$0xff]
    %v1322 = vld [vmem:[#allocation8 + $0x1558] sm:$0xff]
    %v1323 = vld [vmem:[#allocation8 + $0x1560] sm:$0xff]
    %v1324 = vld [vmem:[#allocation8 + $0x1568] sm:$0xff]
    %v1325 = vld [vmem:[#allocation8 + $0x1570] sm:$0xff]
    %v1326 = vld [vmem:[#allocation8 + $0x1578] sm:$0xff]
    %v1327 = vld [vmem:[#allocation8 + $0x1580] sm:$0xff]
    %v1328 = vld [vmem:[#allocation8 + $0x1588] sm:$0xff]
    %v1329 = vld [vmem:[#allocation8 + $0x1590] sm:$0xff]
    %v1330 = vld [vmem:[#allocation8 + $0x1598] sm:$0xff]
    %v1331 = vld [vmem:[#allocation8 + $0x15a0] sm:$0xff]
    %v1332 = vld [vmem:[#allocation8 + $0x15a8] sm:$0xff]
    %v1333 = vld [vmem:[#allocation8 + $0x15b0] sm:$0xff]
    %v1334 = vld [vmem:[#allocation8 + $0x15b8] sm:$0xff]
    %v1335 = vld [vmem:[#allocation8 + $0x15c0] sm:$0xff]
    %v1336 = vld [vmem:[#allocation8 + $0x15c8] sm:$0xff]
    %v1337 = vld [vmem:[#allocation8 + $0x15d0] sm:$0xff]
    %v1338 = vld [vmem:[#allocation8 + $0x15d8] sm:$0xff]
    %v1339 = vld [vmem:[#allocation8 + $0x15e0] sm:$0xff]
    %v1340 = vld [vmem:[#allocation8 + $0x15e8] sm:$0xff]
    %v1341 = vld [vmem:[#allocation8 + $0x15f0] sm:$0xff]
    %v1342 = vld [vmem:[#allocation8 + $0x15f8] sm:$0xff]
    %v1343 = vld [vmem:[#allocation8 + $0x1600] sm:$0xff]
    %v1344 = vld [vmem:[#allocation8 + $0x1608] sm:$0xff]
    %v1345 = vld [vmem:[#allocation8 + $0x1610] sm:$0xff]
    %v1346 = vld [vmem:[#allocation8 + $0x1618] sm:$0xff]
    %v1347 = vld [vmem:[#allocation8 + $0x1620] sm:$0xff]
    %v1348 = vld [vmem:[#allocation8 + $0x1628] sm:$0xff]
    %v1349 = vld [vmem:[#allocation8 + $0x1630] sm:$0xff]
    %v1350 = vld [vmem:[#allocation8 + $0x1638] sm:$0xff]
    %v1351 = vld [vmem:[#allocation8 + $0x1640] sm:$0xff]
    %v1352 = vld [vmem:[#allocation8 + $0x1648] sm:$0xff]
    %v1353 = vld [vmem:[#allocation8 + $0x1650] sm:$0xff]
    %v1354 = vld [vmem:[#allocation8 + $0x1658] sm:$0xff]
    %v1355 = vld [vmem:[#allocation8 + $0x1660] sm:$0xff]
    %v1356 = vld [vmem:[#allocation8 + $0x1668] sm:$0xff]
    %v1357 = vld [vmem:[#allocation8 + $0x1670] sm:$0xff]
    %v1358 = vld [vmem:[#allocation8 + $0x1678] sm:$0xff]
    %v1359 = vld [vmem:[#allocation8 + $0x1680] sm:$0xff]
    %v1360 = vld [vmem:[#allocation8 + $0x1688] sm:$0xff]
    %v1361 = vld [vmem:[#allocation8 + $0x1690] sm:$0xff]
    %v1362 = vld [vmem:[#allocation8 + $0x1698] sm:$0xff]
    %v1363 = vld [vmem:[#allocation8 + $0x16a0] sm:$0xff]
    %v1364 = vld [vmem:[#allocation8 + $0x16a8] sm:$0xff]
    %v1365 = vld [vmem:[#allocation8 + $0x16b0] sm:$0xff]
    %v1366 = vld [vmem:[#allocation8 + $0x16b8] sm:$0xff]
    %v1367 = vld [vmem:[#allocation8 + $0x16c0] sm:$0xff]
    %v1368 = vld [vmem:[#allocation8 + $0x16c8] sm:$0xff]
    %v1369 = vld [vmem:[#allocation8 + $0x16d0] sm:$0xff]
    %v1370 = vld [vmem:[#allocation8 + $0x16d8] sm:$0xff]
    %v1371 = vld [vmem:[#allocation8 + $0x16e0] sm:$0xff]
    %v1372 = vld [vmem:[#allocation8 + $0x16e8] sm:$0xff]
    %v1373 = vld [vmem:[#allocation8 + $0x16f0] sm:$0xff]
    %v1374 = vld [vmem:[#allocation8 + $0x16f8] sm:$0xff]
    %v1375 = vld [vmem:[#allocation8 + $0x1700] sm:$0xff]
    %v1376 = vld [vmem:[#allocation8 + $0x1708] sm:$0xff]
    %v1377 = vld [vmem:[#allocation8 + $0x1710] sm:$0xff]
    %v1378 = vld [vmem:[#allocation8 + $0x1718] sm:$0xff]
    %v1379 = vld [vmem:[#allocation8 + $0x1720] sm:$0xff]
    %v1380 = vld [vmem:[#allocation8 + $0x1728] sm:$0xff]
    %v1381 = vld [vmem:[#allocation8 + $0x1730] sm:$0xff]
    %v1382 = vld [vmem:[#allocation8 + $0x1738] sm:$0xff]
    %v1383 = vld [vmem:[#allocation8 + $0x1740] sm:$0xff]
    %v1384 = vld [vmem:[#allocation8 + $0x1748] sm:$0xff]
    %v1385 = vld [vmem:[#allocation8 + $0x1750] sm:$0xff]
    %v1386 = vld [vmem:[#allocation8 + $0x1758] sm:$0xff]
    %v1387 = vld [vmem:[#allocation8 + $0x1760] sm:$0xff]
    %v1388 = vld [vmem:[#allocation8 + $0x1768] sm:$0xff]
    %v1389 = vld [vmem:[#allocation8 + $0x1770] sm:$0xff]
    %v1390 = vld [vmem:[#allocation8 + $0x1778] sm:$0xff]
    %v1391 = vld [vmem:[#allocation8 + $0x1780] sm:$0xff]
    %v1392 = vld [vmem:[#allocation8 + $0x1788] sm:$0xff]
    %v1393 = vld [vmem:[#allocation8 + $0x1790] sm:$0xff]
    %v1394 = vld [vmem:[#allocation8 + $0x1798] sm:$0xff]
    %v1395 = vld [vmem:[#allocation8 + $0x17a0] sm:$0xff]
    %v1396 = vld [vmem:[#allocation8 + $0x17a8] sm:$0xff]
    %v1397 = vld [vmem:[#allocation8 + $0x17b0] sm:$0xff]
    %v1398 = vld [vmem:[#allocation8 + $0x17b8] sm:$0xff]
    %v1399 = vld [vmem:[#allocation8 + $0x17c0] sm:$0xff]
    %v1400 = vld [vmem:[#allocation8 + $0x17c8] sm:$0xff]
    %v1401 = vld [vmem:[#allocation8 + $0x17d0] sm:$0xff]
    %v1402 = vld [vmem:[#allocation8 + $0x17d8] sm:$0xff]
    %v1403 = vld [vmem:[#allocation8 + $0x17e0] sm:$0xff]
    %v1404 = vld [vmem:[#allocation8 + $0x17e8] sm:$0xff]
    %v1405 = vld [vmem:[#allocation8 + $0x17f0] sm:$0xff]
    %v1406 = vld [vmem:[#allocation8 + $0x17f8] sm:$0xff]
    %v1407 = vld [vmem:[#allocation8 + $0x1800] sm:$0xff]
    %v1408 = vld [vmem:[#allocation8 + $0x1808] sm:$0xff]
    %v1409 = vld [vmem:[#allocation8 + $0x1810] sm:$0xff]
    %v1410 = vld [vmem:[#allocation8 + $0x1818] sm:$0xff]
    %v1411 = vld [vmem:[#allocation8 + $0x1820] sm:$0xff]
    %v1412 = vld [vmem:[#allocation8 + $0x1828] sm:$0xff]
    %v1413 = vld [vmem:[#allocation8 + $0x1830] sm:$0xff]
    %v1414 = vld [vmem:[#allocation8 + $0x1838] sm:$0xff]
    %v1415 = vld [vmem:[#allocation8 + $0x1840] sm:$0xff]
    %v1416 = vld [vmem:[#allocation8 + $0x1848] sm:$0xff]
    %v1417 = vld [vmem:[#allocation8 + $0x1850] sm:$0xff]
    %v1418 = vld [vmem:[#allocation8 + $0x1858] sm:$0xff]
    %v1419 = vld [vmem:[#allocation8 + $0x1860] sm:$0xff]
    %v1420 = vld [vmem:[#allocation8 + $0x1868] sm:$0xff]
    %v1421 = vld [vmem:[#allocation8 + $0x1870] sm:$0xff]
    %v1422 = vld [vmem:[#allocation8 + $0x1878] sm:$0xff]
    %v1423 = vld [vmem:[#allocation8 + $0x1880] sm:$0xff]
    %v1424 = vld [vmem:[#allocation8 + $0x1888] sm:$0xff]
    %v1425 = vld [vmem:[#allocation8 + $0x1890] sm:$0xff]
    %v1426 = vld [vmem:[#allocation8 + $0x1898] sm:$0xff]
    %v1427 = vld [vmem:[#allocation8 + $0x18a0] sm:$0xff]
    %v1428 = vld [vmem:[#allocation8 + $0x18a8] sm:$0xff]
    %v1429 = vld [vmem:[#allocation8 + $0x18b0] sm:$0xff]
    %v1430 = vld [vmem:[#allocation8 + $0x18b8] sm:$0xff]
    %v1431 = vld [vmem:[#allocation8 + $0x18c0] sm:$0xff]
    %v1432 = vld [vmem:[#allocation8 + $0x18c8] sm:$0xff]
    %v1433 = vld [vmem:[#allocation8 + $0x18d0] sm:$0xff]
    %v1434 = vld [vmem:[#allocation8 + $0x18d8] sm:$0xff]
    %v1435 = vld [vmem:[#allocation8 + $0x18e0] sm:$0xff]
    %v1436 = vld [vmem:[#allocation8 + $0x18e8] sm:$0xff]
    %v1437 = vld [vmem:[#allocation8 + $0x18f0] sm:$0xff]
    %v1438 = vld [vmem:[#allocation8 + $0x18f8] sm:$0xff]
    %v1439 = vld [vmem:[#allocation8 + $0x1900] sm:$0xff]
    %v1440 = vld [vmem:[#allocation8 + $0x1908] sm:$0xff]
    %v1441 = vld [vmem:[#allocation8 + $0x1910] sm:$0xff]
    %v1442 = vld [vmem:[#allocation8 + $0x1918] sm:$0xff]
    %v1443 = vld [vmem:[#allocation8 + $0x1920] sm:$0xff]
    %v1444 = vld [vmem:[#allocation8 + $0x1928] sm:$0xff]
    %v1445 = vld [vmem:[#allocation8 + $0x1930] sm:$0xff]
    %v1446 = vld [vmem:[#allocation8 + $0x1938] sm:$0xff]
    %v1447 = vld [vmem:[#allocation8 + $0x1940] sm:$0xff]
    %v1448 = vld [vmem:[#allocation8 + $0x1948] sm:$0xff]
    %v1449 = vld [vmem:[#allocation8 + $0x1950] sm:$0xff]
    %v1450 = vld [vmem:[#allocation8 + $0x1958] sm:$0xff]
    %v1451 = vld [vmem:[#allocation8 + $0x1960] sm:$0xff]
    %v1452 = vld [vmem:[#allocation8 + $0x1968] sm:$0xff]
    %v1453 = vld [vmem:[#allocation8 + $0x1970] sm:$0xff]
    %v1454 = vld [vmem:[#allocation8 + $0x1978] sm:$0xff]
    %v1455 = vld [vmem:[#allocation8 + $0x1980] sm:$0xff]
    %v1456 = vld [vmem:[#allocation8 + $0x1988] sm:$0xff]
    %v1457 = vld [vmem:[#allocation8 + $0x1990] sm:$0xff]
    %v1458 = vld [vmem:[#allocation8 + $0x1998] sm:$0xff]
    %v1459 = vld [vmem:[#allocation8 + $0x19a0] sm:$0xff]
    %v1460 = vld [vmem:[#allocation8 + $0x19a8] sm:$0xff]
    %v1461 = vld [vmem:[#allocation8 + $0x19b0] sm:$0xff]
    %v1462 = vld [vmem:[#allocation8 + $0x19b8] sm:$0xff]
    %v1463 = vld [vmem:[#allocation8 + $0x19c0] sm:$0xff]
    %v1464 = vld [vmem:[#allocation8 + $0x19c8] sm:$0xff]
    %v1465 = vld [vmem:[#allocation8 + $0x19d0] sm:$0xff]
    %v1466 = vld [vmem:[#allocation8 + $0x19d8] sm:$0xff]
    %v1467 = vld [vmem:[#allocation8 + $0x19e0] sm:$0xff]
    %v1468 = vld [vmem:[#allocation8 + $0x19e8] sm:$0xff]
    %v1469 = vld [vmem:[#allocation8 + $0x19f0] sm:$0xff]
    %v1470 = vld [vmem:[#allocation8 + $0x19f8] sm:$0xff]
    %v1471 = vld [vmem:[#allocation8 + $0x1a00] sm:$0xff]
    %v1472 = vld [vmem:[#allocation8 + $0x1a08] sm:$0xff]
    %v1473 = vld [vmem:[#allocation8 + $0x1a10] sm:$0xff]
    %v1474 = vld [vmem:[#allocation8 + $0x1a18] sm:$0xff]
    %v1475 = vld [vmem:[#allocation8 + $0x1a20] sm:$0xff]
    %v1476 = vld [vmem:[#allocation8 + $0x1a28] sm:$0xff]
    %v1477 = vld [vmem:[#allocation8 + $0x1a30] sm:$0xff]
    %v1478 = vld [vmem:[#allocation8 + $0x1a38] sm:$0xff]
    %v1479 = vld [vmem:[#allocation8 + $0x1a40] sm:$0xff]
    %v1480 = vld [vmem:[#allocation8 + $0x1a48] sm:$0xff]
    %v1481 = vld [vmem:[#allocation8 + $0x1a50] sm:$0xff]
    %v1482 = vld [vmem:[#allocation8 + $0x1a58] sm:$0xff]
    %v1483 = vld [vmem:[#allocation8 + $0x1a60] sm:$0xff]
    %v1484 = vld [vmem:[#allocation8 + $0x1a68] sm:$0xff]
    %v1485 = vld [vmem:[#allocation8 + $0x1a70] sm:$0xff]
    %v1486 = vld [vmem:[#allocation8 + $0x1a78] sm:$0xff]
    %v1487 = vld [vmem:[#allocation8 + $0x1a80] sm:$0xff]
    %v1488 = vld [vmem:[#allocation8 + $0x1a88] sm:$0xff]
    %v1489 = vld [vmem:[#allocation8 + $0x1a90] sm:$0xff]
    %v1490 = vld [vmem:[#allocation8 + $0x1a98] sm:$0xff]
    %v1491 = vld [vmem:[#allocation8 + $0x1aa0] sm:$0xff]
    %v1492 = vld [vmem:[#allocation8 + $0x1aa8] sm:$0xff]
    %v1493 = vld [vmem:[#allocation8 + $0x1ab0] sm:$0xff]
    %v1494 = vld [vmem:[#allocation8 + $0x1ab8] sm:$0xff]
    %v1495 = vld [vmem:[#allocation8 + $0x1ac0] sm:$0xff]
    %v1496 = vld [vmem:[#allocation8 + $0x1ac8] sm:$0xff]
    %v1497 = vld [vmem:[#allocation8 + $0x1ad0] sm:$0xff]
    %v1498 = vld [vmem:[#allocation8 + $0x1ad8] sm:$0xff]
    %v1499 = vld [vmem:[#allocation8 + $0x1ae0] sm:$0xff]
    %v1500 = vld [vmem:[#allocation8 + $0x1ae8] sm:$0xff]
    %v1501 = vld [vmem:[#allocation8 + $0x1af0] sm:$0xff]
    %v1502 = vld [vmem:[#allocation8 + $0x1af8] sm:$0xff]
    %v1503 = vld [vmem:[#allocation8 + $0x1b00] sm:$0xff]
    %v1504 = vld [vmem:[#allocation8 + $0x1b08] sm:$0xff]
    %v1505 = vld [vmem:[#allocation8 + $0x1b10] sm:$0xff]
    %v1506 = vld [vmem:[#allocation8 + $0x1b18] sm:$0xff]
    %v1507 = vld [vmem:[#allocation8 + $0x1b20] sm:$0xff]
    %v1508 = vld [vmem:[#allocation8 + $0x1b28] sm:$0xff]
    %v1509 = vld [vmem:[#allocation8 + $0x1b30] sm:$0xff]
    %v1510 = vld [vmem:[#allocation8 + $0x1b38] sm:$0xff]
    %v1511 = vld [vmem:[#allocation8 + $0x1b40] sm:$0xff]
    %v1512 = vld [vmem:[#allocation8 + $0x1b48] sm:$0xff]
    %v1513 = vld [vmem:[#allocation8 + $0x1b50] sm:$0xff]
    %v1514 = vld [vmem:[#allocation8 + $0x1b58] sm:$0xff]
    %v1515 = vld [vmem:[#allocation8 + $0x1b60] sm:$0xff]
    %v1516 = vld [vmem:[#allocation8 + $0x1b68] sm:$0xff]
    %v1517 = vld [vmem:[#allocation8 + $0x1b70] sm:$0xff]
    %v1518 = vld [vmem:[#allocation8 + $0x1b78] sm:$0xff]
    %v1519 = vld [vmem:[#allocation8 + $0x1b80] sm:$0xff]
    %v1520 = vld [vmem:[#allocation8 + $0x1b88] sm:$0xff]
    %v1521 = vld [vmem:[#allocation8 + $0x1b90] sm:$0xff]
    %v1522 = vld [vmem:[#allocation8 + $0x1b98] sm:$0xff]
    %v1523 = vld [vmem:[#allocation8 + $0x1ba0] sm:$0xff]
    %v1524 = vld [vmem:[#allocation8 + $0x1ba8] sm:$0xff]
    %v1525 = vld [vmem:[#allocation8 + $0x1bb0] sm:$0xff]
    %v1526 = vld [vmem:[#allocation8 + $0x1bb8] sm:$0xff]
    %v1527 = vld [vmem:[#allocation8 + $0x1bc0] sm:$0xff]
    %v1528 = vld [vmem:[#allocation8 + $0x1bc8] sm:$0xff]
    %v1529 = vld [vmem:[#allocation8 + $0x1bd0] sm:$0xff]
    %v1530 = vld [vmem:[#allocation8 + $0x1bd8] sm:$0xff]
    %v1531 = vld [vmem:[#allocation8 + $0x1be0] sm:$0xff]
    %v1532 = vld [vmem:[#allocation8 + $0x1be8] sm:$0xff]
    %v1533 = vld [vmem:[#allocation8 + $0x1bf0] sm:$0xff]
    %v1534 = vld [vmem:[#allocation8 + $0x1bf8] sm:$0xff]
    %v1535 = vld [vmem:[#allocation8 + $0x1c00] sm:$0xff]
    %v1536 = vld [vmem:[#allocation8 + $0x1c08] sm:$0xff]
    %v1537 = vld [vmem:[#allocation8 + $0x1c10] sm:$0xff]
    %v1538 = vld [vmem:[#allocation8 + $0x1c18] sm:$0xff]
    %v1539 = vld [vmem:[#allocation8 + $0x1c20] sm:$0xff]
    %v1540 = vld [vmem:[#allocation8 + $0x1c28] sm:$0xff]
    %v1541 = vld [vmem:[#allocation8 + $0x1c30] sm:$0xff]
    %v1542 = vld [vmem:[#allocation8 + $0x1c38] sm:$0xff]
    %v1543 = vld [vmem:[#allocation8 + $0x1c40] sm:$0xff]
    %v1544 = vld [vmem:[#allocation8 + $0x1c48] sm:$0xff]
    %v1545 = vld [vmem:[#allocation8 + $0x1c50] sm:$0xff]
    %v1546 = vld [vmem:[#allocation8 + $0x1c58] sm:$0xff]
    %v1547 = vld [vmem:[#allocation8 + $0x1c60] sm:$0xff]
    %v1548 = vld [vmem:[#allocation8 + $0x1c68] sm:$0xff]
    %v1549 = vld [vmem:[#allocation8 + $0x1c70] sm:$0xff]
    %v1550 = vld [vmem:[#allocation8 + $0x1c78] sm:$0xff]
    %v1551 = vld [vmem:[#allocation8 + $0x1c80] sm:$0xff]
    %v1552 = vld [vmem:[#allocation8 + $0x1c88] sm:$0xff]
    %v1553 = vld [vmem:[#allocation8 + $0x1c90] sm:$0xff]
    %v1554 = vld [vmem:[#allocation8 + $0x1c98] sm:$0xff]
    %v1555 = vld [vmem:[#allocation8 + $0x1ca0] sm:$0xff]
    %v1556 = vld [vmem:[#allocation8 + $0x1ca8] sm:$0xff]
    %v1557 = vld [vmem:[#allocation8 + $0x1cb0] sm:$0xff]
    %v1558 = vld [vmem:[#allocation8 + $0x1cb8] sm:$0xff]
    %v1559 = vld [vmem:[#allocation8 + $0x1cc0] sm:$0xff]
    %v1560 = vld [vmem:[#allocation8 + $0x1cc8] sm:$0xff]
    %v1561 = vld [vmem:[#allocation8 + $0x1cd0] sm:$0xff]
    %v1562 = vld [vmem:[#allocation8 + $0x1cd8] sm:$0xff]
    %v1563 = vld [vmem:[#allocation8 + $0x1ce0] sm:$0xff]
    %v1564 = vld [vmem:[#allocation8 + $0x1ce8] sm:$0xff]
    %v1565 = vld [vmem:[#allocation8 + $0x1cf0] sm:$0xff]
    %v1566 = vld [vmem:[#allocation8 + $0x1cf8] sm:$0xff]
    %v1567 = vld [vmem:[#allocation8 + $0x1d00] sm:$0xff]
    %v1568 = vld [vmem:[#allocation8 + $0x1d08] sm:$0xff]
    %v1569 = vld [vmem:[#allocation8 + $0x1d10] sm:$0xff]
    %v1570 = vld [vmem:[#allocation8 + $0x1d18] sm:$0xff]
    %v1571 = vld [vmem:[#allocation8 + $0x1d20] sm:$0xff]
    %v1572 = vld [vmem:[#allocation8 + $0x1d28] sm:$0xff]
    %v1573 = vld [vmem:[#allocation8 + $0x1d30] sm:$0xff]
    %v1574 = vld [vmem:[#allocation8 + $0x1d38] sm:$0xff]
    %v1575 = vld [vmem:[#allocation8 + $0x1d40] sm:$0xff]
    %v1576 = vld [vmem:[#allocation8 + $0x1d48] sm:$0xff]
    %v1577 = vld [vmem:[#allocation8 + $0x1d50] sm:$0xff]
    %v1578 = vld [vmem:[#allocation8 + $0x1d58] sm:$0xff]
    %v1579 = vld [vmem:[#allocation8 + $0x1d60] sm:$0xff]
    %v1580 = vld [vmem:[#allocation8 + $0x1d68] sm:$0xff]
    %v1581 = vld [vmem:[#allocation8 + $0x1d70] sm:$0xff]
    %v1582 = vld [vmem:[#allocation8 + $0x1d78] sm:$0xff]
    %v1583 = vld [vmem:[#allocation8 + $0x1d80] sm:$0xff]
    %v1584 = vld [vmem:[#allocation8 + $0x1d88] sm:$0xff]
    %v1585 = vld [vmem:[#allocation8 + $0x1d90] sm:$0xff]
    %v1586 = vld [vmem:[#allocation8 + $0x1d98] sm:$0xff]
    %v1587 = vld [vmem:[#allocation8 + $0x1da0] sm:$0xff]
    %v1588 = vld [vmem:[#allocation8 + $0x1da8] sm:$0xff]
    %v1589 = vld [vmem:[#allocation8 + $0x1db0] sm:$0xff]
    %v1590 = vld [vmem:[#allocation8 + $0x1db8] sm:$0xff]
    %v1591 = vld [vmem:[#allocation8 + $0x1dc0] sm:$0xff]
    %v1592 = vld [vmem:[#allocation8 + $0x1dc8] sm:$0xff]
    %v1593 = vld [vmem:[#allocation8 + $0x1dd0] sm:$0xff]
    %v1594 = vld [vmem:[#allocation8 + $0x1dd8] sm:$0xff]
    %v1595 = vld [vmem:[#allocation8 + $0x1de0] sm:$0xff]
    %v1596 = vld [vmem:[#allocation8 + $0x1de8] sm:$0xff]
    %v1597 = vld [vmem:[#allocation8 + $0x1df0] sm:$0xff]
    %v1598 = vld [vmem:[#allocation8 + $0x1df8] sm:$0xff]
    %v1599 = vld [vmem:[#allocation8 + $0x1e00] sm:$0xff]
    %v1600 = vld [vmem:[#allocation8 + $0x1e08] sm:$0xff]
    %v1601 = vld [vmem:[#allocation8 + $0x1e10] sm:$0xff]
    %v1602 = vld [vmem:[#allocation8 + $0x1e18] sm:$0xff]
    %v1603 = vld [vmem:[#allocation8 + $0x1e20] sm:$0xff]
    %v1604 = vld [vmem:[#allocation8 + $0x1e28] sm:$0xff]
    %v1605 = vld [vmem:[#allocation8 + $0x1e30] sm:$0xff]
    %v1606 = vld [vmem:[#allocation8 + $0x1e38] sm:$0xff]
    %v1607 = vld [vmem:[#allocation8 + $0x1e40] sm:$0xff]
    %v1608 = vld [vmem:[#allocation8 + $0x1e48] sm:$0xff]
    %v1609 = vld [vmem:[#allocation8 + $0x1e50] sm:$0xff]
    %v1610 = vld [vmem:[#allocation8 + $0x1e58] sm:$0xff]
    %v1611 = vld [vmem:[#allocation8 + $0x1e60] sm:$0xff]
    %v1612 = vld [vmem:[#allocation8 + $0x1e68] sm:$0xff]
    %v1613 = vld [vmem:[#allocation8 + $0x1e70] sm:$0xff]
    %v1614 = vld [vmem:[#allocation8 + $0x1e78] sm:$0xff]
    %v1615 = vld [vmem:[#allocation8 + $0x1e80] sm:$0xff]
    %v1616 = vld [vmem:[#allocation8 + $0x1e88] sm:$0xff]
    %v1617 = vld [vmem:[#allocation8 + $0x1e90] sm:$0xff]
    %v1618 = vld [vmem:[#allocation8 + $0x1e98] sm:$0xff]
    %v1619 = vld [vmem:[#allocation8 + $0x1ea0] sm:$0xff]
    %v1620 = vld [vmem:[#allocation8 + $0x1ea8] sm:$0xff]
    %v1621 = vld [vmem:[#allocation8 + $0x1eb0] sm:$0xff]
    %v1622 = vld [vmem:[#allocation8 + $0x1eb8] sm:$0xff]
    %v1623 = vld [vmem:[#allocation8 + $0x1ec0] sm:$0xff]
    %v1624 = vld [vmem:[#allocation8 + $0x1ec8] sm:$0xff]
    %v1625 = vld [vmem:[#allocation8 + $0x1ed0] sm:$0xff]
    %v1626 = vld [vmem:[#allocation8 + $0x1ed8] sm:$0xff]
    %v1627 = vld [vmem:[#allocation8 + $0x1ee0] sm:$0xff]
    %v1628 = vld [vmem:[#allocation8 + $0x1ee8] sm:$0xff]
    %v1629 = vld [vmem:[#allocation8 + $0x1ef0] sm:$0xff]
    %v1630 = vld [vmem:[#allocation8 + $0x1ef8] sm:$0xff]
    %v1631 = vld [vmem:[#allocation8 + $0x1f00] sm:$0xff]
    %v1632 = vld [vmem:[#allocation8 + $0x1f08] sm:$0xff]
    %v1633 = vld [vmem:[#allocation8 + $0x1f10] sm:$0xff]
    %v1634 = vld [vmem:[#allocation8 + $0x1f18] sm:$0xff]
    %v1635 = vld [vmem:[#allocation8 + $0x1f20] sm:$0xff]
    %v1636 = vld [vmem:[#allocation8 + $0x1f28] sm:$0xff]
    %v1637 = vld [vmem:[#allocation8 + $0x1f30] sm:$0xff]
    %v1638 = vld [vmem:[#allocation8 + $0x1f38] sm:$0xff]
    %v1639 = vld [vmem:[#allocation8 + $0x1f40] sm:$0xff]
    %v1640 = vld [vmem:[#allocation8 + $0x1f48] sm:$0xff]
    %v1641 = vld [vmem:[#allocation8 + $0x1f50] sm:$0xff]
    %v1642 = vld [vmem:[#allocation8 + $0x1f58] sm:$0xff]
    %v1643 = vld [vmem:[#allocation8 + $0x1f60] sm:$0xff]
    %v1644 = vld [vmem:[#allocation8 + $0x1f68] sm:$0xff]
    %v1645 = vld [vmem:[#allocation8 + $0x1f70] sm:$0xff]
    %v1646 = vld [vmem:[#allocation8 + $0x1f78] sm:$0xff]
    %v1647 = vld [vmem:[#allocation8 + $0x1f80] sm:$0xff]
    %v1648 = vld [vmem:[#allocation8 + $0x1f88] sm:$0xff]
    %v1649 = vld [vmem:[#allocation8 + $0x1f90] sm:$0xff]
    %v1650 = vld [vmem:[#allocation8 + $0x1f98] sm:$0xff]
    %v1651 = vld [vmem:[#allocation8 + $0x1fa0] sm:$0xff]
    %v1652 = vld [vmem:[#allocation8 + $0x1fa8] sm:$0xff]
    %v1653 = vld [vmem:[#allocation8 + $0x1fb0] sm:$0xff]
    %v1654 = vld [vmem:[#allocation8 + $0x1fb8] sm:$0xff]
    %v1655 = vld [vmem:[#allocation8 + $0x1fc0] sm:$0xff]
    %v1656 = vld [vmem:[#allocation8 + $0x1fc8] sm:$0xff]
    %v1657 = vld [vmem:[#allocation8 + $0x1fd0] sm:$0xff]
    %v1658 = vld [vmem:[#allocation8 + $0x1fd8] sm:$0xff]
    %v1659 = vld [vmem:[#allocation8 + $0x1fe0] sm:$0xff]
    %v1660 = vld [vmem:[#allocation8 + $0x1fe8] sm:$0xff]
    %v1661 = vld [vmem:[#allocation8 + $0x1ff0] sm:$0xff]
    %v1662 = vld [vmem:[#allocation8 + $0x1ff8] sm:$0xff]
    %v1663 = vld [vmem:[#allocation10] sm:$0xf]
    %v1665 = vperm.slane %v1663, 0
    %v1666 = vperm.slane %v1663, 1
    %v1667 = vperm.slane %v1663, 2
    %v1668 = vperm.slane %v1663, 3
    %1673 = vmatpush.msra.mxu0 %v699
    %1674 = vmatpush.msra.mxu0 %v695
    %1675 = vmatpush.msra.mxu0 %v691
    %1676 = vmatpush.msra.mxu0 %v687
    %1677 = vmatpush.msra.mxu0 %v683
    %1678 = vmatpush.msra.mxu0 %v679
    %1679 = vmatpush.msra.mxu0 %v675
    %1680 = vmatpush.msra.mxu0 %v671
    %1681 = vmatpush.msra.mxu0 %v667
    %1682 = vmatpush.msra.mxu0 %v663
    %1683 = vmatpush.msra.mxu0 %v659
    %1684 = vmatpush.msra.mxu0 %v655
    %1685 = vmatpush.msra.mxu0 %v651
    %1686 = vmatpush.msra.mxu0 %v647
    %1687 = vmatpush.msra.mxu0 %v643
    %1688 = vmatpush.msra.mxu0 %v639
    %1689 = vmatmul.f32.gmra.mxu0 %v607
    %v1690 = vpop.f32.mrf.mxu0
    %v1691 = vadd.f32 %v1665, %v1690
    %1692 = vmatmul.f32.gmra.mxu0 %v623
    %v1693 = vpop.f32.mrf.mxu0
    %v1694 = vadd.f32 %v1665, %v1693
    %1695 = vdwg.mxu0
    %1696 = vmatpush.msra.mxu0 %v763
    %1697 = vmatpush.msra.mxu0 %v759
    %1698 = vmatpush.msra.mxu0 %v755
    %1699 = vmatpush.msra.mxu0 %v751
    %1700 = vmatpush.msra.mxu0 %v747
    %1701 = vmatpush.msra.mxu0 %v743
    %1702 = vmatpush.msra.mxu0 %v739
    %1703 = vmatpush.msra.mxu0 %v735
    %1704 = vmatpush.msra.mxu0 %v731
    %1705 = vmatpush.msra.mxu0 %v727
    %1706 = vmatpush.msra.mxu0 %v723
    %1707 = vmatpush.msra.mxu0 %v719
    %1708 = vmatpush.msra.mxu0 %v715
    %1709 = vmatpush.msra.mxu0 %v711
    %1710 = vmatpush.msra.mxu0 %v707
    %1711 = vmatpush.msra.mxu0 %v703
    %1712 = vmatmul.f32.gmra.mxu0 %v608
    %v1713 = vpop.f32.mrf.mxu0
    %v1714 = vadd.f32 %v1691, %v1713
    %1715 = vmatmul.f32.gmra.mxu0 %v624
    %v1716 = vpop.f32.mrf.mxu0
    %v1717 = vadd.f32 %v1694, %v1716
    %1718 = vdwg.mxu0
    %1719 = vmatpush.msra.mxu0 %v827
    %1720 = vmatpush.msra.mxu0 %v823
    %1721 = vmatpush.msra.mxu0 %v819
    %1722 = vmatpush.msra.mxu0 %v815
    %1723 = vmatpush.msra.mxu0 %v811
    %1724 = vmatpush.msra.mxu0 %v807
    %1725 = vmatpush.msra.mxu0 %v803
    %1726 = vmatpush.msra.mxu0 %v799
    %1727 = vmatpush.msra.mxu0 %v795
    %1728 = vmatpush.msra.mxu0 %v791
    %1729 = vmatpush.msra.mxu0 %v787
    %1730 = vmatpush.msra.mxu0 %v783
    %1731 = vmatpush.msra.mxu0 %v779
    %1732 = vmatpush.msra.mxu0 %v775
    %1733 = vmatpush.msra.mxu0 %v771
    %1734 = vmatpush.msra.mxu0 %v767
    %1735 = vmatmul.f32.gmra.mxu0 %v609
    %v1736 = vpop.f32.mrf.mxu0
    %v1737 = vadd.f32 %v1714, %v1736
    %1738 = vmatmul.f32.gmra.mxu0 %v625
    %v1739 = vpop.f32.mrf.mxu0
    %v1740 = vadd.f32 %v1717, %v1739
    %1741 = vdwg.mxu0
    %1742 = vmatpush.msra.mxu0 %v891
    %1743 = vmatpush.msra.mxu0 %v887
    %1744 = vmatpush.msra.mxu0 %v883
    %1745 = vmatpush.msra.mxu0 %v879
    %1746 = vmatpush.msra.mxu0 %v875
    %1747 = vmatpush.msra.mxu0 %v871
    %1748 = vmatpush.msra.mxu0 %v867
    %1749 = vmatpush.msra.mxu0 %v863
    %1750 = vmatpush.msra.mxu0 %v859
    %1751 = vmatpush.msra.mxu0 %v855
    %1752 = vmatpush.msra.mxu0 %v851
    %1753 = vmatpush.msra.mxu0 %v847
    %1754 = vmatpush.msra.mxu0 %v843
    %1755 = vmatpush.msra.mxu0 %v839
    %1756 = vmatpush.msra.mxu0 %v835
    %1757 = vmatpush.msra.mxu0 %v831
    %1758 = vmatmul.f32.gmra.mxu0 %v610
    %v1759 = vpop.f32.mrf.mxu0
    %v1760 = vadd.f32 %v1737, %v1759
    %1761 = vmatmul.f32.gmra.mxu0 %v626
    %v1762 = vpop.f32.mrf.mxu0
    %v1763 = vadd.f32 %v1740, %v1762
    %1764 = vdwg.mxu0
    %1765 = vmatpush.msra.mxu0 %v955
    %1766 = vmatpush.msra.mxu0 %v951
    %1767 = vmatpush.msra.mxu0 %v947
    %1768 = vmatpush.msra.mxu0 %v943
    %1769 = vmatpush.msra.mxu0 %v939
    %1770 = vmatpush.msra.mxu0 %v935
    %1771 = vmatpush.msra.mxu0 %v931
    %1772 = vmatpush.msra.mxu0 %v927
    %1773 = vmatpush.msra.mxu0 %v923
    %1774 = vmatpush.msra.mxu0 %v919
    %1775 = vmatpush.msra.mxu0 %v915
    %1776 = vmatpush.msra.mxu0 %v911
    %1777 = vmatpush.msra.mxu0 %v907
    %1778 = vmatpush.msra.mxu0 %v903
    %1779 = vmatpush.msra.mxu0 %v899
    %1780 = vmatpush.msra.mxu0 %v895
    %1781 = vmatmul.f32.gmra.mxu0 %v611
    %v1782 = vpop.f32.mrf.mxu0
    %v1783 = vadd.f32 %v1760, %v1782
    %1784 = vmatmul.f32.gmra.mxu0 %v627
    %v1785 = vpop.f32.mrf.mxu0
    %v1786 = vadd.f32 %v1763, %v1785
    %1787 = vdwg.mxu0
    %1788 = vmatpush.msra.mxu0 %v1019
    %1789 = vmatpush.msra.mxu0 %v1015
    %1790 = vmatpush.msra.mxu0 %v1011
    %1791 = vmatpush.msra.mxu0 %v1007
    %1792 = vmatpush.msra.mxu0 %v1003
    %1793 = vmatpush.msra.mxu0 %v999
    %1794 = vmatpush.msra.mxu0 %v995
    %1795 = vmatpush.msra.mxu0 %v991
    %1796 = vmatpush.msra.mxu0 %v987
    %1797 = vmatpush.msra.mxu0 %v983
    %1798 = vmatpush.msra.mxu0 %v979
    %1799 = vmatpush.msra.mxu0 %v975
    %1800 = vmatpush.msra.mxu0 %v971
    %1801 = vmatpush.msra.mxu0 %v967
    %1802 = vmatpush.msra.mxu0 %v963
    %1803 = vmatpush.msra.mxu0 %v959
    %1804 = vmatmul.f32.gmra.mxu0 %v612
    %v1805 = vpop.f32.mrf.mxu0
    %v1806 = vadd.f32 %v1783, %v1805
    %1807 = vmatmul.f32.gmra.mxu0 %v628
    %v1808 = vpop.f32.mrf.mxu0
    %v1809 = vadd.f32 %v1786, %v1808
    %1810 = vdwg.mxu0
    %1811 = vmatpush.msra.mxu0 %v1083
    %1812 = vmatpush.msra.mxu0 %v1079
    %1813 = vmatpush.msra.mxu0 %v1075
    %1814 = vmatpush.msra.mxu0 %v1071
    %1815 = vmatpush.msra.mxu0 %v1067
    %1816 = vmatpush.msra.mxu0 %v1063
    %1817 = vmatpush.msra.mxu0 %v1059
    %1818 = vmatpush.msra.mxu0 %v1055
    %1819 = vmatpush.msra.mxu0 %v1051
    %1820 = vmatpush.msra.mxu0 %v1047
    %1821 = vmatpush.msra.mxu0 %v1043
    %1822 = vmatpush.msra.mxu0 %v1039
    %1823 = vmatpush.msra.mxu0 %v1035
    %1824 = vmatpush.msra.mxu0 %v1031
    %1825 = vmatpush.msra.mxu0 %v1027
    %1826 = vmatpush.msra.mxu0 %v1023
    %1827 = vmatmul.f32.gmra.mxu0 %v613
    %v1828 = vpop.f32.mrf.mxu0
    %v1829 = vadd.f32 %v1806, %v1828
    %1830 = vmatmul.f32.gmra.mxu0 %v629
    %v1831 = vpop.f32.mrf.mxu0
    %v1832 = vadd.f32 %v1809, %v1831
    %1833 = vdwg.mxu0
    %1834 = vmatpush.msra.mxu0 %v1147
    %1835 = vmatpush.msra.mxu0 %v1143
    %1836 = vmatpush.msra.mxu0 %v1139
    %1837 = vmatpush.msra.mxu0 %v1135
    %1838 = vmatpush.msra.mxu0 %v1131
    %1839 = vmatpush.msra.mxu0 %v1127
    %1840 = vmatpush.msra.mxu0 %v1123
    %1841 = vmatpush.msra.mxu0 %v1119
    %1842 = vmatpush.msra.mxu0 %v1115
    %1843 = vmatpush.msra.mxu0 %v1111
    %1844 = vmatpush.msra.mxu0 %v1107
    %1845 = vmatpush.msra.mxu0 %v1103
    %1846 = vmatpush.msra.mxu0 %v1099
    %1847 = vmatpush.msra.mxu0 %v1095
    %1848 = vmatpush.msra.mxu0 %v1091
    %1849 = vmatpush.msra.mxu0 %v1087
    %1850 = vmatmul.f32.gmra.mxu0 %v614
    %v1851 = vpop.f32.mrf.mxu0
    %v1852 = vadd.f32 %v1829, %v1851
    %1853 = vmatmul.f32.gmra.mxu0 %v630
    %v1854 = vpop.f32.mrf.mxu0
    %v1855 = vadd.f32 %v1832, %v1854
    %1856 = vdwg.mxu0
    %1857 = vmatpush.msra.mxu0 %v1211
    %1858 = vmatpush.msra.mxu0 %v1207
    %1859 = vmatpush.msra.mxu0 %v1203
    %1860 = vmatpush.msra.mxu0 %v1199
    %1861 = vmatpush.msra.mxu0 %v1195
    %1862 = vmatpush.msra.mxu0 %v1191
    %1863 = vmatpush.msra.mxu0 %v1187
    %1864 = vmatpush.msra.mxu0 %v1183
    %1865 = vmatpush.msra.mxu0 %v1179
    %1866 = vmatpush.msra.mxu0 %v1175
    %1867 = vmatpush.msra.mxu0 %v1171
    %1868 = vmatpush.msra.mxu0 %v1167
    %1869 = vmatpush.msra.mxu0 %v1163
    %1870 = vmatpush.msra.mxu0 %v1159
    %1871 = vmatpush.msra.mxu0 %v1155
    %1872 = vmatpush.msra.mxu0 %v1151
    %1873 = vmatmul.f32.gmra.mxu0 %v615
    %v1874 = vpop.f32.mrf.mxu0
    %v1875 = vadd.f32 %v1852, %v1874
    %1876 = vmatmul.f32.gmra.mxu0 %v631
    %v1877 = vpop.f32.mrf.mxu0
    %v1878 = vadd.f32 %v1855, %v1877
    %1879 = vdwg.mxu0
    %1880 = vmatpush.msra.mxu0 %v1275
    %1881 = vmatpush.msra.mxu0 %v1271
    %1882 = vmatpush.msra.mxu0 %v1267
    %1883 = vmatpush.msra.mxu0 %v1263
    %1884 = vmatpush.msra.mxu0 %v1259
    %1885 = vmatpush.msra.mxu0 %v1255
    %1886 = vmatpush.msra.mxu0 %v1251
    %1887 = vmatpush.msra.mxu0 %v1247
    %1888 = vmatpush.msra.mxu0 %v1243
    %1889 = vmatpush.msra.mxu0 %v1239
    %1890 = vmatpush.msra.mxu0 %v1235
    %1891 = vmatpush.msra.mxu0 %v1231
    %1892 = vmatpush.msra.mxu0 %v1227
    %1893 = vmatpush.msra.mxu0 %v1223
    %1894 = vmatpush.msra.mxu0 %v1219
    %1895 = vmatpush.msra.mxu0 %v1215
    %1896 = vmatmul.f32.gmra.mxu0 %v616
    %v1897 = vpop.f32.mrf.mxu0
    %v1898 = vadd.f32 %v1875, %v1897
    %1899 = vmatmul.f32.gmra.mxu0 %v632
    %v1900 = vpop.f32.mrf.mxu0
    %v1901 = vadd.f32 %v1878, %v1900
    %1902 = vdwg.mxu0
    %1903 = vmatpush.msra.mxu0 %v1339
    %1904 = vmatpush.msra.mxu0 %v1335
    %1905 = vmatpush.msra.mxu0 %v1331
    %1906 = vmatpush.msra.mxu0 %v1327
    %1907 = vmatpush.msra.mxu0 %v1323
    %1908 = vmatpush.msra.mxu0 %v1319
    %1909 = vmatpush.msra.mxu0 %v1315
    %1910 = vmatpush.msra.mxu0 %v1311
    %1911 = vmatpush.msra.mxu0 %v1307
    %1912 = vmatpush.msra.mxu0 %v1303
    %1913 = vmatpush.msra.mxu0 %v1299
    %1914 = vmatpush.msra.mxu0 %v1295
    %1915 = vmatpush.msra.mxu0 %v1291
    %1916 = vmatpush.msra.mxu0 %v1287
    %1917 = vmatpush.msra.mxu0 %v1283
    %1918 = vmatpush.msra.mxu0 %v1279
    %1919 = vmatmul.f32.gmra.mxu0 %v617
    %v1920 = vpop.f32.mrf.mxu0
    %v1921 = vadd.f32 %v1898, %v1920
    %1922 = vmatmul.f32.gmra.mxu0 %v633
    %v1923 = vpop.f32.mrf.mxu0
    %v1924 = vadd.f32 %v1901, %v1923
    %1925 = vdwg.mxu0
    %1926 = vmatpush.msra.mxu0 %v1403
    %1927 = vmatpush.msra.mxu0 %v1399
    %1928 = vmatpush.msra.mxu0 %v1395
    %1929 = vmatpush.msra.mxu0 %v1391
    %1930 = vmatpush.msra.mxu0 %v1387
    %1931 = vmatpush.msra.mxu0 %v1383
    %1932 = vmatpush.msra.mxu0 %v1379
    %1933 = vmatpush.msra.mxu0 %v1375
    %1934 = vmatpush.msra.mxu0 %v1371
    %1935 = vmatpush.msra.mxu0 %v1367
    %1936 = vmatpush.msra.mxu0 %v1363
    %1937 = vmatpush.msra.mxu0 %v1359
    %1938 = vmatpush.msra.mxu0 %v1355
    %1939 = vmatpush.msra.mxu0 %v1351
    %1940 = vmatpush.msra.mxu0 %v1347
    %1941 = vmatpush.msra.mxu0 %v1343
    %1942 = vmatmul.f32.gmra.mxu0 %v618
    %v1943 = vpop.f32.mrf.mxu0
    %v1944 = vadd.f32 %v1921, %v1943
    %1945 = vmatmul.f32.gmra.mxu0 %v634
    %v1946 = vpop.f32.mrf.mxu0
    %v1947 = vadd.f32 %v1924, %v1946
    %1948 = vdwg.mxu0
    %1949 = vmatpush.msra.mxu0 %v1467
    %1950 = vmatpush.msra.mxu0 %v1463
    %1951 = vmatpush.msra.mxu0 %v1459
    %1952 = vmatpush.msra.mxu0 %v1455
    %1953 = vmatpush.msra.mxu0 %v1451
    %1954 = vmatpush.msra.mxu0 %v1447
    %1955 = vmatpush.msra.mxu0 %v1443
    %1956 = vmatpush.msra.mxu0 %v1439
    %1957 = vmatpush.msra.mxu0 %v1435
    %1958 = vmatpush.msra.mxu0 %v1431
    %1959 = vmatpush.msra.mxu0 %v1427
    %1960 = vmatpush.msra.mxu0 %v1423
    %1961 = vmatpush.msra.mxu0 %v1419
    %1962 = vmatpush.msra.mxu0 %v1415
    %1963 = vmatpush.msra.mxu0 %v1411
    %1964 = vmatpush.msra.mxu0 %v1407
    %1965 = vmatmul.f32.gmra.mxu0 %v619
    %v1966 = vpop.f32.mrf.mxu0
    %v1967 = vadd.f32 %v1944, %v1966
    %1968 = vmatmul.f32.gmra.mxu0 %v635
    %v1969 = vpop.f32.mrf.mxu0
    %v1970 = vadd.f32 %v1947, %v1969
    %1971 = vdwg.mxu0
    %1972 = vmatpush.msra.mxu0 %v1531
    %1973 = vmatpush.msra.mxu0 %v1527
    %1974 = vmatpush.msra.mxu0 %v1523
    %1975 = vmatpush.msra.mxu0 %v1519
    %1976 = vmatpush.msra.mxu0 %v1515
    %1977 = vmatpush.msra.mxu0 %v1511
    %1978 = vmatpush.msra.mxu0 %v1507
    %1979 = vmatpush.msra.mxu0 %v1503
    %1980 = vmatpush.msra.mxu0 %v1499
    %1981 = vmatpush.msra.mxu0 %v1495
    %1982 = vmatpush.msra.mxu0 %v1491
    %1983 = vmatpush.msra.mxu0 %v1487
    %1984 = vmatpush.msra.mxu0 %v1483
    %1985 = vmatpush.msra.mxu0 %v1479
    %1986 = vmatpush.msra.mxu0 %v1475
    %1987 = vmatpush.msra.mxu0 %v1471
    %1988 = vmatmul.f32.gmra.mxu0 %v620
    %v1989 = vpop.f32.mrf.mxu0
    %v1990 = vadd.f32 %v1967, %v1989
    %1991 = vmatmul.f32.gmra.mxu0 %v636
    %v1992 = vpop.f32.mrf.mxu0
    %v1993 = vadd.f32 %v1970, %v1992
    %1994 = vdwg.mxu0
    %1995 = vmatpush.msra.mxu0 %v1595
    %1996 = vmatpush.msra.mxu0 %v1591
    %1997 = vmatpush.msra.mxu0 %v1587
    %1998 = vmatpush.msra.mxu0 %v1583
    %1999 = vmatpush.msra.mxu0 %v1579
    %2000 = vmatpush.msra.mxu0 %v1575
    %2001 = vmatpush.msra.mxu0 %v1571
    %2002 = vmatpush.msra.mxu0 %v1567
    %2003 = vmatpush.msra.mxu0 %v1563
    %2004 = vmatpush.msra.mxu0 %v1559
    %2005 = vmatpush.msra.mxu0 %v1555
    %2006 = vmatpush.msra.mxu0 %v1551
    %2007 = vmatpush.msra.mxu0 %v1547
    %2008 = vmatpush.msra.mxu0 %v1543
    %2009 = vmatpush.msra.mxu0 %v1539
    %2010 = vmatpush.msra.mxu0 %v1535
    %2011 = vmatmul.f32.gmra.mxu0 %v621
    %v2012 = vpop.f32.mrf.mxu0
    %v2013 = vadd.f32 %v1990, %v2012
    %2014 = vmatmul.f32.gmra.mxu0 %v637
    %v2015 = vpop.f32.mrf.mxu0
    %v2016 = vadd.f32 %v1993, %v2015
    %2017 = vdwg.mxu0
    %2018 = vmatpush.msra.mxu0 %v1659
    %2019 = vmatpush.msra.mxu0 %v1655
    %2020 = vmatpush.msra.mxu0 %v1651
    %2021 = vmatpush.msra.mxu0 %v1647
    %2022 = vmatpush.msra.mxu0 %v1643
    %2023 = vmatpush.msra.mxu0 %v1639
    %2024 = vmatpush.msra.mxu0 %v1635
    %2025 = vmatpush.msra.mxu0 %v1631
    %2026 = vmatpush.msra.mxu0 %v1627
    %2027 = vmatpush.msra.mxu0 %v1623
    %2028 = vmatpush.msra.mxu0 %v1619
    %2029 = vmatpush.msra.mxu0 %v1615
    %2030 = vmatpush.msra.mxu0 %v1611
    %2031 = vmatpush.msra.mxu0 %v1607
    %2032 = vmatpush.msra.mxu0 %v1603
    %2033 = vmatpush.msra.mxu0 %v1599
    %2034 = vmatmul.f32.gmra.mxu0 %v622
    %v2035 = vpop.f32.mrf.mxu0
    %v2036 = vadd.f32 %v2013, %v2035
    %2037 = vmatmul.f32.gmra.mxu0 %v638
    %v2038 = vpop.f32.mrf.mxu0
    %v2039 = vadd.f32 %v2016, %v2038
    %2040 = vdwg.mxu0
    %2041 = vmatpush.msra.mxu0 %v700
    %2042 = vmatpush.msra.mxu0 %v696
    %2043 = vmatpush.msra.mxu0 %v692
    %2044 = vmatpush.msra.mxu0 %v688
    %2045 = vmatpush.msra.mxu0 %v684
    %2046 = vmatpush.msra.mxu0 %v680
    %2047 = vmatpush.msra.mxu0 %v676
    %2048 = vmatpush.msra.mxu0 %v672
    %2049 = vmatpush.msra.mxu0 %v668
    %2050 = vmatpush.msra.mxu0 %v664
    %2051 = vmatpush.msra.mxu0 %v660
    %2052 = vmatpush.msra.mxu0 %v656
    %2053 = vmatpush.msra.mxu0 %v652
    %2054 = vmatpush.msra.mxu0 %v648
    %2055 = vmatpush.msra.mxu0 %v644
    %2056 = vmatpush.msra.mxu0 %v640
    %2057 = vmatmul.f32.gmra.mxu0 %v607
    %v2058 = vpop.f32.mrf.mxu0
    %v2059 = vadd.f32 %v1666, %v2058
    %2060 = vmatmul.f32.gmra.mxu0 %v623
    %v2061 = vpop.f32.mrf.mxu0
    %v2062 = vadd.f32 %v1666, %v2061
    %2063 = vdwg.mxu0
    %2064 = vmatpush.msra.mxu0 %v764
    %2065 = vmatpush.msra.mxu0 %v760
    %2066 = vmatpush.msra.mxu0 %v756
    %2067 = vmatpush.msra.mxu0 %v752
    %2068 = vmatpush.msra.mxu0 %v748
    %2069 = vmatpush.msra.mxu0 %v744
    %2070 = vmatpush.msra.mxu0 %v740
    %2071 = vmatpush.msra.mxu0 %v736
    %2072 = vmatpush.msra.mxu0 %v732
    %2073 = vmatpush.msra.mxu0 %v728
    %2074 = vmatpush.msra.mxu0 %v724
    %2075 = vmatpush.msra.mxu0 %v720
    %2076 = vmatpush.msra.mxu0 %v716
    %2077 = vmatpush.msra.mxu0 %v712
    %2078 = vmatpush.msra.mxu0 %v708
    %2079 = vmatpush.msra.mxu0 %v704
    %2080 = vmatmul.f32.gmra.mxu0 %v608
    %v2081 = vpop.f32.mrf.mxu0
    %v2082 = vadd.f32 %v2059, %v2081
    %2083 = vmatmul.f32.gmra.mxu0 %v624
    %v2084 = vpop.f32.mrf.mxu0
    %v2085 = vadd.f32 %v2062, %v2084
    %2086 = vdwg.mxu0
    %2087 = vmatpush.msra.mxu0 %v828
    %2088 = vmatpush.msra.mxu0 %v824
    %2089 = vmatpush.msra.mxu0 %v820
    %2090 = vmatpush.msra.mxu0 %v816
    %2091 = vmatpush.msra.mxu0 %v812
    %2092 = vmatpush.msra.mxu0 %v808
    %2093 = vmatpush.msra.mxu0 %v804
    %2094 = vmatpush.msra.mxu0 %v800
    %2095 = vmatpush.msra.mxu0 %v796
    %2096 = vmatpush.msra.mxu0 %v792
    %2097 = vmatpush.msra.mxu0 %v788
    %2098 = vmatpush.msra.mxu0 %v784
    %2099 = vmatpush.msra.mxu0 %v780
    %2100 = vmatpush.msra.mxu0 %v776
    %2101 = vmatpush.msra.mxu0 %v772
    %2102 = vmatpush.msra.mxu0 %v768
    %2103 = vmatmul.f32.gmra.mxu0 %v609
    %v2104 = vpop.f32.mrf.mxu0
    %v2105 = vadd.f32 %v2082, %v2104
    %2106 = vmatmul.f32.gmra.mxu0 %v625
    %v2107 = vpop.f32.mrf.mxu0
    %v2108 = vadd.f32 %v2085, %v2107
    %2109 = vdwg.mxu0
    %2110 = vmatpush.msra.mxu0 %v892
    %2111 = vmatpush.msra.mxu0 %v888
    %2112 = vmatpush.msra.mxu0 %v884
    %2113 = vmatpush.msra.mxu0 %v880
    %2114 = vmatpush.msra.mxu0 %v876
    %2115 = vmatpush.msra.mxu0 %v872
    %2116 = vmatpush.msra.mxu0 %v868
    %2117 = vmatpush.msra.mxu0 %v864
    %2118 = vmatpush.msra.mxu0 %v860
    %2119 = vmatpush.msra.mxu0 %v856
    %2120 = vmatpush.msra.mxu0 %v852
    %2121 = vmatpush.msra.mxu0 %v848
    %2122 = vmatpush.msra.mxu0 %v844
    %2123 = vmatpush.msra.mxu0 %v840
    %2124 = vmatpush.msra.mxu0 %v836
    %2125 = vmatpush.msra.mxu0 %v832
    %2126 = vmatmul.f32.gmra.mxu0 %v610
    %v2127 = vpop.f32.mrf.mxu0
    %v2128 = vadd.f32 %v2105, %v2127
    %2129 = vmatmul.f32.gmra.mxu0 %v626
    %v2130 = vpop.f32.mrf.mxu0
    %v2131 = vadd.f32 %v2108, %v2130
    %2132 = vdwg.mxu0
    %2133 = vmatpush.msra.mxu0 %v956
    %2134 = vmatpush.msra.mxu0 %v952
    %2135 = vmatpush.msra.mxu0 %v948
    %2136 = vmatpush.msra.mxu0 %v944
    %2137 = vmatpush.msra.mxu0 %v940
    %2138 = vmatpush.msra.mxu0 %v936
    %2139 = vmatpush.msra.mxu0 %v932
    %2140 = vmatpush.msra.mxu0 %v928
    %2141 = vmatpush.msra.mxu0 %v924
    %2142 = vmatpush.msra.mxu0 %v920
    %2143 = vmatpush.msra.mxu0 %v916
    %2144 = vmatpush.msra.mxu0 %v912
    %2145 = vmatpush.msra.mxu0 %v908
    %2146 = vmatpush.msra.mxu0 %v904
    %2147 = vmatpush.msra.mxu0 %v900
    %2148 = vmatpush.msra.mxu0 %v896
    %2149 = vmatmul.f32.gmra.mxu0 %v611
    %v2150 = vpop.f32.mrf.mxu0
    %v2151 = vadd.f32 %v2128, %v2150
    %2152 = vmatmul.f32.gmra.mxu0 %v627
    %v2153 = vpop.f32.mrf.mxu0
    %v2154 = vadd.f32 %v2131, %v2153
    %2155 = vdwg.mxu0
    %2156 = vmatpush.msra.mxu0 %v1020
    %2157 = vmatpush.msra.mxu0 %v1016
    %2158 = vmatpush.msra.mxu0 %v1012
    %2159 = vmatpush.msra.mxu0 %v1008
    %2160 = vmatpush.msra.mxu0 %v1004
    %2161 = vmatpush.msra.mxu0 %v1000
    %2162 = vmatpush.msra.mxu0 %v996
    %2163 = vmatpush.msra.mxu0 %v992
    %2164 = vmatpush.msra.mxu0 %v988
    %2165 = vmatpush.msra.mxu0 %v984
    %2166 = vmatpush.msra.mxu0 %v980
    %2167 = vmatpush.msra.mxu0 %v976
    %2168 = vmatpush.msra.mxu0 %v972
    %2169 = vmatpush.msra.mxu0 %v968
    %2170 = vmatpush.msra.mxu0 %v964
    %2171 = vmatpush.msra.mxu0 %v960
    %2172 = vmatmul.f32.gmra.mxu0 %v612
    %v2173 = vpop.f32.mrf.mxu0
    %v2174 = vadd.f32 %v2151, %v2173
    %2175 = vmatmul.f32.gmra.mxu0 %v628
    %v2176 = vpop.f32.mrf.mxu0
    %v2177 = vadd.f32 %v2154, %v2176
    %2178 = vdwg.mxu0
    %2179 = vmatpush.msra.mxu0 %v1084
    %2180 = vmatpush.msra.mxu0 %v1080
    %2181 = vmatpush.msra.mxu0 %v1076
    %2182 = vmatpush.msra.mxu0 %v1072
    %2183 = vmatpush.msra.mxu0 %v1068
    %2184 = vmatpush.msra.mxu0 %v1064
    %2185 = vmatpush.msra.mxu0 %v1060
    %2186 = vmatpush.msra.mxu0 %v1056
    %2187 = vmatpush.msra.mxu0 %v1052
    %2188 = vmatpush.msra.mxu0 %v1048
    %2189 = vmatpush.msra.mxu0 %v1044
    %2190 = vmatpush.msra.mxu0 %v1040
    %2191 = vmatpush.msra.mxu0 %v1036
    %2192 = vmatpush.msra.mxu0 %v1032
    %2193 = vmatpush.msra.mxu0 %v1028
    %2194 = vmatpush.msra.mxu0 %v1024
    %2195 = vmatmul.f32.gmra.mxu0 %v613
    %v2196 = vpop.f32.mrf.mxu0
    %v2197 = vadd.f32 %v2174, %v2196
    %2198 = vmatmul.f32.gmra.mxu0 %v629
    %v2199 = vpop.f32.mrf.mxu0
    %v2200 = vadd.f32 %v2177, %v2199
    %2201 = vdwg.mxu0
    %2202 = vmatpush.msra.mxu0 %v1148
    %2203 = vmatpush.msra.mxu0 %v1144
    %2204 = vmatpush.msra.mxu0 %v1140
    %2205 = vmatpush.msra.mxu0 %v1136
    %2206 = vmatpush.msra.mxu0 %v1132
    %2207 = vmatpush.msra.mxu0 %v1128
    %2208 = vmatpush.msra.mxu0 %v1124
    %2209 = vmatpush.msra.mxu0 %v1120
    %2210 = vmatpush.msra.mxu0 %v1116
    %2211 = vmatpush.msra.mxu0 %v1112
    %2212 = vmatpush.msra.mxu0 %v1108
    %2213 = vmatpush.msra.mxu0 %v1104
    %2214 = vmatpush.msra.mxu0 %v1100
    %2215 = vmatpush.msra.mxu0 %v1096
    %2216 = vmatpush.msra.mxu0 %v1092
    %2217 = vmatpush.msra.mxu0 %v1088
    %2218 = vmatmul.f32.gmra.mxu0 %v614
    %v2219 = vpop.f32.mrf.mxu0
    %v2220 = vadd.f32 %v2197, %v2219
    %2221 = vmatmul.f32.gmra.mxu0 %v630
    %v2222 = vpop.f32.mrf.mxu0
    %v2223 = vadd.f32 %v2200, %v2222
    %2224 = vdwg.mxu0
    %2225 = vmatpush.msra.mxu0 %v1212
    %2226 = vmatpush.msra.mxu0 %v1208
    %2227 = vmatpush.msra.mxu0 %v1204
    %2228 = vmatpush.msra.mxu0 %v1200
    %2229 = vmatpush.msra.mxu0 %v1196
    %2230 = vmatpush.msra.mxu0 %v1192
    %2231 = vmatpush.msra.mxu0 %v1188
    %2232 = vmatpush.msra.mxu0 %v1184
    %2233 = vmatpush.msra.mxu0 %v1180
    %2234 = vmatpush.msra.mxu0 %v1176
    %2235 = vmatpush.msra.mxu0 %v1172
    %2236 = vmatpush.msra.mxu0 %v1168
    %2237 = vmatpush.msra.mxu0 %v1164
    %2238 = vmatpush.msra.mxu0 %v1160
    %2239 = vmatpush.msra.mxu0 %v1156
    %2240 = vmatpush.msra.mxu0 %v1152
    %2241 = vmatmul.f32.gmra.mxu0 %v615
    %v2242 = vpop.f32.mrf.mxu0
    %v2243 = vadd.f32 %v2220, %v2242
    %2244 = vmatmul.f32.gmra.mxu0 %v631
    %v2245 = vpop.f32.mrf.mxu0
    %v2246 = vadd.f32 %v2223, %v2245
    %2247 = vdwg.mxu0
    %2248 = vmatpush.msra.mxu0 %v1276
    %2249 = vmatpush.msra.mxu0 %v1272
    %2250 = vmatpush.msra.mxu0 %v1268
    %2251 = vmatpush.msra.mxu0 %v1264
    %2252 = vmatpush.msra.mxu0 %v1260
    %2253 = vmatpush.msra.mxu0 %v1256
    %2254 = vmatpush.msra.mxu0 %v1252
    %2255 = vmatpush.msra.mxu0 %v1248
    %2256 = vmatpush.msra.mxu0 %v1244
    %2257 = vmatpush.msra.mxu0 %v1240
    %2258 = vmatpush.msra.mxu0 %v1236
    %2259 = vmatpush.msra.mxu0 %v1232
    %2260 = vmatpush.msra.mxu0 %v1228
    %2261 = vmatpush.msra.mxu0 %v1224
    %2262 = vmatpush.msra.mxu0 %v1220
    %2263 = vmatpush.msra.mxu0 %v1216
    %2264 = vmatmul.f32.gmra.mxu0 %v616
    %v2265 = vpop.f32.mrf.mxu0
    %v2266 = vadd.f32 %v2243, %v2265
    %2267 = vmatmul.f32.gmra.mxu0 %v632
    %v2268 = vpop.f32.mrf.mxu0
    %v2269 = vadd.f32 %v2246, %v2268
    %2270 = vdwg.mxu0
    %2271 = vmatpush.msra.mxu0 %v1340
    %2272 = vmatpush.msra.mxu0 %v1336
    %2273 = vmatpush.msra.mxu0 %v1332
    %2274 = vmatpush.msra.mxu0 %v1328
    %2275 = vmatpush.msra.mxu0 %v1324
    %2276 = vmatpush.msra.mxu0 %v1320
    %2277 = vmatpush.msra.mxu0 %v1316
    %2278 = vmatpush.msra.mxu0 %v1312
    %2279 = vmatpush.msra.mxu0 %v1308
    %2280 = vmatpush.msra.mxu0 %v1304
    %2281 = vmatpush.msra.mxu0 %v1300
    %2282 = vmatpush.msra.mxu0 %v1296
    %2283 = vmatpush.msra.mxu0 %v1292
    %2284 = vmatpush.msra.mxu0 %v1288
    %2285 = vmatpush.msra.mxu0 %v1284
    %2286 = vmatpush.msra.mxu0 %v1280
    %2287 = vmatmul.f32.gmra.mxu0 %v617
    %v2288 = vpop.f32.mrf.mxu0
    %v2289 = vadd.f32 %v2266, %v2288
    %2290 = vmatmul.f32.gmra.mxu0 %v633
    %v2291 = vpop.f32.mrf.mxu0
    %v2292 = vadd.f32 %v2269, %v2291
    %2293 = vdwg.mxu0
    %2294 = vmatpush.msra.mxu0 %v1404
    %2295 = vmatpush.msra.mxu0 %v1400
    %2296 = vmatpush.msra.mxu0 %v1396
    %2297 = vmatpush.msra.mxu0 %v1392
    %2298 = vmatpush.msra.mxu0 %v1388
    %2299 = vmatpush.msra.mxu0 %v1384
    %2300 = vmatpush.msra.mxu0 %v1380
    %2301 = vmatpush.msra.mxu0 %v1376
    %2302 = vmatpush.msra.mxu0 %v1372
    %2303 = vmatpush.msra.mxu0 %v1368
    %2304 = vmatpush.msra.mxu0 %v1364
    %2305 = vmatpush.msra.mxu0 %v1360
    %2306 = vmatpush.msra.mxu0 %v1356
    %2307 = vmatpush.msra.mxu0 %v1352
    %2308 = vmatpush.msra.mxu0 %v1348
    %2309 = vmatpush.msra.mxu0 %v1344
    %2310 = vmatmul.f32.gmra.mxu0 %v618
    %v2311 = vpop.f32.mrf.mxu0
    %v2312 = vadd.f32 %v2289, %v2311
    %2313 = vmatmul.f32.gmra.mxu0 %v634
    %v2314 = vpop.f32.mrf.mxu0
    %v2315 = vadd.f32 %v2292, %v2314
    %2316 = vdwg.mxu0
    %2317 = vmatpush.msra.mxu0 %v1468
    %2318 = vmatpush.msra.mxu0 %v1464
    %2319 = vmatpush.msra.mxu0 %v1460
    %2320 = vmatpush.msra.mxu0 %v1456
    %2321 = vmatpush.msra.mxu0 %v1452
    %2322 = vmatpush.msra.mxu0 %v1448
    %2323 = vmatpush.msra.mxu0 %v1444
    %2324 = vmatpush.msra.mxu0 %v1440
    %2325 = vmatpush.msra.mxu0 %v1436
    %2326 = vmatpush.msra.mxu0 %v1432
    %2327 = vmatpush.msra.mxu0 %v1428
    %2328 = vmatpush.msra.mxu0 %v1424
    %2329 = vmatpush.msra.mxu0 %v1420
    %2330 = vmatpush.msra.mxu0 %v1416
    %2331 = vmatpush.msra.mxu0 %v1412
    %2332 = vmatpush.msra.mxu0 %v1408
    %2333 = vmatmul.f32.gmra.mxu0 %v619
    %v2334 = vpop.f32.mrf.mxu0
    %v2335 = vadd.f32 %v2312, %v2334
    %2336 = vmatmul.f32.gmra.mxu0 %v635
    %v2337 = vpop.f32.mrf.mxu0
    %v2338 = vadd.f32 %v2315, %v2337
    %2339 = vdwg.mxu0
    %2340 = vmatpush.msra.mxu0 %v1532
    %2341 = vmatpush.msra.mxu0 %v1528
    %2342 = vmatpush.msra.mxu0 %v1524
    %2343 = vmatpush.msra.mxu0 %v1520
    %2344 = vmatpush.msra.mxu0 %v1516
    %2345 = vmatpush.msra.mxu0 %v1512
    %2346 = vmatpush.msra.mxu0 %v1508
    %2347 = vmatpush.msra.mxu0 %v1504
    %2348 = vmatpush.msra.mxu0 %v1500
    %2349 = vmatpush.msra.mxu0 %v1496
    %2350 = vmatpush.msra.mxu0 %v1492
    %2351 = vmatpush.msra.mxu0 %v1488
    %2352 = vmatpush.msra.mxu0 %v1484
    %2353 = vmatpush.msra.mxu0 %v1480
    %2354 = vmatpush.msra.mxu0 %v1476
    %2355 = vmatpush.msra.mxu0 %v1472
    %2356 = vmatmul.f32.gmra.mxu0 %v620
    %v2357 = vpop.f32.mrf.mxu0
    %v2358 = vadd.f32 %v2335, %v2357
    %2359 = vmatmul.f32.gmra.mxu0 %v636
    %v2360 = vpop.f32.mrf.mxu0
    %v2361 = vadd.f32 %v2338, %v2360
    %2362 = vdwg.mxu0
    %2363 = vmatpush.msra.mxu0 %v1596
    %2364 = vmatpush.msra.mxu0 %v1592
    %2365 = vmatpush.msra.mxu0 %v1588
    %2366 = vmatpush.msra.mxu0 %v1584
    %2367 = vmatpush.msra.mxu0 %v1580
    %2368 = vmatpush.msra.mxu0 %v1576
    %2369 = vmatpush.msra.mxu0 %v1572
    %2370 = vmatpush.msra.mxu0 %v1568
    %2371 = vmatpush.msra.mxu0 %v1564
    %2372 = vmatpush.msra.mxu0 %v1560
    %2373 = vmatpush.msra.mxu0 %v1556
    %2374 = vmatpush.msra.mxu0 %v1552
    %2375 = vmatpush.msra.mxu0 %v1548
    %2376 = vmatpush.msra.mxu0 %v1544
    %2377 = vmatpush.msra.mxu0 %v1540
    %2378 = vmatpush.msra.mxu0 %v1536
    %2379 = vmatmul.f32.gmra.mxu0 %v621
    %v2380 = vpop.f32.mrf.mxu0
    %v2381 = vadd.f32 %v2358, %v2380
    %2382 = vmatmul.f32.gmra.mxu0 %v637
    %v2383 = vpop.f32.mrf.mxu0
    %v2384 = vadd.f32 %v2361, %v2383
    %2385 = vdwg.mxu0
    %2386 = vmatpush.msra.mxu0 %v1660
    %2387 = vmatpush.msra.mxu0 %v1656
    %2388 = vmatpush.msra.mxu0 %v1652
    %2389 = vmatpush.msra.mxu0 %v1648
    %2390 = vmatpush.msra.mxu0 %v1644
    %2391 = vmatpush.msra.mxu0 %v1640
    %2392 = vmatpush.msra.mxu0 %v1636
    %2393 = vmatpush.msra.mxu0 %v1632
    %2394 = vmatpush.msra.mxu0 %v1628
    %2395 = vmatpush.msra.mxu0 %v1624
    %2396 = vmatpush.msra.mxu0 %v1620
    %2397 = vmatpush.msra.mxu0 %v1616
    %2398 = vmatpush.msra.mxu0 %v1612
    %2399 = vmatpush.msra.mxu0 %v1608
    %2400 = vmatpush.msra.mxu0 %v1604
    %2401 = vmatpush.msra.mxu0 %v1600
    %2402 = vmatmul.f32.gmra.mxu0 %v622
    %v2403 = vpop.f32.mrf.mxu0
    %v2404 = vadd.f32 %v2381, %v2403
    %2405 = vmatmul.f32.gmra.mxu0 %v638
    %v2406 = vpop.f32.mrf.mxu0
    %v2407 = vadd.f32 %v2384, %v2406
    %2408 = vdwg.mxu0
    %2409 = vmatpush.msra.mxu0 %v701
    %2410 = vmatpush.msra.mxu0 %v697
    %2411 = vmatpush.msra.mxu0 %v693
    %2412 = vmatpush.msra.mxu0 %v689
    %2413 = vmatpush.msra.mxu0 %v685
    %2414 = vmatpush.msra.mxu0 %v681
    %2415 = vmatpush.msra.mxu0 %v677
    %2416 = vmatpush.msra.mxu0 %v673
    %2417 = vmatpush.msra.mxu0 %v669
    %2418 = vmatpush.msra.mxu0 %v665
    %2419 = vmatpush.msra.mxu0 %v661
    %2420 = vmatpush.msra.mxu0 %v657
    %2421 = vmatpush.msra.mxu0 %v653
    %2422 = vmatpush.msra.mxu0 %v649
    %2423 = vmatpush.msra.mxu0 %v645
    %2424 = vmatpush.msra.mxu0 %v641
    %2425 = vmatmul.f32.gmra.mxu0 %v607
    %v2426 = vpop.f32.mrf.mxu0
    %v2427 = vadd.f32 %v1667, %v2426
    %2428 = vmatmul.f32.gmra.mxu0 %v623
    %v2429 = vpop.f32.mrf.mxu0
    %v2430 = vadd.f32 %v1667, %v2429
    %2431 = vdwg.mxu0
    %2432 = vmatpush.msra.mxu0 %v765
    %2433 = vmatpush.msra.mxu0 %v761
    %2434 = vmatpush.msra.mxu0 %v757
    %2435 = vmatpush.msra.mxu0 %v753
    %2436 = vmatpush.msra.mxu0 %v749
    %2437 = vmatpush.msra.mxu0 %v745
    %2438 = vmatpush.msra.mxu0 %v741
    %2439 = vmatpush.msra.mxu0 %v737
    %2440 = vmatpush.msra.mxu0 %v733
    %2441 = vmatpush.msra.mxu0 %v729
    %2442 = vmatpush.msra.mxu0 %v725
    %2443 = vmatpush.msra.mxu0 %v721
    %2444 = vmatpush.msra.mxu0 %v717
    %2445 = vmatpush.msra.mxu0 %v713
    %2446 = vmatpush.msra.mxu0 %v709
    %2447 = vmatpush.msra.mxu0 %v705
    %2448 = vmatmul.f32.gmra.mxu0 %v608
    %v2449 = vpop.f32.mrf.mxu0
    %v2450 = vadd.f32 %v2427, %v2449
    %2451 = vmatmul.f32.gmra.mxu0 %v624
    %v2452 = vpop.f32.mrf.mxu0
    %v2453 = vadd.f32 %v2430, %v2452
    %2454 = vdwg.mxu0
    %2455 = vmatpush.msra.mxu0 %v829
    %2456 = vmatpush.msra.mxu0 %v825
    %2457 = vmatpush.msra.mxu0 %v821
    %2458 = vmatpush.msra.mxu0 %v817
    %2459 = vmatpush.msra.mxu0 %v813
    %2460 = vmatpush.msra.mxu0 %v809
    %2461 = vmatpush.msra.mxu0 %v805
    %2462 = vmatpush.msra.mxu0 %v801
    %2463 = vmatpush.msra.mxu0 %v797
    %2464 = vmatpush.msra.mxu0 %v793
    %2465 = vmatpush.msra.mxu0 %v789
    %2466 = vmatpush.msra.mxu0 %v785
    %2467 = vmatpush.msra.mxu0 %v781
    %2468 = vmatpush.msra.mxu0 %v777
    %2469 = vmatpush.msra.mxu0 %v773
    %2470 = vmatpush.msra.mxu0 %v769
    %2471 = vmatmul.f32.gmra.mxu0 %v609
    %v2472 = vpop.f32.mrf.mxu0
    %v2473 = vadd.f32 %v2450, %v2472
    %2474 = vmatmul.f32.gmra.mxu0 %v625
    %v2475 = vpop.f32.mrf.mxu0
    %v2476 = vadd.f32 %v2453, %v2475
    %2477 = vdwg.mxu0
    %2478 = vmatpush.msra.mxu0 %v893
    %2479 = vmatpush.msra.mxu0 %v889
    %2480 = vmatpush.msra.mxu0 %v885
    %2481 = vmatpush.msra.mxu0 %v881
    %2482 = vmatpush.msra.mxu0 %v877
    %2483 = vmatpush.msra.mxu0 %v873
    %2484 = vmatpush.msra.mxu0 %v869
    %2485 = vmatpush.msra.mxu0 %v865
    %2486 = vmatpush.msra.mxu0 %v861
    %2487 = vmatpush.msra.mxu0 %v857
    %2488 = vmatpush.msra.mxu0 %v853
    %2489 = vmatpush.msra.mxu0 %v849
    %2490 = vmatpush.msra.mxu0 %v845
    %2491 = vmatpush.msra.mxu0 %v841
    %2492 = vmatpush.msra.mxu0 %v837
    %2493 = vmatpush.msra.mxu0 %v833
    %2494 = vmatmul.f32.gmra.mxu0 %v610
    %v2495 = vpop.f32.mrf.mxu0
    %v2496 = vadd.f32 %v2473, %v2495
    %2497 = vmatmul.f32.gmra.mxu0 %v626
    %v2498 = vpop.f32.mrf.mxu0
    %v2499 = vadd.f32 %v2476, %v2498
    %2500 = vdwg.mxu0
    %2501 = vmatpush.msra.mxu0 %v957
    %2502 = vmatpush.msra.mxu0 %v953
    %2503 = vmatpush.msra.mxu0 %v949
    %2504 = vmatpush.msra.mxu0 %v945
    %2505 = vmatpush.msra.mxu0 %v941
    %2506 = vmatpush.msra.mxu0 %v937
    %2507 = vmatpush.msra.mxu0 %v933
    %2508 = vmatpush.msra.mxu0 %v929
    %2509 = vmatpush.msra.mxu0 %v925
    %2510 = vmatpush.msra.mxu0 %v921
    %2511 = vmatpush.msra.mxu0 %v917
    %2512 = vmatpush.msra.mxu0 %v913
    %2513 = vmatpush.msra.mxu0 %v909
    %2514 = vmatpush.msra.mxu0 %v905
    %2515 = vmatpush.msra.mxu0 %v901
    %2516 = vmatpush.msra.mxu0 %v897
    %2517 = vmatmul.f32.gmra.mxu0 %v611
    %v2518 = vpop.f32.mrf.mxu0
    %v2519 = vadd.f32 %v2496, %v2518
    %2520 = vmatmul.f32.gmra.mxu0 %v627
    %v2521 = vpop.f32.mrf.mxu0
    %v2522 = vadd.f32 %v2499, %v2521
    %2523 = vdwg.mxu0
    %2524 = vmatpush.msra.mxu0 %v1021
    %2525 = vmatpush.msra.mxu0 %v1017
    %2526 = vmatpush.msra.mxu0 %v1013
    %2527 = vmatpush.msra.mxu0 %v1009
    %2528 = vmatpush.msra.mxu0 %v1005
    %2529 = vmatpush.msra.mxu0 %v1001
    %2530 = vmatpush.msra.mxu0 %v997
    %2531 = vmatpush.msra.mxu0 %v993
    %2532 = vmatpush.msra.mxu0 %v989
    %2533 = vmatpush.msra.mxu0 %v985
    %2534 = vmatpush.msra.mxu0 %v981
    %2535 = vmatpush.msra.mxu0 %v977
    %2536 = vmatpush.msra.mxu0 %v973
    %2537 = vmatpush.msra.mxu0 %v969
    %2538 = vmatpush.msra.mxu0 %v965
    %2539 = vmatpush.msra.mxu0 %v961
    %2540 = vmatmul.f32.gmra.mxu0 %v612
    %v2541 = vpop.f32.mrf.mxu0
    %v2542 = vadd.f32 %v2519, %v2541
    %2543 = vmatmul.f32.gmra.mxu0 %v628
    %v2544 = vpop.f32.mrf.mxu0
    %v2545 = vadd.f32 %v2522, %v2544
    %2546 = vdwg.mxu0
    %2547 = vmatpush.msra.mxu0 %v1085
    %2548 = vmatpush.msra.mxu0 %v1081
    %2549 = vmatpush.msra.mxu0 %v1077
    %2550 = vmatpush.msra.mxu0 %v1073
    %2551 = vmatpush.msra.mxu0 %v1069
    %2552 = vmatpush.msra.mxu0 %v1065
    %2553 = vmatpush.msra.mxu0 %v1061
    %2554 = vmatpush.msra.mxu0 %v1057
    %2555 = vmatpush.msra.mxu0 %v1053
    %2556 = vmatpush.msra.mxu0 %v1049
    %2557 = vmatpush.msra.mxu0 %v1045
    %2558 = vmatpush.msra.mxu0 %v1041
    %2559 = vmatpush.msra.mxu0 %v1037
    %2560 = vmatpush.msra.mxu0 %v1033
    %2561 = vmatpush.msra.mxu0 %v1029
    %2562 = vmatpush.msra.mxu0 %v1025
    %2563 = vmatmul.f32.gmra.mxu0 %v613
    %v2564 = vpop.f32.mrf.mxu0
    %v2565 = vadd.f32 %v2542, %v2564
    %2566 = vmatmul.f32.gmra.mxu0 %v629
    %v2567 = vpop.f32.mrf.mxu0
    %v2568 = vadd.f32 %v2545, %v2567
    %2569 = vdwg.mxu0
    %2570 = vmatpush.msra.mxu0 %v1149
    %2571 = vmatpush.msra.mxu0 %v1145
    %2572 = vmatpush.msra.mxu0 %v1141
    %2573 = vmatpush.msra.mxu0 %v1137
    %2574 = vmatpush.msra.mxu0 %v1133
    %2575 = vmatpush.msra.mxu0 %v1129
    %2576 = vmatpush.msra.mxu0 %v1125
    %2577 = vmatpush.msra.mxu0 %v1121
    %2578 = vmatpush.msra.mxu0 %v1117
    %2579 = vmatpush.msra.mxu0 %v1113
    %2580 = vmatpush.msra.mxu0 %v1109
    %2581 = vmatpush.msra.mxu0 %v1105
    %2582 = vmatpush.msra.mxu0 %v1101
    %2583 = vmatpush.msra.mxu0 %v1097
    %2584 = vmatpush.msra.mxu0 %v1093
    %2585 = vmatpush.msra.mxu0 %v1089
    %2586 = vmatmul.f32.gmra.mxu0 %v614
    %v2587 = vpop.f32.mrf.mxu0
    %v2588 = vadd.f32 %v2565, %v2587
    %2589 = vmatmul.f32.gmra.mxu0 %v630
    %v2590 = vpop.f32.mrf.mxu0
    %v2591 = vadd.f32 %v2568, %v2590
    %2592 = vdwg.mxu0
    %2593 = vmatpush.msra.mxu0 %v1213
    %2594 = vmatpush.msra.mxu0 %v1209
    %2595 = vmatpush.msra.mxu0 %v1205
    %2596 = vmatpush.msra.mxu0 %v1201
    %2597 = vmatpush.msra.mxu0 %v1197
    %2598 = vmatpush.msra.mxu0 %v1193
    %2599 = vmatpush.msra.mxu0 %v1189
    %2600 = vmatpush.msra.mxu0 %v1185
    %2601 = vmatpush.msra.mxu0 %v1181
    %2602 = vmatpush.msra.mxu0 %v1177
    %2603 = vmatpush.msra.mxu0 %v1173
    %2604 = vmatpush.msra.mxu0 %v1169
    %2605 = vmatpush.msra.mxu0 %v1165
    %2606 = vmatpush.msra.mxu0 %v1161
    %2607 = vmatpush.msra.mxu0 %v1157
    %2608 = vmatpush.msra.mxu0 %v1153
    %2609 = vmatmul.f32.gmra.mxu0 %v615
    %v2610 = vpop.f32.mrf.mxu0
    %v2611 = vadd.f32 %v2588, %v2610
    %2612 = vmatmul.f32.gmra.mxu0 %v631
    %v2613 = vpop.f32.mrf.mxu0
    %v2614 = vadd.f32 %v2591, %v2613
    %2615 = vdwg.mxu0
    %2616 = vmatpush.msra.mxu0 %v1277
    %2617 = vmatpush.msra.mxu0 %v1273
    %2618 = vmatpush.msra.mxu0 %v1269
    %2619 = vmatpush.msra.mxu0 %v1265
    %2620 = vmatpush.msra.mxu0 %v1261
    %2621 = vmatpush.msra.mxu0 %v1257
    %2622 = vmatpush.msra.mxu0 %v1253
    %2623 = vmatpush.msra.mxu0 %v1249
    %2624 = vmatpush.msra.mxu0 %v1245
    %2625 = vmatpush.msra.mxu0 %v1241
    %2626 = vmatpush.msra.mxu0 %v1237
    %2627 = vmatpush.msra.mxu0 %v1233
    %2628 = vmatpush.msra.mxu0 %v1229
    %2629 = vmatpush.msra.mxu0 %v1225
    %2630 = vmatpush.msra.mxu0 %v1221
    %2631 = vmatpush.msra.mxu0 %v1217
    %2632 = vmatmul.f32.gmra.mxu0 %v616
    %v2633 = vpop.f32.mrf.mxu0
    %v2634 = vadd.f32 %v2611, %v2633
    %2635 = vmatmul.f32.gmra.mxu0 %v632
    %v2636 = vpop.f32.mrf.mxu0
    %v2637 = vadd.f32 %v2614, %v2636
    %2638 = vdwg.mxu0
    %2639 = vmatpush.msra.mxu0 %v1341
    %2640 = vmatpush.msra.mxu0 %v1337
    %2641 = vmatpush.msra.mxu0 %v1333
    %2642 = vmatpush.msra.mxu0 %v1329
    %2643 = vmatpush.msra.mxu0 %v1325
    %2644 = vmatpush.msra.mxu0 %v1321
    %2645 = vmatpush.msra.mxu0 %v1317
    %2646 = vmatpush.msra.mxu0 %v1313
    %2647 = vmatpush.msra.mxu0 %v1309
    %2648 = vmatpush.msra.mxu0 %v1305
    %2649 = vmatpush.msra.mxu0 %v1301
    %2650 = vmatpush.msra.mxu0 %v1297
    %2651 = vmatpush.msra.mxu0 %v1293
    %2652 = vmatpush.msra.mxu0 %v1289
    %2653 = vmatpush.msra.mxu0 %v1285
    %2654 = vmatpush.msra.mxu0 %v1281
    %2655 = vmatmul.f32.gmra.mxu0 %v617
    %v2656 = vpop.f32.mrf.mxu0
    %v2657 = vadd.f32 %v2634, %v2656
    %2658 = vmatmul.f32.gmra.mxu0 %v633
    %v2659 = vpop.f32.mrf.mxu0
    %v2660 = vadd.f32 %v2637, %v2659
    %2661 = vdwg.mxu0
    %2662 = vmatpush.msra.mxu0 %v1405
    %2663 = vmatpush.msra.mxu0 %v1401
    %2664 = vmatpush.msra.mxu0 %v1397
    %2665 = vmatpush.msra.mxu0 %v1393
    %2666 = vmatpush.msra.mxu0 %v1389
    %2667 = vmatpush.msra.mxu0 %v1385
    %2668 = vmatpush.msra.mxu0 %v1381
    %2669 = vmatpush.msra.mxu0 %v1377
    %2670 = vmatpush.msra.mxu0 %v1373
    %2671 = vmatpush.msra.mxu0 %v1369
    %2672 = vmatpush.msra.mxu0 %v1365
    %2673 = vmatpush.msra.mxu0 %v1361
    %2674 = vmatpush.msra.mxu0 %v1357
    %2675 = vmatpush.msra.mxu0 %v1353
    %2676 = vmatpush.msra.mxu0 %v1349
    %2677 = vmatpush.msra.mxu0 %v1345
    %2678 = vmatmul.f32.gmra.mxu0 %v618
    %v2679 = vpop.f32.mrf.mxu0
    %v2680 = vadd.f32 %v2657, %v2679
    %2681 = vmatmul.f32.gmra.mxu0 %v634
    %v2682 = vpop.f32.mrf.mxu0
    %v2683 = vadd.f32 %v2660, %v2682
    %2684 = vdwg.mxu0
    %2685 = vmatpush.msra.mxu0 %v1469
    %2686 = vmatpush.msra.mxu0 %v1465
    %2687 = vmatpush.msra.mxu0 %v1461
    %2688 = vmatpush.msra.mxu0 %v1457
    %2689 = vmatpush.msra.mxu0 %v1453
    %2690 = vmatpush.msra.mxu0 %v1449
    %2691 = vmatpush.msra.mxu0 %v1445
    %2692 = vmatpush.msra.mxu0 %v1441
    %2693 = vmatpush.msra.mxu0 %v1437
    %2694 = vmatpush.msra.mxu0 %v1433
    %2695 = vmatpush.msra.mxu0 %v1429
    %2696 = vmatpush.msra.mxu0 %v1425
    %2697 = vmatpush.msra.mxu0 %v1421
    %2698 = vmatpush.msra.mxu0 %v1417
    %2699 = vmatpush.msra.mxu0 %v1413
    %2700 = vmatpush.msra.mxu0 %v1409
    %2701 = vmatmul.f32.gmra.mxu0 %v619
    %v2702 = vpop.f32.mrf.mxu0
    %v2703 = vadd.f32 %v2680, %v2702
    %2704 = vmatmul.f32.gmra.mxu0 %v635
    %v2705 = vpop.f32.mrf.mxu0
    %v2706 = vadd.f32 %v2683, %v2705
    %2707 = vdwg.mxu0
    %2708 = vmatpush.msra.mxu0 %v1533
    %2709 = vmatpush.msra.mxu0 %v1529
    %2710 = vmatpush.msra.mxu0 %v1525
    %2711 = vmatpush.msra.mxu0 %v1521
    %2712 = vmatpush.msra.mxu0 %v1517
    %2713 = vmatpush.msra.mxu0 %v1513
    %2714 = vmatpush.msra.mxu0 %v1509
    %2715 = vmatpush.msra.mxu0 %v1505
    %2716 = vmatpush.msra.mxu0 %v1501
    %2717 = vmatpush.msra.mxu0 %v1497
    %2718 = vmatpush.msra.mxu0 %v1493
    %2719 = vmatpush.msra.mxu0 %v1489
    %2720 = vmatpush.msra.mxu0 %v1485
    %2721 = vmatpush.msra.mxu0 %v1481
    %2722 = vmatpush.msra.mxu0 %v1477
    %2723 = vmatpush.msra.mxu0 %v1473
    %2724 = vmatmul.f32.gmra.mxu0 %v620
    %v2725 = vpop.f32.mrf.mxu0
    %v2726 = vadd.f32 %v2703, %v2725
    %2727 = vmatmul.f32.gmra.mxu0 %v636
    %v2728 = vpop.f32.mrf.mxu0
    %v2729 = vadd.f32 %v2706, %v2728
    %2730 = vdwg.mxu0
    %2731 = vmatpush.msra.mxu0 %v1597
    %2732 = vmatpush.msra.mxu0 %v1593
    %2733 = vmatpush.msra.mxu0 %v1589
    %2734 = vmatpush.msra.mxu0 %v1585
    %2735 = vmatpush.msra.mxu0 %v1581
    %2736 = vmatpush.msra.mxu0 %v1577
    %2737 = vmatpush.msra.mxu0 %v1573
    %2738 = vmatpush.msra.mxu0 %v1569
    %2739 = vmatpush.msra.mxu0 %v1565
    %2740 = vmatpush.msra.mxu0 %v1561
    %2741 = vmatpush.msra.mxu0 %v1557
    %2742 = vmatpush.msra.mxu0 %v1553
    %2743 = vmatpush.msra.mxu0 %v1549
    %2744 = vmatpush.msra.mxu0 %v1545
    %2745 = vmatpush.msra.mxu0 %v1541
    %2746 = vmatpush.msra.mxu0 %v1537
    %2747 = vmatmul.f32.gmra.mxu0 %v621
    %v2748 = vpop.f32.mrf.mxu0
    %v2749 = vadd.f32 %v2726, %v2748
    %2750 = vmatmul.f32.gmra.mxu0 %v637
    %v2751 = vpop.f32.mrf.mxu0
    %v2752 = vadd.f32 %v2729, %v2751
    %2753 = vdwg.mxu0
    %2754 = vmatpush.msra.mxu0 %v1661
    %2755 = vmatpush.msra.mxu0 %v1657
    %2756 = vmatpush.msra.mxu0 %v1653
    %2757 = vmatpush.msra.mxu0 %v1649
    %2758 = vmatpush.msra.mxu0 %v1645
    %2759 = vmatpush.msra.mxu0 %v1641
    %2760 = vmatpush.msra.mxu0 %v1637
    %2761 = vmatpush.msra.mxu0 %v1633
    %2762 = vmatpush.msra.mxu0 %v1629
    %2763 = vmatpush.msra.mxu0 %v1625
    %2764 = vmatpush.msra.mxu0 %v1621
    %2765 = vmatpush.msra.mxu0 %v1617
    %2766 = vmatpush.msra.mxu0 %v1613
    %2767 = vmatpush.msra.mxu0 %v1609
    %2768 = vmatpush.msra.mxu0 %v1605
    %2769 = vmatpush.msra.mxu0 %v1601
    %2770 = vmatmul.f32.gmra.mxu0 %v622
    %v2771 = vpop.f32.mrf.mxu0
    %v2772 = vadd.f32 %v2749, %v2771
    %2773 = vmatmul.f32.gmra.mxu0 %v638
    %v2774 = vpop.f32.mrf.mxu0
    %v2775 = vadd.f32 %v2752, %v2774
    %2776 = vdwg.mxu0
    %2777 = vmatpush.msra.mxu0 %v702
    %2778 = vmatpush.msra.mxu0 %v698
    %2779 = vmatpush.msra.mxu0 %v694
    %2780 = vmatpush.msra.mxu0 %v690
    %2781 = vmatpush.msra.mxu0 %v686
    %2782 = vmatpush.msra.mxu0 %v682
    %2783 = vmatpush.msra.mxu0 %v678
    %2784 = vmatpush.msra.mxu0 %v674
    %2785 = vmatpush.msra.mxu0 %v670
    %2786 = vmatpush.msra.mxu0 %v666
    %2787 = vmatpush.msra.mxu0 %v662
    %2788 = vmatpush.msra.mxu0 %v658
    %2789 = vmatpush.msra.mxu0 %v654
    %2790 = vmatpush.msra.mxu0 %v650
    %2791 = vmatpush.msra.mxu0 %v646
    %2792 = vmatpush.msra.mxu0 %v642
    %2793 = vmatmul.f32.gmra.mxu0 %v607
    %v2794 = vpop.f32.mrf.mxu0
    %v2795 = vadd.f32 %v1668, %v2794
    %2796 = vmatmul.f32.gmra.mxu0 %v623
    %v2797 = vpop.f32.mrf.mxu0
    %v2798 = vadd.f32 %v1668, %v2797
    %2799 = vdwg.mxu0
    %2800 = vmatpush.msra.mxu0 %v766
    %2801 = vmatpush.msra.mxu0 %v762
    %2802 = vmatpush.msra.mxu0 %v758
    %2803 = vmatpush.msra.mxu0 %v754
    %2804 = vmatpush.msra.mxu0 %v750
    %2805 = vmatpush.msra.mxu0 %v746
    %2806 = vmatpush.msra.mxu0 %v742
    %2807 = vmatpush.msra.mxu0 %v738
    %2808 = vmatpush.msra.mxu0 %v734
    %2809 = vmatpush.msra.mxu0 %v730
    %2810 = vmatpush.msra.mxu0 %v726
    %2811 = vmatpush.msra.mxu0 %v722
    %2812 = vmatpush.msra.mxu0 %v718
    %2813 = vmatpush.msra.mxu0 %v714
    %2814 = vmatpush.msra.mxu0 %v710
    %2815 = vmatpush.msra.mxu0 %v706
    %2816 = vmatmul.f32.gmra.mxu0 %v608
    %v2817 = vpop.f32.mrf.mxu0
    %v2818 = vadd.f32 %v2795, %v2817
    %2819 = vmatmul.f32.gmra.mxu0 %v624
    %v2820 = vpop.f32.mrf.mxu0
    %v2821 = vadd.f32 %v2798, %v2820
    %2822 = vdwg.mxu0
    %2823 = vmatpush.msra.mxu0 %v830
    %2824 = vmatpush.msra.mxu0 %v826
    %2825 = vmatpush.msra.mxu0 %v822
    %2826 = vmatpush.msra.mxu0 %v818
    %2827 = vmatpush.msra.mxu0 %v814
    %2828 = vmatpush.msra.mxu0 %v810
    %2829 = vmatpush.msra.mxu0 %v806
    %2830 = vmatpush.msra.mxu0 %v802
    %2831 = vmatpush.msra.mxu0 %v798
    %2832 = vmatpush.msra.mxu0 %v794
    %2833 = vmatpush.msra.mxu0 %v790
    %2834 = vmatpush.msra.mxu0 %v786
    %2835 = vmatpush.msra.mxu0 %v782
    %2836 = vmatpush.msra.mxu0 %v778
    %2837 = vmatpush.msra.mxu0 %v774
    %2838 = vmatpush.msra.mxu0 %v770
    %2839 = vmatmul.f32.gmra.mxu0 %v609
    %v2840 = vpop.f32.mrf.mxu0
    %v2841 = vadd.f32 %v2818, %v2840
    %2842 = vmatmul.f32.gmra.mxu0 %v625
    %v2843 = vpop.f32.mrf.mxu0
    %v2844 = vadd.f32 %v2821, %v2843
    %2845 = vdwg.mxu0
    %2846 = vmatpush.msra.mxu0 %v894
    %2847 = vmatpush.msra.mxu0 %v890
    %2848 = vmatpush.msra.mxu0 %v886
    %2849 = vmatpush.msra.mxu0 %v882
    %2850 = vmatpush.msra.mxu0 %v878
    %2851 = vmatpush.msra.mxu0 %v874
    %2852 = vmatpush.msra.mxu0 %v870
    %2853 = vmatpush.msra.mxu0 %v866
    %2854 = vmatpush.msra.mxu0 %v862
    %2855 = vmatpush.msra.mxu0 %v858
    %2856 = vmatpush.msra.mxu0 %v854
    %2857 = vmatpush.msra.mxu0 %v850
    %2858 = vmatpush.msra.mxu0 %v846
    %2859 = vmatpush.msra.mxu0 %v842
    %2860 = vmatpush.msra.mxu0 %v838
    %2861 = vmatpush.msra.mxu0 %v834
    %2862 = vmatmul.f32.gmra.mxu0 %v610
    %v2863 = vpop.f32.mrf.mxu0
    %v2864 = vadd.f32 %v2841, %v2863
    %2865 = vmatmul.f32.gmra.mxu0 %v626
    %v2866 = vpop.f32.mrf.mxu0
    %v2867 = vadd.f32 %v2844, %v2866
    %2868 = vdwg.mxu0
    %2869 = vmatpush.msra.mxu0 %v958
    %2870 = vmatpush.msra.mxu0 %v954
    %2871 = vmatpush.msra.mxu0 %v950
    %2872 = vmatpush.msra.mxu0 %v946
    %2873 = vmatpush.msra.mxu0 %v942
    %2874 = vmatpush.msra.mxu0 %v938
    %2875 = vmatpush.msra.mxu0 %v934
    %2876 = vmatpush.msra.mxu0 %v930
    %2877 = vmatpush.msra.mxu0 %v926
    %2878 = vmatpush.msra.mxu0 %v922
    %2879 = vmatpush.msra.mxu0 %v918
    %2880 = vmatpush.msra.mxu0 %v914
    %2881 = vmatpush.msra.mxu0 %v910
    %2882 = vmatpush.msra.mxu0 %v906
    %2883 = vmatpush.msra.mxu0 %v902
    %2884 = vmatpush.msra.mxu0 %v898
    %2885 = vmatmul.f32.gmra.mxu0 %v611
    %v2886 = vpop.f32.mrf.mxu0
    %v2887 = vadd.f32 %v2864, %v2886
    %2888 = vmatmul.f32.gmra.mxu0 %v627
    %v2889 = vpop.f32.mrf.mxu0
    %v2890 = vadd.f32 %v2867, %v2889
    %2891 = vdwg.mxu0
    %2892 = vmatpush.msra.mxu0 %v1022
    %2893 = vmatpush.msra.mxu0 %v1018
    %2894 = vmatpush.msra.mxu0 %v1014
    %2895 = vmatpush.msra.mxu0 %v1010
    %2896 = vmatpush.msra.mxu0 %v1006
    %2897 = vmatpush.msra.mxu0 %v1002
    %2898 = vmatpush.msra.mxu0 %v998
    %2899 = vmatpush.msra.mxu0 %v994
    %2900 = vmatpush.msra.mxu0 %v990
    %2901 = vmatpush.msra.mxu0 %v986
    %2902 = vmatpush.msra.mxu0 %v982
    %2903 = vmatpush.msra.mxu0 %v978
    %2904 = vmatpush.msra.mxu0 %v974
    %2905 = vmatpush.msra.mxu0 %v970
    %2906 = vmatpush.msra.mxu0 %v966
    %2907 = vmatpush.msra.mxu0 %v962
    %2908 = vmatmul.f32.gmra.mxu0 %v612
    %v2909 = vpop.f32.mrf.mxu0
    %v2910 = vadd.f32 %v2887, %v2909
    %2911 = vmatmul.f32.gmra.mxu0 %v628
    %v2912 = vpop.f32.mrf.mxu0
    %v2913 = vadd.f32 %v2890, %v2912
    %2914 = vdwg.mxu0
    %2915 = vmatpush.msra.mxu0 %v1086
    %2916 = vmatpush.msra.mxu0 %v1082
    %2917 = vmatpush.msra.mxu0 %v1078
    %2918 = vmatpush.msra.mxu0 %v1074
    %2919 = vmatpush.msra.mxu0 %v1070
    %2920 = vmatpush.msra.mxu0 %v1066
    %2921 = vmatpush.msra.mxu0 %v1062
    %2922 = vmatpush.msra.mxu0 %v1058
    %2923 = vmatpush.msra.mxu0 %v1054
    %2924 = vmatpush.msra.mxu0 %v1050
    %2925 = vmatpush.msra.mxu0 %v1046
    %2926 = vmatpush.msra.mxu0 %v1042
    %2927 = vmatpush.msra.mxu0 %v1038
    %2928 = vmatpush.msra.mxu0 %v1034
    %2929 = vmatpush.msra.mxu0 %v1030
    %2930 = vmatpush.msra.mxu0 %v1026
    %2931 = vmatmul.f32.gmra.mxu0 %v613
    %v2932 = vpop.f32.mrf.mxu0
    %v2933 = vadd.f32 %v2910, %v2932
    %2934 = vmatmul.f32.gmra.mxu0 %v629
    %v2935 = vpop.f32.mrf.mxu0
    %v2936 = vadd.f32 %v2913, %v2935
    %2937 = vdwg.mxu0
    %2938 = vmatpush.msra.mxu0 %v1150
    %2939 = vmatpush.msra.mxu0 %v1146
    %2940 = vmatpush.msra.mxu0 %v1142
    %2941 = vmatpush.msra.mxu0 %v1138
    %2942 = vmatpush.msra.mxu0 %v1134
    %2943 = vmatpush.msra.mxu0 %v1130
    %2944 = vmatpush.msra.mxu0 %v1126
    %2945 = vmatpush.msra.mxu0 %v1122
    %2946 = vmatpush.msra.mxu0 %v1118
    %2947 = vmatpush.msra.mxu0 %v1114
    %2948 = vmatpush.msra.mxu0 %v1110
    %2949 = vmatpush.msra.mxu0 %v1106
    %2950 = vmatpush.msra.mxu0 %v1102
    %2951 = vmatpush.msra.mxu0 %v1098
    %2952 = vmatpush.msra.mxu0 %v1094
    %2953 = vmatpush.msra.mxu0 %v1090
    %2954 = vmatmul.f32.gmra.mxu0 %v614
    %v2955 = vpop.f32.mrf.mxu0
    %v2956 = vadd.f32 %v2933, %v2955
    %2957 = vmatmul.f32.gmra.mxu0 %v630
    %v2958 = vpop.f32.mrf.mxu0
    %v2959 = vadd.f32 %v2936, %v2958
    %2960 = vdwg.mxu0
    %2961 = vmatpush.msra.mxu0 %v1214
    %2962 = vmatpush.msra.mxu0 %v1210
    %2963 = vmatpush.msra.mxu0 %v1206
    %2964 = vmatpush.msra.mxu0 %v1202
    %2965 = vmatpush.msra.mxu0 %v1198
    %2966 = vmatpush.msra.mxu0 %v1194
    %2967 = vmatpush.msra.mxu0 %v1190
    %2968 = vmatpush.msra.mxu0 %v1186
    %2969 = vmatpush.msra.mxu0 %v1182
    %2970 = vmatpush.msra.mxu0 %v1178
    %2971 = vmatpush.msra.mxu0 %v1174
    %2972 = vmatpush.msra.mxu0 %v1170
    %2973 = vmatpush.msra.mxu0 %v1166
    %2974 = vmatpush.msra.mxu0 %v1162
    %2975 = vmatpush.msra.mxu0 %v1158
    %2976 = vmatpush.msra.mxu0 %v1154
    %2977 = vmatmul.f32.gmra.mxu0 %v615
    %v2978 = vpop.f32.mrf.mxu0
    %v2979 = vadd.f32 %v2956, %v2978
    %2980 = vmatmul.f32.gmra.mxu0 %v631
    %v2981 = vpop.f32.mrf.mxu0
    %v2982 = vadd.f32 %v2959, %v2981
    %2983 = vdwg.mxu0
    %2984 = vmatpush.msra.mxu0 %v1278
    %2985 = vmatpush.msra.mxu0 %v1274
    %2986 = vmatpush.msra.mxu0 %v1270
    %2987 = vmatpush.msra.mxu0 %v1266
    %2988 = vmatpush.msra.mxu0 %v1262
    %2989 = vmatpush.msra.mxu0 %v1258
    %2990 = vmatpush.msra.mxu0 %v1254
    %2991 = vmatpush.msra.mxu0 %v1250
    %2992 = vmatpush.msra.mxu0 %v1246
    %2993 = vmatpush.msra.mxu0 %v1242
    %2994 = vmatpush.msra.mxu0 %v1238
    %2995 = vmatpush.msra.mxu0 %v1234
    %2996 = vmatpush.msra.mxu0 %v1230
    %2997 = vmatpush.msra.mxu0 %v1226
    %2998 = vmatpush.msra.mxu0 %v1222
    %2999 = vmatpush.msra.mxu0 %v1218
    %3000 = vmatmul.f32.gmra.mxu0 %v616
    %v3001 = vpop.f32.mrf.mxu0
    %v3002 = vadd.f32 %v2979, %v3001
    %3003 = vmatmul.f32.gmra.mxu0 %v632
    %v3004 = vpop.f32.mrf.mxu0
    %v3005 = vadd.f32 %v2982, %v3004
    %3006 = vdwg.mxu0
    %3007 = vmatpush.msra.mxu0 %v1342
    %3008 = vmatpush.msra.mxu0 %v1338
    %3009 = vmatpush.msra.mxu0 %v1334
    %3010 = vmatpush.msra.mxu0 %v1330
    %3011 = vmatpush.msra.mxu0 %v1326
    %3012 = vmatpush.msra.mxu0 %v1322
    %3013 = vmatpush.msra.mxu0 %v1318
    %3014 = vmatpush.msra.mxu0 %v1314
    %3015 = vmatpush.msra.mxu0 %v1310
    %3016 = vmatpush.msra.mxu0 %v1306
    %3017 = vmatpush.msra.mxu0 %v1302
    %3018 = vmatpush.msra.mxu0 %v1298
    %3019 = vmatpush.msra.mxu0 %v1294
    %3020 = vmatpush.msra.mxu0 %v1290
    %3021 = vmatpush.msra.mxu0 %v1286
    %3022 = vmatpush.msra.mxu0 %v1282
    %3023 = vmatmul.f32.gmra.mxu0 %v617
    %v3024 = vpop.f32.mrf.mxu0
    %v3025 = vadd.f32 %v3002, %v3024
    %3026 = vmatmul.f32.gmra.mxu0 %v633
    %v3027 = vpop.f32.mrf.mxu0
    %v3028 = vadd.f32 %v3005, %v3027
    %3029 = vdwg.mxu0
    %3030 = vmatpush.msra.mxu0 %v1406
    %3031 = vmatpush.msra.mxu0 %v1402
    %3032 = vmatpush.msra.mxu0 %v1398
    %3033 = vmatpush.msra.mxu0 %v1394
    %3034 = vmatpush.msra.mxu0 %v1390
    %3035 = vmatpush.msra.mxu0 %v1386
    %3036 = vmatpush.msra.mxu0 %v1382
    %3037 = vmatpush.msra.mxu0 %v1378
    %3038 = vmatpush.msra.mxu0 %v1374
    %3039 = vmatpush.msra.mxu0 %v1370
    %3040 = vmatpush.msra.mxu0 %v1366
    %3041 = vmatpush.msra.mxu0 %v1362
    %3042 = vmatpush.msra.mxu0 %v1358
    %3043 = vmatpush.msra.mxu0 %v1354
    %3044 = vmatpush.msra.mxu0 %v1350
    %3045 = vmatpush.msra.mxu0 %v1346
    %3046 = vmatmul.f32.gmra.mxu0 %v618
    %v3047 = vpop.f32.mrf.mxu0
    %v3048 = vadd.f32 %v3025, %v3047
    %3049 = vmatmul.f32.gmra.mxu0 %v634
    %v3050 = vpop.f32.mrf.mxu0
    %v3051 = vadd.f32 %v3028, %v3050
    %3052 = vdwg.mxu0
    %3053 = vmatpush.msra.mxu0 %v1470
    %3054 = vmatpush.msra.mxu0 %v1466
    %3055 = vmatpush.msra.mxu0 %v1462
    %3056 = vmatpush.msra.mxu0 %v1458
    %3057 = vmatpush.msra.mxu0 %v1454
    %3058 = vmatpush.msra.mxu0 %v1450
    %3059 = vmatpush.msra.mxu0 %v1446
    %3060 = vmatpush.msra.mxu0 %v1442
    %3061 = vmatpush.msra.mxu0 %v1438
    %3062 = vmatpush.msra.mxu0 %v1434
    %3063 = vmatpush.msra.mxu0 %v1430
    %3064 = vmatpush.msra.mxu0 %v1426
    %3065 = vmatpush.msra.mxu0 %v1422
    %3066 = vmatpush.msra.mxu0 %v1418
    %3067 = vmatpush.msra.mxu0 %v1414
    %3068 = vmatpush.msra.mxu0 %v1410
    %3069 = vmatmul.f32.gmra.mxu0 %v619
    %v3070 = vpop.f32.mrf.mxu0
    %v3071 = vadd.f32 %v3048, %v3070
    %3072 = vmatmul.f32.gmra.mxu0 %v635
    %v3073 = vpop.f32.mrf.mxu0
    %v3074 = vadd.f32 %v3051, %v3073
    %3075 = vdwg.mxu0
    %3076 = vmatpush.msra.mxu0 %v1534
    %3077 = vmatpush.msra.mxu0 %v1530
    %3078 = vmatpush.msra.mxu0 %v1526
    %3079 = vmatpush.msra.mxu0 %v1522
    %3080 = vmatpush.msra.mxu0 %v1518
    %3081 = vmatpush.msra.mxu0 %v1514
    %3082 = vmatpush.msra.mxu0 %v1510
    %3083 = vmatpush.msra.mxu0 %v1506
    %3084 = vmatpush.msra.mxu0 %v1502
    %3085 = vmatpush.msra.mxu0 %v1498
    %3086 = vmatpush.msra.mxu0 %v1494
    %3087 = vmatpush.msra.mxu0 %v1490
    %3088 = vmatpush.msra.mxu0 %v1486
    %3089 = vmatpush.msra.mxu0 %v1482
    %3090 = vmatpush.msra.mxu0 %v1478
    %3091 = vmatpush.msra.mxu0 %v1474
    %3092 = vmatmul.f32.gmra.mxu0 %v620
    %v3093 = vpop.f32.mrf.mxu0
    %v3094 = vadd.f32 %v3071, %v3093
    %3095 = vmatmul.f32.gmra.mxu0 %v636
    %v3096 = vpop.f32.mrf.mxu0
    %v3097 = vadd.f32 %v3074, %v3096
    %3098 = vdwg.mxu0
    %3099 = vmatpush.msra.mxu0 %v1598
    %3100 = vmatpush.msra.mxu0 %v1594
    %3101 = vmatpush.msra.mxu0 %v1590
    %3102 = vmatpush.msra.mxu0 %v1586
    %3103 = vmatpush.msra.mxu0 %v1582
    %3104 = vmatpush.msra.mxu0 %v1578
    %3105 = vmatpush.msra.mxu0 %v1574
    %3106 = vmatpush.msra.mxu0 %v1570
    %3107 = vmatpush.msra.mxu0 %v1566
    %3108 = vmatpush.msra.mxu0 %v1562
    %3109 = vmatpush.msra.mxu0 %v1558
    %3110 = vmatpush.msra.mxu0 %v1554
    %3111 = vmatpush.msra.mxu0 %v1550
    %3112 = vmatpush.msra.mxu0 %v1546
    %3113 = vmatpush.msra.mxu0 %v1542
    %3114 = vmatpush.msra.mxu0 %v1538
    %3115 = vmatmul.f32.gmra.mxu0 %v621
    %v3116 = vpop.f32.mrf.mxu0
    %v3117 = vadd.f32 %v3094, %v3116
    %3118 = vmatmul.f32.gmra.mxu0 %v637
    %v3119 = vpop.f32.mrf.mxu0
    %v3120 = vadd.f32 %v3097, %v3119
    %3121 = vdwg.mxu0
    %3122 = vmatpush.msra.mxu0 %v1662
    %3123 = vmatpush.msra.mxu0 %v1658
    %3124 = vmatpush.msra.mxu0 %v1654
    %3125 = vmatpush.msra.mxu0 %v1650
    %3126 = vmatpush.msra.mxu0 %v1646
    %3127 = vmatpush.msra.mxu0 %v1642
    %3128 = vmatpush.msra.mxu0 %v1638
    %3129 = vmatpush.msra.mxu0 %v1634
    %3130 = vmatpush.msra.mxu0 %v1630
    %3131 = vmatpush.msra.mxu0 %v1626
    %3132 = vmatpush.msra.mxu0 %v1622
    %3133 = vmatpush.msra.mxu0 %v1618
    %3134 = vmatpush.msra.mxu0 %v1614
    %3135 = vmatpush.msra.mxu0 %v1610
    %3136 = vmatpush.msra.mxu0 %v1606
    %3137 = vmatpush.msra.mxu0 %v1602
    %3138 = vmatmul.f32.gmra.mxu0 %v622
    %v3139 = vpop.f32.mrf.mxu0
    %v3140 = vadd.f32 %v3117, %v3139
    %3141 = vmatmul.f32.gmra.mxu0 %v638
    %v3142 = vpop.f32.mrf.mxu0
    %v3143 = vadd.f32 %v3120, %v3142
    %3144 = vdwg.mxu0
    %v3145 = vmax.f32 %v2036, 0.0
    %v3146 = vmax.f32 %v2404, 0.0
    %v3147 = vmax.f32 %v2772, 0.0
    %v3148 = vmax.f32 %v3140, 0.0
    %v3149 = vmax.f32 %v2039, 0.0
    %v3150 = vmax.f32 %v2407, 0.0
    %v3151 = vmax.f32 %v2775, 0.0
    %v3152 = vmax.f32 %v3143, 0.0
    %v3153 = vld [vmem:[#allocation11] sm:$0xff]
    %v3154 = vld [vmem:[#allocation11 + $0x8] sm:$0xff]
    %v3155 = vld [vmem:[#allocation11 + $0x10] sm:$0xff]
    %v3156 = vld [vmem:[#allocation11 + $0x18] sm:$0xff]
    %v3157 = vld [vmem:[#allocation11 + $0x20] sm:$0xff]
    %v3158 = vld [vmem:[#allocation11 + $0x28] sm:$0xff]
    %v3159 = vld [vmem:[#allocation11 + $0x30] sm:$0xff]
    %v3160 = vld [vmem:[#allocation11 + $0x38] sm:$0xff]
    %v3161 = vld [vmem:[#allocation11 + $0x40] sm:$0xff]
    %v3162 = vld [vmem:[#allocation11 + $0x48] sm:$0xff]
    %v3163 = vld [vmem:[#allocation11 + $0x50] sm:$0xff]
    %v3164 = vld [vmem:[#allocation11 + $0x58] sm:$0xff]
    %v3165 = vld [vmem:[#allocation11 + $0x60] sm:$0xff]
    %v3166 = vld [vmem:[#allocation11 + $0x68] sm:$0xff]
    %v3167 = vld [vmem:[#allocation11 + $0x70] sm:$0xff]
    %v3168 = vld [vmem:[#allocation11 + $0x78] sm:$0xff]
    %v3169 = vld [vmem:[#allocation11 + $0x80] sm:$0xff]
    %v3170 = vld [vmem:[#allocation11 + $0x88] sm:$0xff]
    %v3171 = vld [vmem:[#allocation11 + $0x90] sm:$0xff]
    %v3172 = vld [vmem:[#allocation11 + $0x98] sm:$0xff]
    %v3173 = vld [vmem:[#allocation11 + $0xa0] sm:$0xff]
    %v3174 = vld [vmem:[#allocation11 + $0xa8] sm:$0xff]
    %v3175 = vld [vmem:[#allocation11 + $0xb0] sm:$0xff]
    %v3176 = vld [vmem:[#allocation11 + $0xb8] sm:$0xff]
    %v3177 = vld [vmem:[#allocation11 + $0xc0] sm:$0xff]
    %v3178 = vld [vmem:[#allocation11 + $0xc8] sm:$0xff]
    %v3179 = vld [vmem:[#allocation11 + $0xd0] sm:$0xff]
    %v3180 = vld [vmem:[#allocation11 + $0xd8] sm:$0xff]
    %v3181 = vld [vmem:[#allocation11 + $0xe0] sm:$0xff]
    %v3182 = vld [vmem:[#allocation11 + $0xe8] sm:$0xff]
    %v3183 = vld [vmem:[#allocation11 + $0xf0] sm:$0xff]
    %v3184 = vld [vmem:[#allocation11 + $0xf8] sm:$0xff]
    %v3185 = vld [vmem:[#allocation11 + $0x100] sm:$0xff]
    %v3186 = vld [vmem:[#allocation11 + $0x108] sm:$0xff]
    %v3187 = vld [vmem:[#allocation11 + $0x110] sm:$0xff]
    %v3188 = vld [vmem:[#allocation11 + $0x118] sm:$0xff]
    %v3189 = vld [vmem:[#allocation11 + $0x120] sm:$0xff]
    %v3190 = vld [vmem:[#allocation11 + $0x128] sm:$0xff]
    %v3191 = vld [vmem:[#allocation11 + $0x130] sm:$0xff]
    %v3192 = vld [vmem:[#allocation11 + $0x138] sm:$0xff]
    %v3193 = vld [vmem:[#allocation11 + $0x140] sm:$0xff]
    %v3194 = vld [vmem:[#allocation11 + $0x148] sm:$0xff]
    %v3195 = vld [vmem:[#allocation11 + $0x150] sm:$0xff]
    %v3196 = vld [vmem:[#allocation11 + $0x158] sm:$0xff]
    %v3197 = vld [vmem:[#allocation11 + $0x160] sm:$0xff]
    %v3198 = vld [vmem:[#allocation11 + $0x168] sm:$0xff]
    %v3199 = vld [vmem:[#allocation11 + $0x170] sm:$0xff]
    %v3200 = vld [vmem:[#allocation11 + $0x178] sm:$0xff]
    %v3201 = vld [vmem:[#allocation11 + $0x180] sm:$0xff]
    %v3202 = vld [vmem:[#allocation11 + $0x188] sm:$0xff]
    %v3203 = vld [vmem:[#allocation11 + $0x190] sm:$0xff]
    %v3204 = vld [vmem:[#allocation11 + $0x198] sm:$0xff]
    %v3205 = vld [vmem:[#allocation11 + $0x1a0] sm:$0xff]
    %v3206 = vld [vmem:[#allocation11 + $0x1a8] sm:$0xff]
    %v3207 = vld [vmem:[#allocation11 + $0x1b0] sm:$0xff]
    %v3208 = vld [vmem:[#allocation11 + $0x1b8] sm:$0xff]
    %v3209 = vld [vmem:[#allocation11 + $0x1c0] sm:$0xff]
    %v3210 = vld [vmem:[#allocation11 + $0x1c8] sm:$0xff]
    %v3211 = vld [vmem:[#allocation11 + $0x1d0] sm:$0xff]
    %v3212 = vld [vmem:[#allocation11 + $0x1d8] sm:$0xff]
    %v3213 = vld [vmem:[#allocation11 + $0x1e0] sm:$0xff]
    %v3214 = vld [vmem:[#allocation11 + $0x1e8] sm:$0xff]
    %v3215 = vld [vmem:[#allocation11 + $0x1f0] sm:$0xff]
    %v3216 = vld [vmem:[#allocation11 + $0x1f8] sm:$0xff]
    %v3217 = vld [vmem:[#allocation11 + $0x200] sm:$0xff]
    %v3218 = vld [vmem:[#allocation11 + $0x208] sm:$0xff]
    %v3219 = vld [vmem:[#allocation11 + $0x210] sm:$0xff]
    %v3220 = vld [vmem:[#allocation11 + $0x218] sm:$0xff]
    %v3221 = vld [vmem:[#allocation11 + $0x220] sm:$0xff]
    %v3222 = vld [vmem:[#allocation11 + $0x228] sm:$0xff]
    %v3223 = vld [vmem:[#allocation11 + $0x230] sm:$0xff]
    %v3224 = vld [vmem:[#allocation11 + $0x238] sm:$0xff]
    %v3225 = vld [vmem:[#allocation11 + $0x240] sm:$0xff]
    %v3226 = vld [vmem:[#allocation11 + $0x248] sm:$0xff]
    %v3227 = vld [vmem:[#allocation11 + $0x250] sm:$0xff]
    %v3228 = vld [vmem:[#allocation11 + $0x258] sm:$0xff]
    %v3229 = vld [vmem:[#allocation11 + $0x260] sm:$0xff]
    %v3230 = vld [vmem:[#allocation11 + $0x268] sm:$0xff]
    %v3231 = vld [vmem:[#allocation11 + $0x270] sm:$0xff]
    %v3232 = vld [vmem:[#allocation11 + $0x278] sm:$0xff]
    %v3233 = vld [vmem:[#allocation11 + $0x280] sm:$0xff]
    %v3234 = vld [vmem:[#allocation11 + $0x288] sm:$0xff]
    %v3235 = vld [vmem:[#allocation11 + $0x290] sm:$0xff]
    %v3236 = vld [vmem:[#allocation11 + $0x298] sm:$0xff]
    %v3237 = vld [vmem:[#allocation11 + $0x2a0] sm:$0xff]
    %v3238 = vld [vmem:[#allocation11 + $0x2a8] sm:$0xff]
    %v3239 = vld [vmem:[#allocation11 + $0x2b0] sm:$0xff]
    %v3240 = vld [vmem:[#allocation11 + $0x2b8] sm:$0xff]
    %v3241 = vld [vmem:[#allocation11 + $0x2c0] sm:$0xff]
    %v3242 = vld [vmem:[#allocation11 + $0x2c8] sm:$0xff]
    %v3243 = vld [vmem:[#allocation11 + $0x2d0] sm:$0xff]
    %v3244 = vld [vmem:[#allocation11 + $0x2d8] sm:$0xff]
    %v3245 = vld [vmem:[#allocation11 + $0x2e0] sm:$0xff]
    %v3246 = vld [vmem:[#allocation11 + $0x2e8] sm:$0xff]
    %v3247 = vld [vmem:[#allocation11 + $0x2f0] sm:$0xff]
    %v3248 = vld [vmem:[#allocation11 + $0x2f8] sm:$0xff]
    %v3249 = vld [vmem:[#allocation11 + $0x300] sm:$0xff]
    %v3250 = vld [vmem:[#allocation11 + $0x308] sm:$0xff]
    %v3251 = vld [vmem:[#allocation11 + $0x310] sm:$0xff]
    %v3252 = vld [vmem:[#allocation11 + $0x318] sm:$0xff]
    %v3253 = vld [vmem:[#allocation11 + $0x320] sm:$0xff]
    %v3254 = vld [vmem:[#allocation11 + $0x328] sm:$0xff]
    %v3255 = vld [vmem:[#allocation11 + $0x330] sm:$0xff]
    %v3256 = vld [vmem:[#allocation11 + $0x338] sm:$0xff]
    %v3257 = vld [vmem:[#allocation11 + $0x340] sm:$0xff]
    %v3258 = vld [vmem:[#allocation11 + $0x348] sm:$0xff]
    %v3259 = vld [vmem:[#allocation11 + $0x350] sm:$0xff]
    %v3260 = vld [vmem:[#allocation11 + $0x358] sm:$0xff]
    %v3261 = vld [vmem:[#allocation11 + $0x360] sm:$0xff]
    %v3262 = vld [vmem:[#allocation11 + $0x368] sm:$0xff]
    %v3263 = vld [vmem:[#allocation11 + $0x370] sm:$0xff]
    %v3264 = vld [vmem:[#allocation11 + $0x378] sm:$0xff]
    %v3265 = vld [vmem:[#allocation11 + $0x380] sm:$0xff]
    %v3266 = vld [vmem:[#allocation11 + $0x388] sm:$0xff]
    %v3267 = vld [vmem:[#allocation11 + $0x390] sm:$0xff]
    %v3268 = vld [vmem:[#allocation11 + $0x398] sm:$0xff]
    %v3269 = vld [vmem:[#allocation11 + $0x3a0] sm:$0xff]
    %v3270 = vld [vmem:[#allocation11 + $0x3a8] sm:$0xff]
    %v3271 = vld [vmem:[#allocation11 + $0x3b0] sm:$0xff]
    %v3272 = vld [vmem:[#allocation11 + $0x3b8] sm:$0xff]
    %v3273 = vld [vmem:[#allocation11 + $0x3c0] sm:$0xff]
    %v3274 = vld [vmem:[#allocation11 + $0x3c8] sm:$0xff]
    %v3275 = vld [vmem:[#allocation11 + $0x3d0] sm:$0xff]
    %v3276 = vld [vmem:[#allocation11 + $0x3d8] sm:$0xff]
    %v3277 = vld [vmem:[#allocation11 + $0x3e0] sm:$0xff]
    %v3278 = vld [vmem:[#allocation11 + $0x3e8] sm:$0xff]
    %v3279 = vld [vmem:[#allocation11 + $0x3f0] sm:$0xff]
    %v3280 = vld [vmem:[#allocation11 + $0x3f8] sm:$0xff]
    %v3281 = vld [vmem:[#allocation13] sm:$0x3]
    %v3283 = vperm.slane %v3281, 0
    %v3284 = vperm.slane %v3281, 1
    %3287 = vmatpush.msra.mxu0 %v3183
    %3288 = vmatpush.msra.mxu0 %v3181
    %3289 = vmatpush.msra.mxu0 %v3179
    %3290 = vmatpush.msra.mxu0 %v3177
    %3291 = vmatpush.msra.mxu0 %v3175
    %3292 = vmatpush.msra.mxu0 %v3173
    %3293 = vmatpush.msra.mxu0 %v3171
    %3294 = vmatpush.msra.mxu0 %v3169
    %3295 = vmatpush.msra.mxu0 %v3167
    %3296 = vmatpush.msra.mxu0 %v3165
    %3297 = vmatpush.msra.mxu0 %v3163
    %3298 = vmatpush.msra.mxu0 %v3161
    %3299 = vmatpush.msra.mxu0 %v3159
    %3300 = vmatpush.msra.mxu0 %v3157
    %3301 = vmatpush.msra.mxu0 %v3155
    %3302 = vmatpush.msra.mxu0 %v3153
    %3303 = vmatmul.f32.gmra.mxu0 %v3145
    %v3304 = vpop.f32.mrf.mxu0
    %v3305 = vadd.f32 %v3283, %v3304
    %3306 = vmatmul.f32.gmra.mxu0 %v3149
    %v3307 = vpop.f32.mrf.mxu0
    %v3308 = vadd.f32 %v3283, %v3307
    %3309 = vdwg.mxu0
    %3310 = vmatpush.msra.mxu0 %v3215
    %3311 = vmatpush.msra.mxu0 %v3213
    %3312 = vmatpush.msra.mxu0 %v3211
    %3313 = vmatpush.msra.mxu0 %v3209
    %3314 = vmatpush.msra.mxu0 %v3207
    %3315 = vmatpush.msra.mxu0 %v3205
    %3316 = vmatpush.msra.mxu0 %v3203
    %3317 = vmatpush.msra.mxu0 %v3201
    %3318 = vmatpush.msra.mxu0 %v3199
    %3319 = vmatpush.msra.mxu0 %v3197
    %3320 = vmatpush.msra.mxu0 %v3195
    %3321 = vmatpush.msra.mxu0 %v3193
    %3322 = vmatpush.msra.mxu0 %v3191
    %3323 = vmatpush.msra.mxu0 %v3189
    %3324 = vmatpush.msra.mxu0 %v3187
    %3325 = vmatpush.msra.mxu0 %v3185
    %3326 = vmatmul.f32.gmra.mxu0 %v3146
    %v3327 = vpop.f32.mrf.mxu0
    %v3328 = vadd.f32 %v3305, %v3327
    %3329 = vmatmul.f32.gmra.mxu0 %v3150
    %v3330 = vpop.f32.mrf.mxu0
    %v3331 = vadd.f32 %v3308, %v3330
    %3332 = vdwg.mxu0
    %3333 = vmatpush.msra.mxu0 %v3247
    %3334 = vmatpush.msra.mxu0 %v3245
    %3335 = vmatpush.msra.mxu0 %v3243
    %3336 = vmatpush.msra.mxu0 %v3241
    %3337 = vmatpush.msra.mxu0 %v3239
    %3338 = vmatpush.msra.mxu0 %v3237
    %3339 = vmatpush.msra.mxu0 %v3235
    %3340 = vmatpush.msra.mxu0 %v3233
    %3341 = vmatpush.msra.mxu0 %v3231
    %3342 = vmatpush.msra.mxu0 %v3229
    %3343 = vmatpush.msra.mxu0 %v3227
    %3344 = vmatpush.msra.mxu0 %v3225
    %3345 = vmatpush.msra.mxu0 %v3223
    %3346 = vmatpush.msra.mxu0 %v3221
    %3347 = vmatpush.msra.mxu0 %v3219
    %3348 = vmatpush.msra.mxu0 %v3217
    %3349 = vmatmul.f32.gmra.mxu0 %v3147
    %v3350 = vpop.f32.mrf.mxu0
    %v3351 = vadd.f32 %v3328, %v3350
    %3352 = vmatmul.f32.gmra.mxu0 %v3151
    %v3353 = vpop.f32.mrf.mxu0
    %v3354 = vadd.f32 %v3331, %v3353
    %3355 = vdwg.mxu0
    %3356 = vmatpush.msra.mxu0 %v3279
    %3357 = vmatpush.msra.mxu0 %v3277
    %3358 = vmatpush.msra.mxu0 %v3275
    %3359 = vmatpush.msra.mxu0 %v3273
    %3360 = vmatpush.msra.mxu0 %v3271
    %3361 = vmatpush.msra.mxu0 %v3269
    %3362 = vmatpush.msra.mxu0 %v3267
    %3363 = vmatpush.msra.mxu0 %v3265
    %3364 = vmatpush.msra.mxu0 %v3263
    %3365 = vmatpush.msra.mxu0 %v3261
    %3366 = vmatpush.msra.mxu0 %v3259
    %3367 = vmatpush.msra.mxu0 %v3257
    %3368 = vmatpush.msra.mxu0 %v3255
    %3369 = vmatpush.msra.mxu0 %v3253
    %3370 = vmatpush.msra.mxu0 %v3251
    %3371 = vmatpush.msra.mxu0 %v3249
    %3372 = vmatmul.f32.gmra.mxu0 %v3148
    %v3373 = vpop.f32.mrf.mxu0
    %v3374 = vadd.f32 %v3351, %v3373
    %3375 = vmatmul.f32.gmra.mxu0 %v3152
    %v3376 = vpop.f32.mrf.mxu0
    %v3377 = vadd.f32 %v3354, %v3376
    %3378 = vdwg.mxu0
    %3379 = vmatpush.msra.mxu0 %v3184
    %3380 = vmatpush.msra.mxu0 %v3182
    %3381 = vmatpush.msra.mxu0 %v3180
    %3382 = vmatpush.msra.mxu0 %v3178
    %3383 = vmatpush.msra.mxu0 %v3176
    %3384 = vmatpush.msra.mxu0 %v3174
    %3385 = vmatpush.msra.mxu0 %v3172
    %3386 = vmatpush.msra.mxu0 %v3170
    %3387 = vmatpush.msra.mxu0 %v3168
    %3388 = vmatpush.msra.mxu0 %v3166
    %3389 = vmatpush.msra.mxu0 %v3164
    %3390 = vmatpush.msra.mxu0 %v3162
    %3391 = vmatpush.msra.mxu0 %v3160
    %3392 = vmatpush.msra.mxu0 %v3158
    %3393 = vmatpush.msra.mxu0 %v3156
    %3394 = vmatpush.msra.mxu0 %v3154
    %3395 = vmatmul.f32.gmra.mxu0 %v3145
    %v3396 = vpop.f32.mrf.mxu0
    %v3397 = vadd.f32 %v3284, %v3396
    %3398 = vmatmul.f32.gmra.mxu0 %v3149
    %v3399 = vpop.f32.mrf.mxu0
    %v3400 = vadd.f32 %v3284, %v3399
    %3401 = vdwg.mxu0
    %3402 = vmatpush.msra.mxu0 %v3216
    %3403 = vmatpush.msra.mxu0 %v3214
    %3404 = vmatpush.msra.mxu0 %v3212
    %3405 = vmatpush.msra.mxu0 %v3210
    %3406 = vmatpush.msra.mxu0 %v3208
    %3407 = vmatpush.msra.mxu0 %v3206
    %3408 = vmatpush.msra.mxu0 %v3204
    %3409 = vmatpush.msra.mxu0 %v3202
    %3410 = vmatpush.msra.mxu0 %v3200
    %3411 = vmatpush.msra.mxu0 %v3198
    %3412 = vmatpush.msra.mxu0 %v3196
    %3413 = vmatpush.msra.mxu0 %v3194
    %3414 = vmatpush.msra.mxu0 %v3192
    %3415 = vmatpush.msra.mxu0 %v3190
    %3416 = vmatpush.msra.mxu0 %v3188
    %3417 = vmatpush.msra.mxu0 %v3186
    %3418 = vmatmul.f32.gmra.mxu0 %v3146
    %v3419 = vpop.f32.mrf.mxu0
    %v3420 = vadd.f32 %v3397, %v3419
    %3421 = vmatmul.f32.gmra.mxu0 %v3150
    %v3422 = vpop.f32.mrf.mxu0
    %v3423 = vadd.f32 %v3400, %v3422
    %3424 = vdwg.mxu0
    %3425 = vmatpush.msra.mxu0 %v3248
    %3426 = vmatpush.msra.mxu0 %v3246
    %3427 = vmatpush.msra.mxu0 %v3244
    %3428 = vmatpush.msra.mxu0 %v3242
    %3429 = vmatpush.msra.mxu0 %v3240
    %3430 = vmatpush.msra.mxu0 %v3238
    %3431 = vmatpush.msra.mxu0 %v3236
    %3432 = vmatpush.msra.mxu0 %v3234
    %3433 = vmatpush.msra.mxu0 %v3232
    %3434 = vmatpush.msra.mxu0 %v3230
    %3435 = vmatpush.msra.mxu0 %v3228
    %3436 = vmatpush.msra.mxu0 %v3226
    %3437 = vmatpush.msra.mxu0 %v3224
    %3438 = vmatpush.msra.mxu0 %v3222
    %3439 = vmatpush.msra.mxu0 %v3220
    %3440 = vmatpush.msra.mxu0 %v3218
    %3441 = vmatmul.f32.gmra.mxu0 %v3147
    %v3442 = vpop.f32.mrf.mxu0
    %v3443 = vadd.f32 %v3420, %v3442
    %3444 = vmatmul.f32.gmra.mxu0 %v3151
    %v3445 = vpop.f32.mrf.mxu0
    %v3446 = vadd.f32 %v3423, %v3445
    %3447 = vdwg.mxu0
    %3448 = vmatpush.msra.mxu0 %v3280
    %3449 = vmatpush.msra.mxu0 %v3278
    %3450 = vmatpush.msra.mxu0 %v3276
    %3451 = vmatpush.msra.mxu0 %v3274
    %3452 = vmatpush.msra.mxu0 %v3272
    %3453 = vmatpush.msra.mxu0 %v3270
    %3454 = vmatpush.msra.mxu0 %v3268
    %3455 = vmatpush.msra.mxu0 %v3266
    %3456 = vmatpush.msra.mxu0 %v3264
    %3457 = vmatpush.msra.mxu0 %v3262
    %3458 = vmatpush.msra.mxu0 %v3260
    %3459 = vmatpush.msra.mxu0 %v3258
    %3460 = vmatpush.msra.mxu0 %v3256
    %3461 = vmatpush.msra.mxu0 %v3254
    %3462 = vmatpush.msra.mxu0 %v3252
    %3463 = vmatpush.msra.mxu0 %v3250
    %3464 = vmatmul.f32.gmra.mxu0 %v3148
    %v3465 = vpop.f32.mrf.mxu0
    %v3466 = vadd.f32 %v3443, %v3465
    %3467 = vmatmul.f32.gmra.mxu0 %v3152
    %v3468 = vpop.f32.mrf.mxu0
    %v3469 = vadd.f32 %v3446, %v3468
    %3470 = vdwg.mxu0
    %v3471 = vmax.f32 %v3374, 0.0
    %v3472 = vmax.f32 %v3466, 0.0
    %v3473 = vmax.f32 %v3377, 0.0
    %v3474 = vmax.f32 %v3469, 0.0
    %3475 = vst [vmem:[#allocation14] sm:$0xff] %v3471
    %3476 = vst [vmem:[#allocation14 + $0x8] sm:$0xff] %v3472
    %3477 = vst [vmem:[#allocation14 + $0x10] sm:$0xff] %v3473
    %3478 = vst [vmem:[#allocation14 + $0x18] sm:$0xff] %v3474
    // Predicated region
    $region58: #{tpu_custom_call.1} parent=1 // pred_check
      _
    $region59: #{tpu_custom_call.1} parent=1 // pred_check_branch
      %3480 = sbr.rel (0) target = $region61
    $region60: #{tpu_custom_call.1} parent=1 // pred_region
      %3482 = vsyncadd [#allocation4], 0
      %s3483 = sshll.u32 [#allocation14], 4
      %s3484 = int_to_ptr.vmem [resolvable:$true] %s3483
      %s3485 = sshll.u32 %s7, 4
      %s3486 = int_to_ptr.hbm [resolvable:$true] %s3485
      %3491 = dma.vmem_to_hbm [thread:$0]  %s3484, 512, %s3486, [#allocation4], 256, 256, 16
    $region61: #{tpu_custom_call.1} parent=1 // pred_fallthru
      _
    // Predicated region
    $region62: #{tpu_custom_call.1} parent=1 // pred_check
      _
    $region63: #{tpu_custom_call.1} parent=1 // pred_check_branch
      %3493 = sbr.rel (0) target = $region65
    $region64: #{tpu_custom_call.1} parent=1 // pred_region
      %3495 = dma.done [#allocation4], 512
    $region65: #{tpu_custom_call.1} parent=1 // pred_fallthru
      _
    %3496 = vsyncpa [#allocation3], 1
    %3497 = vsyncpa [#allocation6], 1
    %3498 = vsyncpa [#allocation9], 1
    %3499 = vsyncpa [#allocation12], 1
    %3500 = vsyncpa [#allocation4], 1

</llo_original>
